<compile_context>
chip_gen: v7x
topology: tpu7x:2x2x1
jax: 0.10.0
libtpu: 0.0.40
codegen_flags: <defaults>
</compile_context>

<pallas_src>
import functools

import jax
import jax.numpy as jnp
import numpy as np
from jax.experimental import pallas as pl
from jax.experimental.pallas import tpu as pltpu

NUM_FEATURES = 960  # fixed by the module: 960 * 1 * 1


def _round_up(x, m):
    return ((x + m - 1) // m) * m


def _pad_cols(n):
    return max(128, _round_up(n, 128))


def _vmem_capacity_bytes():
    try:
        return int(pltpu.get_tpu_info().vmem_capacity_bytes)
    except Exception:
        return 64 << 20  # conservative fallback: v7x per-TensorCore VMEM


def _heads_kernel(ncp, x_ref, w_ref, b_ref, out_ref):
    # x_ref  : (tb, C*HW)  lane-dense backbone features, native dtype
    # w_ref  : (C*HW, NP)  fused + padded + pool-folded head weights
    # b_ref  : (1, NP)     fused biases; padded columns hold -1e30
    # out_ref: (tb, NP)    [log_softmax(cat) | log_softmax(fab)] (padded cols)
    logits = jnp.dot(x_ref[...], w_ref[...],
                     preferred_element_type=jnp.float32) + b_ref[...]

    def log_softmax(z):
        m = jnp.max(z, axis=-1, keepdims=True)
        z = z - m
        return z - jnp.log(jnp.sum(jnp.exp(z), axis=-1, keepdims=True))

    out_ref[:, :ncp] = log_softmax(logits[:, :ncp])   # category head
    out_ref[:, ncp:] = log_softmax(logits[:, ncp:])   # fabric head


def build_fused_heads(w_cat, b_cat, w_fab, b_fab, H, W, *,
                      slab_dtype=jnp.float32):
    """Builds the fused, pool-folded head parameters ONCE (cache the result).

    w_*: PyTorch-convention (out, in) Linear weights; b_*: (out,).
    Returns (w_exp, bias):
      w_exp : (960*H*W, ncp+nfp) with w_exp[c*HW+hw, n] = w[n, c] / (H*W)
      bias  : (1, ncp+nfp) f32, padded columns = -1e30.
    Pass slab_dtype=jnp.bfloat16 for bf16 backbones (padded cols stay exact 0;
    bias stays f32).
    """
    n_cat, C = w_cat.shape
    n_fab = w_fab.shape[0]
    assert C == NUM_FEATURES and w_fab.shape[1] == C
    HW = H * W
    ncp, nfp = _pad_cols(n_cat), _pad_cols(n_fab)
    NP = ncp + nfp
    inv_hw = 1.0 / float(HW)

    # (C, n) -> (C*HW, n): rows [c*HW, (c+1)*HW) all equal w.T[c] / HW, which
    # matches the contiguous NCHW -> (B, C*HW) reshape of the feature map,
    # so the average pool is absorbed into the MXU contraction.
    wc = jnp.repeat(w_cat.T.astype(jnp.float32) * inv_hw, HW, axis=0)
    wf = jnp.repeat(w_fab.T.astype(jnp.float32) * inv_hw, HW, axis=0)
    w_exp = jnp.zeros((C * HW, NP), jnp.float32)
    w_exp = w_exp.at[:, :n_cat].set(wc)
    w_exp = w_exp.at[:, ncp:ncp + n_fab].set(wf)

    bias = jnp.full((1, NP), -1e30, jnp.float32)
    bias = bias.at[0, :n_cat].set(b_cat.astype(jnp.float32))
    bias = bias.at[0, ncp:ncp + n_fab].set(b_fab.astype(jnp.float32))
    return w_exp.astype(slab_dtype), bias


def multitask_forward(feat_nchw, w_exp, bias, n_cat, n_fab):
    """feat_nchw: (B, 960, H, W) backbone feature map (H=W=1 for the literal
    module, since mobilenet's own avgpool stays inside `self.features`; larger
    H,W also supported — the pool is fused into the matmul).
    w_exp / bias: from build_fused_heads (built once, reused every call).
    Returns (log_probs_category (B, n_cat), log_probs_fabric (B, n_fab))."""
    B, C, H, W = feat_nchw.shape
    assert C == NUM_FEATURES
    CK = C * H * W
    ncp, nfp = _pad_cols(n_cat), _pad_cols(n_fab)
    NP = ncp + nfp
    assert w_exp.shape == (CK, NP) and bias.shape == (1, NP)

    # Free contiguous reshape: lane-dense features; avg-pool folded into matmul.
    x = feat_nchw.reshape(B, CK)

    # ---- tile sizing from PADDED tile footprints + real VMEM capacity -------
    x_item = jnp.dtype(x.dtype).itemsize
    w_item = jnp.dtype(w_exp.dtype).itemsize
    sub = max(8, 32 // x_item)                     # sublane pack of x dtype
    ck_pad = _round_up(CK, 128)                    # lane padding of feature rows
    vmem_cap = _vmem_capacity_bytes()
    # Leave compiler-scratch headroom; ~56 MiB on v7x, 100 MiB on v5e/v6e.
    usable = min(vmem_cap - (8 << 20), 100 << 20)
    fixed = 2 * ck_pad * NP * w_item + 2 * 8 * NP * 4      # slab + bias (2 bufs)
    per_row = 2 * ck_pad * x_item + 2 * NP * 4             # feat + out row (2 bufs)

    if B <= sub:
        tb = B                                     # full-dim block is always legal
    else:
        tb = int(min(B, 256, max(sub, (usable - fixed) // per_row)))
        if B >= 16:                                # grid >= 2 -> use both v7x TCs
            tb = min(tb, _round_up(pl.cdiv(B, 2), sub))
        tb = max(sub, (tb // sub) * sub)           # sublane-aligned batch tile
    grid = (pl.cdiv(B, tb),)

    need = fixed + _round_up(tb, sub) * per_row
    vmem_limit = int(min(max(need + (8 << 20), 32 << 20), vmem_cap))

    out = pl.pallas_call(
        functools.partial(_heads_kernel, ncp),
        out_shape=jax.ShapeDtypeStruct((B, NP), jnp.float32),
        grid=grid,
        in_specs=[
            pl.BlockSpec((tb, CK), lambda i: (i, 0)),   # features, tiled over B
            pl.BlockSpec((CK, NP), lambda i: (0, 0)),   # fused weights (grid-invariant)
            pl.BlockSpec((1, NP), lambda i: (0, 0)),    # fused bias (grid-invariant)
        ],
        out_specs=pl.BlockSpec((tb, NP), lambda i: (i, 0)),
        compiler_params=pltpu.CompilerParams(
            dimension_semantics=("parallel",),  # batch tiles shard over v7x's 2 TCs
            vmem_limit_bytes=vmem_limit),
    )(x, w_exp, bias)

    return out[:, :n_cat], out[:, ncp:ncp + n_fab]


def _reference(feat_nchw, w_cat, b_cat, w_fab, b_fab):
    pooled = jnp.mean(feat_nchw.astype(jnp.float32), axis=(2, 3))  # (B, C)

    def head(w, bias):
        logits = pooled @ w.T.astype(jnp.float32) + bias.astype(jnp.float32)
        return jax.nn.log_softmax(logits, axis=1)

    return head(w_cat, b_cat), head(w_fab, b_fab)


if __name__ == "__main__":
    key = jax.random.PRNGKey(0)
    B, H, W = 2, 4, 4
    num_category_classes, num_fabric_classes = 10, 7

    k1, k2, k3, k4, k5 = jax.random.split(key, 5)
    feat = jax.random.normal(k1, (B, NUM_FEATURES, H, W), jnp.float32)
    # Deterministic Linear params (PyTorch convention: weight (out, in)).
    w_cat = 0.02 * jax.random.normal(
        k2, (num_category_classes, NUM_FEATURES), jnp.float32)
    b_cat = 0.01 * jax.random.normal(k3, (num_category_classes,), jnp.float32)
    w_fab = 0.02 * jax.random.normal(
        k4, (num_fabric_classes, NUM_FEATURES), jnp.float32)
    b_fab = 0.01 * jax.random.normal(k5, (num_fabric_classes,), jnp.float32)

    # Fused, pool-folded head slab built ONCE (not per forward call).
    w_exp, bias = build_fused_heads(w_cat, b_cat, w_fab, b_fab, H, W)
    w_exp, bias = jax.block_until_ready((w_exp, bias))

    fwd = jax.jit(multitask_forward, static_argnums=(3, 4))
    out_cat, out_fab = fwd(feat, w_exp, bias,
                           num_category_classes, num_fabric_classes)
    jax.block_until_ready((out_cat, out_fab))

    ref_cat, ref_fab = _reference(feat, w_cat, b_cat, w_fab, b_fab)
    np.testing.assert_allclose(np.asarray(out_cat), np.asarray(ref_cat),
                               rtol=1e-5, atol=1e-5)
    np.testing.assert_allclose(np.asarray(out_fab), np.asarray(ref_fab),
                               rtol=1e-5, atol=1e-5)
    print("KERNEL_OK")
</pallas_src>

<mosaic_0001>
module attributes {stable_mosaic.version = 11 : i64} {
  func.func @_heads_kernel(%arg0: i32, %arg1: memref<2x15360xf32, #tpu.memory_space<vmem>>, %arg2: memref<15360x256xf32, #tpu.memory_space<vmem>>, %arg3: memref<1x256xf32, #tpu.memory_space<vmem>>, %arg4: memref<2x256xf32, #tpu.memory_space<vmem>>) attributes {dimension_semantics = [#tpu.dimension_semantics<parallel>], iteration_bounds = array<i64: 1>, scalar_prefetch = 0 : i64, scratch_operands = 0 : i64, tpu.core_type = #tpu.core_type<tc>, window_params = [{transform_indices = @transform_0, window_bounds = array<i64: 2, 15360>}, {pipeline_mode = #tpu.pipeline_mode<synchronous>, transform_indices = @transform_1, window_bounds = array<i64: 15360, 256>}, {pipeline_mode = #tpu.pipeline_mode<synchronous>, transform_indices = @transform_2, window_bounds = array<i64: 1, 256>}, {transform_indices = @transform_3, window_bounds = array<i64: 2, 256>}]} {
    %c0 = arith.constant 0 : index
    %c0_0 = arith.constant 0 : index
    %0 = vector.load %arg1[%c0, %c0_0] : memref<2x15360xf32, #tpu.memory_space<vmem>>, vector<2x15360xf32>
    %c0_1 = arith.constant 0 : index
    %c0_2 = arith.constant 0 : index
    %1 = vector.load %arg2[%c0_1, %c0_2] : memref<15360x256xf32, #tpu.memory_space<vmem>>, vector<15360x256xf32>
    %cst = arith.constant dense<0.000000e+00> : vector<2x256xf32>
    %2 = tpu.matmul %0, %1, %cst {dimension_numbers = #tpu.dot_dimension_numbers<[1], [0], [0], [1], [0, 0, 1, 1], [], []>} : vector<2x15360xf32>, vector<15360x256xf32>, vector<2x256xf32> -> vector<2x256xf32>
    %c0_3 = arith.constant 0 : index
    %c0_4 = arith.constant 0 : index
    %3 = vector.load %arg3[%c0_3, %c0_4] : memref<1x256xf32, #tpu.memory_space<vmem>>, vector<1x256xf32>
    %4 = vector.broadcast %3 : vector<1x256xf32> to vector<2x256xf32>
    %5 = arith.addf %2, %4 : vector<2x256xf32>
    %6 = vector.extract_strided_slice %5 {offsets = [0, 0], sizes = [2, 128], strides = [1, 1]} : vector<2x256xf32> to vector<2x128xf32>
    %cst_5 = arith.constant dense<0xFF800000> : vector<2xf32>
    %7 = vector.multi_reduction <maximumf>, %6, %cst_5 [1] : vector<2x128xf32> to vector<2xf32>
    %8 = vector.shape_cast %7 : vector<2xf32> to vector<2x1xf32>
    %9 = vector.broadcast %8 : vector<2x1xf32> to vector<2x128xf32>
    %10 = arith.subf %6, %9 : vector<2x128xf32>
    %11 = math.exp %10 : vector<2x128xf32>
    %cst_6 = arith.constant dense<0.000000e+00> : vector<2xf32>
    %12 = vector.multi_reduction <add>, %11, %cst_6 [1] : vector<2x128xf32> to vector<2xf32>
    %13 = vector.shape_cast %12 : vector<2xf32> to vector<2x1xf32>
    %14 = math.log %13 : vector<2x1xf32>
    %15 = vector.broadcast %14 : vector<2x1xf32> to vector<2x128xf32>
    %16 = arith.subf %10, %15 : vector<2x128xf32>
    %c0_7 = arith.constant 0 : index
    %c0_8 = arith.constant 0 : index
    %17 = vector.load %arg4[%c0_7, %c0_8] : memref<2x256xf32, #tpu.memory_space<vmem>>, vector<2x128xf32>
    tpu.vector_store %arg4[%c0_7, %c0_8], %16 {strides = array<i32>} : memref<2x256xf32, #tpu.memory_space<vmem>>, vector<2x128xf32>,
    %18 = vector.extract_strided_slice %5 {offsets = [0, 128], sizes = [2, 128], strides = [1, 1]} : vector<2x256xf32> to vector<2x128xf32>
    %cst_9 = arith.constant dense<0xFF800000> : vector<2xf32>
    %19 = vector.multi_reduction <maximumf>, %18, %cst_9 [1] : vector<2x128xf32> to vector<2xf32>
    %20 = vector.shape_cast %19 : vector<2xf32> to vector<2x1xf32>
    %21 = vector.broadcast %20 : vector<2x1xf32> to vector<2x128xf32>
    %22 = arith.subf %18, %21 : vector<2x128xf32>
    %23 = math.exp %22 : vector<2x128xf32>
    %cst_10 = arith.constant dense<0.000000e+00> : vector<2xf32>
    %24 = vector.multi_reduction <add>, %23, %cst_10 [1] : vector<2x128xf32> to vector<2xf32>
    %25 = vector.shape_cast %24 : vector<2xf32> to vector<2x1xf32>
    %26 = math.log %25 : vector<2x1xf32>
    %27 = vector.broadcast %26 : vector<2x1xf32> to vector<2x128xf32>
    %28 = arith.subf %22, %27 : vector<2x128xf32>
    %c0_11 = arith.constant 0 : index
    %c128 = arith.constant 128 : index
    %29 = vector.load %arg4[%c0_11, %c128] : memref<2x256xf32, #tpu.memory_space<vmem>>, vector<2x128xf32>
    tpu.vector_store %arg4[%c0_11, %c128], %28 {strides = array<i32>} : memref<2x256xf32, #tpu.memory_space<vmem>>, vector<2x128xf32>,
    return
  }
  func.func @transform_0(%arg0: i32) -> (i32, i32) {
    %c0_i32 = arith.constant 0 : i32
    %c0_i32_0 = arith.constant 0 : i32
    return %arg0, %c0_i32 : i32, i32
  }
  func.func @transform_1(%arg0: i32) -> (i32, i32) {
    %c0_i32 = arith.constant 0 : i32
    %c0_i32_0 = arith.constant 0 : i32
    %c0_i32_1 = arith.constant 0 : i32
    return %c0_i32, %c0_i32_0 : i32, i32
  }
  func.func @transform_2(%arg0: i32) -> (i32, i32) {
    %c0_i32 = arith.constant 0 : i32
    %c0_i32_0 = arith.constant 0 : i32
    %c0_i32_1 = arith.constant 0 : i32
    return %c0_i32, %c0_i32_0 : i32, i32
  }
  func.func @transform_3(%arg0: i32) -> (i32, i32) {
    %c0_i32 = arith.constant 0 : i32
    %c0_i32_0 = arith.constant 0 : i32
    return %arg0, %c0_i32 : i32, i32
  }
}

</mosaic_0001>

<llo_original>
// kernel: multitask_forward.1
$region0: #{multitask_forward.1}
  #allocation0 [shape = 'u32[]', space=smem, size = 0x4, offset = 0x4, fixed_abs, tag = 'smem constant byte address 0x4 - core index']
  #allocation1 [shape = 'u32[144,128]{1,0:T(1,128)}', space=vmem, size = 0x12000, scoped, tag = 'internal scratch']
  %s0 = inlined_call_operand.vmem [shape: f32[2,15360], index: 0, kind: input, shape index: {}]
  %s1 = inlined_call_operand.hbm [shape: f32[15360,256], index: 1, kind: input, shape index: {}]
  %s2 = inlined_call_operand.hbm [shape: f32[1,256], index: 2, kind: input, shape index: {}]
  %s3 = inlined_call_operand.vmem [shape: f32[2,256], index: 3, kind: output, shape index: {}]
  %s4 = sld [smem:[#allocation0]]
  $region30: #{multitask_forward.1} parent=0
    _
  %s6 = ssub.s32 1, %s4
  %s7 = scalar_select 0, %s6, %s4
  $region1: #{multitask_forward.1} parent=0
    #allocation2 [shape = 'u8[15728640]{0}', space=vmem, size = 0xf00000, scoped, tag = 'input window, operand 1, single buffered']
    #allocation3 [shape = 's32[1]{0}', space=sflag, size = 0x4, scoped, tag = 'scoped memory for multitask_forward.1']
    #allocation4 [shape = 'u8[1024]{0}', space=vmem, size = 0x400, scoped, tag = 'input window, operand 2, single buffered']
    #allocation5 [shape = 's32[1]{0}', space=sflag, size = 0x4, scoped, tag = 'scoped memory for multitask_forward.1']
    %8 = vsyncpa [#allocation3], 0
    %9 = vsyncpa [#allocation5], 0
    // Predicated region
    $region2: #{multitask_forward.1} parent=1 // pred_check
      _
    $region3: #{multitask_forward.1} parent=1 // pred_check_branch
      %11 = sbr.rel (0) target = $region5
    $region4: #{multitask_forward.1} parent=1 // pred_region
      _
    $region5: #{multitask_forward.1} parent=1 // pred_fallthru
      _
    // Predicated region
    $region6: #{multitask_forward.1} parent=1 // pred_check
      _
    $region7: #{multitask_forward.1} parent=1 // pred_check_branch
      %13 = sbr.rel (0) target = $region9
    $region8: #{multitask_forward.1} parent=1 // pred_region
      %s15 = ssub.s32 491520, 491520
      %16 = vsyncadd [#allocation3], %s15
      %s17 = sshll.u32 [#allocation2], 4
      %s18 = int_to_ptr.vmem [resolvable:$true] %s17
      %23 = dma.hbm_to_vmem [thread:$0]  %s1, 491520, %s18, [#allocation3], 256, 256, 16
    $region9: #{multitask_forward.1} parent=1 // pred_fallthru
      _
    // Predicated region
    $region10: #{multitask_forward.1} parent=1 // pred_check
      _
    $region11: #{multitask_forward.1} parent=1 // pred_check_branch
      %25 = sbr.rel (0) target = $region13
    $region12: #{multitask_forward.1} parent=1 // pred_region
      %s27 = ssub.s32 32, 32
      %28 = vsyncadd [#allocation5], %s27
      %s30 = sshll.u32 [#allocation4], 4
      %s31 = int_to_ptr.vmem [resolvable:$true] %s30
      %33 = dma.hbm_to_vmem [thread:$0]  %s2, 32, %s31, [#allocation5]
    $region13: #{multitask_forward.1} parent=1 // pred_fallthru
      _
    // Predicated region
    $region14: #{multitask_forward.1} parent=1 // pred_check
      _
    $region15: #{multitask_forward.1} parent=1 // pred_check_branch
      %35 = sbr.rel (0) target = $region17
    $region16: #{multitask_forward.1} parent=1 // pred_region
      %36 = dma.done [#allocation3], 491520
    $region17: #{multitask_forward.1} parent=1 // pred_fallthru
      _
    // Predicated region
    $region18: #{multitask_forward.1} parent=1 // pred_check
      _
    $region19: #{multitask_forward.1} parent=1 // pred_check_branch
      %38 = sbr.rel (0) target = $region21
    $region20: #{multitask_forward.1} parent=1 // pred_region
      %39 = dma.done [#allocation5], 32
    $region21: #{multitask_forward.1} parent=1 // pred_fallthru
      _
    %v40 = vld [vmem:[%s0] sm:$0xff]
    %v41 = vld [vmem:[%s0 + $0x8] sm:$0xff]
    %v42 = vld [vmem:[%s0 + $0x10] sm:$0xff]
    %v43 = vld [vmem:[%s0 + $0x18] sm:$0xff]
    %v44 = vld [vmem:[%s0 + $0x20] sm:$0xff]
    %v45 = vld [vmem:[%s0 + $0x28] sm:$0xff]
    %v46 = vld [vmem:[%s0 + $0x30] sm:$0xff]
    %v47 = vld [vmem:[%s0 + $0x38] sm:$0xff]
    %v48 = vld [vmem:[%s0 + $0x40] sm:$0xff]
    %v49 = vld [vmem:[%s0 + $0x48] sm:$0xff]
    %v50 = vld [vmem:[%s0 + $0x50] sm:$0xff]
    %v51 = vld [vmem:[%s0 + $0x58] sm:$0xff]
    %v52 = vld [vmem:[%s0 + $0x60] sm:$0xff]
    %v53 = vld [vmem:[%s0 + $0x68] sm:$0xff]
    %v54 = vld [vmem:[%s0 + $0x70] sm:$0xff]
    %v55 = vld [vmem:[%s0 + $0x78] sm:$0xff]
    %v56 = vld [vmem:[%s0 + $0x80] sm:$0xff]
    %v57 = vld [vmem:[%s0 + $0x88] sm:$0xff]
    %v58 = vld [vmem:[%s0 + $0x90] sm:$0xff]
    %v59 = vld [vmem:[%s0 + $0x98] sm:$0xff]
    %v60 = vld [vmem:[%s0 + $0xa0] sm:$0xff]
    %v61 = vld [vmem:[%s0 + $0xa8] sm:$0xff]
    %v62 = vld [vmem:[%s0 + $0xb0] sm:$0xff]
    %v63 = vld [vmem:[%s0 + $0xb8] sm:$0xff]
    %v64 = vld [vmem:[%s0 + $0xc0] sm:$0xff]
    %v65 = vld [vmem:[%s0 + $0xc8] sm:$0xff]
    %v66 = vld [vmem:[%s0 + $0xd0] sm:$0xff]
    %v67 = vld [vmem:[%s0 + $0xd8] sm:$0xff]
    %v68 = vld [vmem:[%s0 + $0xe0] sm:$0xff]
    %v69 = vld [vmem:[%s0 + $0xe8] sm:$0xff]
    %v70 = vld [vmem:[#allocation2] sm:$0xff]
    %v71 = vld [vmem:[#allocation2 + $0x8] sm:$0xff]
    %v72 = vld [vmem:[#allocation2 + $0x10] sm:$0xff]
    %v73 = vld [vmem:[#allocation2 + $0x18] sm:$0xff]
    %v74 = vld [vmem:[#allocation2 + $0x20] sm:$0xff]
    %v75 = vld [vmem:[#allocation2 + $0x28] sm:$0xff]
    %v76 = vld [vmem:[#allocation2 + $0x30] sm:$0xff]
    %v77 = vld [vmem:[#allocation2 + $0x38] sm:$0xff]
    %v78 = vld [vmem:[#allocation2 + $0x40] sm:$0xff]
    %v79 = vld [vmem:[#allocation2 + $0x48] sm:$0xff]
    %v80 = vld [vmem:[#allocation2 + $0x50] sm:$0xff]
    %v81 = vld [vmem:[#allocation2 + $0x58] sm:$0xff]
    %v82 = vld [vmem:[#allocation2 + $0x60] sm:$0xff]
    %v83 = vld [vmem:[#allocation2 + $0x68] sm:$0xff]
    %v84 = vld [vmem:[#allocation2 + $0x70] sm:$0xff]
    %v85 = vld [vmem:[#allocation2 + $0x78] sm:$0xff]
    %v86 = vld [vmem:[#allocation2 + $0x80] sm:$0xff]
    %v87 = vld [vmem:[#allocation2 + $0x88] sm:$0xff]
    %v88 = vld [vmem:[#allocation2 + $0x90] sm:$0xff]
    %v89 = vld [vmem:[#allocation2 + $0x98] sm:$0xff]
    %v90 = vld [vmem:[#allocation2 + $0xa0] sm:$0xff]
    %v91 = vld [vmem:[#allocation2 + $0xa8] sm:$0xff]
    %v92 = vld [vmem:[#allocation2 + $0xb0] sm:$0xff]
    %v93 = vld [vmem:[#allocation2 + $0xb8] sm:$0xff]
    %v94 = vld [vmem:[#allocation2 + $0xc0] sm:$0xff]
    %v95 = vld [vmem:[#allocation2 + $0xc8] sm:$0xff]
    %v96 = vld [vmem:[#allocation2 + $0xd0] sm:$0xff]
    %v97 = vld [vmem:[#allocation2 + $0xd8] sm:$0xff]
    %v98 = vld [vmem:[#allocation2 + $0xe0] sm:$0xff]
    %v99 = vld [vmem:[#allocation2 + $0xe8] sm:$0xff]
    %v100 = vld [vmem:[#allocation2 + $0xf0] sm:$0xff]
    %v101 = vld [vmem:[#allocation2 + $0xf8] sm:$0xff]
    %v102 = vld [vmem:[#allocation2 + $0x100] sm:$0xff]
    %v103 = vld [vmem:[#allocation2 + $0x108] sm:$0xff]
    %v104 = vld [vmem:[#allocation2 + $0x110] sm:$0xff]
    %v105 = vld [vmem:[#allocation2 + $0x118] sm:$0xff]
    %v106 = vld [vmem:[#allocation2 + $0x120] sm:$0xff]
    %v107 = vld [vmem:[#allocation2 + $0x128] sm:$0xff]
    %v108 = vld [vmem:[#allocation2 + $0x130] sm:$0xff]
    %v109 = vld [vmem:[#allocation2 + $0x138] sm:$0xff]
    %v110 = vld [vmem:[#allocation2 + $0x140] sm:$0xff]
    %v111 = vld [vmem:[#allocation2 + $0x148] sm:$0xff]
    %v112 = vld [vmem:[#allocation2 + $0x150] sm:$0xff]
    %v113 = vld [vmem:[#allocation2 + $0x158] sm:$0xff]
    %v114 = vld [vmem:[#allocation2 + $0x160] sm:$0xff]
    %v115 = vld [vmem:[#allocation2 + $0x168] sm:$0xff]
    %v116 = vld [vmem:[#allocation2 + $0x170] sm:$0xff]
    %v117 = vld [vmem:[#allocation2 + $0x178] sm:$0xff]
    %v118 = vld [vmem:[#allocation2 + $0x180] sm:$0xff]
    %v119 = vld [vmem:[#allocation2 + $0x188] sm:$0xff]
    %v120 = vld [vmem:[#allocation2 + $0x190] sm:$0xff]
    %v121 = vld [vmem:[#allocation2 + $0x198] sm:$0xff]
    %v122 = vld [vmem:[#allocation2 + $0x1a0] sm:$0xff]
    %v123 = vld [vmem:[#allocation2 + $0x1a8] sm:$0xff]
    %v124 = vld [vmem:[#allocation2 + $0x1b0] sm:$0xff]
    %v125 = vld [vmem:[#allocation2 + $0x1b8] sm:$0xff]
    %v126 = vld [vmem:[#allocation2 + $0x1c0] sm:$0xff]
    %v127 = vld [vmem:[#allocation2 + $0x1c8] sm:$0xff]
    %v128 = vld [vmem:[#allocation2 + $0x1d0] sm:$0xff]
    %v129 = vld [vmem:[#allocation2 + $0x1d8] sm:$0xff]
    %v130 = vld [vmem:[#allocation2 + $0x1e0] sm:$0xff]
    %v131 = vld [vmem:[#allocation2 + $0x1e8] sm:$0xff]
    %v132 = vld [vmem:[#allocation2 + $0x1f0] sm:$0xff]
    %v133 = vld [vmem:[#allocation2 + $0x1f8] sm:$0xff]
    %v134 = vld [vmem:[#allocation2 + $0x200] sm:$0xff]
    %v135 = vld [vmem:[#allocation2 + $0x208] sm:$0xff]
    %v136 = vld [vmem:[#allocation2 + $0x210] sm:$0xff]
    %v137 = vld [vmem:[#allocation2 + $0x218] sm:$0xff]
    %v138 = vld [vmem:[#allocation2 + $0x220] sm:$0xff]
    %v139 = vld [vmem:[#allocation2 + $0x228] sm:$0xff]
    %v140 = vld [vmem:[#allocation2 + $0x230] sm:$0xff]
    %v141 = vld [vmem:[#allocation2 + $0x238] sm:$0xff]
    %v142 = vld [vmem:[#allocation2 + $0x240] sm:$0xff]
    %v143 = vld [vmem:[#allocation2 + $0x248] sm:$0xff]
    %v144 = vld [vmem:[#allocation2 + $0x250] sm:$0xff]
    %v145 = vld [vmem:[#allocation2 + $0x258] sm:$0xff]
    %v146 = vld [vmem:[#allocation2 + $0x260] sm:$0xff]
    %v147 = vld [vmem:[#allocation2 + $0x268] sm:$0xff]
    %v148 = vld [vmem:[#allocation2 + $0x270] sm:$0xff]
    %v149 = vld [vmem:[#allocation2 + $0x278] sm:$0xff]
    %v150 = vld [vmem:[#allocation2 + $0x280] sm:$0xff]
    %v151 = vld [vmem:[#allocation2 + $0x288] sm:$0xff]
    %v152 = vld [vmem:[#allocation2 + $0x290] sm:$0xff]
    %v153 = vld [vmem:[#allocation2 + $0x298] sm:$0xff]
    %v154 = vld [vmem:[#allocation2 + $0x2a0] sm:$0xff]
    %v155 = vld [vmem:[#allocation2 + $0x2a8] sm:$0xff]
    %v156 = vld [vmem:[#allocation2 + $0x2b0] sm:$0xff]
    %v157 = vld [vmem:[#allocation2 + $0x2b8] sm:$0xff]
    %v158 = vld [vmem:[#allocation2 + $0x2c0] sm:$0xff]
    %v159 = vld [vmem:[#allocation2 + $0x2c8] sm:$0xff]
    %v160 = vld [vmem:[#allocation2 + $0x2d0] sm:$0xff]
    %v161 = vld [vmem:[#allocation2 + $0x2d8] sm:$0xff]
    %v162 = vld [vmem:[#allocation2 + $0x2e0] sm:$0xff]
    %v163 = vld [vmem:[#allocation2 + $0x2e8] sm:$0xff]
    %v164 = vld [vmem:[#allocation2 + $0x2f0] sm:$0xff]
    %v165 = vld [vmem:[#allocation2 + $0x2f8] sm:$0xff]
    %v166 = vld [vmem:[#allocation2 + $0x300] sm:$0xff]
    %v167 = vld [vmem:[#allocation2 + $0x308] sm:$0xff]
    %v168 = vld [vmem:[#allocation2 + $0x310] sm:$0xff]
    %v169 = vld [vmem:[#allocation2 + $0x318] sm:$0xff]
    %v170 = vld [vmem:[#allocation2 + $0x320] sm:$0xff]
    %v171 = vld [vmem:[#allocation2 + $0x328] sm:$0xff]
    %v172 = vld [vmem:[#allocation2 + $0x330] sm:$0xff]
    %v173 = vld [vmem:[#allocation2 + $0x338] sm:$0xff]
    %v174 = vld [vmem:[#allocation2 + $0x340] sm:$0xff]
    %v175 = vld [vmem:[#allocation2 + $0x348] sm:$0xff]
    %v176 = vld [vmem:[#allocation2 + $0x350] sm:$0xff]
    %v177 = vld [vmem:[#allocation2 + $0x358] sm:$0xff]
    %v178 = vld [vmem:[#allocation2 + $0x360] sm:$0xff]
    %v179 = vld [vmem:[#allocation2 + $0x368] sm:$0xff]
    %v180 = vld [vmem:[#allocation2 + $0x370] sm:$0xff]
    %v181 = vld [vmem:[#allocation2 + $0x378] sm:$0xff]
    %v182 = vld [vmem:[#allocation2 + $0x380] sm:$0xff]
    %v183 = vld [vmem:[#allocation2 + $0x388] sm:$0xff]
    %v184 = vld [vmem:[#allocation2 + $0x390] sm:$0xff]
    %v185 = vld [vmem:[#allocation2 + $0x398] sm:$0xff]
    %v186 = vld [vmem:[#allocation2 + $0x3a0] sm:$0xff]
    %v187 = vld [vmem:[#allocation2 + $0x3a8] sm:$0xff]
    %v188 = vld [vmem:[#allocation2 + $0x3b0] sm:$0xff]
    %v189 = vld [vmem:[#allocation2 + $0x3b8] sm:$0xff]
    %v190 = vld [vmem:[#allocation2 + $0x3c0] sm:$0xff]
    %v191 = vld [vmem:[#allocation2 + $0x3c8] sm:$0xff]
    %v192 = vld [vmem:[#allocation2 + $0x3d0] sm:$0xff]
    %v193 = vld [vmem:[#allocation2 + $0x3d8] sm:$0xff]
    %v194 = vld [vmem:[#allocation2 + $0x3e0] sm:$0xff]
    %v195 = vld [vmem:[#allocation2 + $0x3e8] sm:$0xff]
    %v196 = vld [vmem:[#allocation2 + $0x3f0] sm:$0xff]
    %v197 = vld [vmem:[#allocation2 + $0x3f8] sm:$0xff]
    %v198 = vld [vmem:[#allocation2 + $0x400] sm:$0xff]
    %v199 = vld [vmem:[#allocation2 + $0x408] sm:$0xff]
    %v200 = vld [vmem:[#allocation2 + $0x410] sm:$0xff]
    %v201 = vld [vmem:[#allocation2 + $0x418] sm:$0xff]
    %v202 = vld [vmem:[#allocation2 + $0x420] sm:$0xff]
    %v203 = vld [vmem:[#allocation2 + $0x428] sm:$0xff]
    %v204 = vld [vmem:[#allocation2 + $0x430] sm:$0xff]
    %v205 = vld [vmem:[#allocation2 + $0x438] sm:$0xff]
    %v206 = vld [vmem:[#allocation2 + $0x440] sm:$0xff]
    %v207 = vld [vmem:[#allocation2 + $0x448] sm:$0xff]
    %v208 = vld [vmem:[#allocation2 + $0x450] sm:$0xff]
    %v209 = vld [vmem:[#allocation2 + $0x458] sm:$0xff]
    %v210 = vld [vmem:[#allocation2 + $0x460] sm:$0xff]
    %v211 = vld [vmem:[#allocation2 + $0x468] sm:$0xff]
    %v212 = vld [vmem:[#allocation2 + $0x470] sm:$0xff]
    %v213 = vld [vmem:[#allocation2 + $0x478] sm:$0xff]
    %v214 = vld [vmem:[#allocation2 + $0x480] sm:$0xff]
    %v215 = vld [vmem:[#allocation2 + $0x488] sm:$0xff]
    %v216 = vld [vmem:[#allocation2 + $0x490] sm:$0xff]
    %v217 = vld [vmem:[#allocation2 + $0x498] sm:$0xff]
    %v218 = vld [vmem:[#allocation2 + $0x4a0] sm:$0xff]
    %v219 = vld [vmem:[#allocation2 + $0x4a8] sm:$0xff]
    %v220 = vld [vmem:[#allocation2 + $0x4b0] sm:$0xff]
    %v221 = vld [vmem:[#allocation2 + $0x4b8] sm:$0xff]
    %v222 = vld [vmem:[#allocation2 + $0x4c0] sm:$0xff]
    %v223 = vld [vmem:[#allocation2 + $0x4c8] sm:$0xff]
    %v224 = vld [vmem:[#allocation2 + $0x4d0] sm:$0xff]
    %v225 = vld [vmem:[#allocation2 + $0x4d8] sm:$0xff]
    %v226 = vld [vmem:[#allocation2 + $0x4e0] sm:$0xff]
    %v227 = vld [vmem:[#allocation2 + $0x4e8] sm:$0xff]
    %v228 = vld [vmem:[#allocation2 + $0x4f0] sm:$0xff]
    %v229 = vld [vmem:[#allocation2 + $0x4f8] sm:$0xff]
    %v230 = vld [vmem:[#allocation2 + $0x500] sm:$0xff]
    %v231 = vld [vmem:[#allocation2 + $0x508] sm:$0xff]
    %v232 = vld [vmem:[#allocation2 + $0x510] sm:$0xff]
    %v233 = vld [vmem:[#allocation2 + $0x518] sm:$0xff]
    %v234 = vld [vmem:[#allocation2 + $0x520] sm:$0xff]
    %v235 = vld [vmem:[#allocation2 + $0x528] sm:$0xff]
    %v236 = vld [vmem:[#allocation2 + $0x530] sm:$0xff]
    %v237 = vld [vmem:[#allocation2 + $0x538] sm:$0xff]
    %v238 = vld [vmem:[#allocation2 + $0x540] sm:$0xff]
    %v239 = vld [vmem:[#allocation2 + $0x548] sm:$0xff]
    %v240 = vld [vmem:[#allocation2 + $0x550] sm:$0xff]
    %v241 = vld [vmem:[#allocation2 + $0x558] sm:$0xff]
    %v242 = vld [vmem:[#allocation2 + $0x560] sm:$0xff]
    %v243 = vld [vmem:[#allocation2 + $0x568] sm:$0xff]
    %v244 = vld [vmem:[#allocation2 + $0x570] sm:$0xff]
    %v245 = vld [vmem:[#allocation2 + $0x578] sm:$0xff]
    %v246 = vld [vmem:[#allocation2 + $0x580] sm:$0xff]
    %v247 = vld [vmem:[#allocation2 + $0x588] sm:$0xff]
    %v248 = vld [vmem:[#allocation2 + $0x590] sm:$0xff]
    %v249 = vld [vmem:[#allocation2 + $0x598] sm:$0xff]
    %v250 = vld [vmem:[#allocation2 + $0x5a0] sm:$0xff]
    %v251 = vld [vmem:[#allocation2 + $0x5a8] sm:$0xff]
    %v252 = vld [vmem:[#allocation2 + $0x5b0] sm:$0xff]
    %v253 = vld [vmem:[#allocation2 + $0x5b8] sm:$0xff]
    %v254 = vld [vmem:[#allocation2 + $0x5c0] sm:$0xff]
    %v255 = vld [vmem:[#allocation2 + $0x5c8] sm:$0xff]
    %v256 = vld [vmem:[#allocation2 + $0x5d0] sm:$0xff]
    %v257 = vld [vmem:[#allocation2 + $0x5d8] sm:$0xff]
    %v258 = vld [vmem:[#allocation2 + $0x5e0] sm:$0xff]
    %v259 = vld [vmem:[#allocation2 + $0x5e8] sm:$0xff]
    %v260 = vld [vmem:[#allocation2 + $0x5f0] sm:$0xff]
    %v261 = vld [vmem:[#allocation2 + $0x5f8] sm:$0xff]
    %v262 = vld [vmem:[#allocation2 + $0x600] sm:$0xff]
    %v263 = vld [vmem:[#allocation2 + $0x608] sm:$0xff]
    %v264 = vld [vmem:[#allocation2 + $0x610] sm:$0xff]
    %v265 = vld [vmem:[#allocation2 + $0x618] sm:$0xff]
    %v266 = vld [vmem:[#allocation2 + $0x620] sm:$0xff]
    %v267 = vld [vmem:[#allocation2 + $0x628] sm:$0xff]
    %v268 = vld [vmem:[#allocation2 + $0x630] sm:$0xff]
    %v269 = vld [vmem:[#allocation2 + $0x638] sm:$0xff]
    %v270 = vld [vmem:[#allocation2 + $0x640] sm:$0xff]
    %v271 = vld [vmem:[#allocation2 + $0x648] sm:$0xff]
    %v272 = vld [vmem:[#allocation2 + $0x650] sm:$0xff]
    %v273 = vld [vmem:[#allocation2 + $0x658] sm:$0xff]
    %v274 = vld [vmem:[#allocation2 + $0x660] sm:$0xff]
    %v275 = vld [vmem:[#allocation2 + $0x668] sm:$0xff]
    %v276 = vld [vmem:[#allocation2 + $0x670] sm:$0xff]
    %v277 = vld [vmem:[#allocation2 + $0x678] sm:$0xff]
    %v278 = vld [vmem:[#allocation2 + $0x680] sm:$0xff]
    %v279 = vld [vmem:[#allocation2 + $0x688] sm:$0xff]
    %v280 = vld [vmem:[#allocation2 + $0x690] sm:$0xff]
    %v281 = vld [vmem:[#allocation2 + $0x698] sm:$0xff]
    %v282 = vld [vmem:[#allocation2 + $0x6a0] sm:$0xff]
    %v283 = vld [vmem:[#allocation2 + $0x6a8] sm:$0xff]
    %v284 = vld [vmem:[#allocation2 + $0x6b0] sm:$0xff]
    %v285 = vld [vmem:[#allocation2 + $0x6b8] sm:$0xff]
    %v286 = vld [vmem:[#allocation2 + $0x6c0] sm:$0xff]
    %v287 = vld [vmem:[#allocation2 + $0x6c8] sm:$0xff]
    %v288 = vld [vmem:[#allocation2 + $0x6d0] sm:$0xff]
    %v289 = vld [vmem:[#allocation2 + $0x6d8] sm:$0xff]
    %v290 = vld [vmem:[#allocation2 + $0x6e0] sm:$0xff]
    %v291 = vld [vmem:[#allocation2 + $0x6e8] sm:$0xff]
    %v292 = vld [vmem:[#allocation2 + $0x6f0] sm:$0xff]
    %v293 = vld [vmem:[#allocation2 + $0x6f8] sm:$0xff]
    %v294 = vld [vmem:[#allocation2 + $0x700] sm:$0xff]
    %v295 = vld [vmem:[#allocation2 + $0x708] sm:$0xff]
    %v296 = vld [vmem:[#allocation2 + $0x710] sm:$0xff]
    %v297 = vld [vmem:[#allocation2 + $0x718] sm:$0xff]
    %v298 = vld [vmem:[#allocation2 + $0x720] sm:$0xff]
    %v299 = vld [vmem:[#allocation2 + $0x728] sm:$0xff]
    %v300 = vld [vmem:[#allocation2 + $0x730] sm:$0xff]
    %v301 = vld [vmem:[#allocation2 + $0x738] sm:$0xff]
    %v302 = vld [vmem:[#allocation2 + $0x740] sm:$0xff]
    %v303 = vld [vmem:[#allocation2 + $0x748] sm:$0xff]
    %v304 = vld [vmem:[#allocation2 + $0x750] sm:$0xff]
    %v305 = vld [vmem:[#allocation2 + $0x758] sm:$0xff]
    %v306 = vld [vmem:[#allocation2 + $0x760] sm:$0xff]
    %v307 = vld [vmem:[#allocation2 + $0x768] sm:$0xff]
    %v308 = vld [vmem:[#allocation2 + $0x770] sm:$0xff]
    %v309 = vld [vmem:[#allocation2 + $0x778] sm:$0xff]
    %v310 = vld [vmem:[#allocation2 + $0x780] sm:$0xff]
    %v311 = vld [vmem:[#allocation2 + $0x788] sm:$0xff]
    %v312 = vld [vmem:[#allocation2 + $0x790] sm:$0xff]
    %v313 = vld [vmem:[#allocation2 + $0x798] sm:$0xff]
    %v314 = vld [vmem:[#allocation2 + $0x7a0] sm:$0xff]
    %v315 = vld [vmem:[#allocation2 + $0x7a8] sm:$0xff]
    %v316 = vld [vmem:[#allocation2 + $0x7b0] sm:$0xff]
    %v317 = vld [vmem:[#allocation2 + $0x7b8] sm:$0xff]
    %v318 = vld [vmem:[#allocation2 + $0x7c0] sm:$0xff]
    %v319 = vld [vmem:[#allocation2 + $0x7c8] sm:$0xff]
    %v320 = vld [vmem:[#allocation2 + $0x7d0] sm:$0xff]
    %v321 = vld [vmem:[#allocation2 + $0x7d8] sm:$0xff]
    %v322 = vld [vmem:[#allocation2 + $0x7e0] sm:$0xff]
    %v323 = vld [vmem:[#allocation2 + $0x7e8] sm:$0xff]
    %v324 = vld [vmem:[#allocation2 + $0x7f0] sm:$0xff]
    %v325 = vld [vmem:[#allocation2 + $0x7f8] sm:$0xff]
    %v326 = vld [vmem:[#allocation2 + $0x800] sm:$0xff]
    %v327 = vld [vmem:[#allocation2 + $0x808] sm:$0xff]
    %v328 = vld [vmem:[#allocation2 + $0x810] sm:$0xff]
    %v329 = vld [vmem:[#allocation2 + $0x818] sm:$0xff]
    %v330 = vld [vmem:[#allocation2 + $0x820] sm:$0xff]
    %v331 = vld [vmem:[#allocation2 + $0x828] sm:$0xff]
    %v332 = vld [vmem:[#allocation2 + $0x830] sm:$0xff]
    %v333 = vld [vmem:[#allocation2 + $0x838] sm:$0xff]
    %v334 = vld [vmem:[#allocation2 + $0x840] sm:$0xff]
    %v335 = vld [vmem:[#allocation2 + $0x848] sm:$0xff]
    %v336 = vld [vmem:[#allocation2 + $0x850] sm:$0xff]
    %v337 = vld [vmem:[#allocation2 + $0x858] sm:$0xff]
    %v338 = vld [vmem:[#allocation2 + $0x860] sm:$0xff]
    %v339 = vld [vmem:[#allocation2 + $0x868] sm:$0xff]
    %v340 = vld [vmem:[#allocation2 + $0x870] sm:$0xff]
    %v341 = vld [vmem:[#allocation2 + $0x878] sm:$0xff]
    %v342 = vld [vmem:[#allocation2 + $0x880] sm:$0xff]
    %v343 = vld [vmem:[#allocation2 + $0x888] sm:$0xff]
    %v344 = vld [vmem:[#allocation2 + $0x890] sm:$0xff]
    %v345 = vld [vmem:[#allocation2 + $0x898] sm:$0xff]
    %v346 = vld [vmem:[#allocation2 + $0x8a0] sm:$0xff]
    %v347 = vld [vmem:[#allocation2 + $0x8a8] sm:$0xff]
    %v348 = vld [vmem:[#allocation2 + $0x8b0] sm:$0xff]
    %v349 = vld [vmem:[#allocation2 + $0x8b8] sm:$0xff]
    %v350 = vld [vmem:[#allocation2 + $0x8c0] sm:$0xff]
    %v351 = vld [vmem:[#allocation2 + $0x8c8] sm:$0xff]
    %v352 = vld [vmem:[#allocation2 + $0x8d0] sm:$0xff]
    %v353 = vld [vmem:[#allocation2 + $0x8d8] sm:$0xff]
    %v354 = vld [vmem:[#allocation2 + $0x8e0] sm:$0xff]
    %v355 = vld [vmem:[#allocation2 + $0x8e8] sm:$0xff]
    %v356 = vld [vmem:[#allocation2 + $0x8f0] sm:$0xff]
    %v357 = vld [vmem:[#allocation2 + $0x8f8] sm:$0xff]
    %v358 = vld [vmem:[#allocation2 + $0x900] sm:$0xff]
    %v359 = vld [vmem:[#allocation2 + $0x908] sm:$0xff]
    %v360 = vld [vmem:[#allocation2 + $0x910] sm:$0xff]
    %v361 = vld [vmem:[#allocation2 + $0x918] sm:$0xff]
    %v362 = vld [vmem:[#allocation2 + $0x920] sm:$0xff]
    %v363 = vld [vmem:[#allocation2 + $0x928] sm:$0xff]
    %v364 = vld [vmem:[#allocation2 + $0x930] sm:$0xff]
    %v365 = vld [vmem:[#allocation2 + $0x938] sm:$0xff]
    %v366 = vld [vmem:[#allocation2 + $0x940] sm:$0xff]
    %v367 = vld [vmem:[#allocation2 + $0x948] sm:$0xff]
    %v368 = vld [vmem:[#allocation2 + $0x950] sm:$0xff]
    %v369 = vld [vmem:[#allocation2 + $0x958] sm:$0xff]
    %v370 = vld [vmem:[#allocation2 + $0x960] sm:$0xff]
    %v371 = vld [vmem:[#allocation2 + $0x968] sm:$0xff]
    %v372 = vld [vmem:[#allocation2 + $0x970] sm:$0xff]
    %v373 = vld [vmem:[#allocation2 + $0x978] sm:$0xff]
    %v374 = vld [vmem:[#allocation2 + $0x980] sm:$0xff]
    %v375 = vld [vmem:[#allocation2 + $0x988] sm:$0xff]
    %v376 = vld [vmem:[#allocation2 + $0x990] sm:$0xff]
    %v377 = vld [vmem:[#allocation2 + $0x998] sm:$0xff]
    %v378 = vld [vmem:[#allocation2 + $0x9a0] sm:$0xff]
    %v379 = vld [vmem:[#allocation2 + $0x9a8] sm:$0xff]
    %v380 = vld [vmem:[#allocation2 + $0x9b0] sm:$0xff]
    %v381 = vld [vmem:[#allocation2 + $0x9b8] sm:$0xff]
    %v382 = vld [vmem:[#allocation2 + $0x9c0] sm:$0xff]
    %v383 = vld [vmem:[#allocation2 + $0x9c8] sm:$0xff]
    %v384 = vld [vmem:[#allocation2 + $0x9d0] sm:$0xff]
    %v385 = vld [vmem:[#allocation2 + $0x9d8] sm:$0xff]
    %v386 = vld [vmem:[#allocation2 + $0x9e0] sm:$0xff]
    %v387 = vld [vmem:[#allocation2 + $0x9e8] sm:$0xff]
    %v388 = vld [vmem:[#allocation2 + $0x9f0] sm:$0xff]
    %v389 = vld [vmem:[#allocation2 + $0x9f8] sm:$0xff]
    %v390 = vld [vmem:[#allocation2 + $0xa00] sm:$0xff]
    %v391 = vld [vmem:[#allocation2 + $0xa08] sm:$0xff]
    %v392 = vld [vmem:[#allocation2 + $0xa10] sm:$0xff]
    %v393 = vld [vmem:[#allocation2 + $0xa18] sm:$0xff]
    %v394 = vld [vmem:[#allocation2 + $0xa20] sm:$0xff]
    %v395 = vld [vmem:[#allocation2 + $0xa28] sm:$0xff]
    %v396 = vld [vmem:[#allocation2 + $0xa30] sm:$0xff]
    %v397 = vld [vmem:[#allocation2 + $0xa38] sm:$0xff]
    %v398 = vld [vmem:[#allocation2 + $0xa40] sm:$0xff]
    %v399 = vld [vmem:[#allocation2 + $0xa48] sm:$0xff]
    %v400 = vld [vmem:[#allocation2 + $0xa50] sm:$0xff]
    %v401 = vld [vmem:[#allocation2 + $0xa58] sm:$0xff]
    %v402 = vld [vmem:[#allocation2 + $0xa60] sm:$0xff]
    %v403 = vld [vmem:[#allocation2 + $0xa68] sm:$0xff]
    %v404 = vld [vmem:[#allocation2 + $0xa70] sm:$0xff]
    %v405 = vld [vmem:[#allocation2 + $0xa78] sm:$0xff]
    %v406 = vld [vmem:[#allocation2 + $0xa80] sm:$0xff]
    %v407 = vld [vmem:[#allocation2 + $0xa88] sm:$0xff]
    %v408 = vld [vmem:[#allocation2 + $0xa90] sm:$0xff]
    %v409 = vld [vmem:[#allocation2 + $0xa98] sm:$0xff]
    %v410 = vld [vmem:[#allocation2 + $0xaa0] sm:$0xff]
    %v411 = vld [vmem:[#allocation2 + $0xaa8] sm:$0xff]
    %v412 = vld [vmem:[#allocation2 + $0xab0] sm:$0xff]
    %v413 = vld [vmem:[#allocation2 + $0xab8] sm:$0xff]
    %v414 = vld [vmem:[#allocation2 + $0xac0] sm:$0xff]
    %v415 = vld [vmem:[#allocation2 + $0xac8] sm:$0xff]
    %v416 = vld [vmem:[#allocation2 + $0xad0] sm:$0xff]
    %v417 = vld [vmem:[#allocation2 + $0xad8] sm:$0xff]
    %v418 = vld [vmem:[#allocation2 + $0xae0] sm:$0xff]
    %v419 = vld [vmem:[#allocation2 + $0xae8] sm:$0xff]
    %v420 = vld [vmem:[#allocation2 + $0xaf0] sm:$0xff]
    %v421 = vld [vmem:[#allocation2 + $0xaf8] sm:$0xff]
    %v422 = vld [vmem:[#allocation2 + $0xb00] sm:$0xff]
    %v423 = vld [vmem:[#allocation2 + $0xb08] sm:$0xff]
    %v424 = vld [vmem:[#allocation2 + $0xb10] sm:$0xff]
    %v425 = vld [vmem:[#allocation2 + $0xb18] sm:$0xff]
    %v426 = vld [vmem:[#allocation2 + $0xb20] sm:$0xff]
    %v427 = vld [vmem:[#allocation2 + $0xb28] sm:$0xff]
    %v428 = vld [vmem:[#allocation2 + $0xb30] sm:$0xff]
    %v429 = vld [vmem:[#allocation2 + $0xb38] sm:$0xff]
    %v430 = vld [vmem:[#allocation2 + $0xb40] sm:$0xff]
    %v431 = vld [vmem:[#allocation2 + $0xb48] sm:$0xff]
    %v432 = vld [vmem:[#allocation2 + $0xb50] sm:$0xff]
    %v433 = vld [vmem:[#allocation2 + $0xb58] sm:$0xff]
    %v434 = vld [vmem:[#allocation2 + $0xb60] sm:$0xff]
    %v435 = vld [vmem:[#allocation2 + $0xb68] sm:$0xff]
    %v436 = vld [vmem:[#allocation2 + $0xb70] sm:$0xff]
    %v437 = vld [vmem:[#allocation2 + $0xb78] sm:$0xff]
    %v438 = vld [vmem:[#allocation2 + $0xb80] sm:$0xff]
    %v439 = vld [vmem:[#allocation2 + $0xb88] sm:$0xff]
    %v440 = vld [vmem:[#allocation2 + $0xb90] sm:$0xff]
    %v441 = vld [vmem:[#allocation2 + $0xb98] sm:$0xff]
    %v442 = vld [vmem:[#allocation2 + $0xba0] sm:$0xff]
    %v443 = vld [vmem:[#allocation2 + $0xba8] sm:$0xff]
    %v444 = vld [vmem:[#allocation2 + $0xbb0] sm:$0xff]
    %v445 = vld [vmem:[#allocation2 + $0xbb8] sm:$0xff]
    %v446 = vld [vmem:[#allocation2 + $0xbc0] sm:$0xff]
    %v447 = vld [vmem:[#allocation2 + $0xbc8] sm:$0xff]
    %v448 = vld [vmem:[#allocation2 + $0xbd0] sm:$0xff]
    %v449 = vld [vmem:[#allocation2 + $0xbd8] sm:$0xff]
    %v450 = vld [vmem:[#allocation2 + $0xbe0] sm:$0xff]
    %v451 = vld [vmem:[#allocation2 + $0xbe8] sm:$0xff]
    %v452 = vld [vmem:[#allocation2 + $0xbf0] sm:$0xff]
    %v453 = vld [vmem:[#allocation2 + $0xbf8] sm:$0xff]
    %v454 = vld [vmem:[#allocation2 + $0xc00] sm:$0xff]
    %v455 = vld [vmem:[#allocation2 + $0xc08] sm:$0xff]
    %v456 = vld [vmem:[#allocation2 + $0xc10] sm:$0xff]
    %v457 = vld [vmem:[#allocation2 + $0xc18] sm:$0xff]
    %v458 = vld [vmem:[#allocation2 + $0xc20] sm:$0xff]
    %v459 = vld [vmem:[#allocation2 + $0xc28] sm:$0xff]
    %v460 = vld [vmem:[#allocation2 + $0xc30] sm:$0xff]
    %v461 = vld [vmem:[#allocation2 + $0xc38] sm:$0xff]
    %v462 = vld [vmem:[#allocation2 + $0xc40] sm:$0xff]
    %v463 = vld [vmem:[#allocation2 + $0xc48] sm:$0xff]
    %v464 = vld [vmem:[#allocation2 + $0xc50] sm:$0xff]
    %v465 = vld [vmem:[#allocation2 + $0xc58] sm:$0xff]
    %v466 = vld [vmem:[#allocation2 + $0xc60] sm:$0xff]
    %v467 = vld [vmem:[#allocation2 + $0xc68] sm:$0xff]
    %v468 = vld [vmem:[#allocation2 + $0xc70] sm:$0xff]
    %v469 = vld [vmem:[#allocation2 + $0xc78] sm:$0xff]
    %v470 = vld [vmem:[#allocation2 + $0xc80] sm:$0xff]
    %v471 = vld [vmem:[#allocation2 + $0xc88] sm:$0xff]
    %v472 = vld [vmem:[#allocation2 + $0xc90] sm:$0xff]
    %v473 = vld [vmem:[#allocation2 + $0xc98] sm:$0xff]
    %v474 = vld [vmem:[#allocation2 + $0xca0] sm:$0xff]
    %v475 = vld [vmem:[#allocation2 + $0xca8] sm:$0xff]
    %v476 = vld [vmem:[#allocation2 + $0xcb0] sm:$0xff]
    %v477 = vld [vmem:[#allocation2 + $0xcb8] sm:$0xff]
    %v478 = vld [vmem:[#allocation2 + $0xcc0] sm:$0xff]
    %v479 = vld [vmem:[#allocation2 + $0xcc8] sm:$0xff]
    %v480 = vld [vmem:[#allocation2 + $0xcd0] sm:$0xff]
    %v481 = vld [vmem:[#allocation2 + $0xcd8] sm:$0xff]
    %v482 = vld [vmem:[#allocation2 + $0xce0] sm:$0xff]
    %v483 = vld [vmem:[#allocation2 + $0xce8] sm:$0xff]
    %v484 = vld [vmem:[#allocation2 + $0xcf0] sm:$0xff]
    %v485 = vld [vmem:[#allocation2 + $0xcf8] sm:$0xff]
    %v486 = vld [vmem:[#allocation2 + $0xd00] sm:$0xff]
    %v487 = vld [vmem:[#allocation2 + $0xd08] sm:$0xff]
    %v488 = vld [vmem:[#allocation2 + $0xd10] sm:$0xff]
    %v489 = vld [vmem:[#allocation2 + $0xd18] sm:$0xff]
    %v490 = vld [vmem:[#allocation2 + $0xd20] sm:$0xff]
    %v491 = vld [vmem:[#allocation2 + $0xd28] sm:$0xff]
    %v492 = vld [vmem:[#allocation2 + $0xd30] sm:$0xff]
    %v493 = vld [vmem:[#allocation2 + $0xd38] sm:$0xff]
    %v494 = vld [vmem:[#allocation2 + $0xd40] sm:$0xff]
    %v495 = vld [vmem:[#allocation2 + $0xd48] sm:$0xff]
    %v496 = vld [vmem:[#allocation2 + $0xd50] sm:$0xff]
    %v497 = vld [vmem:[#allocation2 + $0xd58] sm:$0xff]
    %v498 = vld [vmem:[#allocation2 + $0xd60] sm:$0xff]
    %v499 = vld [vmem:[#allocation2 + $0xd68] sm:$0xff]
    %v500 = vld [vmem:[#allocation2 + $0xd70] sm:$0xff]
    %v501 = vld [vmem:[#allocation2 + $0xd78] sm:$0xff]
    %v502 = vld [vmem:[#allocation2 + $0xd80] sm:$0xff]
    %v503 = vld [vmem:[#allocation2 + $0xd88] sm:$0xff]
    %v504 = vld [vmem:[#allocation2 + $0xd90] sm:$0xff]
    %v505 = vld [vmem:[#allocation2 + $0xd98] sm:$0xff]
    %v506 = vld [vmem:[#allocation2 + $0xda0] sm:$0xff]
    %v507 = vld [vmem:[#allocation2 + $0xda8] sm:$0xff]
    %v508 = vld [vmem:[#allocation2 + $0xdb0] sm:$0xff]
    %v509 = vld [vmem:[#allocation2 + $0xdb8] sm:$0xff]
    %v510 = vld [vmem:[#allocation2 + $0xdc0] sm:$0xff]
    %v511 = vld [vmem:[#allocation2 + $0xdc8] sm:$0xff]
    %v512 = vld [vmem:[#allocation2 + $0xdd0] sm:$0xff]
    %v513 = vld [vmem:[#allocation2 + $0xdd8] sm:$0xff]
    %v514 = vld [vmem:[#allocation2 + $0xde0] sm:$0xff]
    %v515 = vld [vmem:[#allocation2 + $0xde8] sm:$0xff]
    %v516 = vld [vmem:[#allocation2 + $0xdf0] sm:$0xff]
    %v517 = vld [vmem:[#allocation2 + $0xdf8] sm:$0xff]
    %v518 = vld [vmem:[#allocation2 + $0xe00] sm:$0xff]
    %v519 = vld [vmem:[#allocation2 + $0xe08] sm:$0xff]
    %v520 = vld [vmem:[#allocation2 + $0xe10] sm:$0xff]
    %v521 = vld [vmem:[#allocation2 + $0xe18] sm:$0xff]
    %v522 = vld [vmem:[#allocation2 + $0xe20] sm:$0xff]
    %v523 = vld [vmem:[#allocation2 + $0xe28] sm:$0xff]
    %v524 = vld [vmem:[#allocation2 + $0xe30] sm:$0xff]
    %v525 = vld [vmem:[#allocation2 + $0xe38] sm:$0xff]
    %v526 = vld [vmem:[#allocation2 + $0xe40] sm:$0xff]
    %v527 = vld [vmem:[#allocation2 + $0xe48] sm:$0xff]
    %v528 = vld [vmem:[#allocation2 + $0xe50] sm:$0xff]
    %v529 = vld [vmem:[#allocation2 + $0xe58] sm:$0xff]
    %v530 = vld [vmem:[#allocation2 + $0xe60] sm:$0xff]
    %v531 = vld [vmem:[#allocation2 + $0xe68] sm:$0xff]
    %v532 = vld [vmem:[#allocation2 + $0xe70] sm:$0xff]
    %v533 = vld [vmem:[#allocation2 + $0xe78] sm:$0xff]
    %v534 = vld [vmem:[#allocation2 + $0xe80] sm:$0xff]
    %v535 = vld [vmem:[#allocation2 + $0xe88] sm:$0xff]
    %v536 = vld [vmem:[#allocation2 + $0xe90] sm:$0xff]
    %v537 = vld [vmem:[#allocation2 + $0xe98] sm:$0xff]
    %v538 = vld [vmem:[#allocation2 + $0xea0] sm:$0xff]
    %v539 = vld [vmem:[#allocation2 + $0xea8] sm:$0xff]
    %v540 = vld [vmem:[#allocation2 + $0xeb0] sm:$0xff]
    %v541 = vld [vmem:[#allocation2 + $0xeb8] sm:$0xff]
    %v542 = vld [vmem:[#allocation2 + $0xec0] sm:$0xff]
    %v543 = vld [vmem:[#allocation2 + $0xec8] sm:$0xff]
    %v544 = vld [vmem:[#allocation2 + $0xed0] sm:$0xff]
    %v545 = vld [vmem:[#allocation2 + $0xed8] sm:$0xff]
    %v546 = vld [vmem:[#allocation2 + $0xee0] sm:$0xff]
    %v547 = vld [vmem:[#allocation2 + $0xee8] sm:$0xff]
    %v548 = vld [vmem:[#allocation2 + $0xef0] sm:$0xff]
    %v549 = vld [vmem:[#allocation2 + $0xef8] sm:$0xff]
    %v550 = vld [vmem:[#allocation2 + $0xf00] sm:$0xff]
    %v551 = vld [vmem:[#allocation2 + $0xf08] sm:$0xff]
    %v552 = vld [vmem:[#allocation2 + $0xf10] sm:$0xff]
    %v553 = vld [vmem:[#allocation2 + $0xf18] sm:$0xff]
    %v554 = vld [vmem:[#allocation2 + $0xf20] sm:$0xff]
    %v555 = vld [vmem:[#allocation2 + $0xf28] sm:$0xff]
    %v556 = vld [vmem:[#allocation2 + $0xf30] sm:$0xff]
    %v557 = vld [vmem:[#allocation2 + $0xf38] sm:$0xff]
    %v558 = vld [vmem:[#allocation2 + $0xf40] sm:$0xff]
    %v559 = vld [vmem:[#allocation2 + $0xf48] sm:$0xff]
    %v560 = vld [vmem:[#allocation2 + $0xf50] sm:$0xff]
    %v561 = vld [vmem:[#allocation2 + $0xf58] sm:$0xff]
    %v562 = vld [vmem:[#allocation2 + $0xf60] sm:$0xff]
    %v563 = vld [vmem:[#allocation2 + $0xf68] sm:$0xff]
    %v564 = vld [vmem:[#allocation2 + $0xf70] sm:$0xff]
    %v565 = vld [vmem:[#allocation2 + $0xf78] sm:$0xff]
    %v566 = vld [vmem:[#allocation2 + $0xf80] sm:$0xff]
    %v567 = vld [vmem:[#allocation2 + $0xf88] sm:$0xff]
    %v568 = vld [vmem:[#allocation2 + $0xf90] sm:$0xff]
    %v569 = vld [vmem:[#allocation2 + $0xf98] sm:$0xff]
    %v570 = vld [vmem:[#allocation2 + $0xfa0] sm:$0xff]
    %v571 = vld [vmem:[#allocation2 + $0xfa8] sm:$0xff]
    %v572 = vld [vmem:[#allocation2 + $0xfb0] sm:$0xff]
    %v573 = vld [vmem:[#allocation2 + $0xfb8] sm:$0xff]
    %v574 = vld [vmem:[#allocation2 + $0xfc0] sm:$0xff]
    %v575 = vld [vmem:[#allocation2 + $0xfc8] sm:$0xff]
    %v576 = vld [vmem:[#allocation2 + $0xfd0] sm:$0xff]
    %v577 = vld [vmem:[#allocation2 + $0xfd8] sm:$0xff]
    %v578 = vld [vmem:[#allocation2 + $0xfe0] sm:$0xff]
    %v579 = vld [vmem:[#allocation2 + $0xfe8] sm:$0xff]
    %v580 = vld [vmem:[#allocation2 + $0xff0] sm:$0xff]
    %v581 = vld [vmem:[#allocation2 + $0xff8] sm:$0xff]
    %v582 = vld [vmem:[#allocation2 + $0x1000] sm:$0xff]
    %v583 = vld [vmem:[#allocation2 + $0x1008] sm:$0xff]
    %v584 = vld [vmem:[#allocation2 + $0x1010] sm:$0xff]
    %v585 = vld [vmem:[#allocation2 + $0x1018] sm:$0xff]
    %v586 = vld [vmem:[#allocation2 + $0x1020] sm:$0xff]
    %v587 = vld [vmem:[#allocation2 + $0x1028] sm:$0xff]
    %v588 = vld [vmem:[#allocation2 + $0x1030] sm:$0xff]
    %v589 = vld [vmem:[#allocation2 + $0x1038] sm:$0xff]
    %v590 = vld [vmem:[#allocation2 + $0x1040] sm:$0xff]
    %v591 = vld [vmem:[#allocation2 + $0x1048] sm:$0xff]
    %v592 = vld [vmem:[#allocation2 + $0x1050] sm:$0xff]
    %v593 = vld [vmem:[#allocation2 + $0x1058] sm:$0xff]
    %v594 = vld [vmem:[#allocation2 + $0x1060] sm:$0xff]
    %v595 = vld [vmem:[#allocation2 + $0x1068] sm:$0xff]
    %v596 = vld [vmem:[#allocation2 + $0x1070] sm:$0xff]
    %v597 = vld [vmem:[#allocation2 + $0x1078] sm:$0xff]
    %v598 = vld [vmem:[#allocation2 + $0x1080] sm:$0xff]
    %v599 = vld [vmem:[#allocation2 + $0x1088] sm:$0xff]
    %v600 = vld [vmem:[#allocation2 + $0x1090] sm:$0xff]
    %v601 = vld [vmem:[#allocation2 + $0x1098] sm:$0xff]
    %v602 = vld [vmem:[#allocation2 + $0x10a0] sm:$0xff]
    %v603 = vld [vmem:[#allocation2 + $0x10a8] sm:$0xff]
    %v604 = vld [vmem:[#allocation2 + $0x10b0] sm:$0xff]
    %v605 = vld [vmem:[#allocation2 + $0x10b8] sm:$0xff]
    %v606 = vld [vmem:[#allocation2 + $0x10c0] sm:$0xff]
    %v607 = vld [vmem:[#allocation2 + $0x10c8] sm:$0xff]
    %v608 = vld [vmem:[#allocation2 + $0x10d0] sm:$0xff]
    %v609 = vld [vmem:[#allocation2 + $0x10d8] sm:$0xff]
    %v610 = vld [vmem:[#allocation2 + $0x10e0] sm:$0xff]
    %v611 = vld [vmem:[#allocation2 + $0x10e8] sm:$0xff]
    %v612 = vld [vmem:[#allocation2 + $0x10f0] sm:$0xff]
    %v613 = vld [vmem:[#allocation2 + $0x10f8] sm:$0xff]
    %v614 = vld [vmem:[#allocation2 + $0x1100] sm:$0xff]
    %v615 = vld [vmem:[#allocation2 + $0x1108] sm:$0xff]
    %v616 = vld [vmem:[#allocation2 + $0x1110] sm:$0xff]
    %v617 = vld [vmem:[#allocation2 + $0x1118] sm:$0xff]
    %v618 = vld [vmem:[#allocation2 + $0x1120] sm:$0xff]
    %v619 = vld [vmem:[#allocation2 + $0x1128] sm:$0xff]
    %v620 = vld [vmem:[#allocation2 + $0x1130] sm:$0xff]
    %v621 = vld [vmem:[#allocation2 + $0x1138] sm:$0xff]
    %v622 = vld [vmem:[#allocation2 + $0x1140] sm:$0xff]
    %v623 = vld [vmem:[#allocation2 + $0x1148] sm:$0xff]
    %v624 = vld [vmem:[#allocation2 + $0x1150] sm:$0xff]
    %v625 = vld [vmem:[#allocation2 + $0x1158] sm:$0xff]
    %v626 = vld [vmem:[#allocation2 + $0x1160] sm:$0xff]
    %v627 = vld [vmem:[#allocation2 + $0x1168] sm:$0xff]
    %v628 = vld [vmem:[#allocation2 + $0x1170] sm:$0xff]
    %v629 = vld [vmem:[#allocation2 + $0x1178] sm:$0xff]
    %v630 = vld [vmem:[#allocation2 + $0x1180] sm:$0xff]
    %v631 = vld [vmem:[#allocation2 + $0x1188] sm:$0xff]
    %v632 = vld [vmem:[#allocation2 + $0x1190] sm:$0xff]
    %v633 = vld [vmem:[#allocation2 + $0x1198] sm:$0xff]
    %v634 = vld [vmem:[#allocation2 + $0x11a0] sm:$0xff]
    %v635 = vld [vmem:[#allocation2 + $0x11a8] sm:$0xff]
    %v636 = vld [vmem:[#allocation2 + $0x11b0] sm:$0xff]
    %v637 = vld [vmem:[#allocation2 + $0x11b8] sm:$0xff]
    %v638 = vld [vmem:[#allocation2 + $0x11c0] sm:$0xff]
    %v639 = vld [vmem:[#allocation2 + $0x11c8] sm:$0xff]
    %v640 = vld [vmem:[#allocation2 + $0x11d0] sm:$0xff]
    %v641 = vld [vmem:[#allocation2 + $0x11d8] sm:$0xff]
    %v642 = vld [vmem:[#allocation2 + $0x11e0] sm:$0xff]
    %v643 = vld [vmem:[#allocation2 + $0x11e8] sm:$0xff]
    %v644 = vld [vmem:[#allocation2 + $0x11f0] sm:$0xff]
    %v645 = vld [vmem:[#allocation2 + $0x11f8] sm:$0xff]
    %v646 = vld [vmem:[#allocation2 + $0x1200] sm:$0xff]
    %v647 = vld [vmem:[#allocation2 + $0x1208] sm:$0xff]
    %v648 = vld [vmem:[#allocation2 + $0x1210] sm:$0xff]
    %v649 = vld [vmem:[#allocation2 + $0x1218] sm:$0xff]
    %v650 = vld [vmem:[#allocation2 + $0x1220] sm:$0xff]
    %v651 = vld [vmem:[#allocation2 + $0x1228] sm:$0xff]
    %v652 = vld [vmem:[#allocation2 + $0x1230] sm:$0xff]
    %v653 = vld [vmem:[#allocation2 + $0x1238] sm:$0xff]
    %v654 = vld [vmem:[#allocation2 + $0x1240] sm:$0xff]
    %v655 = vld [vmem:[#allocation2 + $0x1248] sm:$0xff]
    %v656 = vld [vmem:[#allocation2 + $0x1250] sm:$0xff]
    %v657 = vld [vmem:[#allocation2 + $0x1258] sm:$0xff]
    %v658 = vld [vmem:[#allocation2 + $0x1260] sm:$0xff]
    %v659 = vld [vmem:[#allocation2 + $0x1268] sm:$0xff]
    %v660 = vld [vmem:[#allocation2 + $0x1270] sm:$0xff]
    %v661 = vld [vmem:[#allocation2 + $0x1278] sm:$0xff]
    %v662 = vld [vmem:[#allocation2 + $0x1280] sm:$0xff]
    %v663 = vld [vmem:[#allocation2 + $0x1288] sm:$0xff]
    %v664 = vld [vmem:[#allocation2 + $0x1290] sm:$0xff]
    %v665 = vld [vmem:[#allocation2 + $0x1298] sm:$0xff]
    %v666 = vld [vmem:[#allocation2 + $0x12a0] sm:$0xff]
    %v667 = vld [vmem:[#allocation2 + $0x12a8] sm:$0xff]
    %v668 = vld [vmem:[#allocation2 + $0x12b0] sm:$0xff]
    %v669 = vld [vmem:[#allocation2 + $0x12b8] sm:$0xff]
    %v670 = vld [vmem:[#allocation2 + $0x12c0] sm:$0xff]
    %v671 = vld [vmem:[#allocation2 + $0x12c8] sm:$0xff]
    %v672 = vld [vmem:[#allocation2 + $0x12d0] sm:$0xff]
    %v673 = vld [vmem:[#allocation2 + $0x12d8] sm:$0xff]
    %v674 = vld [vmem:[#allocation2 + $0x12e0] sm:$0xff]
    %v675 = vld [vmem:[#allocation2 + $0x12e8] sm:$0xff]
    %v676 = vld [vmem:[#allocation2 + $0x12f0] sm:$0xff]
    %v677 = vld [vmem:[#allocation2 + $0x12f8] sm:$0xff]
    %v678 = vld [vmem:[#allocation2 + $0x1300] sm:$0xff]
    %v679 = vld [vmem:[#allocation2 + $0x1308] sm:$0xff]
    %v680 = vld [vmem:[#allocation2 + $0x1310] sm:$0xff]
    %v681 = vld [vmem:[#allocation2 + $0x1318] sm:$0xff]
    %v682 = vld [vmem:[#allocation2 + $0x1320] sm:$0xff]
    %v683 = vld [vmem:[#allocation2 + $0x1328] sm:$0xff]
    %v684 = vld [vmem:[#allocation2 + $0x1330] sm:$0xff]
    %v685 = vld [vmem:[#allocation2 + $0x1338] sm:$0xff]
    %v686 = vld [vmem:[#allocation2 + $0x1340] sm:$0xff]
    %v687 = vld [vmem:[#allocation2 + $0x1348] sm:$0xff]
    %v688 = vld [vmem:[#allocation2 + $0x1350] sm:$0xff]
    %v689 = vld [vmem:[#allocation2 + $0x1358] sm:$0xff]
    %v690 = vld [vmem:[#allocation2 + $0x1360] sm:$0xff]
    %v691 = vld [vmem:[#allocation2 + $0x1368] sm:$0xff]
    %v692 = vld [vmem:[#allocation2 + $0x1370] sm:$0xff]
    %v693 = vld [vmem:[#allocation2 + $0x1378] sm:$0xff]
    %v694 = vld [vmem:[#allocation2 + $0x1380] sm:$0xff]
    %v695 = vld [vmem:[#allocation2 + $0x1388] sm:$0xff]
    %v696 = vld [vmem:[#allocation2 + $0x1390] sm:$0xff]
    %v697 = vld [vmem:[#allocation2 + $0x1398] sm:$0xff]
    %v698 = vld [vmem:[#allocation2 + $0x13a0] sm:$0xff]
    %v699 = vld [vmem:[#allocation2 + $0x13a8] sm:$0xff]
    %v700 = vld [vmem:[#allocation2 + $0x13b0] sm:$0xff]
    %v701 = vld [vmem:[#allocation2 + $0x13b8] sm:$0xff]
    %v702 = vld [vmem:[#allocation2 + $0x13c0] sm:$0xff]
    %v703 = vld [vmem:[#allocation2 + $0x13c8] sm:$0xff]
    %v704 = vld [vmem:[#allocation2 + $0x13d0] sm:$0xff]
    %v705 = vld [vmem:[#allocation2 + $0x13d8] sm:$0xff]
    %v706 = vld [vmem:[#allocation2 + $0x13e0] sm:$0xff]
    %v707 = vld [vmem:[#allocation2 + $0x13e8] sm:$0xff]
    %v708 = vld [vmem:[#allocation2 + $0x13f0] sm:$0xff]
    %v709 = vld [vmem:[#allocation2 + $0x13f8] sm:$0xff]
    %v710 = vld [vmem:[#allocation2 + $0x1400] sm:$0xff]
    %v711 = vld [vmem:[#allocation2 + $0x1408] sm:$0xff]
    %v712 = vld [vmem:[#allocation2 + $0x1410] sm:$0xff]
    %v713 = vld [vmem:[#allocation2 + $0x1418] sm:$0xff]
    %v714 = vld [vmem:[#allocation2 + $0x1420] sm:$0xff]
    %v715 = vld [vmem:[#allocation2 + $0x1428] sm:$0xff]
    %v716 = vld [vmem:[#allocation2 + $0x1430] sm:$0xff]
    %v717 = vld [vmem:[#allocation2 + $0x1438] sm:$0xff]
    %v718 = vld [vmem:[#allocation2 + $0x1440] sm:$0xff]
    %v719 = vld [vmem:[#allocation2 + $0x1448] sm:$0xff]
    %v720 = vld [vmem:[#allocation2 + $0x1450] sm:$0xff]
    %v721 = vld [vmem:[#allocation2 + $0x1458] sm:$0xff]
    %v722 = vld [vmem:[#allocation2 + $0x1460] sm:$0xff]
    %v723 = vld [vmem:[#allocation2 + $0x1468] sm:$0xff]
    %v724 = vld [vmem:[#allocation2 + $0x1470] sm:$0xff]
    %v725 = vld [vmem:[#allocation2 + $0x1478] sm:$0xff]
    %v726 = vld [vmem:[#allocation2 + $0x1480] sm:$0xff]
    %v727 = vld [vmem:[#allocation2 + $0x1488] sm:$0xff]
    %v728 = vld [vmem:[#allocation2 + $0x1490] sm:$0xff]
    %v729 = vld [vmem:[#allocation2 + $0x1498] sm:$0xff]
    %v730 = vld [vmem:[#allocation2 + $0x14a0] sm:$0xff]
    %v731 = vld [vmem:[#allocation2 + $0x14a8] sm:$0xff]
    %v732 = vld [vmem:[#allocation2 + $0x14b0] sm:$0xff]
    %v733 = vld [vmem:[#allocation2 + $0x14b8] sm:$0xff]
    %v734 = vld [vmem:[#allocation2 + $0x14c0] sm:$0xff]
    %v735 = vld [vmem:[#allocation2 + $0x14c8] sm:$0xff]
    %v736 = vld [vmem:[#allocation2 + $0x14d0] sm:$0xff]
    %v737 = vld [vmem:[#allocation2 + $0x14d8] sm:$0xff]
    %v738 = vld [vmem:[#allocation2 + $0x14e0] sm:$0xff]
    %v739 = vld [vmem:[#allocation2 + $0x14e8] sm:$0xff]
    %v740 = vld [vmem:[#allocation2 + $0x14f0] sm:$0xff]
    %v741 = vld [vmem:[#allocation2 + $0x14f8] sm:$0xff]
    %v742 = vld [vmem:[#allocation2 + $0x1500] sm:$0xff]
    %v743 = vld [vmem:[#allocation2 + $0x1508] sm:$0xff]
    %v744 = vld [vmem:[#allocation2 + $0x1510] sm:$0xff]
    %v745 = vld [vmem:[#allocation2 + $0x1518] sm:$0xff]
    %v746 = vld [vmem:[#allocation2 + $0x1520] sm:$0xff]
    %v747 = vld [vmem:[#allocation2 + $0x1528] sm:$0xff]
    %v748 = vld [vmem:[#allocation2 + $0x1530] sm:$0xff]
    %v749 = vld [vmem:[#allocation2 + $0x1538] sm:$0xff]
    %v750 = vld [vmem:[#allocation2 + $0x1540] sm:$0xff]
    %v751 = vld [vmem:[#allocation2 + $0x1548] sm:$0xff]
    %v752 = vld [vmem:[#allocation2 + $0x1550] sm:$0xff]
    %v753 = vld [vmem:[#allocation2 + $0x1558] sm:$0xff]
    %v754 = vld [vmem:[#allocation2 + $0x1560] sm:$0xff]
    %v755 = vld [vmem:[#allocation2 + $0x1568] sm:$0xff]
    %v756 = vld [vmem:[#allocation2 + $0x1570] sm:$0xff]
    %v757 = vld [vmem:[#allocation2 + $0x1578] sm:$0xff]
    %v758 = vld [vmem:[#allocation2 + $0x1580] sm:$0xff]
    %v759 = vld [vmem:[#allocation2 + $0x1588] sm:$0xff]
    %v760 = vld [vmem:[#allocation2 + $0x1590] sm:$0xff]
    %v761 = vld [vmem:[#allocation2 + $0x1598] sm:$0xff]
    %v762 = vld [vmem:[#allocation2 + $0x15a0] sm:$0xff]
    %v763 = vld [vmem:[#allocation2 + $0x15a8] sm:$0xff]
    %v764 = vld [vmem:[#allocation2 + $0x15b0] sm:$0xff]
    %v765 = vld [vmem:[#allocation2 + $0x15b8] sm:$0xff]
    %v766 = vld [vmem:[#allocation2 + $0x15c0] sm:$0xff]
    %v767 = vld [vmem:[#allocation2 + $0x15c8] sm:$0xff]
    %v768 = vld [vmem:[#allocation2 + $0x15d0] sm:$0xff]
    %v769 = vld [vmem:[#allocation2 + $0x15d8] sm:$0xff]
    %v770 = vld [vmem:[#allocation2 + $0x15e0] sm:$0xff]
    %v771 = vld [vmem:[#allocation2 + $0x15e8] sm:$0xff]
    %v772 = vld [vmem:[#allocation2 + $0x15f0] sm:$0xff]
    %v773 = vld [vmem:[#allocation2 + $0x15f8] sm:$0xff]
    %v774 = vld [vmem:[#allocation2 + $0x1600] sm:$0xff]
    %v775 = vld [vmem:[#allocation2 + $0x1608] sm:$0xff]
    %v776 = vld [vmem:[#allocation2 + $0x1610] sm:$0xff]
    %v777 = vld [vmem:[#allocation2 + $0x1618] sm:$0xff]
    %v778 = vld [vmem:[#allocation2 + $0x1620] sm:$0xff]
    %v779 = vld [vmem:[#allocation2 + $0x1628] sm:$0xff]
    %v780 = vld [vmem:[#allocation2 + $0x1630] sm:$0xff]
    %v781 = vld [vmem:[#allocation2 + $0x1638] sm:$0xff]
    %v782 = vld [vmem:[#allocation2 + $0x1640] sm:$0xff]
    %v783 = vld [vmem:[#allocation2 + $0x1648] sm:$0xff]
    %v784 = vld [vmem:[#allocation2 + $0x1650] sm:$0xff]
    %v785 = vld [vmem:[#allocation2 + $0x1658] sm:$0xff]
    %v786 = vld [vmem:[#allocation2 + $0x1660] sm:$0xff]
    %v787 = vld [vmem:[#allocation2 + $0x1668] sm:$0xff]
    %v788 = vld [vmem:[#allocation2 + $0x1670] sm:$0xff]
    %v789 = vld [vmem:[#allocation2 + $0x1678] sm:$0xff]
    %v790 = vld [vmem:[#allocation2 + $0x1680] sm:$0xff]
    %v791 = vld [vmem:[#allocation2 + $0x1688] sm:$0xff]
    %v792 = vld [vmem:[#allocation2 + $0x1690] sm:$0xff]
    %v793 = vld [vmem:[#allocation2 + $0x1698] sm:$0xff]
    %v794 = vld [vmem:[#allocation2 + $0x16a0] sm:$0xff]
    %v795 = vld [vmem:[#allocation2 + $0x16a8] sm:$0xff]
    %v796 = vld [vmem:[#allocation2 + $0x16b0] sm:$0xff]
    %v797 = vld [vmem:[#allocation2 + $0x16b8] sm:$0xff]
    %v798 = vld [vmem:[#allocation2 + $0x16c0] sm:$0xff]
    %v799 = vld [vmem:[#allocation2 + $0x16c8] sm:$0xff]
    %v800 = vld [vmem:[#allocation2 + $0x16d0] sm:$0xff]
    %v801 = vld [vmem:[#allocation2 + $0x16d8] sm:$0xff]
    %v802 = vld [vmem:[#allocation2 + $0x16e0] sm:$0xff]
    %v803 = vld [vmem:[#allocation2 + $0x16e8] sm:$0xff]
    %v804 = vld [vmem:[#allocation2 + $0x16f0] sm:$0xff]
    %v805 = vld [vmem:[#allocation2 + $0x16f8] sm:$0xff]
    %v806 = vld [vmem:[#allocation2 + $0x1700] sm:$0xff]
    %v807 = vld [vmem:[#allocation2 + $0x1708] sm:$0xff]
    %v808 = vld [vmem:[#allocation2 + $0x1710] sm:$0xff]
    %v809 = vld [vmem:[#allocation2 + $0x1718] sm:$0xff]
    %v810 = vld [vmem:[#allocation2 + $0x1720] sm:$0xff]
    %v811 = vld [vmem:[#allocation2 + $0x1728] sm:$0xff]
    %v812 = vld [vmem:[#allocation2 + $0x1730] sm:$0xff]
    %v813 = vld [vmem:[#allocation2 + $0x1738] sm:$0xff]
    %v814 = vld [vmem:[#allocation2 + $0x1740] sm:$0xff]
    %v815 = vld [vmem:[#allocation2 + $0x1748] sm:$0xff]
    %v816 = vld [vmem:[#allocation2 + $0x1750] sm:$0xff]
    %v817 = vld [vmem:[#allocation2 + $0x1758] sm:$0xff]
    %v818 = vld [vmem:[#allocation2 + $0x1760] sm:$0xff]
    %v819 = vld [vmem:[#allocation2 + $0x1768] sm:$0xff]
    %v820 = vld [vmem:[#allocation2 + $0x1770] sm:$0xff]
    %v821 = vld [vmem:[#allocation2 + $0x1778] sm:$0xff]
    %v822 = vld [vmem:[#allocation2 + $0x1780] sm:$0xff]
    %v823 = vld [vmem:[#allocation2 + $0x1788] sm:$0xff]
    %v824 = vld [vmem:[#allocation2 + $0x1790] sm:$0xff]
    %v825 = vld [vmem:[#allocation2 + $0x1798] sm:$0xff]
    %v826 = vld [vmem:[#allocation2 + $0x17a0] sm:$0xff]
    %v827 = vld [vmem:[#allocation2 + $0x17a8] sm:$0xff]
    %v828 = vld [vmem:[#allocation2 + $0x17b0] sm:$0xff]
    %v829 = vld [vmem:[#allocation2 + $0x17b8] sm:$0xff]
    %v830 = vld [vmem:[#allocation2 + $0x17c0] sm:$0xff]
    %v831 = vld [vmem:[#allocation2 + $0x17c8] sm:$0xff]
    %v832 = vld [vmem:[#allocation2 + $0x17d0] sm:$0xff]
    %v833 = vld [vmem:[#allocation2 + $0x17d8] sm:$0xff]
    %v834 = vld [vmem:[#allocation2 + $0x17e0] sm:$0xff]
    %v835 = vld [vmem:[#allocation2 + $0x17e8] sm:$0xff]
    %v836 = vld [vmem:[#allocation2 + $0x17f0] sm:$0xff]
    %v837 = vld [vmem:[#allocation2 + $0x17f8] sm:$0xff]
    %v838 = vld [vmem:[#allocation2 + $0x1800] sm:$0xff]
    %v839 = vld [vmem:[#allocation2 + $0x1808] sm:$0xff]
    %v840 = vld [vmem:[#allocation2 + $0x1810] sm:$0xff]
    %v841 = vld [vmem:[#allocation2 + $0x1818] sm:$0xff]
    %v842 = vld [vmem:[#allocation2 + $0x1820] sm:$0xff]
    %v843 = vld [vmem:[#allocation2 + $0x1828] sm:$0xff]
    %v844 = vld [vmem:[#allocation2 + $0x1830] sm:$0xff]
    %v845 = vld [vmem:[#allocation2 + $0x1838] sm:$0xff]
    %v846 = vld [vmem:[#allocation2 + $0x1840] sm:$0xff]
    %v847 = vld [vmem:[#allocation2 + $0x1848] sm:$0xff]
    %v848 = vld [vmem:[#allocation2 + $0x1850] sm:$0xff]
    %v849 = vld [vmem:[#allocation2 + $0x1858] sm:$0xff]
    %v850 = vld [vmem:[#allocation2 + $0x1860] sm:$0xff]
    %v851 = vld [vmem:[#allocation2 + $0x1868] sm:$0xff]
    %v852 = vld [vmem:[#allocation2 + $0x1870] sm:$0xff]
    %v853 = vld [vmem:[#allocation2 + $0x1878] sm:$0xff]
    %v854 = vld [vmem:[#allocation2 + $0x1880] sm:$0xff]
    %v855 = vld [vmem:[#allocation2 + $0x1888] sm:$0xff]
    %v856 = vld [vmem:[#allocation2 + $0x1890] sm:$0xff]
    %v857 = vld [vmem:[#allocation2 + $0x1898] sm:$0xff]
    %v858 = vld [vmem:[#allocation2 + $0x18a0] sm:$0xff]
    %v859 = vld [vmem:[#allocation2 + $0x18a8] sm:$0xff]
    %v860 = vld [vmem:[#allocation2 + $0x18b0] sm:$0xff]
    %v861 = vld [vmem:[#allocation2 + $0x18b8] sm:$0xff]
    %v862 = vld [vmem:[#allocation2 + $0x18c0] sm:$0xff]
    %v863 = vld [vmem:[#allocation2 + $0x18c8] sm:$0xff]
    %v864 = vld [vmem:[#allocation2 + $0x18d0] sm:$0xff]
    %v865 = vld [vmem:[#allocation2 + $0x18d8] sm:$0xff]
    %v866 = vld [vmem:[#allocation2 + $0x18e0] sm:$0xff]
    %v867 = vld [vmem:[#allocation2 + $0x18e8] sm:$0xff]
    %v868 = vld [vmem:[#allocation2 + $0x18f0] sm:$0xff]
    %v869 = vld [vmem:[#allocation2 + $0x18f8] sm:$0xff]
    %v870 = vld [vmem:[#allocation2 + $0x1900] sm:$0xff]
    %v871 = vld [vmem:[#allocation2 + $0x1908] sm:$0xff]
    %v872 = vld [vmem:[#allocation2 + $0x1910] sm:$0xff]
    %v873 = vld [vmem:[#allocation2 + $0x1918] sm:$0xff]
    %v874 = vld [vmem:[#allocation2 + $0x1920] sm:$0xff]
    %v875 = vld [vmem:[#allocation2 + $0x1928] sm:$0xff]
    %v876 = vld [vmem:[#allocation2 + $0x1930] sm:$0xff]
    %v877 = vld [vmem:[#allocation2 + $0x1938] sm:$0xff]
    %v878 = vld [vmem:[#allocation2 + $0x1940] sm:$0xff]
    %v879 = vld [vmem:[#allocation2 + $0x1948] sm:$0xff]
    %v880 = vld [vmem:[#allocation2 + $0x1950] sm:$0xff]
    %v881 = vld [vmem:[#allocation2 + $0x1958] sm:$0xff]
    %v882 = vld [vmem:[#allocation2 + $0x1960] sm:$0xff]
    %v883 = vld [vmem:[#allocation2 + $0x1968] sm:$0xff]
    %v884 = vld [vmem:[#allocation2 + $0x1970] sm:$0xff]
    %v885 = vld [vmem:[#allocation2 + $0x1978] sm:$0xff]
    %v886 = vld [vmem:[#allocation2 + $0x1980] sm:$0xff]
    %v887 = vld [vmem:[#allocation2 + $0x1988] sm:$0xff]
    %v888 = vld [vmem:[#allocation2 + $0x1990] sm:$0xff]
    %v889 = vld [vmem:[#allocation2 + $0x1998] sm:$0xff]
    %v890 = vld [vmem:[#allocation2 + $0x19a0] sm:$0xff]
    %v891 = vld [vmem:[#allocation2 + $0x19a8] sm:$0xff]
    %v892 = vld [vmem:[#allocation2 + $0x19b0] sm:$0xff]
    %v893 = vld [vmem:[#allocation2 + $0x19b8] sm:$0xff]
    %v894 = vld [vmem:[#allocation2 + $0x19c0] sm:$0xff]
    %v895 = vld [vmem:[#allocation2 + $0x19c8] sm:$0xff]
    %v896 = vld [vmem:[#allocation2 + $0x19d0] sm:$0xff]
    %v897 = vld [vmem:[#allocation2 + $0x19d8] sm:$0xff]
    %v898 = vld [vmem:[#allocation2 + $0x19e0] sm:$0xff]
    %v899 = vld [vmem:[#allocation2 + $0x19e8] sm:$0xff]
    %v900 = vld [vmem:[#allocation2 + $0x19f0] sm:$0xff]
    %v901 = vld [vmem:[#allocation2 + $0x19f8] sm:$0xff]
    %v902 = vld [vmem:[#allocation2 + $0x1a00] sm:$0xff]
    %v903 = vld [vmem:[#allocation2 + $0x1a08] sm:$0xff]
    %v904 = vld [vmem:[#allocation2 + $0x1a10] sm:$0xff]
    %v905 = vld [vmem:[#allocation2 + $0x1a18] sm:$0xff]
    %v906 = vld [vmem:[#allocation2 + $0x1a20] sm:$0xff]
    %v907 = vld [vmem:[#allocation2 + $0x1a28] sm:$0xff]
    %v908 = vld [vmem:[#allocation2 + $0x1a30] sm:$0xff]
    %v909 = vld [vmem:[#allocation2 + $0x1a38] sm:$0xff]
    %v910 = vld [vmem:[#allocation2 + $0x1a40] sm:$0xff]
    %v911 = vld [vmem:[#allocation2 + $0x1a48] sm:$0xff]
    %v912 = vld [vmem:[#allocation2 + $0x1a50] sm:$0xff]
    %v913 = vld [vmem:[#allocation2 + $0x1a58] sm:$0xff]
    %v914 = vld [vmem:[#allocation2 + $0x1a60] sm:$0xff]
    %v915 = vld [vmem:[#allocation2 + $0x1a68] sm:$0xff]
    %v916 = vld [vmem:[#allocation2 + $0x1a70] sm:$0xff]
    %v917 = vld [vmem:[#allocation2 + $0x1a78] sm:$0xff]
    %v918 = vld [vmem:[#allocation2 + $0x1a80] sm:$0xff]
    %v919 = vld [vmem:[#allocation2 + $0x1a88] sm:$0xff]
    %v920 = vld [vmem:[#allocation2 + $0x1a90] sm:$0xff]
    %v921 = vld [vmem:[#allocation2 + $0x1a98] sm:$0xff]
    %v922 = vld [vmem:[#allocation2 + $0x1aa0] sm:$0xff]
    %v923 = vld [vmem:[#allocation2 + $0x1aa8] sm:$0xff]
    %v924 = vld [vmem:[#allocation2 + $0x1ab0] sm:$0xff]
    %v925 = vld [vmem:[#allocation2 + $0x1ab8] sm:$0xff]
    %v926 = vld [vmem:[#allocation2 + $0x1ac0] sm:$0xff]
    %v927 = vld [vmem:[#allocation2 + $0x1ac8] sm:$0xff]
    %v928 = vld [vmem:[#allocation2 + $0x1ad0] sm:$0xff]
    %v929 = vld [vmem:[#allocation2 + $0x1ad8] sm:$0xff]
    %v930 = vld [vmem:[#allocation2 + $0x1ae0] sm:$0xff]
    %v931 = vld [vmem:[#allocation2 + $0x1ae8] sm:$0xff]
    %v932 = vld [vmem:[#allocation2 + $0x1af0] sm:$0xff]
    %v933 = vld [vmem:[#allocation2 + $0x1af8] sm:$0xff]
    %v934 = vld [vmem:[#allocation2 + $0x1b00] sm:$0xff]
    %v935 = vld [vmem:[#allocation2 + $0x1b08] sm:$0xff]
    %v936 = vld [vmem:[#allocation2 + $0x1b10] sm:$0xff]
    %v937 = vld [vmem:[#allocation2 + $0x1b18] sm:$0xff]
    %v938 = vld [vmem:[#allocation2 + $0x1b20] sm:$0xff]
    %v939 = vld [vmem:[#allocation2 + $0x1b28] sm:$0xff]
    %v940 = vld [vmem:[#allocation2 + $0x1b30] sm:$0xff]
    %v941 = vld [vmem:[#allocation2 + $0x1b38] sm:$0xff]
    %v942 = vld [vmem:[#allocation2 + $0x1b40] sm:$0xff]
    %v943 = vld [vmem:[#allocation2 + $0x1b48] sm:$0xff]
    %v944 = vld [vmem:[#allocation2 + $0x1b50] sm:$0xff]
    %v945 = vld [vmem:[#allocation2 + $0x1b58] sm:$0xff]
    %v946 = vld [vmem:[#allocation2 + $0x1b60] sm:$0xff]
    %v947 = vld [vmem:[#allocation2 + $0x1b68] sm:$0xff]
    %v948 = vld [vmem:[#allocation2 + $0x1b70] sm:$0xff]
    %v949 = vld [vmem:[#allocation2 + $0x1b78] sm:$0xff]
    %v950 = vld [vmem:[#allocation2 + $0x1b80] sm:$0xff]
    %v951 = vld [vmem:[#allocation2 + $0x1b88] sm:$0xff]
    %v952 = vld [vmem:[#allocation2 + $0x1b90] sm:$0xff]
    %v953 = vld [vmem:[#allocation2 + $0x1b98] sm:$0xff]
    %v954 = vld [vmem:[#allocation2 + $0x1ba0] sm:$0xff]
    %v955 = vld [vmem:[#allocation2 + $0x1ba8] sm:$0xff]
    %v956 = vld [vmem:[#allocation2 + $0x1bb0] sm:$0xff]
    %v957 = vld [vmem:[#allocation2 + $0x1bb8] sm:$0xff]
    %v958 = vld [vmem:[#allocation2 + $0x1bc0] sm:$0xff]
    %v959 = vld [vmem:[#allocation2 + $0x1bc8] sm:$0xff]
    %v960 = vld [vmem:[#allocation2 + $0x1bd0] sm:$0xff]
    %v961 = vld [vmem:[#allocation2 + $0x1bd8] sm:$0xff]
    %v962 = vld [vmem:[#allocation2 + $0x1be0] sm:$0xff]
    %v963 = vld [vmem:[#allocation2 + $0x1be8] sm:$0xff]
    %v964 = vld [vmem:[#allocation2 + $0x1bf0] sm:$0xff]
    %v965 = vld [vmem:[#allocation2 + $0x1bf8] sm:$0xff]
    %v966 = vld [vmem:[#allocation2 + $0x1c00] sm:$0xff]
    %v967 = vld [vmem:[#allocation2 + $0x1c08] sm:$0xff]
    %v968 = vld [vmem:[#allocation2 + $0x1c10] sm:$0xff]
    %v969 = vld [vmem:[#allocation2 + $0x1c18] sm:$0xff]
    %v970 = vld [vmem:[#allocation2 + $0x1c20] sm:$0xff]
    %v971 = vld [vmem:[#allocation2 + $0x1c28] sm:$0xff]
    %v972 = vld [vmem:[#allocation2 + $0x1c30] sm:$0xff]
    %v973 = vld [vmem:[#allocation2 + $0x1c38] sm:$0xff]
    %v974 = vld [vmem:[#allocation2 + $0x1c40] sm:$0xff]
    %v975 = vld [vmem:[#allocation2 + $0x1c48] sm:$0xff]
    %v976 = vld [vmem:[#allocation2 + $0x1c50] sm:$0xff]
    %v977 = vld [vmem:[#allocation2 + $0x1c58] sm:$0xff]
    %v978 = vld [vmem:[#allocation2 + $0x1c60] sm:$0xff]
    %v979 = vld [vmem:[#allocation2 + $0x1c68] sm:$0xff]
    %v980 = vld [vmem:[#allocation2 + $0x1c70] sm:$0xff]
    %v981 = vld [vmem:[#allocation2 + $0x1c78] sm:$0xff]
    %v982 = vld [vmem:[#allocation2 + $0x1c80] sm:$0xff]
    %v983 = vld [vmem:[#allocation2 + $0x1c88] sm:$0xff]
    %v984 = vld [vmem:[#allocation2 + $0x1c90] sm:$0xff]
    %v985 = vld [vmem:[#allocation2 + $0x1c98] sm:$0xff]
    %v986 = vld [vmem:[#allocation2 + $0x1ca0] sm:$0xff]
    %v987 = vld [vmem:[#allocation2 + $0x1ca8] sm:$0xff]
    %v988 = vld [vmem:[#allocation2 + $0x1cb0] sm:$0xff]
    %v989 = vld [vmem:[#allocation2 + $0x1cb8] sm:$0xff]
    %v990 = vld [vmem:[#allocation2 + $0x1cc0] sm:$0xff]
    %v991 = vld [vmem:[#allocation2 + $0x1cc8] sm:$0xff]
    %v992 = vld [vmem:[#allocation2 + $0x1cd0] sm:$0xff]
    %v993 = vld [vmem:[#allocation2 + $0x1cd8] sm:$0xff]
    %v994 = vld [vmem:[#allocation2 + $0x1ce0] sm:$0xff]
    %v995 = vld [vmem:[#allocation2 + $0x1ce8] sm:$0xff]
    %v996 = vld [vmem:[#allocation2 + $0x1cf0] sm:$0xff]
    %v997 = vld [vmem:[#allocation2 + $0x1cf8] sm:$0xff]
    %v998 = vld [vmem:[#allocation2 + $0x1d00] sm:$0xff]
    %v999 = vld [vmem:[#allocation2 + $0x1d08] sm:$0xff]
    %v1000 = vld [vmem:[#allocation2 + $0x1d10] sm:$0xff]
    %v1001 = vld [vmem:[#allocation2 + $0x1d18] sm:$0xff]
    %v1002 = vld [vmem:[#allocation2 + $0x1d20] sm:$0xff]
    %v1003 = vld [vmem:[#allocation2 + $0x1d28] sm:$0xff]
    %v1004 = vld [vmem:[#allocation2 + $0x1d30] sm:$0xff]
    %v1005 = vld [vmem:[#allocation2 + $0x1d38] sm:$0xff]
    %v1006 = vld [vmem:[#allocation2 + $0x1d40] sm:$0xff]
    %v1007 = vld [vmem:[#allocation2 + $0x1d48] sm:$0xff]
    %v1008 = vld [vmem:[#allocation2 + $0x1d50] sm:$0xff]
    %v1009 = vld [vmem:[#allocation2 + $0x1d58] sm:$0xff]
    %v1010 = vld [vmem:[#allocation2 + $0x1d60] sm:$0xff]
    %v1011 = vld [vmem:[#allocation2 + $0x1d68] sm:$0xff]
    %v1012 = vld [vmem:[#allocation2 + $0x1d70] sm:$0xff]
    %v1013 = vld [vmem:[#allocation2 + $0x1d78] sm:$0xff]
    %v1014 = vld [vmem:[#allocation2 + $0x1d80] sm:$0xff]
    %v1015 = vld [vmem:[#allocation2 + $0x1d88] sm:$0xff]
    %v1016 = vld [vmem:[#allocation2 + $0x1d90] sm:$0xff]
    %v1017 = vld [vmem:[#allocation2 + $0x1d98] sm:$0xff]
    %v1018 = vld [vmem:[#allocation2 + $0x1da0] sm:$0xff]
    %v1019 = vld [vmem:[#allocation2 + $0x1da8] sm:$0xff]
    %v1020 = vld [vmem:[#allocation2 + $0x1db0] sm:$0xff]
    %v1021 = vld [vmem:[#allocation2 + $0x1db8] sm:$0xff]
    %v1022 = vld [vmem:[#allocation2 + $0x1dc0] sm:$0xff]
    %v1023 = vld [vmem:[#allocation2 + $0x1dc8] sm:$0xff]
    %v1024 = vld [vmem:[#allocation2 + $0x1dd0] sm:$0xff]
    %v1025 = vld [vmem:[#allocation2 + $0x1dd8] sm:$0xff]
    %v1026 = vld [vmem:[#allocation2 + $0x1de0] sm:$0xff]
    %v1027 = vld [vmem:[#allocation2 + $0x1de8] sm:$0xff]
    %v1028 = vld [vmem:[#allocation2 + $0x1df0] sm:$0xff]
    %v1029 = vld [vmem:[#allocation2 + $0x1df8] sm:$0xff]
    %v1030 = vld [vmem:[#allocation2 + $0x1e00] sm:$0xff]
    %v1031 = vld [vmem:[#allocation2 + $0x1e08] sm:$0xff]
    %v1032 = vld [vmem:[#allocation2 + $0x1e10] sm:$0xff]
    %v1033 = vld [vmem:[#allocation2 + $0x1e18] sm:$0xff]
    %v1034 = vld [vmem:[#allocation2 + $0x1e20] sm:$0xff]
    %v1035 = vld [vmem:[#allocation2 + $0x1e28] sm:$0xff]
    %v1036 = vld [vmem:[#allocation2 + $0x1e30] sm:$0xff]
    %v1037 = vld [vmem:[#allocation2 + $0x1e38] sm:$0xff]
    %v1038 = vld [vmem:[#allocation2 + $0x1e40] sm:$0xff]
    %v1039 = vld [vmem:[#allocation2 + $0x1e48] sm:$0xff]
    %v1040 = vld [vmem:[#allocation2 + $0x1e50] sm:$0xff]
    %v1041 = vld [vmem:[#allocation2 + $0x1e58] sm:$0xff]
    %v1042 = vld [vmem:[#allocation2 + $0x1e60] sm:$0xff]
    %v1043 = vld [vmem:[#allocation2 + $0x1e68] sm:$0xff]
    %v1044 = vld [vmem:[#allocation2 + $0x1e70] sm:$0xff]
    %v1045 = vld [vmem:[#allocation2 + $0x1e78] sm:$0xff]
    %v1046 = vld [vmem:[#allocation2 + $0x1e80] sm:$0xff]
    %v1047 = vld [vmem:[#allocation2 + $0x1e88] sm:$0xff]
    %v1048 = vld [vmem:[#allocation2 + $0x1e90] sm:$0xff]
    %v1049 = vld [vmem:[#allocation2 + $0x1e98] sm:$0xff]
    %v1050 = vld [vmem:[#allocation2 + $0x1ea0] sm:$0xff]
    %v1051 = vld [vmem:[#allocation2 + $0x1ea8] sm:$0xff]
    %v1052 = vld [vmem:[#allocation2 + $0x1eb0] sm:$0xff]
    %v1053 = vld [vmem:[#allocation2 + $0x1eb8] sm:$0xff]
    %v1054 = vld [vmem:[#allocation2 + $0x1ec0] sm:$0xff]
    %v1055 = vld [vmem:[#allocation2 + $0x1ec8] sm:$0xff]
    %v1056 = vld [vmem:[#allocation2 + $0x1ed0] sm:$0xff]
    %v1057 = vld [vmem:[#allocation2 + $0x1ed8] sm:$0xff]
    %v1058 = vld [vmem:[#allocation2 + $0x1ee0] sm:$0xff]
    %v1059 = vld [vmem:[#allocation2 + $0x1ee8] sm:$0xff]
    %v1060 = vld [vmem:[#allocation2 + $0x1ef0] sm:$0xff]
    %v1061 = vld [vmem:[#allocation2 + $0x1ef8] sm:$0xff]
    %v1062 = vld [vmem:[#allocation2 + $0x1f00] sm:$0xff]
    %v1063 = vld [vmem:[#allocation2 + $0x1f08] sm:$0xff]
    %v1064 = vld [vmem:[#allocation2 + $0x1f10] sm:$0xff]
    %v1065 = vld [vmem:[#allocation2 + $0x1f18] sm:$0xff]
    %v1066 = vld [vmem:[#allocation2 + $0x1f20] sm:$0xff]
    %v1067 = vld [vmem:[#allocation2 + $0x1f28] sm:$0xff]
    %v1068 = vld [vmem:[#allocation2 + $0x1f30] sm:$0xff]
    %v1069 = vld [vmem:[#allocation2 + $0x1f38] sm:$0xff]
    %v1070 = vld [vmem:[#allocation2 + $0x1f40] sm:$0xff]
    %v1071 = vld [vmem:[#allocation2 + $0x1f48] sm:$0xff]
    %v1072 = vld [vmem:[#allocation2 + $0x1f50] sm:$0xff]
    %v1073 = vld [vmem:[#allocation2 + $0x1f58] sm:$0xff]
    %v1074 = vld [vmem:[#allocation2 + $0x1f60] sm:$0xff]
    %v1075 = vld [vmem:[#allocation2 + $0x1f68] sm:$0xff]
    %v1076 = vld [vmem:[#allocation2 + $0x1f70] sm:$0xff]
    %v1077 = vld [vmem:[#allocation2 + $0x1f78] sm:$0xff]
    %v1078 = vld [vmem:[#allocation2 + $0x1f80] sm:$0xff]
    %v1079 = vld [vmem:[#allocation2 + $0x1f88] sm:$0xff]
    %v1080 = vld [vmem:[#allocation2 + $0x1f90] sm:$0xff]
    %v1081 = vld [vmem:[#allocation2 + $0x1f98] sm:$0xff]
    %v1082 = vld [vmem:[#allocation2 + $0x1fa0] sm:$0xff]
    %v1083 = vld [vmem:[#allocation2 + $0x1fa8] sm:$0xff]
    %v1084 = vld [vmem:[#allocation2 + $0x1fb0] sm:$0xff]
    %v1085 = vld [vmem:[#allocation2 + $0x1fb8] sm:$0xff]
    %v1086 = vld [vmem:[#allocation2 + $0x1fc0] sm:$0xff]
    %v1087 = vld [vmem:[#allocation2 + $0x1fc8] sm:$0xff]
    %v1088 = vld [vmem:[#allocation2 + $0x1fd0] sm:$0xff]
    %v1089 = vld [vmem:[#allocation2 + $0x1fd8] sm:$0xff]
    %v1090 = vld [vmem:[#allocation2 + $0x1fe0] sm:$0xff]
    %v1091 = vld [vmem:[#allocation2 + $0x1fe8] sm:$0xff]
    %v1092 = vld [vmem:[#allocation2 + $0x1ff0] sm:$0xff]
    %v1093 = vld [vmem:[#allocation2 + $0x1ff8] sm:$0xff]
    %v1094 = vld [vmem:[#allocation2 + $0x2000] sm:$0xff]
    %v1095 = vld [vmem:[#allocation2 + $0x2008] sm:$0xff]
    %v1096 = vld [vmem:[#allocation2 + $0x2010] sm:$0xff]
    %v1097 = vld [vmem:[#allocation2 + $0x2018] sm:$0xff]
    %v1098 = vld [vmem:[#allocation2 + $0x2020] sm:$0xff]
    %v1099 = vld [vmem:[#allocation2 + $0x2028] sm:$0xff]
    %v1100 = vld [vmem:[#allocation2 + $0x2030] sm:$0xff]
    %v1101 = vld [vmem:[#allocation2 + $0x2038] sm:$0xff]
    %v1102 = vld [vmem:[#allocation2 + $0x2040] sm:$0xff]
    %v1103 = vld [vmem:[#allocation2 + $0x2048] sm:$0xff]
    %v1104 = vld [vmem:[#allocation2 + $0x2050] sm:$0xff]
    %v1105 = vld [vmem:[#allocation2 + $0x2058] sm:$0xff]
    %v1106 = vld [vmem:[#allocation2 + $0x2060] sm:$0xff]
    %v1107 = vld [vmem:[#allocation2 + $0x2068] sm:$0xff]
    %v1108 = vld [vmem:[#allocation2 + $0x2070] sm:$0xff]
    %v1109 = vld [vmem:[#allocation2 + $0x2078] sm:$0xff]
    %v1110 = vld [vmem:[#allocation2 + $0x2080] sm:$0xff]
    %v1111 = vld [vmem:[#allocation2 + $0x2088] sm:$0xff]
    %v1112 = vld [vmem:[#allocation2 + $0x2090] sm:$0xff]
    %v1113 = vld [vmem:[#allocation2 + $0x2098] sm:$0xff]
    %v1114 = vld [vmem:[#allocation2 + $0x20a0] sm:$0xff]
    %v1115 = vld [vmem:[#allocation2 + $0x20a8] sm:$0xff]
    %v1116 = vld [vmem:[#allocation2 + $0x20b0] sm:$0xff]
    %v1117 = vld [vmem:[#allocation2 + $0x20b8] sm:$0xff]
    %v1118 = vld [vmem:[#allocation2 + $0x20c0] sm:$0xff]
    %v1119 = vld [vmem:[#allocation2 + $0x20c8] sm:$0xff]
    %v1120 = vld [vmem:[#allocation2 + $0x20d0] sm:$0xff]
    %v1121 = vld [vmem:[#allocation2 + $0x20d8] sm:$0xff]
    %v1122 = vld [vmem:[#allocation2 + $0x20e0] sm:$0xff]
    %v1123 = vld [vmem:[#allocation2 + $0x20e8] sm:$0xff]
    %v1124 = vld [vmem:[#allocation2 + $0x20f0] sm:$0xff]
    %v1125 = vld [vmem:[#allocation2 + $0x20f8] sm:$0xff]
    %v1126 = vld [vmem:[#allocation2 + $0x2100] sm:$0xff]
    %v1127 = vld [vmem:[#allocation2 + $0x2108] sm:$0xff]
    %v1128 = vld [vmem:[#allocation2 + $0x2110] sm:$0xff]
    %v1129 = vld [vmem:[#allocation2 + $0x2118] sm:$0xff]
    %v1130 = vld [vmem:[#allocation2 + $0x2120] sm:$0xff]
    %v1131 = vld [vmem:[#allocation2 + $0x2128] sm:$0xff]
    %v1132 = vld [vmem:[#allocation2 + $0x2130] sm:$0xff]
    %v1133 = vld [vmem:[#allocation2 + $0x2138] sm:$0xff]
    %v1134 = vld [vmem:[#allocation2 + $0x2140] sm:$0xff]
    %v1135 = vld [vmem:[#allocation2 + $0x2148] sm:$0xff]
    %v1136 = vld [vmem:[#allocation2 + $0x2150] sm:$0xff]
    %v1137 = vld [vmem:[#allocation2 + $0x2158] sm:$0xff]
    %v1138 = vld [vmem:[#allocation2 + $0x2160] sm:$0xff]
    %v1139 = vld [vmem:[#allocation2 + $0x2168] sm:$0xff]
    %v1140 = vld [vmem:[#allocation2 + $0x2170] sm:$0xff]
    %v1141 = vld [vmem:[#allocation2 + $0x2178] sm:$0xff]
    %v1142 = vld [vmem:[#allocation2 + $0x2180] sm:$0xff]
    %v1143 = vld [vmem:[#allocation2 + $0x2188] sm:$0xff]
    %v1144 = vld [vmem:[#allocation2 + $0x2190] sm:$0xff]
    %v1145 = vld [vmem:[#allocation2 + $0x2198] sm:$0xff]
    %v1146 = vld [vmem:[#allocation2 + $0x21a0] sm:$0xff]
    %v1147 = vld [vmem:[#allocation2 + $0x21a8] sm:$0xff]
    %v1148 = vld [vmem:[#allocation2 + $0x21b0] sm:$0xff]
    %v1149 = vld [vmem:[#allocation2 + $0x21b8] sm:$0xff]
    %v1150 = vld [vmem:[#allocation2 + $0x21c0] sm:$0xff]
    %v1151 = vld [vmem:[#allocation2 + $0x21c8] sm:$0xff]
    %v1152 = vld [vmem:[#allocation2 + $0x21d0] sm:$0xff]
    %v1153 = vld [vmem:[#allocation2 + $0x21d8] sm:$0xff]
    %v1154 = vld [vmem:[#allocation2 + $0x21e0] sm:$0xff]
    %v1155 = vld [vmem:[#allocation2 + $0x21e8] sm:$0xff]
    %v1156 = vld [vmem:[#allocation2 + $0x21f0] sm:$0xff]
    %v1157 = vld [vmem:[#allocation2 + $0x21f8] sm:$0xff]
    %v1158 = vld [vmem:[#allocation2 + $0x2200] sm:$0xff]
    %v1159 = vld [vmem:[#allocation2 + $0x2208] sm:$0xff]
    %v1160 = vld [vmem:[#allocation2 + $0x2210] sm:$0xff]
    %v1161 = vld [vmem:[#allocation2 + $0x2218] sm:$0xff]
    %v1162 = vld [vmem:[#allocation2 + $0x2220] sm:$0xff]
    %v1163 = vld [vmem:[#allocation2 + $0x2228] sm:$0xff]
    %v1164 = vld [vmem:[#allocation2 + $0x2230] sm:$0xff]
    %v1165 = vld [vmem:[#allocation2 + $0x2238] sm:$0xff]
    %v1166 = vld [vmem:[#allocation2 + $0x2240] sm:$0xff]
    %v1167 = vld [vmem:[#allocation2 + $0x2248] sm:$0xff]
    %v1168 = vld [vmem:[#allocation2 + $0x2250] sm:$0xff]
    %v1169 = vld [vmem:[#allocation2 + $0x2258] sm:$0xff]
    %v1170 = vld [vmem:[#allocation2 + $0x2260] sm:$0xff]
    %v1171 = vld [vmem:[#allocation2 + $0x2268] sm:$0xff]
    %v1172 = vld [vmem:[#allocation2 + $0x2270] sm:$0xff]
    %v1173 = vld [vmem:[#allocation2 + $0x2278] sm:$0xff]
    %v1174 = vld [vmem:[#allocation2 + $0x2280] sm:$0xff]
    %v1175 = vld [vmem:[#allocation2 + $0x2288] sm:$0xff]
    %v1176 = vld [vmem:[#allocation2 + $0x2290] sm:$0xff]
    %v1177 = vld [vmem:[#allocation2 + $0x2298] sm:$0xff]
    %v1178 = vld [vmem:[#allocation2 + $0x22a0] sm:$0xff]
    %v1179 = vld [vmem:[#allocation2 + $0x22a8] sm:$0xff]
    %v1180 = vld [vmem:[#allocation2 + $0x22b0] sm:$0xff]
    %v1181 = vld [vmem:[#allocation2 + $0x22b8] sm:$0xff]
    %v1182 = vld [vmem:[#allocation2 + $0x22c0] sm:$0xff]
    %v1183 = vld [vmem:[#allocation2 + $0x22c8] sm:$0xff]
    %v1184 = vld [vmem:[#allocation2 + $0x22d0] sm:$0xff]
    %v1185 = vld [vmem:[#allocation2 + $0x22d8] sm:$0xff]
    %v1186 = vld [vmem:[#allocation2 + $0x22e0] sm:$0xff]
    %v1187 = vld [vmem:[#allocation2 + $0x22e8] sm:$0xff]
    %v1188 = vld [vmem:[#allocation2 + $0x22f0] sm:$0xff]
    %v1189 = vld [vmem:[#allocation2 + $0x22f8] sm:$0xff]
    %v1190 = vld [vmem:[#allocation2 + $0x2300] sm:$0xff]
    %v1191 = vld [vmem:[#allocation2 + $0x2308] sm:$0xff]
    %v1192 = vld [vmem:[#allocation2 + $0x2310] sm:$0xff]
    %v1193 = vld [vmem:[#allocation2 + $0x2318] sm:$0xff]
    %v1194 = vld [vmem:[#allocation2 + $0x2320] sm:$0xff]
    %v1195 = vld [vmem:[#allocation2 + $0x2328] sm:$0xff]
    %v1196 = vld [vmem:[#allocation2 + $0x2330] sm:$0xff]
    %v1197 = vld [vmem:[#allocation2 + $0x2338] sm:$0xff]
    %v1198 = vld [vmem:[#allocation2 + $0x2340] sm:$0xff]
    %v1199 = vld [vmem:[#allocation2 + $0x2348] sm:$0xff]
    %v1200 = vld [vmem:[#allocation2 + $0x2350] sm:$0xff]
    %v1201 = vld [vmem:[#allocation2 + $0x2358] sm:$0xff]
    %v1202 = vld [vmem:[#allocation2 + $0x2360] sm:$0xff]
    %v1203 = vld [vmem:[#allocation2 + $0x2368] sm:$0xff]
    %v1204 = vld [vmem:[#allocation2 + $0x2370] sm:$0xff]
    %v1205 = vld [vmem:[#allocation2 + $0x2378] sm:$0xff]
    %v1206 = vld [vmem:[#allocation2 + $0x2380] sm:$0xff]
    %v1207 = vld [vmem:[#allocation2 + $0x2388] sm:$0xff]
    %v1208 = vld [vmem:[#allocation2 + $0x2390] sm:$0xff]
    %v1209 = vld [vmem:[#allocation2 + $0x2398] sm:$0xff]
    %v1210 = vld [vmem:[#allocation2 + $0x23a0] sm:$0xff]
    %v1211 = vld [vmem:[#allocation2 + $0x23a8] sm:$0xff]
    %v1212 = vld [vmem:[#allocation2 + $0x23b0] sm:$0xff]
    %v1213 = vld [vmem:[#allocation2 + $0x23b8] sm:$0xff]
    %v1214 = vld [vmem:[#allocation2 + $0x23c0] sm:$0xff]
    %v1215 = vld [vmem:[#allocation2 + $0x23c8] sm:$0xff]
    %v1216 = vld [vmem:[#allocation2 + $0x23d0] sm:$0xff]
    %v1217 = vld [vmem:[#allocation2 + $0x23d8] sm:$0xff]
    %v1218 = vld [vmem:[#allocation2 + $0x23e0] sm:$0xff]
    %v1219 = vld [vmem:[#allocation2 + $0x23e8] sm:$0xff]
    %v1220 = vld [vmem:[#allocation2 + $0x23f0] sm:$0xff]
    %v1221 = vld [vmem:[#allocation2 + $0x23f8] sm:$0xff]
    %v1222 = vld [vmem:[#allocation2 + $0x2400] sm:$0xff]
    %v1223 = vld [vmem:[#allocation2 + $0x2408] sm:$0xff]
    %v1224 = vld [vmem:[#allocation2 + $0x2410] sm:$0xff]
    %v1225 = vld [vmem:[#allocation2 + $0x2418] sm:$0xff]
    %v1226 = vld [vmem:[#allocation2 + $0x2420] sm:$0xff]
    %v1227 = vld [vmem:[#allocation2 + $0x2428] sm:$0xff]
    %v1228 = vld [vmem:[#allocation2 + $0x2430] sm:$0xff]
    %v1229 = vld [vmem:[#allocation2 + $0x2438] sm:$0xff]
    %v1230 = vld [vmem:[#allocation2 + $0x2440] sm:$0xff]
    %v1231 = vld [vmem:[#allocation2 + $0x2448] sm:$0xff]
    %v1232 = vld [vmem:[#allocation2 + $0x2450] sm:$0xff]
    %v1233 = vld [vmem:[#allocation2 + $0x2458] sm:$0xff]
    %v1234 = vld [vmem:[#allocation2 + $0x2460] sm:$0xff]
    %v1235 = vld [vmem:[#allocation2 + $0x2468] sm:$0xff]
    %v1236 = vld [vmem:[#allocation2 + $0x2470] sm:$0xff]
    %v1237 = vld [vmem:[#allocation2 + $0x2478] sm:$0xff]
    %v1238 = vld [vmem:[#allocation2 + $0x2480] sm:$0xff]
    %v1239 = vld [vmem:[#allocation2 + $0x2488] sm:$0xff]
    %v1240 = vld [vmem:[#allocation2 + $0x2490] sm:$0xff]
    %v1241 = vld [vmem:[#allocation2 + $0x2498] sm:$0xff]
    %v1242 = vld [vmem:[#allocation2 + $0x24a0] sm:$0xff]
    %v1243 = vld [vmem:[#allocation2 + $0x24a8] sm:$0xff]
    %v1244 = vld [vmem:[#allocation2 + $0x24b0] sm:$0xff]
    %v1245 = vld [vmem:[#allocation2 + $0x24b8] sm:$0xff]
    %v1246 = vld [vmem:[#allocation2 + $0x24c0] sm:$0xff]
    %v1247 = vld [vmem:[#allocation2 + $0x24c8] sm:$0xff]
    %v1248 = vld [vmem:[#allocation2 + $0x24d0] sm:$0xff]
    %v1249 = vld [vmem:[#allocation2 + $0x24d8] sm:$0xff]
    %v1250 = vld [vmem:[#allocation2 + $0x24e0] sm:$0xff]
    %v1251 = vld [vmem:[#allocation2 + $0x24e8] sm:$0xff]
    %v1252 = vld [vmem:[#allocation2 + $0x24f0] sm:$0xff]
    %v1253 = vld [vmem:[#allocation2 + $0x24f8] sm:$0xff]
    %v1254 = vld [vmem:[#allocation2 + $0x2500] sm:$0xff]
    %v1255 = vld [vmem:[#allocation2 + $0x2508] sm:$0xff]
    %v1256 = vld [vmem:[#allocation2 + $0x2510] sm:$0xff]
    %v1257 = vld [vmem:[#allocation2 + $0x2518] sm:$0xff]
    %v1258 = vld [vmem:[#allocation2 + $0x2520] sm:$0xff]
    %v1259 = vld [vmem:[#allocation2 + $0x2528] sm:$0xff]
    %v1260 = vld [vmem:[#allocation2 + $0x2530] sm:$0xff]
    %v1261 = vld [vmem:[#allocation2 + $0x2538] sm:$0xff]
    %v1262 = vld [vmem:[#allocation2 + $0x2540] sm:$0xff]
    %v1263 = vld [vmem:[#allocation2 + $0x2548] sm:$0xff]
    %v1264 = vld [vmem:[#allocation2 + $0x2550] sm:$0xff]
    %v1265 = vld [vmem:[#allocation2 + $0x2558] sm:$0xff]
    %v1266 = vld [vmem:[#allocation2 + $0x2560] sm:$0xff]
    %v1267 = vld [vmem:[#allocation2 + $0x2568] sm:$0xff]
    %v1268 = vld [vmem:[#allocation2 + $0x2570] sm:$0xff]
    %v1269 = vld [vmem:[#allocation2 + $0x2578] sm:$0xff]
    %v1270 = vld [vmem:[#allocation2 + $0x2580] sm:$0xff]
    %v1271 = vld [vmem:[#allocation2 + $0x2588] sm:$0xff]
    %v1272 = vld [vmem:[#allocation2 + $0x2590] sm:$0xff]
    %v1273 = vld [vmem:[#allocation2 + $0x2598] sm:$0xff]
    %v1274 = vld [vmem:[#allocation2 + $0x25a0] sm:$0xff]
    %v1275 = vld [vmem:[#allocation2 + $0x25a8] sm:$0xff]
    %v1276 = vld [vmem:[#allocation2 + $0x25b0] sm:$0xff]
    %v1277 = vld [vmem:[#allocation2 + $0x25b8] sm:$0xff]
    %v1278 = vld [vmem:[#allocation2 + $0x25c0] sm:$0xff]
    %v1279 = vld [vmem:[#allocation2 + $0x25c8] sm:$0xff]
    %v1280 = vld [vmem:[#allocation2 + $0x25d0] sm:$0xff]
    %v1281 = vld [vmem:[#allocation2 + $0x25d8] sm:$0xff]
    %v1282 = vld [vmem:[#allocation2 + $0x25e0] sm:$0xff]
    %v1283 = vld [vmem:[#allocation2 + $0x25e8] sm:$0xff]
    %v1284 = vld [vmem:[#allocation2 + $0x25f0] sm:$0xff]
    %v1285 = vld [vmem:[#allocation2 + $0x25f8] sm:$0xff]
    %v1286 = vld [vmem:[#allocation2 + $0x2600] sm:$0xff]
    %v1287 = vld [vmem:[#allocation2 + $0x2608] sm:$0xff]
    %v1288 = vld [vmem:[#allocation2 + $0x2610] sm:$0xff]
    %v1289 = vld [vmem:[#allocation2 + $0x2618] sm:$0xff]
    %v1290 = vld [vmem:[#allocation2 + $0x2620] sm:$0xff]
    %v1291 = vld [vmem:[#allocation2 + $0x2628] sm:$0xff]
    %v1292 = vld [vmem:[#allocation2 + $0x2630] sm:$0xff]
    %v1293 = vld [vmem:[#allocation2 + $0x2638] sm:$0xff]
    %v1294 = vld [vmem:[#allocation2 + $0x2640] sm:$0xff]
    %v1295 = vld [vmem:[#allocation2 + $0x2648] sm:$0xff]
    %v1296 = vld [vmem:[#allocation2 + $0x2650] sm:$0xff]
    %v1297 = vld [vmem:[#allocation2 + $0x2658] sm:$0xff]
    %v1298 = vld [vmem:[#allocation2 + $0x2660] sm:$0xff]
    %v1299 = vld [vmem:[#allocation2 + $0x2668] sm:$0xff]
    %v1300 = vld [vmem:[#allocation2 + $0x2670] sm:$0xff]
    %v1301 = vld [vmem:[#allocation2 + $0x2678] sm:$0xff]
    %v1302 = vld [vmem:[#allocation2 + $0x2680] sm:$0xff]
    %v1303 = vld [vmem:[#allocation2 + $0x2688] sm:$0xff]
    %v1304 = vld [vmem:[#allocation2 + $0x2690] sm:$0xff]
    %v1305 = vld [vmem:[#allocation2 + $0x2698] sm:$0xff]
    %v1306 = vld [vmem:[#allocation2 + $0x26a0] sm:$0xff]
    %v1307 = vld [vmem:[#allocation2 + $0x26a8] sm:$0xff]
    %v1308 = vld [vmem:[#allocation2 + $0x26b0] sm:$0xff]
    %v1309 = vld [vmem:[#allocation2 + $0x26b8] sm:$0xff]
    %v1310 = vld [vmem:[#allocation2 + $0x26c0] sm:$0xff]
    %v1311 = vld [vmem:[#allocation2 + $0x26c8] sm:$0xff]
    %v1312 = vld [vmem:[#allocation2 + $0x26d0] sm:$0xff]
    %v1313 = vld [vmem:[#allocation2 + $0x26d8] sm:$0xff]
    %v1314 = vld [vmem:[#allocation2 + $0x26e0] sm:$0xff]
    %v1315 = vld [vmem:[#allocation2 + $0x26e8] sm:$0xff]
    %v1316 = vld [vmem:[#allocation2 + $0x26f0] sm:$0xff]
    %v1317 = vld [vmem:[#allocation2 + $0x26f8] sm:$0xff]
    %v1318 = vld [vmem:[#allocation2 + $0x2700] sm:$0xff]
    %v1319 = vld [vmem:[#allocation2 + $0x2708] sm:$0xff]
    %v1320 = vld [vmem:[#allocation2 + $0x2710] sm:$0xff]
    %v1321 = vld [vmem:[#allocation2 + $0x2718] sm:$0xff]
    %v1322 = vld [vmem:[#allocation2 + $0x2720] sm:$0xff]
    %v1323 = vld [vmem:[#allocation2 + $0x2728] sm:$0xff]
    %v1324 = vld [vmem:[#allocation2 + $0x2730] sm:$0xff]
    %v1325 = vld [vmem:[#allocation2 + $0x2738] sm:$0xff]
    %v1326 = vld [vmem:[#allocation2 + $0x2740] sm:$0xff]
    %v1327 = vld [vmem:[#allocation2 + $0x2748] sm:$0xff]
    %v1328 = vld [vmem:[#allocation2 + $0x2750] sm:$0xff]
    %v1329 = vld [vmem:[#allocation2 + $0x2758] sm:$0xff]
    %v1330 = vld [vmem:[#allocation2 + $0x2760] sm:$0xff]
    %v1331 = vld [vmem:[#allocation2 + $0x2768] sm:$0xff]
    %v1332 = vld [vmem:[#allocation2 + $0x2770] sm:$0xff]
    %v1333 = vld [vmem:[#allocation2 + $0x2778] sm:$0xff]
    %v1334 = vld [vmem:[#allocation2 + $0x2780] sm:$0xff]
    %v1335 = vld [vmem:[#allocation2 + $0x2788] sm:$0xff]
    %v1336 = vld [vmem:[#allocation2 + $0x2790] sm:$0xff]
    %v1337 = vld [vmem:[#allocation2 + $0x2798] sm:$0xff]
    %v1338 = vld [vmem:[#allocation2 + $0x27a0] sm:$0xff]
    %v1339 = vld [vmem:[#allocation2 + $0x27a8] sm:$0xff]
    %v1340 = vld [vmem:[#allocation2 + $0x27b0] sm:$0xff]
    %v1341 = vld [vmem:[#allocation2 + $0x27b8] sm:$0xff]
    %v1342 = vld [vmem:[#allocation2 + $0x27c0] sm:$0xff]
    %v1343 = vld [vmem:[#allocation2 + $0x27c8] sm:$0xff]
    %v1344 = vld [vmem:[#allocation2 + $0x27d0] sm:$0xff]
    %v1345 = vld [vmem:[#allocation2 + $0x27d8] sm:$0xff]
    %v1346 = vld [vmem:[#allocation2 + $0x27e0] sm:$0xff]
    %v1347 = vld [vmem:[#allocation2 + $0x27e8] sm:$0xff]
    %v1348 = vld [vmem:[#allocation2 + $0x27f0] sm:$0xff]
    %v1349 = vld [vmem:[#allocation2 + $0x27f8] sm:$0xff]
    %v1350 = vld [vmem:[#allocation2 + $0x2800] sm:$0xff]
    %v1351 = vld [vmem:[#allocation2 + $0x2808] sm:$0xff]
    %v1352 = vld [vmem:[#allocation2 + $0x2810] sm:$0xff]
    %v1353 = vld [vmem:[#allocation2 + $0x2818] sm:$0xff]
    %v1354 = vld [vmem:[#allocation2 + $0x2820] sm:$0xff]
    %v1355 = vld [vmem:[#allocation2 + $0x2828] sm:$0xff]
    %v1356 = vld [vmem:[#allocation2 + $0x2830] sm:$0xff]
    %v1357 = vld [vmem:[#allocation2 + $0x2838] sm:$0xff]
    %v1358 = vld [vmem:[#allocation2 + $0x2840] sm:$0xff]
    %v1359 = vld [vmem:[#allocation2 + $0x2848] sm:$0xff]
    %v1360 = vld [vmem:[#allocation2 + $0x2850] sm:$0xff]
    %v1361 = vld [vmem:[#allocation2 + $0x2858] sm:$0xff]
    %v1362 = vld [vmem:[#allocation2 + $0x2860] sm:$0xff]
    %v1363 = vld [vmem:[#allocation2 + $0x2868] sm:$0xff]
    %v1364 = vld [vmem:[#allocation2 + $0x2870] sm:$0xff]
    %v1365 = vld [vmem:[#allocation2 + $0x2878] sm:$0xff]
    %v1366 = vld [vmem:[#allocation2 + $0x2880] sm:$0xff]
    %v1367 = vld [vmem:[#allocation2 + $0x2888] sm:$0xff]
    %v1368 = vld [vmem:[#allocation2 + $0x2890] sm:$0xff]
    %v1369 = vld [vmem:[#allocation2 + $0x2898] sm:$0xff]
    %v1370 = vld [vmem:[#allocation2 + $0x28a0] sm:$0xff]
    %v1371 = vld [vmem:[#allocation2 + $0x28a8] sm:$0xff]
    %v1372 = vld [vmem:[#allocation2 + $0x28b0] sm:$0xff]
    %v1373 = vld [vmem:[#allocation2 + $0x28b8] sm:$0xff]
    %v1374 = vld [vmem:[#allocation2 + $0x28c0] sm:$0xff]
    %v1375 = vld [vmem:[#allocation2 + $0x28c8] sm:$0xff]
    %v1376 = vld [vmem:[#allocation2 + $0x28d0] sm:$0xff]
    %v1377 = vld [vmem:[#allocation2 + $0x28d8] sm:$0xff]
    %v1378 = vld [vmem:[#allocation2 + $0x28e0] sm:$0xff]
    %v1379 = vld [vmem:[#allocation2 + $0x28e8] sm:$0xff]
    %v1380 = vld [vmem:[#allocation2 + $0x28f0] sm:$0xff]
    %v1381 = vld [vmem:[#allocation2 + $0x28f8] sm:$0xff]
    %v1382 = vld [vmem:[#allocation2 + $0x2900] sm:$0xff]
    %v1383 = vld [vmem:[#allocation2 + $0x2908] sm:$0xff]
    %v1384 = vld [vmem:[#allocation2 + $0x2910] sm:$0xff]
    %v1385 = vld [vmem:[#allocation2 + $0x2918] sm:$0xff]
    %v1386 = vld [vmem:[#allocation2 + $0x2920] sm:$0xff]
    %v1387 = vld [vmem:[#allocation2 + $0x2928] sm:$0xff]
    %v1388 = vld [vmem:[#allocation2 + $0x2930] sm:$0xff]
    %v1389 = vld [vmem:[#allocation2 + $0x2938] sm:$0xff]
    %v1390 = vld [vmem:[#allocation2 + $0x2940] sm:$0xff]
    %v1391 = vld [vmem:[#allocation2 + $0x2948] sm:$0xff]
    %v1392 = vld [vmem:[#allocation2 + $0x2950] sm:$0xff]
    %v1393 = vld [vmem:[#allocation2 + $0x2958] sm:$0xff]
    %v1394 = vld [vmem:[#allocation2 + $0x2960] sm:$0xff]
    %v1395 = vld [vmem:[#allocation2 + $0x2968] sm:$0xff]
    %v1396 = vld [vmem:[#allocation2 + $0x2970] sm:$0xff]
    %v1397 = vld [vmem:[#allocation2 + $0x2978] sm:$0xff]
    %v1398 = vld [vmem:[#allocation2 + $0x2980] sm:$0xff]
    %v1399 = vld [vmem:[#allocation2 + $0x2988] sm:$0xff]
    %v1400 = vld [vmem:[#allocation2 + $0x2990] sm:$0xff]
    %v1401 = vld [vmem:[#allocation2 + $0x2998] sm:$0xff]
    %v1402 = vld [vmem:[#allocation2 + $0x29a0] sm:$0xff]
    %v1403 = vld [vmem:[#allocation2 + $0x29a8] sm:$0xff]
    %v1404 = vld [vmem:[#allocation2 + $0x29b0] sm:$0xff]
    %v1405 = vld [vmem:[#allocation2 + $0x29b8] sm:$0xff]
    %v1406 = vld [vmem:[#allocation2 + $0x29c0] sm:$0xff]
    %v1407 = vld [vmem:[#allocation2 + $0x29c8] sm:$0xff]
    %v1408 = vld [vmem:[#allocation2 + $0x29d0] sm:$0xff]
    %v1409 = vld [vmem:[#allocation2 + $0x29d8] sm:$0xff]
    %v1410 = vld [vmem:[#allocation2 + $0x29e0] sm:$0xff]
    %v1411 = vld [vmem:[#allocation2 + $0x29e8] sm:$0xff]
    %v1412 = vld [vmem:[#allocation2 + $0x29f0] sm:$0xff]
    %v1413 = vld [vmem:[#allocation2 + $0x29f8] sm:$0xff]
    %v1414 = vld [vmem:[#allocation2 + $0x2a00] sm:$0xff]
    %v1415 = vld [vmem:[#allocation2 + $0x2a08] sm:$0xff]
    %v1416 = vld [vmem:[#allocation2 + $0x2a10] sm:$0xff]
    %v1417 = vld [vmem:[#allocation2 + $0x2a18] sm:$0xff]
    %v1418 = vld [vmem:[#allocation2 + $0x2a20] sm:$0xff]
    %v1419 = vld [vmem:[#allocation2 + $0x2a28] sm:$0xff]
    %v1420 = vld [vmem:[#allocation2 + $0x2a30] sm:$0xff]
    %v1421 = vld [vmem:[#allocation2 + $0x2a38] sm:$0xff]
    %v1422 = vld [vmem:[#allocation2 + $0x2a40] sm:$0xff]
    %v1423 = vld [vmem:[#allocation2 + $0x2a48] sm:$0xff]
    %v1424 = vld [vmem:[#allocation2 + $0x2a50] sm:$0xff]
    %v1425 = vld [vmem:[#allocation2 + $0x2a58] sm:$0xff]
    %v1426 = vld [vmem:[#allocation2 + $0x2a60] sm:$0xff]
    %v1427 = vld [vmem:[#allocation2 + $0x2a68] sm:$0xff]
    %v1428 = vld [vmem:[#allocation2 + $0x2a70] sm:$0xff]
    %v1429 = vld [vmem:[#allocation2 + $0x2a78] sm:$0xff]
    %v1430 = vld [vmem:[#allocation2 + $0x2a80] sm:$0xff]
    %v1431 = vld [vmem:[#allocation2 + $0x2a88] sm:$0xff]
    %v1432 = vld [vmem:[#allocation2 + $0x2a90] sm:$0xff]
    %v1433 = vld [vmem:[#allocation2 + $0x2a98] sm:$0xff]
    %v1434 = vld [vmem:[#allocation2 + $0x2aa0] sm:$0xff]
    %v1435 = vld [vmem:[#allocation2 + $0x2aa8] sm:$0xff]
    %v1436 = vld [vmem:[#allocation2 + $0x2ab0] sm:$0xff]
    %v1437 = vld [vmem:[#allocation2 + $0x2ab8] sm:$0xff]
    %v1438 = vld [vmem:[#allocation2 + $0x2ac0] sm:$0xff]
    %v1439 = vld [vmem:[#allocation2 + $0x2ac8] sm:$0xff]
    %v1440 = vld [vmem:[#allocation2 + $0x2ad0] sm:$0xff]
    %v1441 = vld [vmem:[#allocation2 + $0x2ad8] sm:$0xff]
    %v1442 = vld [vmem:[#allocation2 + $0x2ae0] sm:$0xff]
    %v1443 = vld [vmem:[#allocation2 + $0x2ae8] sm:$0xff]
    %v1444 = vld [vmem:[#allocation2 + $0x2af0] sm:$0xff]
    %v1445 = vld [vmem:[#allocation2 + $0x2af8] sm:$0xff]
    %v1446 = vld [vmem:[#allocation2 + $0x2b00] sm:$0xff]
    %v1447 = vld [vmem:[#allocation2 + $0x2b08] sm:$0xff]
    %v1448 = vld [vmem:[#allocation2 + $0x2b10] sm:$0xff]
    %v1449 = vld [vmem:[#allocation2 + $0x2b18] sm:$0xff]
    %v1450 = vld [vmem:[#allocation2 + $0x2b20] sm:$0xff]
    %v1451 = vld [vmem:[#allocation2 + $0x2b28] sm:$0xff]
    %v1452 = vld [vmem:[#allocation2 + $0x2b30] sm:$0xff]
    %v1453 = vld [vmem:[#allocation2 + $0x2b38] sm:$0xff]
    %v1454 = vld [vmem:[#allocation2 + $0x2b40] sm:$0xff]
    %v1455 = vld [vmem:[#allocation2 + $0x2b48] sm:$0xff]
    %v1456 = vld [vmem:[#allocation2 + $0x2b50] sm:$0xff]
    %v1457 = vld [vmem:[#allocation2 + $0x2b58] sm:$0xff]
    %v1458 = vld [vmem:[#allocation2 + $0x2b60] sm:$0xff]
    %v1459 = vld [vmem:[#allocation2 + $0x2b68] sm:$0xff]
    %v1460 = vld [vmem:[#allocation2 + $0x2b70] sm:$0xff]
    %v1461 = vld [vmem:[#allocation2 + $0x2b78] sm:$0xff]
    %v1462 = vld [vmem:[#allocation2 + $0x2b80] sm:$0xff]
    %v1463 = vld [vmem:[#allocation2 + $0x2b88] sm:$0xff]
    %v1464 = vld [vmem:[#allocation2 + $0x2b90] sm:$0xff]
    %v1465 = vld [vmem:[#allocation2 + $0x2b98] sm:$0xff]
    %v1466 = vld [vmem:[#allocation2 + $0x2ba0] sm:$0xff]
    %v1467 = vld [vmem:[#allocation2 + $0x2ba8] sm:$0xff]
    %v1468 = vld [vmem:[#allocation2 + $0x2bb0] sm:$0xff]
    %v1469 = vld [vmem:[#allocation2 + $0x2bb8] sm:$0xff]
    %v1470 = vld [vmem:[#allocation2 + $0x2bc0] sm:$0xff]
    %v1471 = vld [vmem:[#allocation2 + $0x2bc8] sm:$0xff]
    %v1472 = vld [vmem:[#allocation2 + $0x2bd0] sm:$0xff]
    %v1473 = vld [vmem:[#allocation2 + $0x2bd8] sm:$0xff]
    %v1474 = vld [vmem:[#allocation2 + $0x2be0] sm:$0xff]
    %v1475 = vld [vmem:[#allocation2 + $0x2be8] sm:$0xff]
    %v1476 = vld [vmem:[#allocation2 + $0x2bf0] sm:$0xff]
    %v1477 = vld [vmem:[#allocation2 + $0x2bf8] sm:$0xff]
    %v1478 = vld [vmem:[#allocation2 + $0x2c00] sm:$0xff]
    %v1479 = vld [vmem:[#allocation2 + $0x2c08] sm:$0xff]
    %v1480 = vld [vmem:[#allocation2 + $0x2c10] sm:$0xff]
    %v1481 = vld [vmem:[#allocation2 + $0x2c18] sm:$0xff]
    %v1482 = vld [vmem:[#allocation2 + $0x2c20] sm:$0xff]
    %v1483 = vld [vmem:[#allocation2 + $0x2c28] sm:$0xff]
    %v1484 = vld [vmem:[#allocation2 + $0x2c30] sm:$0xff]
    %v1485 = vld [vmem:[#allocation2 + $0x2c38] sm:$0xff]
    %v1486 = vld [vmem:[#allocation2 + $0x2c40] sm:$0xff]
    %v1487 = vld [vmem:[#allocation2 + $0x2c48] sm:$0xff]
    %v1488 = vld [vmem:[#allocation2 + $0x2c50] sm:$0xff]
    %v1489 = vld [vmem:[#allocation2 + $0x2c58] sm:$0xff]
    %v1490 = vld [vmem:[#allocation2 + $0x2c60] sm:$0xff]
    %v1491 = vld [vmem:[#allocation2 + $0x2c68] sm:$0xff]
    %v1492 = vld [vmem:[#allocation2 + $0x2c70] sm:$0xff]
    %v1493 = vld [vmem:[#allocation2 + $0x2c78] sm:$0xff]
    %v1494 = vld [vmem:[#allocation2 + $0x2c80] sm:$0xff]
    %v1495 = vld [vmem:[#allocation2 + $0x2c88] sm:$0xff]
    %v1496 = vld [vmem:[#allocation2 + $0x2c90] sm:$0xff]
    %v1497 = vld [vmem:[#allocation2 + $0x2c98] sm:$0xff]
    %v1498 = vld [vmem:[#allocation2 + $0x2ca0] sm:$0xff]
    %v1499 = vld [vmem:[#allocation2 + $0x2ca8] sm:$0xff]
    %v1500 = vld [vmem:[#allocation2 + $0x2cb0] sm:$0xff]
    %v1501 = vld [vmem:[#allocation2 + $0x2cb8] sm:$0xff]
    %v1502 = vld [vmem:[#allocation2 + $0x2cc0] sm:$0xff]
    %v1503 = vld [vmem:[#allocation2 + $0x2cc8] sm:$0xff]
    %v1504 = vld [vmem:[#allocation2 + $0x2cd0] sm:$0xff]
    %v1505 = vld [vmem:[#allocation2 + $0x2cd8] sm:$0xff]
    %v1506 = vld [vmem:[#allocation2 + $0x2ce0] sm:$0xff]
    %v1507 = vld [vmem:[#allocation2 + $0x2ce8] sm:$0xff]
    %v1508 = vld [vmem:[#allocation2 + $0x2cf0] sm:$0xff]
    %v1509 = vld [vmem:[#allocation2 + $0x2cf8] sm:$0xff]
    %v1510 = vld [vmem:[#allocation2 + $0x2d00] sm:$0xff]
    %v1511 = vld [vmem:[#allocation2 + $0x2d08] sm:$0xff]
    %v1512 = vld [vmem:[#allocation2 + $0x2d10] sm:$0xff]
    %v1513 = vld [vmem:[#allocation2 + $0x2d18] sm:$0xff]
    %v1514 = vld [vmem:[#allocation2 + $0x2d20] sm:$0xff]
    %v1515 = vld [vmem:[#allocation2 + $0x2d28] sm:$0xff]
    %v1516 = vld [vmem:[#allocation2 + $0x2d30] sm:$0xff]
    %v1517 = vld [vmem:[#allocation2 + $0x2d38] sm:$0xff]
    %v1518 = vld [vmem:[#allocation2 + $0x2d40] sm:$0xff]
    %v1519 = vld [vmem:[#allocation2 + $0x2d48] sm:$0xff]
    %v1520 = vld [vmem:[#allocation2 + $0x2d50] sm:$0xff]
    %v1521 = vld [vmem:[#allocation2 + $0x2d58] sm:$0xff]
    %v1522 = vld [vmem:[#allocation2 + $0x2d60] sm:$0xff]
    %v1523 = vld [vmem:[#allocation2 + $0x2d68] sm:$0xff]
    %v1524 = vld [vmem:[#allocation2 + $0x2d70] sm:$0xff]
    %v1525 = vld [vmem:[#allocation2 + $0x2d78] sm:$0xff]
    %v1526 = vld [vmem:[#allocation2 + $0x2d80] sm:$0xff]
    %v1527 = vld [vmem:[#allocation2 + $0x2d88] sm:$0xff]
    %v1528 = vld [vmem:[#allocation2 + $0x2d90] sm:$0xff]
    %v1529 = vld [vmem:[#allocation2 + $0x2d98] sm:$0xff]
    %v1530 = vld [vmem:[#allocation2 + $0x2da0] sm:$0xff]
    %v1531 = vld [vmem:[#allocation2 + $0x2da8] sm:$0xff]
    %v1532 = vld [vmem:[#allocation2 + $0x2db0] sm:$0xff]
    %v1533 = vld [vmem:[#allocation2 + $0x2db8] sm:$0xff]
    %v1534 = vld [vmem:[#allocation2 + $0x2dc0] sm:$0xff]
    %v1535 = vld [vmem:[#allocation2 + $0x2dc8] sm:$0xff]
    %v1536 = vld [vmem:[#allocation2 + $0x2dd0] sm:$0xff]
    %v1537 = vld [vmem:[#allocation2 + $0x2dd8] sm:$0xff]
    %v1538 = vld [vmem:[#allocation2 + $0x2de0] sm:$0xff]
    %v1539 = vld [vmem:[#allocation2 + $0x2de8] sm:$0xff]
    %v1540 = vld [vmem:[#allocation2 + $0x2df0] sm:$0xff]
    %v1541 = vld [vmem:[#allocation2 + $0x2df8] sm:$0xff]
    %v1542 = vld [vmem:[#allocation2 + $0x2e00] sm:$0xff]
    %v1543 = vld [vmem:[#allocation2 + $0x2e08] sm:$0xff]
    %v1544 = vld [vmem:[#allocation2 + $0x2e10] sm:$0xff]
    %v1545 = vld [vmem:[#allocation2 + $0x2e18] sm:$0xff]
    %v1546 = vld [vmem:[#allocation2 + $0x2e20] sm:$0xff]
    %v1547 = vld [vmem:[#allocation2 + $0x2e28] sm:$0xff]
    %v1548 = vld [vmem:[#allocation2 + $0x2e30] sm:$0xff]
    %v1549 = vld [vmem:[#allocation2 + $0x2e38] sm:$0xff]
    %v1550 = vld [vmem:[#allocation2 + $0x2e40] sm:$0xff]
    %v1551 = vld [vmem:[#allocation2 + $0x2e48] sm:$0xff]
    %v1552 = vld [vmem:[#allocation2 + $0x2e50] sm:$0xff]
    %v1553 = vld [vmem:[#allocation2 + $0x2e58] sm:$0xff]
    %v1554 = vld [vmem:[#allocation2 + $0x2e60] sm:$0xff]
    %v1555 = vld [vmem:[#allocation2 + $0x2e68] sm:$0xff]
    %v1556 = vld [vmem:[#allocation2 + $0x2e70] sm:$0xff]
    %v1557 = vld [vmem:[#allocation2 + $0x2e78] sm:$0xff]
    %v1558 = vld [vmem:[#allocation2 + $0x2e80] sm:$0xff]
    %v1559 = vld [vmem:[#allocation2 + $0x2e88] sm:$0xff]
    %v1560 = vld [vmem:[#allocation2 + $0x2e90] sm:$0xff]
    %v1561 = vld [vmem:[#allocation2 + $0x2e98] sm:$0xff]
    %v1562 = vld [vmem:[#allocation2 + $0x2ea0] sm:$0xff]
    %v1563 = vld [vmem:[#allocation2 + $0x2ea8] sm:$0xff]
    %v1564 = vld [vmem:[#allocation2 + $0x2eb0] sm:$0xff]
    %v1565 = vld [vmem:[#allocation2 + $0x2eb8] sm:$0xff]
    %v1566 = vld [vmem:[#allocation2 + $0x2ec0] sm:$0xff]
    %v1567 = vld [vmem:[#allocation2 + $0x2ec8] sm:$0xff]
    %v1568 = vld [vmem:[#allocation2 + $0x2ed0] sm:$0xff]
    %v1569 = vld [vmem:[#allocation2 + $0x2ed8] sm:$0xff]
    %v1570 = vld [vmem:[#allocation2 + $0x2ee0] sm:$0xff]
    %v1571 = vld [vmem:[#allocation2 + $0x2ee8] sm:$0xff]
    %v1572 = vld [vmem:[#allocation2 + $0x2ef0] sm:$0xff]
    %v1573 = vld [vmem:[#allocation2 + $0x2ef8] sm:$0xff]
    %v1574 = vld [vmem:[#allocation2 + $0x2f00] sm:$0xff]
    %v1575 = vld [vmem:[#allocation2 + $0x2f08] sm:$0xff]
    %v1576 = vld [vmem:[#allocation2 + $0x2f10] sm:$0xff]
    %v1577 = vld [vmem:[#allocation2 + $0x2f18] sm:$0xff]
    %v1578 = vld [vmem:[#allocation2 + $0x2f20] sm:$0xff]
    %v1579 = vld [vmem:[#allocation2 + $0x2f28] sm:$0xff]
    %v1580 = vld [vmem:[#allocation2 + $0x2f30] sm:$0xff]
    %v1581 = vld [vmem:[#allocation2 + $0x2f38] sm:$0xff]
    %v1582 = vld [vmem:[#allocation2 + $0x2f40] sm:$0xff]
    %v1583 = vld [vmem:[#allocation2 + $0x2f48] sm:$0xff]
    %v1584 = vld [vmem:[#allocation2 + $0x2f50] sm:$0xff]
    %v1585 = vld [vmem:[#allocation2 + $0x2f58] sm:$0xff]
    %v1586 = vld [vmem:[#allocation2 + $0x2f60] sm:$0xff]
    %v1587 = vld [vmem:[#allocation2 + $0x2f68] sm:$0xff]
    %v1588 = vld [vmem:[#allocation2 + $0x2f70] sm:$0xff]
    %v1589 = vld [vmem:[#allocation2 + $0x2f78] sm:$0xff]
    %v1590 = vld [vmem:[#allocation2 + $0x2f80] sm:$0xff]
    %v1591 = vld [vmem:[#allocation2 + $0x2f88] sm:$0xff]
    %v1592 = vld [vmem:[#allocation2 + $0x2f90] sm:$0xff]
    %v1593 = vld [vmem:[#allocation2 + $0x2f98] sm:$0xff]
    %v1594 = vld [vmem:[#allocation2 + $0x2fa0] sm:$0xff]
    %v1595 = vld [vmem:[#allocation2 + $0x2fa8] sm:$0xff]
    %v1596 = vld [vmem:[#allocation2 + $0x2fb0] sm:$0xff]
    %v1597 = vld [vmem:[#allocation2 + $0x2fb8] sm:$0xff]
    %v1598 = vld [vmem:[#allocation2 + $0x2fc0] sm:$0xff]
    %v1599 = vld [vmem:[#allocation2 + $0x2fc8] sm:$0xff]
    %v1600 = vld [vmem:[#allocation2 + $0x2fd0] sm:$0xff]
    %v1601 = vld [vmem:[#allocation2 + $0x2fd8] sm:$0xff]
    %v1602 = vld [vmem:[#allocation2 + $0x2fe0] sm:$0xff]
    %v1603 = vld [vmem:[#allocation2 + $0x2fe8] sm:$0xff]
    %v1604 = vld [vmem:[#allocation2 + $0x2ff0] sm:$0xff]
    %v1605 = vld [vmem:[#allocation2 + $0x2ff8] sm:$0xff]
    %v1606 = vld [vmem:[#allocation2 + $0x3000] sm:$0xff]
    %v1607 = vld [vmem:[#allocation2 + $0x3008] sm:$0xff]
    %v1608 = vld [vmem:[#allocation2 + $0x3010] sm:$0xff]
    %v1609 = vld [vmem:[#allocation2 + $0x3018] sm:$0xff]
    %v1610 = vld [vmem:[#allocation2 + $0x3020] sm:$0xff]
    %v1611 = vld [vmem:[#allocation2 + $0x3028] sm:$0xff]
    %v1612 = vld [vmem:[#allocation2 + $0x3030] sm:$0xff]
    %v1613 = vld [vmem:[#allocation2 + $0x3038] sm:$0xff]
    %v1614 = vld [vmem:[#allocation2 + $0x3040] sm:$0xff]
    %v1615 = vld [vmem:[#allocation2 + $0x3048] sm:$0xff]
    %v1616 = vld [vmem:[#allocation2 + $0x3050] sm:$0xff]
    %v1617 = vld [vmem:[#allocation2 + $0x3058] sm:$0xff]
    %v1618 = vld [vmem:[#allocation2 + $0x3060] sm:$0xff]
    %v1619 = vld [vmem:[#allocation2 + $0x3068] sm:$0xff]
    %v1620 = vld [vmem:[#allocation2 + $0x3070] sm:$0xff]
    %v1621 = vld [vmem:[#allocation2 + $0x3078] sm:$0xff]
    %v1622 = vld [vmem:[#allocation2 + $0x3080] sm:$0xff]
    %v1623 = vld [vmem:[#allocation2 + $0x3088] sm:$0xff]
    %v1624 = vld [vmem:[#allocation2 + $0x3090] sm:$0xff]
    %v1625 = vld [vmem:[#allocation2 + $0x3098] sm:$0xff]
    %v1626 = vld [vmem:[#allocation2 + $0x30a0] sm:$0xff]
    %v1627 = vld [vmem:[#allocation2 + $0x30a8] sm:$0xff]
    %v1628 = vld [vmem:[#allocation2 + $0x30b0] sm:$0xff]
    %v1629 = vld [vmem:[#allocation2 + $0x30b8] sm:$0xff]
    %v1630 = vld [vmem:[#allocation2 + $0x30c0] sm:$0xff]
    %v1631 = vld [vmem:[#allocation2 + $0x30c8] sm:$0xff]
    %v1632 = vld [vmem:[#allocation2 + $0x30d0] sm:$0xff]
    %v1633 = vld [vmem:[#allocation2 + $0x30d8] sm:$0xff]
    %v1634 = vld [vmem:[#allocation2 + $0x30e0] sm:$0xff]
    %v1635 = vld [vmem:[#allocation2 + $0x30e8] sm:$0xff]
    %v1636 = vld [vmem:[#allocation2 + $0x30f0] sm:$0xff]
    %v1637 = vld [vmem:[#allocation2 + $0x30f8] sm:$0xff]
    %v1638 = vld [vmem:[#allocation2 + $0x3100] sm:$0xff]
    %v1639 = vld [vmem:[#allocation2 + $0x3108] sm:$0xff]
    %v1640 = vld [vmem:[#allocation2 + $0x3110] sm:$0xff]
    %v1641 = vld [vmem:[#allocation2 + $0x3118] sm:$0xff]
    %v1642 = vld [vmem:[#allocation2 + $0x3120] sm:$0xff]
    %v1643 = vld [vmem:[#allocation2 + $0x3128] sm:$0xff]
    %v1644 = vld [vmem:[#allocation2 + $0x3130] sm:$0xff]
    %v1645 = vld [vmem:[#allocation2 + $0x3138] sm:$0xff]
    %v1646 = vld [vmem:[#allocation2 + $0x3140] sm:$0xff]
    %v1647 = vld [vmem:[#allocation2 + $0x3148] sm:$0xff]
    %v1648 = vld [vmem:[#allocation2 + $0x3150] sm:$0xff]
    %v1649 = vld [vmem:[#allocation2 + $0x3158] sm:$0xff]
    %v1650 = vld [vmem:[#allocation2 + $0x3160] sm:$0xff]
    %v1651 = vld [vmem:[#allocation2 + $0x3168] sm:$0xff]
    %v1652 = vld [vmem:[#allocation2 + $0x3170] sm:$0xff]
    %v1653 = vld [vmem:[#allocation2 + $0x3178] sm:$0xff]
    %v1654 = vld [vmem:[#allocation2 + $0x3180] sm:$0xff]
    %v1655 = vld [vmem:[#allocation2 + $0x3188] sm:$0xff]
    %v1656 = vld [vmem:[#allocation2 + $0x3190] sm:$0xff]
    %v1657 = vld [vmem:[#allocation2 + $0x3198] sm:$0xff]
    %v1658 = vld [vmem:[#allocation2 + $0x31a0] sm:$0xff]
    %v1659 = vld [vmem:[#allocation2 + $0x31a8] sm:$0xff]
    %v1660 = vld [vmem:[#allocation2 + $0x31b0] sm:$0xff]
    %v1661 = vld [vmem:[#allocation2 + $0x31b8] sm:$0xff]
    %v1662 = vld [vmem:[#allocation2 + $0x31c0] sm:$0xff]
    %v1663 = vld [vmem:[#allocation2 + $0x31c8] sm:$0xff]
    %v1664 = vld [vmem:[#allocation2 + $0x31d0] sm:$0xff]
    %v1665 = vld [vmem:[#allocation2 + $0x31d8] sm:$0xff]
    %v1666 = vld [vmem:[#allocation2 + $0x31e0] sm:$0xff]
    %v1667 = vld [vmem:[#allocation2 + $0x31e8] sm:$0xff]
    %v1668 = vld [vmem:[#allocation2 + $0x31f0] sm:$0xff]
    %v1669 = vld [vmem:[#allocation2 + $0x31f8] sm:$0xff]
    %v1670 = vld [vmem:[#allocation2 + $0x3200] sm:$0xff]
    %v1671 = vld [vmem:[#allocation2 + $0x3208] sm:$0xff]
    %v1672 = vld [vmem:[#allocation2 + $0x3210] sm:$0xff]
    %v1673 = vld [vmem:[#allocation2 + $0x3218] sm:$0xff]
    %v1674 = vld [vmem:[#allocation2 + $0x3220] sm:$0xff]
    %v1675 = vld [vmem:[#allocation2 + $0x3228] sm:$0xff]
    %v1676 = vld [vmem:[#allocation2 + $0x3230] sm:$0xff]
    %v1677 = vld [vmem:[#allocation2 + $0x3238] sm:$0xff]
    %v1678 = vld [vmem:[#allocation2 + $0x3240] sm:$0xff]
    %v1679 = vld [vmem:[#allocation2 + $0x3248] sm:$0xff]
    %v1680 = vld [vmem:[#allocation2 + $0x3250] sm:$0xff]
    %v1681 = vld [vmem:[#allocation2 + $0x3258] sm:$0xff]
    %v1682 = vld [vmem:[#allocation2 + $0x3260] sm:$0xff]
    %v1683 = vld [vmem:[#allocation2 + $0x3268] sm:$0xff]
    %v1684 = vld [vmem:[#allocation2 + $0x3270] sm:$0xff]
    %v1685 = vld [vmem:[#allocation2 + $0x3278] sm:$0xff]
    %v1686 = vld [vmem:[#allocation2 + $0x3280] sm:$0xff]
    %v1687 = vld [vmem:[#allocation2 + $0x3288] sm:$0xff]
    %v1688 = vld [vmem:[#allocation2 + $0x3290] sm:$0xff]
    %v1689 = vld [vmem:[#allocation2 + $0x3298] sm:$0xff]
    %v1690 = vld [vmem:[#allocation2 + $0x32a0] sm:$0xff]
    %v1691 = vld [vmem:[#allocation2 + $0x32a8] sm:$0xff]
    %v1692 = vld [vmem:[#allocation2 + $0x32b0] sm:$0xff]
    %v1693 = vld [vmem:[#allocation2 + $0x32b8] sm:$0xff]
    %v1694 = vld [vmem:[#allocation2 + $0x32c0] sm:$0xff]
    %v1695 = vld [vmem:[#allocation2 + $0x32c8] sm:$0xff]
    %v1696 = vld [vmem:[#allocation2 + $0x32d0] sm:$0xff]
    %v1697 = vld [vmem:[#allocation2 + $0x32d8] sm:$0xff]
    %v1698 = vld [vmem:[#allocation2 + $0x32e0] sm:$0xff]
    %v1699 = vld [vmem:[#allocation2 + $0x32e8] sm:$0xff]
    %v1700 = vld [vmem:[#allocation2 + $0x32f0] sm:$0xff]
    %v1701 = vld [vmem:[#allocation2 + $0x32f8] sm:$0xff]
    %v1702 = vld [vmem:[#allocation2 + $0x3300] sm:$0xff]
    %v1703 = vld [vmem:[#allocation2 + $0x3308] sm:$0xff]
    %v1704 = vld [vmem:[#allocation2 + $0x3310] sm:$0xff]
    %v1705 = vld [vmem:[#allocation2 + $0x3318] sm:$0xff]
    %v1706 = vld [vmem:[#allocation2 + $0x3320] sm:$0xff]
    %v1707 = vld [vmem:[#allocation2 + $0x3328] sm:$0xff]
    %v1708 = vld [vmem:[#allocation2 + $0x3330] sm:$0xff]
    %v1709 = vld [vmem:[#allocation2 + $0x3338] sm:$0xff]
    %v1710 = vld [vmem:[#allocation2 + $0x3340] sm:$0xff]
    %v1711 = vld [vmem:[#allocation2 + $0x3348] sm:$0xff]
    %v1712 = vld [vmem:[#allocation2 + $0x3350] sm:$0xff]
    %v1713 = vld [vmem:[#allocation2 + $0x3358] sm:$0xff]
    %v1714 = vld [vmem:[#allocation2 + $0x3360] sm:$0xff]
    %v1715 = vld [vmem:[#allocation2 + $0x3368] sm:$0xff]
    %v1716 = vld [vmem:[#allocation2 + $0x3370] sm:$0xff]
    %v1717 = vld [vmem:[#allocation2 + $0x3378] sm:$0xff]
    %v1718 = vld [vmem:[#allocation2 + $0x3380] sm:$0xff]
    %v1719 = vld [vmem:[#allocation2 + $0x3388] sm:$0xff]
    %v1720 = vld [vmem:[#allocation2 + $0x3390] sm:$0xff]
    %v1721 = vld [vmem:[#allocation2 + $0x3398] sm:$0xff]
    %v1722 = vld [vmem:[#allocation2 + $0x33a0] sm:$0xff]
    %v1723 = vld [vmem:[#allocation2 + $0x33a8] sm:$0xff]
    %v1724 = vld [vmem:[#allocation2 + $0x33b0] sm:$0xff]
    %v1725 = vld [vmem:[#allocation2 + $0x33b8] sm:$0xff]
    %v1726 = vld [vmem:[#allocation2 + $0x33c0] sm:$0xff]
    %v1727 = vld [vmem:[#allocation2 + $0x33c8] sm:$0xff]
    %v1728 = vld [vmem:[#allocation2 + $0x33d0] sm:$0xff]
    %v1729 = vld [vmem:[#allocation2 + $0x33d8] sm:$0xff]
    %v1730 = vld [vmem:[#allocation2 + $0x33e0] sm:$0xff]
    %v1731 = vld [vmem:[#allocation2 + $0x33e8] sm:$0xff]
    %v1732 = vld [vmem:[#allocation2 + $0x33f0] sm:$0xff]
    %v1733 = vld [vmem:[#allocation2 + $0x33f8] sm:$0xff]
    %v1734 = vld [vmem:[#allocation2 + $0x3400] sm:$0xff]
    %v1735 = vld [vmem:[#allocation2 + $0x3408] sm:$0xff]
    %v1736 = vld [vmem:[#allocation2 + $0x3410] sm:$0xff]
    %v1737 = vld [vmem:[#allocation2 + $0x3418] sm:$0xff]
    %v1738 = vld [vmem:[#allocation2 + $0x3420] sm:$0xff]
    %v1739 = vld [vmem:[#allocation2 + $0x3428] sm:$0xff]
    %v1740 = vld [vmem:[#allocation2 + $0x3430] sm:$0xff]
    %v1741 = vld [vmem:[#allocation2 + $0x3438] sm:$0xff]
    %v1742 = vld [vmem:[#allocation2 + $0x3440] sm:$0xff]
    %v1743 = vld [vmem:[#allocation2 + $0x3448] sm:$0xff]
    %v1744 = vld [vmem:[#allocation2 + $0x3450] sm:$0xff]
    %v1745 = vld [vmem:[#allocation2 + $0x3458] sm:$0xff]
    %v1746 = vld [vmem:[#allocation2 + $0x3460] sm:$0xff]
    %v1747 = vld [vmem:[#allocation2 + $0x3468] sm:$0xff]
    %v1748 = vld [vmem:[#allocation2 + $0x3470] sm:$0xff]
    %v1749 = vld [vmem:[#allocation2 + $0x3478] sm:$0xff]
    %v1750 = vld [vmem:[#allocation2 + $0x3480] sm:$0xff]
    %v1751 = vld [vmem:[#allocation2 + $0x3488] sm:$0xff]
    %v1752 = vld [vmem:[#allocation2 + $0x3490] sm:$0xff]
    %v1753 = vld [vmem:[#allocation2 + $0x3498] sm:$0xff]
    %v1754 = vld [vmem:[#allocation2 + $0x34a0] sm:$0xff]
    %v1755 = vld [vmem:[#allocation2 + $0x34a8] sm:$0xff]
    %v1756 = vld [vmem:[#allocation2 + $0x34b0] sm:$0xff]
    %v1757 = vld [vmem:[#allocation2 + $0x34b8] sm:$0xff]
    %v1758 = vld [vmem:[#allocation2 + $0x34c0] sm:$0xff]
    %v1759 = vld [vmem:[#allocation2 + $0x34c8] sm:$0xff]
    %v1760 = vld [vmem:[#allocation2 + $0x34d0] sm:$0xff]
    %v1761 = vld [vmem:[#allocation2 + $0x34d8] sm:$0xff]
    %v1762 = vld [vmem:[#allocation2 + $0x34e0] sm:$0xff]
    %v1763 = vld [vmem:[#allocation2 + $0x34e8] sm:$0xff]
    %v1764 = vld [vmem:[#allocation2 + $0x34f0] sm:$0xff]
    %v1765 = vld [vmem:[#allocation2 + $0x34f8] sm:$0xff]
    %v1766 = vld [vmem:[#allocation2 + $0x3500] sm:$0xff]
    %v1767 = vld [vmem:[#allocation2 + $0x3508] sm:$0xff]
    %v1768 = vld [vmem:[#allocation2 + $0x3510] sm:$0xff]
    %v1769 = vld [vmem:[#allocation2 + $0x3518] sm:$0xff]
    %v1770 = vld [vmem:[#allocation2 + $0x3520] sm:$0xff]
    %v1771 = vld [vmem:[#allocation2 + $0x3528] sm:$0xff]
    %v1772 = vld [vmem:[#allocation2 + $0x3530] sm:$0xff]
    %v1773 = vld [vmem:[#allocation2 + $0x3538] sm:$0xff]
    %v1774 = vld [vmem:[#allocation2 + $0x3540] sm:$0xff]
    %v1775 = vld [vmem:[#allocation2 + $0x3548] sm:$0xff]
    %v1776 = vld [vmem:[#allocation2 + $0x3550] sm:$0xff]
    %v1777 = vld [vmem:[#allocation2 + $0x3558] sm:$0xff]
    %v1778 = vld [vmem:[#allocation2 + $0x3560] sm:$0xff]
    %v1779 = vld [vmem:[#allocation2 + $0x3568] sm:$0xff]
    %v1780 = vld [vmem:[#allocation2 + $0x3570] sm:$0xff]
    %v1781 = vld [vmem:[#allocation2 + $0x3578] sm:$0xff]
    %v1782 = vld [vmem:[#allocation2 + $0x3580] sm:$0xff]
    %v1783 = vld [vmem:[#allocation2 + $0x3588] sm:$0xff]
    %v1784 = vld [vmem:[#allocation2 + $0x3590] sm:$0xff]
    %v1785 = vld [vmem:[#allocation2 + $0x3598] sm:$0xff]
    %v1786 = vld [vmem:[#allocation2 + $0x35a0] sm:$0xff]
    %v1787 = vld [vmem:[#allocation2 + $0x35a8] sm:$0xff]
    %v1788 = vld [vmem:[#allocation2 + $0x35b0] sm:$0xff]
    %v1789 = vld [vmem:[#allocation2 + $0x35b8] sm:$0xff]
    %v1790 = vld [vmem:[#allocation2 + $0x35c0] sm:$0xff]
    %v1791 = vld [vmem:[#allocation2 + $0x35c8] sm:$0xff]
    %v1792 = vld [vmem:[#allocation2 + $0x35d0] sm:$0xff]
    %v1793 = vld [vmem:[#allocation2 + $0x35d8] sm:$0xff]
    %v1794 = vld [vmem:[#allocation2 + $0x35e0] sm:$0xff]
    %v1795 = vld [vmem:[#allocation2 + $0x35e8] sm:$0xff]
    %v1796 = vld [vmem:[#allocation2 + $0x35f0] sm:$0xff]
    %v1797 = vld [vmem:[#allocation2 + $0x35f8] sm:$0xff]
    %v1798 = vld [vmem:[#allocation2 + $0x3600] sm:$0xff]
    %v1799 = vld [vmem:[#allocation2 + $0x3608] sm:$0xff]
    %v1800 = vld [vmem:[#allocation2 + $0x3610] sm:$0xff]
    %v1801 = vld [vmem:[#allocation2 + $0x3618] sm:$0xff]
    %v1802 = vld [vmem:[#allocation2 + $0x3620] sm:$0xff]
    %v1803 = vld [vmem:[#allocation2 + $0x3628] sm:$0xff]
    %v1804 = vld [vmem:[#allocation2 + $0x3630] sm:$0xff]
    %v1805 = vld [vmem:[#allocation2 + $0x3638] sm:$0xff]
    %v1806 = vld [vmem:[#allocation2 + $0x3640] sm:$0xff]
    %v1807 = vld [vmem:[#allocation2 + $0x3648] sm:$0xff]
    %v1808 = vld [vmem:[#allocation2 + $0x3650] sm:$0xff]
    %v1809 = vld [vmem:[#allocation2 + $0x3658] sm:$0xff]
    %v1810 = vld [vmem:[#allocation2 + $0x3660] sm:$0xff]
    %v1811 = vld [vmem:[#allocation2 + $0x3668] sm:$0xff]
    %v1812 = vld [vmem:[#allocation2 + $0x3670] sm:$0xff]
    %v1813 = vld [vmem:[#allocation2 + $0x3678] sm:$0xff]
    %v1814 = vld [vmem:[#allocation2 + $0x3680] sm:$0xff]
    %v1815 = vld [vmem:[#allocation2 + $0x3688] sm:$0xff]
    %v1816 = vld [vmem:[#allocation2 + $0x3690] sm:$0xff]
    %v1817 = vld [vmem:[#allocation2 + $0x3698] sm:$0xff]
    %v1818 = vld [vmem:[#allocation2 + $0x36a0] sm:$0xff]
    %v1819 = vld [vmem:[#allocation2 + $0x36a8] sm:$0xff]
    %v1820 = vld [vmem:[#allocation2 + $0x36b0] sm:$0xff]
    %v1821 = vld [vmem:[#allocation2 + $0x36b8] sm:$0xff]
    %v1822 = vld [vmem:[#allocation2 + $0x36c0] sm:$0xff]
    %v1823 = vld [vmem:[#allocation2 + $0x36c8] sm:$0xff]
    %v1824 = vld [vmem:[#allocation2 + $0x36d0] sm:$0xff]
    %v1825 = vld [vmem:[#allocation2 + $0x36d8] sm:$0xff]
    %v1826 = vld [vmem:[#allocation2 + $0x36e0] sm:$0xff]
    %v1827 = vld [vmem:[#allocation2 + $0x36e8] sm:$0xff]
    %v1828 = vld [vmem:[#allocation2 + $0x36f0] sm:$0xff]
    %v1829 = vld [vmem:[#allocation2 + $0x36f8] sm:$0xff]
    %v1830 = vld [vmem:[#allocation2 + $0x3700] sm:$0xff]
    %v1831 = vld [vmem:[#allocation2 + $0x3708] sm:$0xff]
    %v1832 = vld [vmem:[#allocation2 + $0x3710] sm:$0xff]
    %v1833 = vld [vmem:[#allocation2 + $0x3718] sm:$0xff]
    %v1834 = vld [vmem:[#allocation2 + $0x3720] sm:$0xff]
    %v1835 = vld [vmem:[#allocation2 + $0x3728] sm:$0xff]
    %v1836 = vld [vmem:[#allocation2 + $0x3730] sm:$0xff]
    %v1837 = vld [vmem:[#allocation2 + $0x3738] sm:$0xff]
    %v1838 = vld [vmem:[#allocation2 + $0x3740] sm:$0xff]
    %v1839 = vld [vmem:[#allocation2 + $0x3748] sm:$0xff]
    %v1840 = vld [vmem:[#allocation2 + $0x3750] sm:$0xff]
    %v1841 = vld [vmem:[#allocation2 + $0x3758] sm:$0xff]
    %v1842 = vld [vmem:[#allocation2 + $0x3760] sm:$0xff]
    %v1843 = vld [vmem:[#allocation2 + $0x3768] sm:$0xff]
    %v1844 = vld [vmem:[#allocation2 + $0x3770] sm:$0xff]
    %v1845 = vld [vmem:[#allocation2 + $0x3778] sm:$0xff]
    %v1846 = vld [vmem:[#allocation2 + $0x3780] sm:$0xff]
    %v1847 = vld [vmem:[#allocation2 + $0x3788] sm:$0xff]
    %v1848 = vld [vmem:[#allocation2 + $0x3790] sm:$0xff]
    %v1849 = vld [vmem:[#allocation2 + $0x3798] sm:$0xff]
    %v1850 = vld [vmem:[#allocation2 + $0x37a0] sm:$0xff]
    %v1851 = vld [vmem:[#allocation2 + $0x37a8] sm:$0xff]
    %v1852 = vld [vmem:[#allocation2 + $0x37b0] sm:$0xff]
    %v1853 = vld [vmem:[#allocation2 + $0x37b8] sm:$0xff]
    %v1854 = vld [vmem:[#allocation2 + $0x37c0] sm:$0xff]
    %v1855 = vld [vmem:[#allocation2 + $0x37c8] sm:$0xff]
    %v1856 = vld [vmem:[#allocation2 + $0x37d0] sm:$0xff]
    %v1857 = vld [vmem:[#allocation2 + $0x37d8] sm:$0xff]
    %v1858 = vld [vmem:[#allocation2 + $0x37e0] sm:$0xff]
    %v1859 = vld [vmem:[#allocation2 + $0x37e8] sm:$0xff]
    %v1860 = vld [vmem:[#allocation2 + $0x37f0] sm:$0xff]
    %v1861 = vld [vmem:[#allocation2 + $0x37f8] sm:$0xff]
    %v1862 = vld [vmem:[#allocation2 + $0x3800] sm:$0xff]
    %v1863 = vld [vmem:[#allocation2 + $0x3808] sm:$0xff]
    %v1864 = vld [vmem:[#allocation2 + $0x3810] sm:$0xff]
    %v1865 = vld [vmem:[#allocation2 + $0x3818] sm:$0xff]
    %v1866 = vld [vmem:[#allocation2 + $0x3820] sm:$0xff]
    %v1867 = vld [vmem:[#allocation2 + $0x3828] sm:$0xff]
    %v1868 = vld [vmem:[#allocation2 + $0x3830] sm:$0xff]
    %v1869 = vld [vmem:[#allocation2 + $0x3838] sm:$0xff]
    %v1870 = vld [vmem:[#allocation2 + $0x3840] sm:$0xff]
    %v1871 = vld [vmem:[#allocation2 + $0x3848] sm:$0xff]
    %v1872 = vld [vmem:[#allocation2 + $0x3850] sm:$0xff]
    %v1873 = vld [vmem:[#allocation2 + $0x3858] sm:$0xff]
    %v1874 = vld [vmem:[#allocation2 + $0x3860] sm:$0xff]
    %v1875 = vld [vmem:[#allocation2 + $0x3868] sm:$0xff]
    %v1876 = vld [vmem:[#allocation2 + $0x3870] sm:$0xff]
    %v1877 = vld [vmem:[#allocation2 + $0x3878] sm:$0xff]
    %v1878 = vld [vmem:[#allocation2 + $0x3880] sm:$0xff]
    %v1879 = vld [vmem:[#allocation2 + $0x3888] sm:$0xff]
    %v1880 = vld [vmem:[#allocation2 + $0x3890] sm:$0xff]
    %v1881 = vld [vmem:[#allocation2 + $0x3898] sm:$0xff]
    %v1882 = vld [vmem:[#allocation2 + $0x38a0] sm:$0xff]
    %v1883 = vld [vmem:[#allocation2 + $0x38a8] sm:$0xff]
    %v1884 = vld [vmem:[#allocation2 + $0x38b0] sm:$0xff]
    %v1885 = vld [vmem:[#allocation2 + $0x38b8] sm:$0xff]
    %v1886 = vld [vmem:[#allocation2 + $0x38c0] sm:$0xff]
    %v1887 = vld [vmem:[#allocation2 + $0x38c8] sm:$0xff]
    %v1888 = vld [vmem:[#allocation2 + $0x38d0] sm:$0xff]
    %v1889 = vld [vmem:[#allocation2 + $0x38d8] sm:$0xff]
    %v1890 = vld [vmem:[#allocation2 + $0x38e0] sm:$0xff]
    %v1891 = vld [vmem:[#allocation2 + $0x38e8] sm:$0xff]
    %v1892 = vld [vmem:[#allocation2 + $0x38f0] sm:$0xff]
    %v1893 = vld [vmem:[#allocation2 + $0x38f8] sm:$0xff]
    %v1894 = vld [vmem:[#allocation2 + $0x3900] sm:$0xff]
    %v1895 = vld [vmem:[#allocation2 + $0x3908] sm:$0xff]
    %v1896 = vld [vmem:[#allocation2 + $0x3910] sm:$0xff]
    %v1897 = vld [vmem:[#allocation2 + $0x3918] sm:$0xff]
    %v1898 = vld [vmem:[#allocation2 + $0x3920] sm:$0xff]
    %v1899 = vld [vmem:[#allocation2 + $0x3928] sm:$0xff]
    %v1900 = vld [vmem:[#allocation2 + $0x3930] sm:$0xff]
    %v1901 = vld [vmem:[#allocation2 + $0x3938] sm:$0xff]
    %v1902 = vld [vmem:[#allocation2 + $0x3940] sm:$0xff]
    %v1903 = vld [vmem:[#allocation2 + $0x3948] sm:$0xff]
    %v1904 = vld [vmem:[#allocation2 + $0x3950] sm:$0xff]
    %v1905 = vld [vmem:[#allocation2 + $0x3958] sm:$0xff]
    %v1906 = vld [vmem:[#allocation2 + $0x3960] sm:$0xff]
    %v1907 = vld [vmem:[#allocation2 + $0x3968] sm:$0xff]
    %v1908 = vld [vmem:[#allocation2 + $0x3970] sm:$0xff]
    %v1909 = vld [vmem:[#allocation2 + $0x3978] sm:$0xff]
    %v1910 = vld [vmem:[#allocation2 + $0x3980] sm:$0xff]
    %v1911 = vld [vmem:[#allocation2 + $0x3988] sm:$0xff]
    %v1912 = vld [vmem:[#allocation2 + $0x3990] sm:$0xff]
    %v1913 = vld [vmem:[#allocation2 + $0x3998] sm:$0xff]
    %v1914 = vld [vmem:[#allocation2 + $0x39a0] sm:$0xff]
    %v1915 = vld [vmem:[#allocation2 + $0x39a8] sm:$0xff]
    %v1916 = vld [vmem:[#allocation2 + $0x39b0] sm:$0xff]
    %v1917 = vld [vmem:[#allocation2 + $0x39b8] sm:$0xff]
    %v1918 = vld [vmem:[#allocation2 + $0x39c0] sm:$0xff]
    %v1919 = vld [vmem:[#allocation2 + $0x39c8] sm:$0xff]
    %v1920 = vld [vmem:[#allocation2 + $0x39d0] sm:$0xff]
    %v1921 = vld [vmem:[#allocation2 + $0x39d8] sm:$0xff]
    %v1922 = vld [vmem:[#allocation2 + $0x39e0] sm:$0xff]
    %v1923 = vld [vmem:[#allocation2 + $0x39e8] sm:$0xff]
    %v1924 = vld [vmem:[#allocation2 + $0x39f0] sm:$0xff]
    %v1925 = vld [vmem:[#allocation2 + $0x39f8] sm:$0xff]
    %v1926 = vld [vmem:[#allocation2 + $0x3a00] sm:$0xff]
    %v1927 = vld [vmem:[#allocation2 + $0x3a08] sm:$0xff]
    %v1928 = vld [vmem:[#allocation2 + $0x3a10] sm:$0xff]
    %v1929 = vld [vmem:[#allocation2 + $0x3a18] sm:$0xff]
    %v1930 = vld [vmem:[#allocation2 + $0x3a20] sm:$0xff]
    %v1931 = vld [vmem:[#allocation2 + $0x3a28] sm:$0xff]
    %v1932 = vld [vmem:[#allocation2 + $0x3a30] sm:$0xff]
    %v1933 = vld [vmem:[#allocation2 + $0x3a38] sm:$0xff]
    %v1934 = vld [vmem:[#allocation2 + $0x3a40] sm:$0xff]
    %v1935 = vld [vmem:[#allocation2 + $0x3a48] sm:$0xff]
    %v1936 = vld [vmem:[#allocation2 + $0x3a50] sm:$0xff]
    %v1937 = vld [vmem:[#allocation2 + $0x3a58] sm:$0xff]
    %v1938 = vld [vmem:[#allocation2 + $0x3a60] sm:$0xff]
    %v1939 = vld [vmem:[#allocation2 + $0x3a68] sm:$0xff]
    %v1940 = vld [vmem:[#allocation2 + $0x3a70] sm:$0xff]
    %v1941 = vld [vmem:[#allocation2 + $0x3a78] sm:$0xff]
    %v1942 = vld [vmem:[#allocation2 + $0x3a80] sm:$0xff]
    %v1943 = vld [vmem:[#allocation2 + $0x3a88] sm:$0xff]
    %v1944 = vld [vmem:[#allocation2 + $0x3a90] sm:$0xff]
    %v1945 = vld [vmem:[#allocation2 + $0x3a98] sm:$0xff]
    %v1946 = vld [vmem:[#allocation2 + $0x3aa0] sm:$0xff]
    %v1947 = vld [vmem:[#allocation2 + $0x3aa8] sm:$0xff]
    %v1948 = vld [vmem:[#allocation2 + $0x3ab0] sm:$0xff]
    %v1949 = vld [vmem:[#allocation2 + $0x3ab8] sm:$0xff]
    %v1950 = vld [vmem:[#allocation2 + $0x3ac0] sm:$0xff]
    %v1951 = vld [vmem:[#allocation2 + $0x3ac8] sm:$0xff]
    %v1952 = vld [vmem:[#allocation2 + $0x3ad0] sm:$0xff]
    %v1953 = vld [vmem:[#allocation2 + $0x3ad8] sm:$0xff]
    %v1954 = vld [vmem:[#allocation2 + $0x3ae0] sm:$0xff]
    %v1955 = vld [vmem:[#allocation2 + $0x3ae8] sm:$0xff]
    %v1956 = vld [vmem:[#allocation2 + $0x3af0] sm:$0xff]
    %v1957 = vld [vmem:[#allocation2 + $0x3af8] sm:$0xff]
    %v1958 = vld [vmem:[#allocation2 + $0x3b00] sm:$0xff]
    %v1959 = vld [vmem:[#allocation2 + $0x3b08] sm:$0xff]
    %v1960 = vld [vmem:[#allocation2 + $0x3b10] sm:$0xff]
    %v1961 = vld [vmem:[#allocation2 + $0x3b18] sm:$0xff]
    %v1962 = vld [vmem:[#allocation2 + $0x3b20] sm:$0xff]
    %v1963 = vld [vmem:[#allocation2 + $0x3b28] sm:$0xff]
    %v1964 = vld [vmem:[#allocation2 + $0x3b30] sm:$0xff]
    %v1965 = vld [vmem:[#allocation2 + $0x3b38] sm:$0xff]
    %v1966 = vld [vmem:[#allocation2 + $0x3b40] sm:$0xff]
    %v1967 = vld [vmem:[#allocation2 + $0x3b48] sm:$0xff]
    %v1968 = vld [vmem:[#allocation2 + $0x3b50] sm:$0xff]
    %v1969 = vld [vmem:[#allocation2 + $0x3b58] sm:$0xff]
    %v1970 = vld [vmem:[#allocation2 + $0x3b60] sm:$0xff]
    %v1971 = vld [vmem:[#allocation2 + $0x3b68] sm:$0xff]
    %v1972 = vld [vmem:[#allocation2 + $0x3b70] sm:$0xff]
    %v1973 = vld [vmem:[#allocation2 + $0x3b78] sm:$0xff]
    %v1974 = vld [vmem:[#allocation2 + $0x3b80] sm:$0xff]
    %v1975 = vld [vmem:[#allocation2 + $0x3b88] sm:$0xff]
    %v1976 = vld [vmem:[#allocation2 + $0x3b90] sm:$0xff]
    %v1977 = vld [vmem:[#allocation2 + $0x3b98] sm:$0xff]
    %v1978 = vld [vmem:[#allocation2 + $0x3ba0] sm:$0xff]
    %v1979 = vld [vmem:[#allocation2 + $0x3ba8] sm:$0xff]
    %v1980 = vld [vmem:[#allocation2 + $0x3bb0] sm:$0xff]
    %v1981 = vld [vmem:[#allocation2 + $0x3bb8] sm:$0xff]
    %v1982 = vld [vmem:[#allocation2 + $0x3bc0] sm:$0xff]
    %v1983 = vld [vmem:[#allocation2 + $0x3bc8] sm:$0xff]
    %v1984 = vld [vmem:[#allocation2 + $0x3bd0] sm:$0xff]
    %v1985 = vld [vmem:[#allocation2 + $0x3bd8] sm:$0xff]
    %v1986 = vld [vmem:[#allocation2 + $0x3be0] sm:$0xff]
    %v1987 = vld [vmem:[#allocation2 + $0x3be8] sm:$0xff]
    %v1988 = vld [vmem:[#allocation2 + $0x3bf0] sm:$0xff]
    %v1989 = vld [vmem:[#allocation2 + $0x3bf8] sm:$0xff]
    %v1990 = vld [vmem:[#allocation2 + $0x3c00] sm:$0xff]
    %v1991 = vld [vmem:[#allocation2 + $0x3c08] sm:$0xff]
    %v1992 = vld [vmem:[#allocation2 + $0x3c10] sm:$0xff]
    %v1993 = vld [vmem:[#allocation2 + $0x3c18] sm:$0xff]
    %v1994 = vld [vmem:[#allocation2 + $0x3c20] sm:$0xff]
    %v1995 = vld [vmem:[#allocation2 + $0x3c28] sm:$0xff]
    %v1996 = vld [vmem:[#allocation2 + $0x3c30] sm:$0xff]
    %v1997 = vld [vmem:[#allocation2 + $0x3c38] sm:$0xff]
    %v1998 = vld [vmem:[#allocation2 + $0x3c40] sm:$0xff]
    %v1999 = vld [vmem:[#allocation2 + $0x3c48] sm:$0xff]
    %v2000 = vld [vmem:[#allocation2 + $0x3c50] sm:$0xff]
    %v2001 = vld [vmem:[#allocation2 + $0x3c58] sm:$0xff]
    %v2002 = vld [vmem:[#allocation2 + $0x3c60] sm:$0xff]
    %v2003 = vld [vmem:[#allocation2 + $0x3c68] sm:$0xff]
    %v2004 = vld [vmem:[#allocation2 + $0x3c70] sm:$0xff]
    %v2005 = vld [vmem:[#allocation2 + $0x3c78] sm:$0xff]
    %v2006 = vld [vmem:[#allocation2 + $0x3c80] sm:$0xff]
    %v2007 = vld [vmem:[#allocation2 + $0x3c88] sm:$0xff]
    %v2008 = vld [vmem:[#allocation2 + $0x3c90] sm:$0xff]
    %v2009 = vld [vmem:[#allocation2 + $0x3c98] sm:$0xff]
    %v2010 = vld [vmem:[#allocation2 + $0x3ca0] sm:$0xff]
    %v2011 = vld [vmem:[#allocation2 + $0x3ca8] sm:$0xff]
    %v2012 = vld [vmem:[#allocation2 + $0x3cb0] sm:$0xff]
    %v2013 = vld [vmem:[#allocation2 + $0x3cb8] sm:$0xff]
    %v2014 = vld [vmem:[#allocation2 + $0x3cc0] sm:$0xff]
    %v2015 = vld [vmem:[#allocation2 + $0x3cc8] sm:$0xff]
    %v2016 = vld [vmem:[#allocation2 + $0x3cd0] sm:$0xff]
    %v2017 = vld [vmem:[#allocation2 + $0x3cd8] sm:$0xff]
    %v2018 = vld [vmem:[#allocation2 + $0x3ce0] sm:$0xff]
    %v2019 = vld [vmem:[#allocation2 + $0x3ce8] sm:$0xff]
    %v2020 = vld [vmem:[#allocation2 + $0x3cf0] sm:$0xff]
    %v2021 = vld [vmem:[#allocation2 + $0x3cf8] sm:$0xff]
    %v2022 = vld [vmem:[#allocation2 + $0x3d00] sm:$0xff]
    %v2023 = vld [vmem:[#allocation2 + $0x3d08] sm:$0xff]
    %v2024 = vld [vmem:[#allocation2 + $0x3d10] sm:$0xff]
    %v2025 = vld [vmem:[#allocation2 + $0x3d18] sm:$0xff]
    %v2026 = vld [vmem:[#allocation2 + $0x3d20] sm:$0xff]
    %v2027 = vld [vmem:[#allocation2 + $0x3d28] sm:$0xff]
    %v2028 = vld [vmem:[#allocation2 + $0x3d30] sm:$0xff]
    %v2029 = vld [vmem:[#allocation2 + $0x3d38] sm:$0xff]
    %v2030 = vld [vmem:[#allocation2 + $0x3d40] sm:$0xff]
    %v2031 = vld [vmem:[#allocation2 + $0x3d48] sm:$0xff]
    %v2032 = vld [vmem:[#allocation2 + $0x3d50] sm:$0xff]
    %v2033 = vld [vmem:[#allocation2 + $0x3d58] sm:$0xff]
    %v2034 = vld [vmem:[#allocation2 + $0x3d60] sm:$0xff]
    %v2035 = vld [vmem:[#allocation2 + $0x3d68] sm:$0xff]
    %v2036 = vld [vmem:[#allocation2 + $0x3d70] sm:$0xff]
    %v2037 = vld [vmem:[#allocation2 + $0x3d78] sm:$0xff]
    %v2038 = vld [vmem:[#allocation2 + $0x3d80] sm:$0xff]
    %v2039 = vld [vmem:[#allocation2 + $0x3d88] sm:$0xff]
    %v2040 = vld [vmem:[#allocation2 + $0x3d90] sm:$0xff]
    %v2041 = vld [vmem:[#allocation2 + $0x3d98] sm:$0xff]
    %v2042 = vld [vmem:[#allocation2 + $0x3da0] sm:$0xff]
    %v2043 = vld [vmem:[#allocation2 + $0x3da8] sm:$0xff]
    %v2044 = vld [vmem:[#allocation2 + $0x3db0] sm:$0xff]
    %v2045 = vld [vmem:[#allocation2 + $0x3db8] sm:$0xff]
    %v2046 = vld [vmem:[#allocation2 + $0x3dc0] sm:$0xff]
    %v2047 = vld [vmem:[#allocation2 + $0x3dc8] sm:$0xff]
    %v2048 = vld [vmem:[#allocation2 + $0x3dd0] sm:$0xff]
    %v2049 = vld [vmem:[#allocation2 + $0x3dd8] sm:$0xff]
    %v2050 = vld [vmem:[#allocation2 + $0x3de0] sm:$0xff]
    %v2051 = vld [vmem:[#allocation2 + $0x3de8] sm:$0xff]
    %v2052 = vld [vmem:[#allocation2 + $0x3df0] sm:$0xff]
    %v2053 = vld [vmem:[#allocation2 + $0x3df8] sm:$0xff]
    %v2054 = vld [vmem:[#allocation2 + $0x3e00] sm:$0xff]
    %v2055 = vld [vmem:[#allocation2 + $0x3e08] sm:$0xff]
    %v2056 = vld [vmem:[#allocation2 + $0x3e10] sm:$0xff]
    %v2057 = vld [vmem:[#allocation2 + $0x3e18] sm:$0xff]
    %v2058 = vld [vmem:[#allocation2 + $0x3e20] sm:$0xff]
    %v2059 = vld [vmem:[#allocation2 + $0x3e28] sm:$0xff]
    %v2060 = vld [vmem:[#allocation2 + $0x3e30] sm:$0xff]
    %v2061 = vld [vmem:[#allocation2 + $0x3e38] sm:$0xff]
    %v2062 = vld [vmem:[#allocation2 + $0x3e40] sm:$0xff]
    %v2063 = vld [vmem:[#allocation2 + $0x3e48] sm:$0xff]
    %v2064 = vld [vmem:[#allocation2 + $0x3e50] sm:$0xff]
    %v2065 = vld [vmem:[#allocation2 + $0x3e58] sm:$0xff]
    %v2066 = vld [vmem:[#allocation2 + $0x3e60] sm:$0xff]
    %v2067 = vld [vmem:[#allocation2 + $0x3e68] sm:$0xff]
    %v2068 = vld [vmem:[#allocation2 + $0x3e70] sm:$0xff]
    %v2069 = vld [vmem:[#allocation2 + $0x3e78] sm:$0xff]
    %v2070 = vld [vmem:[#allocation2 + $0x3e80] sm:$0xff]
    %v2071 = vld [vmem:[#allocation2 + $0x3e88] sm:$0xff]
    %v2072 = vld [vmem:[#allocation2 + $0x3e90] sm:$0xff]
    %v2073 = vld [vmem:[#allocation2 + $0x3e98] sm:$0xff]
    %v2074 = vld [vmem:[#allocation2 + $0x3ea0] sm:$0xff]
    %v2075 = vld [vmem:[#allocation2 + $0x3ea8] sm:$0xff]
    %v2076 = vld [vmem:[#allocation2 + $0x3eb0] sm:$0xff]
    %v2077 = vld [vmem:[#allocation2 + $0x3eb8] sm:$0xff]
    %v2078 = vld [vmem:[#allocation2 + $0x3ec0] sm:$0xff]
    %v2079 = vld [vmem:[#allocation2 + $0x3ec8] sm:$0xff]
    %v2080 = vld [vmem:[#allocation2 + $0x3ed0] sm:$0xff]
    %v2081 = vld [vmem:[#allocation2 + $0x3ed8] sm:$0xff]
    %v2082 = vld [vmem:[#allocation2 + $0x3ee0] sm:$0xff]
    %v2083 = vld [vmem:[#allocation2 + $0x3ee8] sm:$0xff]
    %v2084 = vld [vmem:[#allocation2 + $0x3ef0] sm:$0xff]
    %v2085 = vld [vmem:[#allocation2 + $0x3ef8] sm:$0xff]
    %v2086 = vld [vmem:[#allocation2 + $0x3f00] sm:$0xff]
    %v2087 = vld [vmem:[#allocation2 + $0x3f08] sm:$0xff]
    %v2088 = vld [vmem:[#allocation2 + $0x3f10] sm:$0xff]
    %v2089 = vld [vmem:[#allocation2 + $0x3f18] sm:$0xff]
    %v2090 = vld [vmem:[#allocation2 + $0x3f20] sm:$0xff]
    %v2091 = vld [vmem:[#allocation2 + $0x3f28] sm:$0xff]
    %v2092 = vld [vmem:[#allocation2 + $0x3f30] sm:$0xff]
    %v2093 = vld [vmem:[#allocation2 + $0x3f38] sm:$0xff]
    %v2094 = vld [vmem:[#allocation2 + $0x3f40] sm:$0xff]
    %v2095 = vld [vmem:[#allocation2 + $0x3f48] sm:$0xff]
    %v2096 = vld [vmem:[#allocation2 + $0x3f50] sm:$0xff]
    %v2097 = vld [vmem:[#allocation2 + $0x3f58] sm:$0xff]
    %v2098 = vld [vmem:[#allocation2 + $0x3f60] sm:$0xff]
    %v2099 = vld [vmem:[#allocation2 + $0x3f68] sm:$0xff]
    %v2100 = vld [vmem:[#allocation2 + $0x3f70] sm:$0xff]
    %v2101 = vld [vmem:[#allocation2 + $0x3f78] sm:$0xff]
    %v2102 = vld [vmem:[#allocation2 + $0x3f80] sm:$0xff]
    %v2103 = vld [vmem:[#allocation2 + $0x3f88] sm:$0xff]
    %v2104 = vld [vmem:[#allocation2 + $0x3f90] sm:$0xff]
    %v2105 = vld [vmem:[#allocation2 + $0x3f98] sm:$0xff]
    %v2106 = vld [vmem:[#allocation2 + $0x3fa0] sm:$0xff]
    %v2107 = vld [vmem:[#allocation2 + $0x3fa8] sm:$0xff]
    %v2108 = vld [vmem:[#allocation2 + $0x3fb0] sm:$0xff]
    %v2109 = vld [vmem:[#allocation2 + $0x3fb8] sm:$0xff]
    %v2110 = vld [vmem:[#allocation2 + $0x3fc0] sm:$0xff]
    %v2111 = vld [vmem:[#allocation2 + $0x3fc8] sm:$0xff]
    %v2112 = vld [vmem:[#allocation2 + $0x3fd0] sm:$0xff]
    %v2113 = vld [vmem:[#allocation2 + $0x3fd8] sm:$0xff]
    %v2114 = vld [vmem:[#allocation2 + $0x3fe0] sm:$0xff]
    %v2115 = vld [vmem:[#allocation2 + $0x3fe8] sm:$0xff]
    %v2116 = vld [vmem:[#allocation2 + $0x3ff0] sm:$0xff]
    %v2117 = vld [vmem:[#allocation2 + $0x3ff8] sm:$0xff]
    %v2118 = vld [vmem:[#allocation2 + $0x4000] sm:$0xff]
    %v2119 = vld [vmem:[#allocation2 + $0x4008] sm:$0xff]
    %v2120 = vld [vmem:[#allocation2 + $0x4010] sm:$0xff]
    %v2121 = vld [vmem:[#allocation2 + $0x4018] sm:$0xff]
    %v2122 = vld [vmem:[#allocation2 + $0x4020] sm:$0xff]
    %v2123 = vld [vmem:[#allocation2 + $0x4028] sm:$0xff]
    %v2124 = vld [vmem:[#allocation2 + $0x4030] sm:$0xff]
    %v2125 = vld [vmem:[#allocation2 + $0x4038] sm:$0xff]
    %v2126 = vld [vmem:[#allocation2 + $0x4040] sm:$0xff]
    %v2127 = vld [vmem:[#allocation2 + $0x4048] sm:$0xff]
    %v2128 = vld [vmem:[#allocation2 + $0x4050] sm:$0xff]
    %v2129 = vld [vmem:[#allocation2 + $0x4058] sm:$0xff]
    %v2130 = vld [vmem:[#allocation2 + $0x4060] sm:$0xff]
    %v2131 = vld [vmem:[#allocation2 + $0x4068] sm:$0xff]
    %v2132 = vld [vmem:[#allocation2 + $0x4070] sm:$0xff]
    %v2133 = vld [vmem:[#allocation2 + $0x4078] sm:$0xff]
    %v2134 = vld [vmem:[#allocation2 + $0x4080] sm:$0xff]
    %v2135 = vld [vmem:[#allocation2 + $0x4088] sm:$0xff]
    %v2136 = vld [vmem:[#allocation2 + $0x4090] sm:$0xff]
    %v2137 = vld [vmem:[#allocation2 + $0x4098] sm:$0xff]
    %v2138 = vld [vmem:[#allocation2 + $0x40a0] sm:$0xff]
    %v2139 = vld [vmem:[#allocation2 + $0x40a8] sm:$0xff]
    %v2140 = vld [vmem:[#allocation2 + $0x40b0] sm:$0xff]
    %v2141 = vld [vmem:[#allocation2 + $0x40b8] sm:$0xff]
    %v2142 = vld [vmem:[#allocation2 + $0x40c0] sm:$0xff]
    %v2143 = vld [vmem:[#allocation2 + $0x40c8] sm:$0xff]
    %v2144 = vld [vmem:[#allocation2 + $0x40d0] sm:$0xff]
    %v2145 = vld [vmem:[#allocation2 + $0x40d8] sm:$0xff]
    %v2146 = vld [vmem:[#allocation2 + $0x40e0] sm:$0xff]
    %v2147 = vld [vmem:[#allocation2 + $0x40e8] sm:$0xff]
    %v2148 = vld [vmem:[#allocation2 + $0x40f0] sm:$0xff]
    %v2149 = vld [vmem:[#allocation2 + $0x40f8] sm:$0xff]
    %v2150 = vld [vmem:[#allocation2 + $0x4100] sm:$0xff]
    %v2151 = vld [vmem:[#allocation2 + $0x4108] sm:$0xff]
    %v2152 = vld [vmem:[#allocation2 + $0x4110] sm:$0xff]
    %v2153 = vld [vmem:[#allocation2 + $0x4118] sm:$0xff]
    %v2154 = vld [vmem:[#allocation2 + $0x4120] sm:$0xff]
    %v2155 = vld [vmem:[#allocation2 + $0x4128] sm:$0xff]
    %v2156 = vld [vmem:[#allocation2 + $0x4130] sm:$0xff]
    %v2157 = vld [vmem:[#allocation2 + $0x4138] sm:$0xff]
    %v2158 = vld [vmem:[#allocation2 + $0x4140] sm:$0xff]
    %v2159 = vld [vmem:[#allocation2 + $0x4148] sm:$0xff]
    %v2160 = vld [vmem:[#allocation2 + $0x4150] sm:$0xff]
    %v2161 = vld [vmem:[#allocation2 + $0x4158] sm:$0xff]
    %v2162 = vld [vmem:[#allocation2 + $0x4160] sm:$0xff]
    %v2163 = vld [vmem:[#allocation2 + $0x4168] sm:$0xff]
    %v2164 = vld [vmem:[#allocation2 + $0x4170] sm:$0xff]
    %v2165 = vld [vmem:[#allocation2 + $0x4178] sm:$0xff]
    %v2166 = vld [vmem:[#allocation2 + $0x4180] sm:$0xff]
    %v2167 = vld [vmem:[#allocation2 + $0x4188] sm:$0xff]
    %v2168 = vld [vmem:[#allocation2 + $0x4190] sm:$0xff]
    %v2169 = vld [vmem:[#allocation2 + $0x4198] sm:$0xff]
    %v2170 = vld [vmem:[#allocation2 + $0x41a0] sm:$0xff]
    %v2171 = vld [vmem:[#allocation2 + $0x41a8] sm:$0xff]
    %v2172 = vld [vmem:[#allocation2 + $0x41b0] sm:$0xff]
    %v2173 = vld [vmem:[#allocation2 + $0x41b8] sm:$0xff]
    %v2174 = vld [vmem:[#allocation2 + $0x41c0] sm:$0xff]
    %v2175 = vld [vmem:[#allocation2 + $0x41c8] sm:$0xff]
    %v2176 = vld [vmem:[#allocation2 + $0x41d0] sm:$0xff]
    %v2177 = vld [vmem:[#allocation2 + $0x41d8] sm:$0xff]
    %v2178 = vld [vmem:[#allocation2 + $0x41e0] sm:$0xff]
    %v2179 = vld [vmem:[#allocation2 + $0x41e8] sm:$0xff]
    %v2180 = vld [vmem:[#allocation2 + $0x41f0] sm:$0xff]
    %v2181 = vld [vmem:[#allocation2 + $0x41f8] sm:$0xff]
    %v2182 = vld [vmem:[#allocation2 + $0x4200] sm:$0xff]
    %v2183 = vld [vmem:[#allocation2 + $0x4208] sm:$0xff]
    %v2184 = vld [vmem:[#allocation2 + $0x4210] sm:$0xff]
    %v2185 = vld [vmem:[#allocation2 + $0x4218] sm:$0xff]
    %v2186 = vld [vmem:[#allocation2 + $0x4220] sm:$0xff]
    %v2187 = vld [vmem:[#allocation2 + $0x4228] sm:$0xff]
    %v2188 = vld [vmem:[#allocation2 + $0x4230] sm:$0xff]
    %v2189 = vld [vmem:[#allocation2 + $0x4238] sm:$0xff]
    %v2190 = vld [vmem:[#allocation2 + $0x4240] sm:$0xff]
    %v2191 = vld [vmem:[#allocation2 + $0x4248] sm:$0xff]
    %v2192 = vld [vmem:[#allocation2 + $0x4250] sm:$0xff]
    %v2193 = vld [vmem:[#allocation2 + $0x4258] sm:$0xff]
    %v2194 = vld [vmem:[#allocation2 + $0x4260] sm:$0xff]
    %v2195 = vld [vmem:[#allocation2 + $0x4268] sm:$0xff]
    %v2196 = vld [vmem:[#allocation2 + $0x4270] sm:$0xff]
    %v2197 = vld [vmem:[#allocation2 + $0x4278] sm:$0xff]
    %v2198 = vld [vmem:[#allocation2 + $0x4280] sm:$0xff]
    %v2199 = vld [vmem:[#allocation2 + $0x4288] sm:$0xff]
    %v2200 = vld [vmem:[#allocation2 + $0x4290] sm:$0xff]
    %v2201 = vld [vmem:[#allocation2 + $0x4298] sm:$0xff]
    %v2202 = vld [vmem:[#allocation2 + $0x42a0] sm:$0xff]
    %v2203 = vld [vmem:[#allocation2 + $0x42a8] sm:$0xff]
    %v2204 = vld [vmem:[#allocation2 + $0x42b0] sm:$0xff]
    %v2205 = vld [vmem:[#allocation2 + $0x42b8] sm:$0xff]
    %v2206 = vld [vmem:[#allocation2 + $0x42c0] sm:$0xff]
    %v2207 = vld [vmem:[#allocation2 + $0x42c8] sm:$0xff]
    %v2208 = vld [vmem:[#allocation2 + $0x42d0] sm:$0xff]
    %v2209 = vld [vmem:[#allocation2 + $0x42d8] sm:$0xff]
    %v2210 = vld [vmem:[#allocation2 + $0x42e0] sm:$0xff]
    %v2211 = vld [vmem:[#allocation2 + $0x42e8] sm:$0xff]
    %v2212 = vld [vmem:[#allocation2 + $0x42f0] sm:$0xff]
    %v2213 = vld [vmem:[#allocation2 + $0x42f8] sm:$0xff]
    %v2214 = vld [vmem:[#allocation2 + $0x4300] sm:$0xff]
    %v2215 = vld [vmem:[#allocation2 + $0x4308] sm:$0xff]
    %v2216 = vld [vmem:[#allocation2 + $0x4310] sm:$0xff]
    %v2217 = vld [vmem:[#allocation2 + $0x4318] sm:$0xff]
    %v2218 = vld [vmem:[#allocation2 + $0x4320] sm:$0xff]
    %v2219 = vld [vmem:[#allocation2 + $0x4328] sm:$0xff]
    %v2220 = vld [vmem:[#allocation2 + $0x4330] sm:$0xff]
    %v2221 = vld [vmem:[#allocation2 + $0x4338] sm:$0xff]
    %v2222 = vld [vmem:[#allocation2 + $0x4340] sm:$0xff]
    %v2223 = vld [vmem:[#allocation2 + $0x4348] sm:$0xff]
    %v2224 = vld [vmem:[#allocation2 + $0x4350] sm:$0xff]
    %v2225 = vld [vmem:[#allocation2 + $0x4358] sm:$0xff]
    %v2226 = vld [vmem:[#allocation2 + $0x4360] sm:$0xff]
    %v2227 = vld [vmem:[#allocation2 + $0x4368] sm:$0xff]
    %v2228 = vld [vmem:[#allocation2 + $0x4370] sm:$0xff]
    %v2229 = vld [vmem:[#allocation2 + $0x4378] sm:$0xff]
    %v2230 = vld [vmem:[#allocation2 + $0x4380] sm:$0xff]
    %v2231 = vld [vmem:[#allocation2 + $0x4388] sm:$0xff]
    %v2232 = vld [vmem:[#allocation2 + $0x4390] sm:$0xff]
    %v2233 = vld [vmem:[#allocation2 + $0x4398] sm:$0xff]
    %v2234 = vld [vmem:[#allocation2 + $0x43a0] sm:$0xff]
    %v2235 = vld [vmem:[#allocation2 + $0x43a8] sm:$0xff]
    %v2236 = vld [vmem:[#allocation2 + $0x43b0] sm:$0xff]
    %v2237 = vld [vmem:[#allocation2 + $0x43b8] sm:$0xff]
    %v2238 = vld [vmem:[#allocation2 + $0x43c0] sm:$0xff]
    %v2239 = vld [vmem:[#allocation2 + $0x43c8] sm:$0xff]
    %v2240 = vld [vmem:[#allocation2 + $0x43d0] sm:$0xff]
    %v2241 = vld [vmem:[#allocation2 + $0x43d8] sm:$0xff]
    %v2242 = vld [vmem:[#allocation2 + $0x43e0] sm:$0xff]
    %v2243 = vld [vmem:[#allocation2 + $0x43e8] sm:$0xff]
    %v2244 = vld [vmem:[#allocation2 + $0x43f0] sm:$0xff]
    %v2245 = vld [vmem:[#allocation2 + $0x43f8] sm:$0xff]
    %v2246 = vld [vmem:[#allocation2 + $0x4400] sm:$0xff]
    %v2247 = vld [vmem:[#allocation2 + $0x4408] sm:$0xff]
    %v2248 = vld [vmem:[#allocation2 + $0x4410] sm:$0xff]
    %v2249 = vld [vmem:[#allocation2 + $0x4418] sm:$0xff]
    %v2250 = vld [vmem:[#allocation2 + $0x4420] sm:$0xff]
    %v2251 = vld [vmem:[#allocation2 + $0x4428] sm:$0xff]
    %v2252 = vld [vmem:[#allocation2 + $0x4430] sm:$0xff]
    %v2253 = vld [vmem:[#allocation2 + $0x4438] sm:$0xff]
    %v2254 = vld [vmem:[#allocation2 + $0x4440] sm:$0xff]
    %v2255 = vld [vmem:[#allocation2 + $0x4448] sm:$0xff]
    %v2256 = vld [vmem:[#allocation2 + $0x4450] sm:$0xff]
    %v2257 = vld [vmem:[#allocation2 + $0x4458] sm:$0xff]
    %v2258 = vld [vmem:[#allocation2 + $0x4460] sm:$0xff]
    %v2259 = vld [vmem:[#allocation2 + $0x4468] sm:$0xff]
    %v2260 = vld [vmem:[#allocation2 + $0x4470] sm:$0xff]
    %v2261 = vld [vmem:[#allocation2 + $0x4478] sm:$0xff]
    %v2262 = vld [vmem:[#allocation2 + $0x4480] sm:$0xff]
    %v2263 = vld [vmem:[#allocation2 + $0x4488] sm:$0xff]
    %v2264 = vld [vmem:[#allocation2 + $0x4490] sm:$0xff]
    %v2265 = vld [vmem:[#allocation2 + $0x4498] sm:$0xff]
    %v2266 = vld [vmem:[#allocation2 + $0x44a0] sm:$0xff]
    %v2267 = vld [vmem:[#allocation2 + $0x44a8] sm:$0xff]
    %v2268 = vld [vmem:[#allocation2 + $0x44b0] sm:$0xff]
    %v2269 = vld [vmem:[#allocation2 + $0x44b8] sm:$0xff]
    %v2270 = vld [vmem:[#allocation2 + $0x44c0] sm:$0xff]
    %v2271 = vld [vmem:[#allocation2 + $0x44c8] sm:$0xff]
    %v2272 = vld [vmem:[#allocation2 + $0x44d0] sm:$0xff]
    %v2273 = vld [vmem:[#allocation2 + $0x44d8] sm:$0xff]
    %v2274 = vld [vmem:[#allocation2 + $0x44e0] sm:$0xff]
    %v2275 = vld [vmem:[#allocation2 + $0x44e8] sm:$0xff]
    %v2276 = vld [vmem:[#allocation2 + $0x44f0] sm:$0xff]
    %v2277 = vld [vmem:[#allocation2 + $0x44f8] sm:$0xff]
    %v2278 = vld [vmem:[#allocation2 + $0x4500] sm:$0xff]
    %v2279 = vld [vmem:[#allocation2 + $0x4508] sm:$0xff]
    %v2280 = vld [vmem:[#allocation2 + $0x4510] sm:$0xff]
    %v2281 = vld [vmem:[#allocation2 + $0x4518] sm:$0xff]
    %v2282 = vld [vmem:[#allocation2 + $0x4520] sm:$0xff]
    %v2283 = vld [vmem:[#allocation2 + $0x4528] sm:$0xff]
    %v2284 = vld [vmem:[#allocation2 + $0x4530] sm:$0xff]
    %v2285 = vld [vmem:[#allocation2 + $0x4538] sm:$0xff]
    %v2286 = vld [vmem:[#allocation2 + $0x4540] sm:$0xff]
    %v2287 = vld [vmem:[#allocation2 + $0x4548] sm:$0xff]
    %v2288 = vld [vmem:[#allocation2 + $0x4550] sm:$0xff]
    %v2289 = vld [vmem:[#allocation2 + $0x4558] sm:$0xff]
    %v2290 = vld [vmem:[#allocation2 + $0x4560] sm:$0xff]
    %v2291 = vld [vmem:[#allocation2 + $0x4568] sm:$0xff]
    %v2292 = vld [vmem:[#allocation2 + $0x4570] sm:$0xff]
    %v2293 = vld [vmem:[#allocation2 + $0x4578] sm:$0xff]
    %v2294 = vld [vmem:[#allocation2 + $0x4580] sm:$0xff]
    %v2295 = vld [vmem:[#allocation2 + $0x4588] sm:$0xff]
    %v2296 = vld [vmem:[#allocation2 + $0x4590] sm:$0xff]
    %v2297 = vld [vmem:[#allocation2 + $0x4598] sm:$0xff]
    %v2298 = vld [vmem:[#allocation2 + $0x45a0] sm:$0xff]
    %v2299 = vld [vmem:[#allocation2 + $0x45a8] sm:$0xff]
    %v2300 = vld [vmem:[#allocation2 + $0x45b0] sm:$0xff]
    %v2301 = vld [vmem:[#allocation2 + $0x45b8] sm:$0xff]
    %v2302 = vld [vmem:[#allocation2 + $0x45c0] sm:$0xff]
    %v2303 = vld [vmem:[#allocation2 + $0x45c8] sm:$0xff]
    %v2304 = vld [vmem:[#allocation2 + $0x45d0] sm:$0xff]
    %v2305 = vld [vmem:[#allocation2 + $0x45d8] sm:$0xff]
    %v2306 = vld [vmem:[#allocation2 + $0x45e0] sm:$0xff]
    %v2307 = vld [vmem:[#allocation2 + $0x45e8] sm:$0xff]
    %v2308 = vld [vmem:[#allocation2 + $0x45f0] sm:$0xff]
    %v2309 = vld [vmem:[#allocation2 + $0x45f8] sm:$0xff]
    %v2310 = vld [vmem:[#allocation2 + $0x4600] sm:$0xff]
    %v2311 = vld [vmem:[#allocation2 + $0x4608] sm:$0xff]
    %v2312 = vld [vmem:[#allocation2 + $0x4610] sm:$0xff]
    %v2313 = vld [vmem:[#allocation2 + $0x4618] sm:$0xff]
    %v2314 = vld [vmem:[#allocation2 + $0x4620] sm:$0xff]
    %v2315 = vld [vmem:[#allocation2 + $0x4628] sm:$0xff]
    %v2316 = vld [vmem:[#allocation2 + $0x4630] sm:$0xff]
    %v2317 = vld [vmem:[#allocation2 + $0x4638] sm:$0xff]
    %v2318 = vld [vmem:[#allocation2 + $0x4640] sm:$0xff]
    %v2319 = vld [vmem:[#allocation2 + $0x4648] sm:$0xff]
    %v2320 = vld [vmem:[#allocation2 + $0x4650] sm:$0xff]
    %v2321 = vld [vmem:[#allocation2 + $0x4658] sm:$0xff]
    %v2322 = vld [vmem:[#allocation2 + $0x4660] sm:$0xff]
    %v2323 = vld [vmem:[#allocation2 + $0x4668] sm:$0xff]
    %v2324 = vld [vmem:[#allocation2 + $0x4670] sm:$0xff]
    %v2325 = vld [vmem:[#allocation2 + $0x4678] sm:$0xff]
    %v2326 = vld [vmem:[#allocation2 + $0x4680] sm:$0xff]
    %v2327 = vld [vmem:[#allocation2 + $0x4688] sm:$0xff]
    %v2328 = vld [vmem:[#allocation2 + $0x4690] sm:$0xff]
    %v2329 = vld [vmem:[#allocation2 + $0x4698] sm:$0xff]
    %v2330 = vld [vmem:[#allocation2 + $0x46a0] sm:$0xff]
    %v2331 = vld [vmem:[#allocation2 + $0x46a8] sm:$0xff]
    %v2332 = vld [vmem:[#allocation2 + $0x46b0] sm:$0xff]
    %v2333 = vld [vmem:[#allocation2 + $0x46b8] sm:$0xff]
    %v2334 = vld [vmem:[#allocation2 + $0x46c0] sm:$0xff]
    %v2335 = vld [vmem:[#allocation2 + $0x46c8] sm:$0xff]
    %v2336 = vld [vmem:[#allocation2 + $0x46d0] sm:$0xff]
    %v2337 = vld [vmem:[#allocation2 + $0x46d8] sm:$0xff]
    %v2338 = vld [vmem:[#allocation2 + $0x46e0] sm:$0xff]
    %v2339 = vld [vmem:[#allocation2 + $0x46e8] sm:$0xff]
    %v2340 = vld [vmem:[#allocation2 + $0x46f0] sm:$0xff]
    %v2341 = vld [vmem:[#allocation2 + $0x46f8] sm:$0xff]
    %v2342 = vld [vmem:[#allocation2 + $0x4700] sm:$0xff]
    %v2343 = vld [vmem:[#allocation2 + $0x4708] sm:$0xff]
    %v2344 = vld [vmem:[#allocation2 + $0x4710] sm:$0xff]
    %v2345 = vld [vmem:[#allocation2 + $0x4718] sm:$0xff]
    %v2346 = vld [vmem:[#allocation2 + $0x4720] sm:$0xff]
    %v2347 = vld [vmem:[#allocation2 + $0x4728] sm:$0xff]
    %v2348 = vld [vmem:[#allocation2 + $0x4730] sm:$0xff]
    %v2349 = vld [vmem:[#allocation2 + $0x4738] sm:$0xff]
    %v2350 = vld [vmem:[#allocation2 + $0x4740] sm:$0xff]
    %v2351 = vld [vmem:[#allocation2 + $0x4748] sm:$0xff]
    %v2352 = vld [vmem:[#allocation2 + $0x4750] sm:$0xff]
    %v2353 = vld [vmem:[#allocation2 + $0x4758] sm:$0xff]
    %v2354 = vld [vmem:[#allocation2 + $0x4760] sm:$0xff]
    %v2355 = vld [vmem:[#allocation2 + $0x4768] sm:$0xff]
    %v2356 = vld [vmem:[#allocation2 + $0x4770] sm:$0xff]
    %v2357 = vld [vmem:[#allocation2 + $0x4778] sm:$0xff]
    %v2358 = vld [vmem:[#allocation2 + $0x4780] sm:$0xff]
    %v2359 = vld [vmem:[#allocation2 + $0x4788] sm:$0xff]
    %v2360 = vld [vmem:[#allocation2 + $0x4790] sm:$0xff]
    %v2361 = vld [vmem:[#allocation2 + $0x4798] sm:$0xff]
    %v2362 = vld [vmem:[#allocation2 + $0x47a0] sm:$0xff]
    %v2363 = vld [vmem:[#allocation2 + $0x47a8] sm:$0xff]
    %v2364 = vld [vmem:[#allocation2 + $0x47b0] sm:$0xff]
    %v2365 = vld [vmem:[#allocation2 + $0x47b8] sm:$0xff]
    %v2366 = vld [vmem:[#allocation2 + $0x47c0] sm:$0xff]
    %v2367 = vld [vmem:[#allocation2 + $0x47c8] sm:$0xff]
    %v2368 = vld [vmem:[#allocation2 + $0x47d0] sm:$0xff]
    %v2369 = vld [vmem:[#allocation2 + $0x47d8] sm:$0xff]
    %v2370 = vld [vmem:[#allocation2 + $0x47e0] sm:$0xff]
    %v2371 = vld [vmem:[#allocation2 + $0x47e8] sm:$0xff]
    %v2372 = vld [vmem:[#allocation2 + $0x47f0] sm:$0xff]
    %v2373 = vld [vmem:[#allocation2 + $0x47f8] sm:$0xff]
    %v2374 = vld [vmem:[#allocation2 + $0x4800] sm:$0xff]
    %v2375 = vld [vmem:[#allocation2 + $0x4808] sm:$0xff]
    %v2376 = vld [vmem:[#allocation2 + $0x4810] sm:$0xff]
    %v2377 = vld [vmem:[#allocation2 + $0x4818] sm:$0xff]
    %v2378 = vld [vmem:[#allocation2 + $0x4820] sm:$0xff]
    %v2379 = vld [vmem:[#allocation2 + $0x4828] sm:$0xff]
    %v2380 = vld [vmem:[#allocation2 + $0x4830] sm:$0xff]
    %v2381 = vld [vmem:[#allocation2 + $0x4838] sm:$0xff]
    %v2382 = vld [vmem:[#allocation2 + $0x4840] sm:$0xff]
    %v2383 = vld [vmem:[#allocation2 + $0x4848] sm:$0xff]
    %v2384 = vld [vmem:[#allocation2 + $0x4850] sm:$0xff]
    %v2385 = vld [vmem:[#allocation2 + $0x4858] sm:$0xff]
    %v2386 = vld [vmem:[#allocation2 + $0x4860] sm:$0xff]
    %v2387 = vld [vmem:[#allocation2 + $0x4868] sm:$0xff]
    %v2388 = vld [vmem:[#allocation2 + $0x4870] sm:$0xff]
    %v2389 = vld [vmem:[#allocation2 + $0x4878] sm:$0xff]
    %v2390 = vld [vmem:[#allocation2 + $0x4880] sm:$0xff]
    %v2391 = vld [vmem:[#allocation2 + $0x4888] sm:$0xff]
    %v2392 = vld [vmem:[#allocation2 + $0x4890] sm:$0xff]
    %v2393 = vld [vmem:[#allocation2 + $0x4898] sm:$0xff]
    %v2394 = vld [vmem:[#allocation2 + $0x48a0] sm:$0xff]
    %v2395 = vld [vmem:[#allocation2 + $0x48a8] sm:$0xff]
    %v2396 = vld [vmem:[#allocation2 + $0x48b0] sm:$0xff]
    %v2397 = vld [vmem:[#allocation2 + $0x48b8] sm:$0xff]
    %v2398 = vld [vmem:[#allocation2 + $0x48c0] sm:$0xff]
    %v2399 = vld [vmem:[#allocation2 + $0x48c8] sm:$0xff]
    %v2400 = vld [vmem:[#allocation2 + $0x48d0] sm:$0xff]
    %v2401 = vld [vmem:[#allocation2 + $0x48d8] sm:$0xff]
    %v2402 = vld [vmem:[#allocation2 + $0x48e0] sm:$0xff]
    %v2403 = vld [vmem:[#allocation2 + $0x48e8] sm:$0xff]
    %v2404 = vld [vmem:[#allocation2 + $0x48f0] sm:$0xff]
    %v2405 = vld [vmem:[#allocation2 + $0x48f8] sm:$0xff]
    %v2406 = vld [vmem:[#allocation2 + $0x4900] sm:$0xff]
    %v2407 = vld [vmem:[#allocation2 + $0x4908] sm:$0xff]
    %v2408 = vld [vmem:[#allocation2 + $0x4910] sm:$0xff]
    %v2409 = vld [vmem:[#allocation2 + $0x4918] sm:$0xff]
    %v2410 = vld [vmem:[#allocation2 + $0x4920] sm:$0xff]
    %v2411 = vld [vmem:[#allocation2 + $0x4928] sm:$0xff]
    %v2412 = vld [vmem:[#allocation2 + $0x4930] sm:$0xff]
    %v2413 = vld [vmem:[#allocation2 + $0x4938] sm:$0xff]
    %v2414 = vld [vmem:[#allocation2 + $0x4940] sm:$0xff]
    %v2415 = vld [vmem:[#allocation2 + $0x4948] sm:$0xff]
    %v2416 = vld [vmem:[#allocation2 + $0x4950] sm:$0xff]
    %v2417 = vld [vmem:[#allocation2 + $0x4958] sm:$0xff]
    %v2418 = vld [vmem:[#allocation2 + $0x4960] sm:$0xff]
    %v2419 = vld [vmem:[#allocation2 + $0x4968] sm:$0xff]
    %v2420 = vld [vmem:[#allocation2 + $0x4970] sm:$0xff]
    %v2421 = vld [vmem:[#allocation2 + $0x4978] sm:$0xff]
    %v2422 = vld [vmem:[#allocation2 + $0x4980] sm:$0xff]
    %v2423 = vld [vmem:[#allocation2 + $0x4988] sm:$0xff]
    %v2424 = vld [vmem:[#allocation2 + $0x4990] sm:$0xff]
    %v2425 = vld [vmem:[#allocation2 + $0x4998] sm:$0xff]
    %v2426 = vld [vmem:[#allocation2 + $0x49a0] sm:$0xff]
    %v2427 = vld [vmem:[#allocation2 + $0x49a8] sm:$0xff]
    %v2428 = vld [vmem:[#allocation2 + $0x49b0] sm:$0xff]
    %v2429 = vld [vmem:[#allocation2 + $0x49b8] sm:$0xff]
    %v2430 = vld [vmem:[#allocation2 + $0x49c0] sm:$0xff]
    %v2431 = vld [vmem:[#allocation2 + $0x49c8] sm:$0xff]
    %v2432 = vld [vmem:[#allocation2 + $0x49d0] sm:$0xff]
    %v2433 = vld [vmem:[#allocation2 + $0x49d8] sm:$0xff]
    %v2434 = vld [vmem:[#allocation2 + $0x49e0] sm:$0xff]
    %v2435 = vld [vmem:[#allocation2 + $0x49e8] sm:$0xff]
    %v2436 = vld [vmem:[#allocation2 + $0x49f0] sm:$0xff]
    %v2437 = vld [vmem:[#allocation2 + $0x49f8] sm:$0xff]
    %v2438 = vld [vmem:[#allocation2 + $0x4a00] sm:$0xff]
    %v2439 = vld [vmem:[#allocation2 + $0x4a08] sm:$0xff]
    %v2440 = vld [vmem:[#allocation2 + $0x4a10] sm:$0xff]
    %v2441 = vld [vmem:[#allocation2 + $0x4a18] sm:$0xff]
    %v2442 = vld [vmem:[#allocation2 + $0x4a20] sm:$0xff]
    %v2443 = vld [vmem:[#allocation2 + $0x4a28] sm:$0xff]
    %v2444 = vld [vmem:[#allocation2 + $0x4a30] sm:$0xff]
    %v2445 = vld [vmem:[#allocation2 + $0x4a38] sm:$0xff]
    %v2446 = vld [vmem:[#allocation2 + $0x4a40] sm:$0xff]
    %v2447 = vld [vmem:[#allocation2 + $0x4a48] sm:$0xff]
    %v2448 = vld [vmem:[#allocation2 + $0x4a50] sm:$0xff]
    %v2449 = vld [vmem:[#allocation2 + $0x4a58] sm:$0xff]
    %v2450 = vld [vmem:[#allocation2 + $0x4a60] sm:$0xff]
    %v2451 = vld [vmem:[#allocation2 + $0x4a68] sm:$0xff]
    %v2452 = vld [vmem:[#allocation2 + $0x4a70] sm:$0xff]
    %v2453 = vld [vmem:[#allocation2 + $0x4a78] sm:$0xff]
    %v2454 = vld [vmem:[#allocation2 + $0x4a80] sm:$0xff]
    %v2455 = vld [vmem:[#allocation2 + $0x4a88] sm:$0xff]
    %v2456 = vld [vmem:[#allocation2 + $0x4a90] sm:$0xff]
    %v2457 = vld [vmem:[#allocation2 + $0x4a98] sm:$0xff]
    %v2458 = vld [vmem:[#allocation2 + $0x4aa0] sm:$0xff]
    %v2459 = vld [vmem:[#allocation2 + $0x4aa8] sm:$0xff]
    %v2460 = vld [vmem:[#allocation2 + $0x4ab0] sm:$0xff]
    %v2461 = vld [vmem:[#allocation2 + $0x4ab8] sm:$0xff]
    %v2462 = vld [vmem:[#allocation2 + $0x4ac0] sm:$0xff]
    %v2463 = vld [vmem:[#allocation2 + $0x4ac8] sm:$0xff]
    %v2464 = vld [vmem:[#allocation2 + $0x4ad0] sm:$0xff]
    %v2465 = vld [vmem:[#allocation2 + $0x4ad8] sm:$0xff]
    %v2466 = vld [vmem:[#allocation2 + $0x4ae0] sm:$0xff]
    %v2467 = vld [vmem:[#allocation2 + $0x4ae8] sm:$0xff]
    %v2468 = vld [vmem:[#allocation2 + $0x4af0] sm:$0xff]
    %v2469 = vld [vmem:[#allocation2 + $0x4af8] sm:$0xff]
    %v2470 = vld [vmem:[#allocation2 + $0x4b00] sm:$0xff]
    %v2471 = vld [vmem:[#allocation2 + $0x4b08] sm:$0xff]
    %v2472 = vld [vmem:[#allocation2 + $0x4b10] sm:$0xff]
    %v2473 = vld [vmem:[#allocation2 + $0x4b18] sm:$0xff]
    %v2474 = vld [vmem:[#allocation2 + $0x4b20] sm:$0xff]
    %v2475 = vld [vmem:[#allocation2 + $0x4b28] sm:$0xff]
    %v2476 = vld [vmem:[#allocation2 + $0x4b30] sm:$0xff]
    %v2477 = vld [vmem:[#allocation2 + $0x4b38] sm:$0xff]
    %v2478 = vld [vmem:[#allocation2 + $0x4b40] sm:$0xff]
    %v2479 = vld [vmem:[#allocation2 + $0x4b48] sm:$0xff]
    %v2480 = vld [vmem:[#allocation2 + $0x4b50] sm:$0xff]
    %v2481 = vld [vmem:[#allocation2 + $0x4b58] sm:$0xff]
    %v2482 = vld [vmem:[#allocation2 + $0x4b60] sm:$0xff]
    %v2483 = vld [vmem:[#allocation2 + $0x4b68] sm:$0xff]
    %v2484 = vld [vmem:[#allocation2 + $0x4b70] sm:$0xff]
    %v2485 = vld [vmem:[#allocation2 + $0x4b78] sm:$0xff]
    %v2486 = vld [vmem:[#allocation2 + $0x4b80] sm:$0xff]
    %v2487 = vld [vmem:[#allocation2 + $0x4b88] sm:$0xff]
    %v2488 = vld [vmem:[#allocation2 + $0x4b90] sm:$0xff]
    %v2489 = vld [vmem:[#allocation2 + $0x4b98] sm:$0xff]
    %v2490 = vld [vmem:[#allocation2 + $0x4ba0] sm:$0xff]
    %v2491 = vld [vmem:[#allocation2 + $0x4ba8] sm:$0xff]
    %v2492 = vld [vmem:[#allocation2 + $0x4bb0] sm:$0xff]
    %v2493 = vld [vmem:[#allocation2 + $0x4bb8] sm:$0xff]
    %v2494 = vld [vmem:[#allocation2 + $0x4bc0] sm:$0xff]
    %v2495 = vld [vmem:[#allocation2 + $0x4bc8] sm:$0xff]
    %v2496 = vld [vmem:[#allocation2 + $0x4bd0] sm:$0xff]
    %v2497 = vld [vmem:[#allocation2 + $0x4bd8] sm:$0xff]
    %v2498 = vld [vmem:[#allocation2 + $0x4be0] sm:$0xff]
    %v2499 = vld [vmem:[#allocation2 + $0x4be8] sm:$0xff]
    %v2500 = vld [vmem:[#allocation2 + $0x4bf0] sm:$0xff]
    %v2501 = vld [vmem:[#allocation2 + $0x4bf8] sm:$0xff]
    %v2502 = vld [vmem:[#allocation2 + $0x4c00] sm:$0xff]
    %v2503 = vld [vmem:[#allocation2 + $0x4c08] sm:$0xff]
    %v2504 = vld [vmem:[#allocation2 + $0x4c10] sm:$0xff]
    %v2505 = vld [vmem:[#allocation2 + $0x4c18] sm:$0xff]
    %v2506 = vld [vmem:[#allocation2 + $0x4c20] sm:$0xff]
    %v2507 = vld [vmem:[#allocation2 + $0x4c28] sm:$0xff]
    %v2508 = vld [vmem:[#allocation2 + $0x4c30] sm:$0xff]
    %v2509 = vld [vmem:[#allocation2 + $0x4c38] sm:$0xff]
    %v2510 = vld [vmem:[#allocation2 + $0x4c40] sm:$0xff]
    %v2511 = vld [vmem:[#allocation2 + $0x4c48] sm:$0xff]
    %v2512 = vld [vmem:[#allocation2 + $0x4c50] sm:$0xff]
    %v2513 = vld [vmem:[#allocation2 + $0x4c58] sm:$0xff]
    %v2514 = vld [vmem:[#allocation2 + $0x4c60] sm:$0xff]
    %v2515 = vld [vmem:[#allocation2 + $0x4c68] sm:$0xff]
    %v2516 = vld [vmem:[#allocation2 + $0x4c70] sm:$0xff]
    %v2517 = vld [vmem:[#allocation2 + $0x4c78] sm:$0xff]
    %v2518 = vld [vmem:[#allocation2 + $0x4c80] sm:$0xff]
    %v2519 = vld [vmem:[#allocation2 + $0x4c88] sm:$0xff]
    %v2520 = vld [vmem:[#allocation2 + $0x4c90] sm:$0xff]
    %v2521 = vld [vmem:[#allocation2 + $0x4c98] sm:$0xff]
    %v2522 = vld [vmem:[#allocation2 + $0x4ca0] sm:$0xff]
    %v2523 = vld [vmem:[#allocation2 + $0x4ca8] sm:$0xff]
    %v2524 = vld [vmem:[#allocation2 + $0x4cb0] sm:$0xff]
    %v2525 = vld [vmem:[#allocation2 + $0x4cb8] sm:$0xff]
    %v2526 = vld [vmem:[#allocation2 + $0x4cc0] sm:$0xff]
    %v2527 = vld [vmem:[#allocation2 + $0x4cc8] sm:$0xff]
    %v2528 = vld [vmem:[#allocation2 + $0x4cd0] sm:$0xff]
    %v2529 = vld [vmem:[#allocation2 + $0x4cd8] sm:$0xff]
    %v2530 = vld [vmem:[#allocation2 + $0x4ce0] sm:$0xff]
    %v2531 = vld [vmem:[#allocation2 + $0x4ce8] sm:$0xff]
    %v2532 = vld [vmem:[#allocation2 + $0x4cf0] sm:$0xff]
    %v2533 = vld [vmem:[#allocation2 + $0x4cf8] sm:$0xff]
    %v2534 = vld [vmem:[#allocation2 + $0x4d00] sm:$0xff]
    %v2535 = vld [vmem:[#allocation2 + $0x4d08] sm:$0xff]
    %v2536 = vld [vmem:[#allocation2 + $0x4d10] sm:$0xff]
    %v2537 = vld [vmem:[#allocation2 + $0x4d18] sm:$0xff]
    %v2538 = vld [vmem:[#allocation2 + $0x4d20] sm:$0xff]
    %v2539 = vld [vmem:[#allocation2 + $0x4d28] sm:$0xff]
    %v2540 = vld [vmem:[#allocation2 + $0x4d30] sm:$0xff]
    %v2541 = vld [vmem:[#allocation2 + $0x4d38] sm:$0xff]
    %v2542 = vld [vmem:[#allocation2 + $0x4d40] sm:$0xff]
    %v2543 = vld [vmem:[#allocation2 + $0x4d48] sm:$0xff]
    %v2544 = vld [vmem:[#allocation2 + $0x4d50] sm:$0xff]
    %v2545 = vld [vmem:[#allocation2 + $0x4d58] sm:$0xff]
    %v2546 = vld [vmem:[#allocation2 + $0x4d60] sm:$0xff]
    %v2547 = vld [vmem:[#allocation2 + $0x4d68] sm:$0xff]
    %v2548 = vld [vmem:[#allocation2 + $0x4d70] sm:$0xff]
    %v2549 = vld [vmem:[#allocation2 + $0x4d78] sm:$0xff]
    %v2550 = vld [vmem:[#allocation2 + $0x4d80] sm:$0xff]
    %v2551 = vld [vmem:[#allocation2 + $0x4d88] sm:$0xff]
    %v2552 = vld [vmem:[#allocation2 + $0x4d90] sm:$0xff]
    %v2553 = vld [vmem:[#allocation2 + $0x4d98] sm:$0xff]
    %v2554 = vld [vmem:[#allocation2 + $0x4da0] sm:$0xff]
    %v2555 = vld [vmem:[#allocation2 + $0x4da8] sm:$0xff]
    %v2556 = vld [vmem:[#allocation2 + $0x4db0] sm:$0xff]
    %v2557 = vld [vmem:[#allocation2 + $0x4db8] sm:$0xff]
    %v2558 = vld [vmem:[#allocation2 + $0x4dc0] sm:$0xff]
    %v2559 = vld [vmem:[#allocation2 + $0x4dc8] sm:$0xff]
    %v2560 = vld [vmem:[#allocation2 + $0x4dd0] sm:$0xff]
    %v2561 = vld [vmem:[#allocation2 + $0x4dd8] sm:$0xff]
    %v2562 = vld [vmem:[#allocation2 + $0x4de0] sm:$0xff]
    %v2563 = vld [vmem:[#allocation2 + $0x4de8] sm:$0xff]
    %v2564 = vld [vmem:[#allocation2 + $0x4df0] sm:$0xff]
    %v2565 = vld [vmem:[#allocation2 + $0x4df8] sm:$0xff]
    %v2566 = vld [vmem:[#allocation2 + $0x4e00] sm:$0xff]
    %v2567 = vld [vmem:[#allocation2 + $0x4e08] sm:$0xff]
    %v2568 = vld [vmem:[#allocation2 + $0x4e10] sm:$0xff]
    %v2569 = vld [vmem:[#allocation2 + $0x4e18] sm:$0xff]
    %v2570 = vld [vmem:[#allocation2 + $0x4e20] sm:$0xff]
    %v2571 = vld [vmem:[#allocation2 + $0x4e28] sm:$0xff]
    %v2572 = vld [vmem:[#allocation2 + $0x4e30] sm:$0xff]
    %v2573 = vld [vmem:[#allocation2 + $0x4e38] sm:$0xff]
    %v2574 = vld [vmem:[#allocation2 + $0x4e40] sm:$0xff]
    %v2575 = vld [vmem:[#allocation2 + $0x4e48] sm:$0xff]
    %v2576 = vld [vmem:[#allocation2 + $0x4e50] sm:$0xff]
    %v2577 = vld [vmem:[#allocation2 + $0x4e58] sm:$0xff]
    %v2578 = vld [vmem:[#allocation2 + $0x4e60] sm:$0xff]
    %v2579 = vld [vmem:[#allocation2 + $0x4e68] sm:$0xff]
    %v2580 = vld [vmem:[#allocation2 + $0x4e70] sm:$0xff]
    %v2581 = vld [vmem:[#allocation2 + $0x4e78] sm:$0xff]
    %v2582 = vld [vmem:[#allocation2 + $0x4e80] sm:$0xff]
    %v2583 = vld [vmem:[#allocation2 + $0x4e88] sm:$0xff]
    %v2584 = vld [vmem:[#allocation2 + $0x4e90] sm:$0xff]
    %v2585 = vld [vmem:[#allocation2 + $0x4e98] sm:$0xff]
    %v2586 = vld [vmem:[#allocation2 + $0x4ea0] sm:$0xff]
    %v2587 = vld [vmem:[#allocation2 + $0x4ea8] sm:$0xff]
    %v2588 = vld [vmem:[#allocation2 + $0x4eb0] sm:$0xff]
    %v2589 = vld [vmem:[#allocation2 + $0x4eb8] sm:$0xff]
    %v2590 = vld [vmem:[#allocation2 + $0x4ec0] sm:$0xff]
    %v2591 = vld [vmem:[#allocation2 + $0x4ec8] sm:$0xff]
    %v2592 = vld [vmem:[#allocation2 + $0x4ed0] sm:$0xff]
    %v2593 = vld [vmem:[#allocation2 + $0x4ed8] sm:$0xff]
    %v2594 = vld [vmem:[#allocation2 + $0x4ee0] sm:$0xff]
    %v2595 = vld [vmem:[#allocation2 + $0x4ee8] sm:$0xff]
    %v2596 = vld [vmem:[#allocation2 + $0x4ef0] sm:$0xff]
    %v2597 = vld [vmem:[#allocation2 + $0x4ef8] sm:$0xff]
    %v2598 = vld [vmem:[#allocation2 + $0x4f00] sm:$0xff]
    %v2599 = vld [vmem:[#allocation2 + $0x4f08] sm:$0xff]
    %v2600 = vld [vmem:[#allocation2 + $0x4f10] sm:$0xff]
    %v2601 = vld [vmem:[#allocation2 + $0x4f18] sm:$0xff]
    %v2602 = vld [vmem:[#allocation2 + $0x4f20] sm:$0xff]
    %v2603 = vld [vmem:[#allocation2 + $0x4f28] sm:$0xff]
    %v2604 = vld [vmem:[#allocation2 + $0x4f30] sm:$0xff]
    %v2605 = vld [vmem:[#allocation2 + $0x4f38] sm:$0xff]
    %v2606 = vld [vmem:[#allocation2 + $0x4f40] sm:$0xff]
    %v2607 = vld [vmem:[#allocation2 + $0x4f48] sm:$0xff]
    %v2608 = vld [vmem:[#allocation2 + $0x4f50] sm:$0xff]
    %v2609 = vld [vmem:[#allocation2 + $0x4f58] sm:$0xff]
    %v2610 = vld [vmem:[#allocation2 + $0x4f60] sm:$0xff]
    %v2611 = vld [vmem:[#allocation2 + $0x4f68] sm:$0xff]
    %v2612 = vld [vmem:[#allocation2 + $0x4f70] sm:$0xff]
    %v2613 = vld [vmem:[#allocation2 + $0x4f78] sm:$0xff]
    %v2614 = vld [vmem:[#allocation2 + $0x4f80] sm:$0xff]
    %v2615 = vld [vmem:[#allocation2 + $0x4f88] sm:$0xff]
    %v2616 = vld [vmem:[#allocation2 + $0x4f90] sm:$0xff]
    %v2617 = vld [vmem:[#allocation2 + $0x4f98] sm:$0xff]
    %v2618 = vld [vmem:[#allocation2 + $0x4fa0] sm:$0xff]
    %v2619 = vld [vmem:[#allocation2 + $0x4fa8] sm:$0xff]
    %v2620 = vld [vmem:[#allocation2 + $0x4fb0] sm:$0xff]
    %v2621 = vld [vmem:[#allocation2 + $0x4fb8] sm:$0xff]
    %v2622 = vld [vmem:[#allocation2 + $0x4fc0] sm:$0xff]
    %v2623 = vld [vmem:[#allocation2 + $0x4fc8] sm:$0xff]
    %v2624 = vld [vmem:[#allocation2 + $0x4fd0] sm:$0xff]
    %v2625 = vld [vmem:[#allocation2 + $0x4fd8] sm:$0xff]
    %v2626 = vld [vmem:[#allocation2 + $0x4fe0] sm:$0xff]
    %v2627 = vld [vmem:[#allocation2 + $0x4fe8] sm:$0xff]
    %v2628 = vld [vmem:[#allocation2 + $0x4ff0] sm:$0xff]
    %v2629 = vld [vmem:[#allocation2 + $0x4ff8] sm:$0xff]
    %v2630 = vld [vmem:[#allocation2 + $0x5000] sm:$0xff]
    %v2631 = vld [vmem:[#allocation2 + $0x5008] sm:$0xff]
    %v2632 = vld [vmem:[#allocation2 + $0x5010] sm:$0xff]
    %v2633 = vld [vmem:[#allocation2 + $0x5018] sm:$0xff]
    %v2634 = vld [vmem:[#allocation2 + $0x5020] sm:$0xff]
    %v2635 = vld [vmem:[#allocation2 + $0x5028] sm:$0xff]
    %v2636 = vld [vmem:[#allocation2 + $0x5030] sm:$0xff]
    %v2637 = vld [vmem:[#allocation2 + $0x5038] sm:$0xff]
    %v2638 = vld [vmem:[#allocation2 + $0x5040] sm:$0xff]
    %v2639 = vld [vmem:[#allocation2 + $0x5048] sm:$0xff]
    %v2640 = vld [vmem:[#allocation2 + $0x5050] sm:$0xff]
    %v2641 = vld [vmem:[#allocation2 + $0x5058] sm:$0xff]
    %v2642 = vld [vmem:[#allocation2 + $0x5060] sm:$0xff]
    %v2643 = vld [vmem:[#allocation2 + $0x5068] sm:$0xff]
    %v2644 = vld [vmem:[#allocation2 + $0x5070] sm:$0xff]
    %v2645 = vld [vmem:[#allocation2 + $0x5078] sm:$0xff]
    %v2646 = vld [vmem:[#allocation2 + $0x5080] sm:$0xff]
    %v2647 = vld [vmem:[#allocation2 + $0x5088] sm:$0xff]
    %v2648 = vld [vmem:[#allocation2 + $0x5090] sm:$0xff]
    %v2649 = vld [vmem:[#allocation2 + $0x5098] sm:$0xff]
    %v2650 = vld [vmem:[#allocation2 + $0x50a0] sm:$0xff]
    %v2651 = vld [vmem:[#allocation2 + $0x50a8] sm:$0xff]
    %v2652 = vld [vmem:[#allocation2 + $0x50b0] sm:$0xff]
    %v2653 = vld [vmem:[#allocation2 + $0x50b8] sm:$0xff]
    %v2654 = vld [vmem:[#allocation2 + $0x50c0] sm:$0xff]
    %v2655 = vld [vmem:[#allocation2 + $0x50c8] sm:$0xff]
    %v2656 = vld [vmem:[#allocation2 + $0x50d0] sm:$0xff]
    %v2657 = vld [vmem:[#allocation2 + $0x50d8] sm:$0xff]
    %v2658 = vld [vmem:[#allocation2 + $0x50e0] sm:$0xff]
    %v2659 = vld [vmem:[#allocation2 + $0x50e8] sm:$0xff]
    %v2660 = vld [vmem:[#allocation2 + $0x50f0] sm:$0xff]
    %v2661 = vld [vmem:[#allocation2 + $0x50f8] sm:$0xff]
    %v2662 = vld [vmem:[#allocation2 + $0x5100] sm:$0xff]
    %v2663 = vld [vmem:[#allocation2 + $0x5108] sm:$0xff]
    %v2664 = vld [vmem:[#allocation2 + $0x5110] sm:$0xff]
    %v2665 = vld [vmem:[#allocation2 + $0x5118] sm:$0xff]
    %v2666 = vld [vmem:[#allocation2 + $0x5120] sm:$0xff]
    %v2667 = vld [vmem:[#allocation2 + $0x5128] sm:$0xff]
    %v2668 = vld [vmem:[#allocation2 + $0x5130] sm:$0xff]
    %v2669 = vld [vmem:[#allocation2 + $0x5138] sm:$0xff]
    %v2670 = vld [vmem:[#allocation2 + $0x5140] sm:$0xff]
    %v2671 = vld [vmem:[#allocation2 + $0x5148] sm:$0xff]
    %v2672 = vld [vmem:[#allocation2 + $0x5150] sm:$0xff]
    %v2673 = vld [vmem:[#allocation2 + $0x5158] sm:$0xff]
    %v2674 = vld [vmem:[#allocation2 + $0x5160] sm:$0xff]
    %v2675 = vld [vmem:[#allocation2 + $0x5168] sm:$0xff]
    %v2676 = vld [vmem:[#allocation2 + $0x5170] sm:$0xff]
    %v2677 = vld [vmem:[#allocation2 + $0x5178] sm:$0xff]
    %v2678 = vld [vmem:[#allocation2 + $0x5180] sm:$0xff]
    %v2679 = vld [vmem:[#allocation2 + $0x5188] sm:$0xff]
    %v2680 = vld [vmem:[#allocation2 + $0x5190] sm:$0xff]
    %v2681 = vld [vmem:[#allocation2 + $0x5198] sm:$0xff]
    %v2682 = vld [vmem:[#allocation2 + $0x51a0] sm:$0xff]
    %v2683 = vld [vmem:[#allocation2 + $0x51a8] sm:$0xff]
    %v2684 = vld [vmem:[#allocation2 + $0x51b0] sm:$0xff]
    %v2685 = vld [vmem:[#allocation2 + $0x51b8] sm:$0xff]
    %v2686 = vld [vmem:[#allocation2 + $0x51c0] sm:$0xff]
    %v2687 = vld [vmem:[#allocation2 + $0x51c8] sm:$0xff]
    %v2688 = vld [vmem:[#allocation2 + $0x51d0] sm:$0xff]
    %v2689 = vld [vmem:[#allocation2 + $0x51d8] sm:$0xff]
    %v2690 = vld [vmem:[#allocation2 + $0x51e0] sm:$0xff]
    %v2691 = vld [vmem:[#allocation2 + $0x51e8] sm:$0xff]
    %v2692 = vld [vmem:[#allocation2 + $0x51f0] sm:$0xff]
    %v2693 = vld [vmem:[#allocation2 + $0x51f8] sm:$0xff]
    %v2694 = vld [vmem:[#allocation2 + $0x5200] sm:$0xff]
    %v2695 = vld [vmem:[#allocation2 + $0x5208] sm:$0xff]
    %v2696 = vld [vmem:[#allocation2 + $0x5210] sm:$0xff]
    %v2697 = vld [vmem:[#allocation2 + $0x5218] sm:$0xff]
    %v2698 = vld [vmem:[#allocation2 + $0x5220] sm:$0xff]
    %v2699 = vld [vmem:[#allocation2 + $0x5228] sm:$0xff]
    %v2700 = vld [vmem:[#allocation2 + $0x5230] sm:$0xff]
    %v2701 = vld [vmem:[#allocation2 + $0x5238] sm:$0xff]
    %v2702 = vld [vmem:[#allocation2 + $0x5240] sm:$0xff]
    %v2703 = vld [vmem:[#allocation2 + $0x5248] sm:$0xff]
    %v2704 = vld [vmem:[#allocation2 + $0x5250] sm:$0xff]
    %v2705 = vld [vmem:[#allocation2 + $0x5258] sm:$0xff]
    %v2706 = vld [vmem:[#allocation2 + $0x5260] sm:$0xff]
    %v2707 = vld [vmem:[#allocation2 + $0x5268] sm:$0xff]
    %v2708 = vld [vmem:[#allocation2 + $0x5270] sm:$0xff]
    %v2709 = vld [vmem:[#allocation2 + $0x5278] sm:$0xff]
    %v2710 = vld [vmem:[#allocation2 + $0x5280] sm:$0xff]
    %v2711 = vld [vmem:[#allocation2 + $0x5288] sm:$0xff]
    %v2712 = vld [vmem:[#allocation2 + $0x5290] sm:$0xff]
    %v2713 = vld [vmem:[#allocation2 + $0x5298] sm:$0xff]
    %v2714 = vld [vmem:[#allocation2 + $0x52a0] sm:$0xff]
    %v2715 = vld [vmem:[#allocation2 + $0x52a8] sm:$0xff]
    %v2716 = vld [vmem:[#allocation2 + $0x52b0] sm:$0xff]
    %v2717 = vld [vmem:[#allocation2 + $0x52b8] sm:$0xff]
    %v2718 = vld [vmem:[#allocation2 + $0x52c0] sm:$0xff]
    %v2719 = vld [vmem:[#allocation2 + $0x52c8] sm:$0xff]
    %v2720 = vld [vmem:[#allocation2 + $0x52d0] sm:$0xff]
    %v2721 = vld [vmem:[#allocation2 + $0x52d8] sm:$0xff]
    %v2722 = vld [vmem:[#allocation2 + $0x52e0] sm:$0xff]
    %v2723 = vld [vmem:[#allocation2 + $0x52e8] sm:$0xff]
    %v2724 = vld [vmem:[#allocation2 + $0x52f0] sm:$0xff]
    %v2725 = vld [vmem:[#allocation2 + $0x52f8] sm:$0xff]
    %v2726 = vld [vmem:[#allocation2 + $0x5300] sm:$0xff]
    %v2727 = vld [vmem:[#allocation2 + $0x5308] sm:$0xff]
    %v2728 = vld [vmem:[#allocation2 + $0x5310] sm:$0xff]
    %v2729 = vld [vmem:[#allocation2 + $0x5318] sm:$0xff]
    %v2730 = vld [vmem:[#allocation2 + $0x5320] sm:$0xff]
    %v2731 = vld [vmem:[#allocation2 + $0x5328] sm:$0xff]
    %v2732 = vld [vmem:[#allocation2 + $0x5330] sm:$0xff]
    %v2733 = vld [vmem:[#allocation2 + $0x5338] sm:$0xff]
    %v2734 = vld [vmem:[#allocation2 + $0x5340] sm:$0xff]
    %v2735 = vld [vmem:[#allocation2 + $0x5348] sm:$0xff]
    %v2736 = vld [vmem:[#allocation2 + $0x5350] sm:$0xff]
    %v2737 = vld [vmem:[#allocation2 + $0x5358] sm:$0xff]
    %v2738 = vld [vmem:[#allocation2 + $0x5360] sm:$0xff]
    %v2739 = vld [vmem:[#allocation2 + $0x5368] sm:$0xff]
    %v2740 = vld [vmem:[#allocation2 + $0x5370] sm:$0xff]
    %v2741 = vld [vmem:[#allocation2 + $0x5378] sm:$0xff]
    %v2742 = vld [vmem:[#allocation2 + $0x5380] sm:$0xff]
    %v2743 = vld [vmem:[#allocation2 + $0x5388] sm:$0xff]
    %v2744 = vld [vmem:[#allocation2 + $0x5390] sm:$0xff]
    %v2745 = vld [vmem:[#allocation2 + $0x5398] sm:$0xff]
    %v2746 = vld [vmem:[#allocation2 + $0x53a0] sm:$0xff]
    %v2747 = vld [vmem:[#allocation2 + $0x53a8] sm:$0xff]
    %v2748 = vld [vmem:[#allocation2 + $0x53b0] sm:$0xff]
    %v2749 = vld [vmem:[#allocation2 + $0x53b8] sm:$0xff]
    %v2750 = vld [vmem:[#allocation2 + $0x53c0] sm:$0xff]
    %v2751 = vld [vmem:[#allocation2 + $0x53c8] sm:$0xff]
    %v2752 = vld [vmem:[#allocation2 + $0x53d0] sm:$0xff]
    %v2753 = vld [vmem:[#allocation2 + $0x53d8] sm:$0xff]
    %v2754 = vld [vmem:[#allocation2 + $0x53e0] sm:$0xff]
    %v2755 = vld [vmem:[#allocation2 + $0x53e8] sm:$0xff]
    %v2756 = vld [vmem:[#allocation2 + $0x53f0] sm:$0xff]
    %v2757 = vld [vmem:[#allocation2 + $0x53f8] sm:$0xff]
    %v2758 = vld [vmem:[#allocation2 + $0x5400] sm:$0xff]
    %v2759 = vld [vmem:[#allocation2 + $0x5408] sm:$0xff]
    %v2760 = vld [vmem:[#allocation2 + $0x5410] sm:$0xff]
    %v2761 = vld [vmem:[#allocation2 + $0x5418] sm:$0xff]
    %v2762 = vld [vmem:[#allocation2 + $0x5420] sm:$0xff]
    %v2763 = vld [vmem:[#allocation2 + $0x5428] sm:$0xff]
    %v2764 = vld [vmem:[#allocation2 + $0x5430] sm:$0xff]
    %v2765 = vld [vmem:[#allocation2 + $0x5438] sm:$0xff]
    %v2766 = vld [vmem:[#allocation2 + $0x5440] sm:$0xff]
    %v2767 = vld [vmem:[#allocation2 + $0x5448] sm:$0xff]
    %v2768 = vld [vmem:[#allocation2 + $0x5450] sm:$0xff]
    %v2769 = vld [vmem:[#allocation2 + $0x5458] sm:$0xff]
    %v2770 = vld [vmem:[#allocation2 + $0x5460] sm:$0xff]
    %v2771 = vld [vmem:[#allocation2 + $0x5468] sm:$0xff]
    %v2772 = vld [vmem:[#allocation2 + $0x5470] sm:$0xff]
    %v2773 = vld [vmem:[#allocation2 + $0x5478] sm:$0xff]
    %v2774 = vld [vmem:[#allocation2 + $0x5480] sm:$0xff]
    %v2775 = vld [vmem:[#allocation2 + $0x5488] sm:$0xff]
    %v2776 = vld [vmem:[#allocation2 + $0x5490] sm:$0xff]
    %v2777 = vld [vmem:[#allocation2 + $0x5498] sm:$0xff]
    %v2778 = vld [vmem:[#allocation2 + $0x54a0] sm:$0xff]
    %v2779 = vld [vmem:[#allocation2 + $0x54a8] sm:$0xff]
    %v2780 = vld [vmem:[#allocation2 + $0x54b0] sm:$0xff]
    %v2781 = vld [vmem:[#allocation2 + $0x54b8] sm:$0xff]
    %v2782 = vld [vmem:[#allocation2 + $0x54c0] sm:$0xff]
    %v2783 = vld [vmem:[#allocation2 + $0x54c8] sm:$0xff]
    %v2784 = vld [vmem:[#allocation2 + $0x54d0] sm:$0xff]
    %v2785 = vld [vmem:[#allocation2 + $0x54d8] sm:$0xff]
    %v2786 = vld [vmem:[#allocation2 + $0x54e0] sm:$0xff]
    %v2787 = vld [vmem:[#allocation2 + $0x54e8] sm:$0xff]
    %v2788 = vld [vmem:[#allocation2 + $0x54f0] sm:$0xff]
    %v2789 = vld [vmem:[#allocation2 + $0x54f8] sm:$0xff]
    %v2790 = vld [vmem:[#allocation2 + $0x5500] sm:$0xff]
    %v2791 = vld [vmem:[#allocation2 + $0x5508] sm:$0xff]
    %v2792 = vld [vmem:[#allocation2 + $0x5510] sm:$0xff]
    %v2793 = vld [vmem:[#allocation2 + $0x5518] sm:$0xff]
    %v2794 = vld [vmem:[#allocation2 + $0x5520] sm:$0xff]
    %v2795 = vld [vmem:[#allocation2 + $0x5528] sm:$0xff]
    %v2796 = vld [vmem:[#allocation2 + $0x5530] sm:$0xff]
    %v2797 = vld [vmem:[#allocation2 + $0x5538] sm:$0xff]
    %v2798 = vld [vmem:[#allocation2 + $0x5540] sm:$0xff]
    %v2799 = vld [vmem:[#allocation2 + $0x5548] sm:$0xff]
    %v2800 = vld [vmem:[#allocation2 + $0x5550] sm:$0xff]
    %v2801 = vld [vmem:[#allocation2 + $0x5558] sm:$0xff]
    %v2802 = vld [vmem:[#allocation2 + $0x5560] sm:$0xff]
    %v2803 = vld [vmem:[#allocation2 + $0x5568] sm:$0xff]
    %v2804 = vld [vmem:[#allocation2 + $0x5570] sm:$0xff]
    %v2805 = vld [vmem:[#allocation2 + $0x5578] sm:$0xff]
    %v2806 = vld [vmem:[#allocation2 + $0x5580] sm:$0xff]
    %v2807 = vld [vmem:[#allocation2 + $0x5588] sm:$0xff]
    %v2808 = vld [vmem:[#allocation2 + $0x5590] sm:$0xff]
    %v2809 = vld [vmem:[#allocation2 + $0x5598] sm:$0xff]
    %v2810 = vld [vmem:[#allocation2 + $0x55a0] sm:$0xff]
    %v2811 = vld [vmem:[#allocation2 + $0x55a8] sm:$0xff]
    %v2812 = vld [vmem:[#allocation2 + $0x55b0] sm:$0xff]
    %v2813 = vld [vmem:[#allocation2 + $0x55b8] sm:$0xff]
    %v2814 = vld [vmem:[#allocation2 + $0x55c0] sm:$0xff]
    %v2815 = vld [vmem:[#allocation2 + $0x55c8] sm:$0xff]
    %v2816 = vld [vmem:[#allocation2 + $0x55d0] sm:$0xff]
    %v2817 = vld [vmem:[#allocation2 + $0x55d8] sm:$0xff]
    %v2818 = vld [vmem:[#allocation2 + $0x55e0] sm:$0xff]
    %v2819 = vld [vmem:[#allocation2 + $0x55e8] sm:$0xff]
    %v2820 = vld [vmem:[#allocation2 + $0x55f0] sm:$0xff]
    %v2821 = vld [vmem:[#allocation2 + $0x55f8] sm:$0xff]
    %v2822 = vld [vmem:[#allocation2 + $0x5600] sm:$0xff]
    %v2823 = vld [vmem:[#allocation2 + $0x5608] sm:$0xff]
    %v2824 = vld [vmem:[#allocation2 + $0x5610] sm:$0xff]
    %v2825 = vld [vmem:[#allocation2 + $0x5618] sm:$0xff]
    %v2826 = vld [vmem:[#allocation2 + $0x5620] sm:$0xff]
    %v2827 = vld [vmem:[#allocation2 + $0x5628] sm:$0xff]
    %v2828 = vld [vmem:[#allocation2 + $0x5630] sm:$0xff]
    %v2829 = vld [vmem:[#allocation2 + $0x5638] sm:$0xff]
    %v2830 = vld [vmem:[#allocation2 + $0x5640] sm:$0xff]
    %v2831 = vld [vmem:[#allocation2 + $0x5648] sm:$0xff]
    %v2832 = vld [vmem:[#allocation2 + $0x5650] sm:$0xff]
    %v2833 = vld [vmem:[#allocation2 + $0x5658] sm:$0xff]
    %v2834 = vld [vmem:[#allocation2 + $0x5660] sm:$0xff]
    %v2835 = vld [vmem:[#allocation2 + $0x5668] sm:$0xff]
    %v2836 = vld [vmem:[#allocation2 + $0x5670] sm:$0xff]
    %v2837 = vld [vmem:[#allocation2 + $0x5678] sm:$0xff]
    %v2838 = vld [vmem:[#allocation2 + $0x5680] sm:$0xff]
    %v2839 = vld [vmem:[#allocation2 + $0x5688] sm:$0xff]
    %v2840 = vld [vmem:[#allocation2 + $0x5690] sm:$0xff]
    %v2841 = vld [vmem:[#allocation2 + $0x5698] sm:$0xff]
    %v2842 = vld [vmem:[#allocation2 + $0x56a0] sm:$0xff]
    %v2843 = vld [vmem:[#allocation2 + $0x56a8] sm:$0xff]
    %v2844 = vld [vmem:[#allocation2 + $0x56b0] sm:$0xff]
    %v2845 = vld [vmem:[#allocation2 + $0x56b8] sm:$0xff]
    %v2846 = vld [vmem:[#allocation2 + $0x56c0] sm:$0xff]
    %v2847 = vld [vmem:[#allocation2 + $0x56c8] sm:$0xff]
    %v2848 = vld [vmem:[#allocation2 + $0x56d0] sm:$0xff]
    %v2849 = vld [vmem:[#allocation2 + $0x56d8] sm:$0xff]
    %v2850 = vld [vmem:[#allocation2 + $0x56e0] sm:$0xff]
    %v2851 = vld [vmem:[#allocation2 + $0x56e8] sm:$0xff]
    %v2852 = vld [vmem:[#allocation2 + $0x56f0] sm:$0xff]
    %v2853 = vld [vmem:[#allocation2 + $0x56f8] sm:$0xff]
    %v2854 = vld [vmem:[#allocation2 + $0x5700] sm:$0xff]
    %v2855 = vld [vmem:[#allocation2 + $0x5708] sm:$0xff]
    %v2856 = vld [vmem:[#allocation2 + $0x5710] sm:$0xff]
    %v2857 = vld [vmem:[#allocation2 + $0x5718] sm:$0xff]
    %v2858 = vld [vmem:[#allocation2 + $0x5720] sm:$0xff]
    %v2859 = vld [vmem:[#allocation2 + $0x5728] sm:$0xff]
    %v2860 = vld [vmem:[#allocation2 + $0x5730] sm:$0xff]
    %v2861 = vld [vmem:[#allocation2 + $0x5738] sm:$0xff]
    %v2862 = vld [vmem:[#allocation2 + $0x5740] sm:$0xff]
    %v2863 = vld [vmem:[#allocation2 + $0x5748] sm:$0xff]
    %v2864 = vld [vmem:[#allocation2 + $0x5750] sm:$0xff]
    %v2865 = vld [vmem:[#allocation2 + $0x5758] sm:$0xff]
    %v2866 = vld [vmem:[#allocation2 + $0x5760] sm:$0xff]
    %v2867 = vld [vmem:[#allocation2 + $0x5768] sm:$0xff]
    %v2868 = vld [vmem:[#allocation2 + $0x5770] sm:$0xff]
    %v2869 = vld [vmem:[#allocation2 + $0x5778] sm:$0xff]
    %v2870 = vld [vmem:[#allocation2 + $0x5780] sm:$0xff]
    %v2871 = vld [vmem:[#allocation2 + $0x5788] sm:$0xff]
    %v2872 = vld [vmem:[#allocation2 + $0x5790] sm:$0xff]
    %v2873 = vld [vmem:[#allocation2 + $0x5798] sm:$0xff]
    %v2874 = vld [vmem:[#allocation2 + $0x57a0] sm:$0xff]
    %v2875 = vld [vmem:[#allocation2 + $0x57a8] sm:$0xff]
    %v2876 = vld [vmem:[#allocation2 + $0x57b0] sm:$0xff]
    %v2877 = vld [vmem:[#allocation2 + $0x57b8] sm:$0xff]
    %v2878 = vld [vmem:[#allocation2 + $0x57c0] sm:$0xff]
    %v2879 = vld [vmem:[#allocation2 + $0x57c8] sm:$0xff]
    %v2880 = vld [vmem:[#allocation2 + $0x57d0] sm:$0xff]
    %v2881 = vld [vmem:[#allocation2 + $0x57d8] sm:$0xff]
    %v2882 = vld [vmem:[#allocation2 + $0x57e0] sm:$0xff]
    %v2883 = vld [vmem:[#allocation2 + $0x57e8] sm:$0xff]
    %v2884 = vld [vmem:[#allocation2 + $0x57f0] sm:$0xff]
    %v2885 = vld [vmem:[#allocation2 + $0x57f8] sm:$0xff]
    %v2886 = vld [vmem:[#allocation2 + $0x5800] sm:$0xff]
    %v2887 = vld [vmem:[#allocation2 + $0x5808] sm:$0xff]
    %v2888 = vld [vmem:[#allocation2 + $0x5810] sm:$0xff]
    %v2889 = vld [vmem:[#allocation2 + $0x5818] sm:$0xff]
    %v2890 = vld [vmem:[#allocation2 + $0x5820] sm:$0xff]
    %v2891 = vld [vmem:[#allocation2 + $0x5828] sm:$0xff]
    %v2892 = vld [vmem:[#allocation2 + $0x5830] sm:$0xff]
    %v2893 = vld [vmem:[#allocation2 + $0x5838] sm:$0xff]
    %v2894 = vld [vmem:[#allocation2 + $0x5840] sm:$0xff]
    %v2895 = vld [vmem:[#allocation2 + $0x5848] sm:$0xff]
    %v2896 = vld [vmem:[#allocation2 + $0x5850] sm:$0xff]
    %v2897 = vld [vmem:[#allocation2 + $0x5858] sm:$0xff]
    %v2898 = vld [vmem:[#allocation2 + $0x5860] sm:$0xff]
    %v2899 = vld [vmem:[#allocation2 + $0x5868] sm:$0xff]
    %v2900 = vld [vmem:[#allocation2 + $0x5870] sm:$0xff]
    %v2901 = vld [vmem:[#allocation2 + $0x5878] sm:$0xff]
    %v2902 = vld [vmem:[#allocation2 + $0x5880] sm:$0xff]
    %v2903 = vld [vmem:[#allocation2 + $0x5888] sm:$0xff]
    %v2904 = vld [vmem:[#allocation2 + $0x5890] sm:$0xff]
    %v2905 = vld [vmem:[#allocation2 + $0x5898] sm:$0xff]
    %v2906 = vld [vmem:[#allocation2 + $0x58a0] sm:$0xff]
    %v2907 = vld [vmem:[#allocation2 + $0x58a8] sm:$0xff]
    %v2908 = vld [vmem:[#allocation2 + $0x58b0] sm:$0xff]
    %v2909 = vld [vmem:[#allocation2 + $0x58b8] sm:$0xff]
    %v2910 = vld [vmem:[#allocation2 + $0x58c0] sm:$0xff]
    %v2911 = vld [vmem:[#allocation2 + $0x58c8] sm:$0xff]
    %v2912 = vld [vmem:[#allocation2 + $0x58d0] sm:$0xff]
    %v2913 = vld [vmem:[#allocation2 + $0x58d8] sm:$0xff]
    %v2914 = vld [vmem:[#allocation2 + $0x58e0] sm:$0xff]
    %v2915 = vld [vmem:[#allocation2 + $0x58e8] sm:$0xff]
    %v2916 = vld [vmem:[#allocation2 + $0x58f0] sm:$0xff]
    %v2917 = vld [vmem:[#allocation2 + $0x58f8] sm:$0xff]
    %v2918 = vld [vmem:[#allocation2 + $0x5900] sm:$0xff]
    %v2919 = vld [vmem:[#allocation2 + $0x5908] sm:$0xff]
    %v2920 = vld [vmem:[#allocation2 + $0x5910] sm:$0xff]
    %v2921 = vld [vmem:[#allocation2 + $0x5918] sm:$0xff]
    %v2922 = vld [vmem:[#allocation2 + $0x5920] sm:$0xff]
    %v2923 = vld [vmem:[#allocation2 + $0x5928] sm:$0xff]
    %v2924 = vld [vmem:[#allocation2 + $0x5930] sm:$0xff]
    %v2925 = vld [vmem:[#allocation2 + $0x5938] sm:$0xff]
    %v2926 = vld [vmem:[#allocation2 + $0x5940] sm:$0xff]
    %v2927 = vld [vmem:[#allocation2 + $0x5948] sm:$0xff]
    %v2928 = vld [vmem:[#allocation2 + $0x5950] sm:$0xff]
    %v2929 = vld [vmem:[#allocation2 + $0x5958] sm:$0xff]
    %v2930 = vld [vmem:[#allocation2 + $0x5960] sm:$0xff]
    %v2931 = vld [vmem:[#allocation2 + $0x5968] sm:$0xff]
    %v2932 = vld [vmem:[#allocation2 + $0x5970] sm:$0xff]
    %v2933 = vld [vmem:[#allocation2 + $0x5978] sm:$0xff]
    %v2934 = vld [vmem:[#allocation2 + $0x5980] sm:$0xff]
    %v2935 = vld [vmem:[#allocation2 + $0x5988] sm:$0xff]
    %v2936 = vld [vmem:[#allocation2 + $0x5990] sm:$0xff]
    %v2937 = vld [vmem:[#allocation2 + $0x5998] sm:$0xff]
    %v2938 = vld [vmem:[#allocation2 + $0x59a0] sm:$0xff]
    %v2939 = vld [vmem:[#allocation2 + $0x59a8] sm:$0xff]
    %v2940 = vld [vmem:[#allocation2 + $0x59b0] sm:$0xff]
    %v2941 = vld [vmem:[#allocation2 + $0x59b8] sm:$0xff]
    %v2942 = vld [vmem:[#allocation2 + $0x59c0] sm:$0xff]
    %v2943 = vld [vmem:[#allocation2 + $0x59c8] sm:$0xff]
    %v2944 = vld [vmem:[#allocation2 + $0x59d0] sm:$0xff]
    %v2945 = vld [vmem:[#allocation2 + $0x59d8] sm:$0xff]
    %v2946 = vld [vmem:[#allocation2 + $0x59e0] sm:$0xff]
    %v2947 = vld [vmem:[#allocation2 + $0x59e8] sm:$0xff]
    %v2948 = vld [vmem:[#allocation2 + $0x59f0] sm:$0xff]
    %v2949 = vld [vmem:[#allocation2 + $0x59f8] sm:$0xff]
    %v2950 = vld [vmem:[#allocation2 + $0x5a00] sm:$0xff]
    %v2951 = vld [vmem:[#allocation2 + $0x5a08] sm:$0xff]
    %v2952 = vld [vmem:[#allocation2 + $0x5a10] sm:$0xff]
    %v2953 = vld [vmem:[#allocation2 + $0x5a18] sm:$0xff]
    %v2954 = vld [vmem:[#allocation2 + $0x5a20] sm:$0xff]
    %v2955 = vld [vmem:[#allocation2 + $0x5a28] sm:$0xff]
    %v2956 = vld [vmem:[#allocation2 + $0x5a30] sm:$0xff]
    %v2957 = vld [vmem:[#allocation2 + $0x5a38] sm:$0xff]
    %v2958 = vld [vmem:[#allocation2 + $0x5a40] sm:$0xff]
    %v2959 = vld [vmem:[#allocation2 + $0x5a48] sm:$0xff]
    %v2960 = vld [vmem:[#allocation2 + $0x5a50] sm:$0xff]
    %v2961 = vld [vmem:[#allocation2 + $0x5a58] sm:$0xff]
    %v2962 = vld [vmem:[#allocation2 + $0x5a60] sm:$0xff]
    %v2963 = vld [vmem:[#allocation2 + $0x5a68] sm:$0xff]
    %v2964 = vld [vmem:[#allocation2 + $0x5a70] sm:$0xff]
    %v2965 = vld [vmem:[#allocation2 + $0x5a78] sm:$0xff]
    %v2966 = vld [vmem:[#allocation2 + $0x5a80] sm:$0xff]
    %v2967 = vld [vmem:[#allocation2 + $0x5a88] sm:$0xff]
    %v2968 = vld [vmem:[#allocation2 + $0x5a90] sm:$0xff]
    %v2969 = vld [vmem:[#allocation2 + $0x5a98] sm:$0xff]
    %v2970 = vld [vmem:[#allocation2 + $0x5aa0] sm:$0xff]
    %v2971 = vld [vmem:[#allocation2 + $0x5aa8] sm:$0xff]
    %v2972 = vld [vmem:[#allocation2 + $0x5ab0] sm:$0xff]
    %v2973 = vld [vmem:[#allocation2 + $0x5ab8] sm:$0xff]
    %v2974 = vld [vmem:[#allocation2 + $0x5ac0] sm:$0xff]
    %v2975 = vld [vmem:[#allocation2 + $0x5ac8] sm:$0xff]
    %v2976 = vld [vmem:[#allocation2 + $0x5ad0] sm:$0xff]
    %v2977 = vld [vmem:[#allocation2 + $0x5ad8] sm:$0xff]
    %v2978 = vld [vmem:[#allocation2 + $0x5ae0] sm:$0xff]
    %v2979 = vld [vmem:[#allocation2 + $0x5ae8] sm:$0xff]
    %v2980 = vld [vmem:[#allocation2 + $0x5af0] sm:$0xff]
    %v2981 = vld [vmem:[#allocation2 + $0x5af8] sm:$0xff]
    %v2982 = vld [vmem:[#allocation2 + $0x5b00] sm:$0xff]
    %v2983 = vld [vmem:[#allocation2 + $0x5b08] sm:$0xff]
    %v2984 = vld [vmem:[#allocation2 + $0x5b10] sm:$0xff]
    %v2985 = vld [vmem:[#allocation2 + $0x5b18] sm:$0xff]
    %v2986 = vld [vmem:[#allocation2 + $0x5b20] sm:$0xff]
    %v2987 = vld [vmem:[#allocation2 + $0x5b28] sm:$0xff]
    %v2988 = vld [vmem:[#allocation2 + $0x5b30] sm:$0xff]
    %v2989 = vld [vmem:[#allocation2 + $0x5b38] sm:$0xff]
    %v2990 = vld [vmem:[#allocation2 + $0x5b40] sm:$0xff]
    %v2991 = vld [vmem:[#allocation2 + $0x5b48] sm:$0xff]
    %v2992 = vld [vmem:[#allocation2 + $0x5b50] sm:$0xff]
    %v2993 = vld [vmem:[#allocation2 + $0x5b58] sm:$0xff]
    %v2994 = vld [vmem:[#allocation2 + $0x5b60] sm:$0xff]
    %v2995 = vld [vmem:[#allocation2 + $0x5b68] sm:$0xff]
    %v2996 = vld [vmem:[#allocation2 + $0x5b70] sm:$0xff]
    %v2997 = vld [vmem:[#allocation2 + $0x5b78] sm:$0xff]
    %v2998 = vld [vmem:[#allocation2 + $0x5b80] sm:$0xff]
    %v2999 = vld [vmem:[#allocation2 + $0x5b88] sm:$0xff]
    %v3000 = vld [vmem:[#allocation2 + $0x5b90] sm:$0xff]
    %v3001 = vld [vmem:[#allocation2 + $0x5b98] sm:$0xff]
    %v3002 = vld [vmem:[#allocation2 + $0x5ba0] sm:$0xff]
    %v3003 = vld [vmem:[#allocation2 + $0x5ba8] sm:$0xff]
    %v3004 = vld [vmem:[#allocation2 + $0x5bb0] sm:$0xff]
    %v3005 = vld [vmem:[#allocation2 + $0x5bb8] sm:$0xff]
    %v3006 = vld [vmem:[#allocation2 + $0x5bc0] sm:$0xff]
    %v3007 = vld [vmem:[#allocation2 + $0x5bc8] sm:$0xff]
    %v3008 = vld [vmem:[#allocation2 + $0x5bd0] sm:$0xff]
    %v3009 = vld [vmem:[#allocation2 + $0x5bd8] sm:$0xff]
    %v3010 = vld [vmem:[#allocation2 + $0x5be0] sm:$0xff]
    %v3011 = vld [vmem:[#allocation2 + $0x5be8] sm:$0xff]
    %v3012 = vld [vmem:[#allocation2 + $0x5bf0] sm:$0xff]
    %v3013 = vld [vmem:[#allocation2 + $0x5bf8] sm:$0xff]
    %v3014 = vld [vmem:[#allocation2 + $0x5c00] sm:$0xff]
    %v3015 = vld [vmem:[#allocation2 + $0x5c08] sm:$0xff]
    %v3016 = vld [vmem:[#allocation2 + $0x5c10] sm:$0xff]
    %v3017 = vld [vmem:[#allocation2 + $0x5c18] sm:$0xff]
    %v3018 = vld [vmem:[#allocation2 + $0x5c20] sm:$0xff]
    %v3019 = vld [vmem:[#allocation2 + $0x5c28] sm:$0xff]
    %v3020 = vld [vmem:[#allocation2 + $0x5c30] sm:$0xff]
    %v3021 = vld [vmem:[#allocation2 + $0x5c38] sm:$0xff]
    %v3022 = vld [vmem:[#allocation2 + $0x5c40] sm:$0xff]
    %v3023 = vld [vmem:[#allocation2 + $0x5c48] sm:$0xff]
    %v3024 = vld [vmem:[#allocation2 + $0x5c50] sm:$0xff]
    %v3025 = vld [vmem:[#allocation2 + $0x5c58] sm:$0xff]
    %v3026 = vld [vmem:[#allocation2 + $0x5c60] sm:$0xff]
    %v3027 = vld [vmem:[#allocation2 + $0x5c68] sm:$0xff]
    %v3028 = vld [vmem:[#allocation2 + $0x5c70] sm:$0xff]
    %v3029 = vld [vmem:[#allocation2 + $0x5c78] sm:$0xff]
    %v3030 = vld [vmem:[#allocation2 + $0x5c80] sm:$0xff]
    %v3031 = vld [vmem:[#allocation2 + $0x5c88] sm:$0xff]
    %v3032 = vld [vmem:[#allocation2 + $0x5c90] sm:$0xff]
    %v3033 = vld [vmem:[#allocation2 + $0x5c98] sm:$0xff]
    %v3034 = vld [vmem:[#allocation2 + $0x5ca0] sm:$0xff]
    %v3035 = vld [vmem:[#allocation2 + $0x5ca8] sm:$0xff]
    %v3036 = vld [vmem:[#allocation2 + $0x5cb0] sm:$0xff]
    %v3037 = vld [vmem:[#allocation2 + $0x5cb8] sm:$0xff]
    %v3038 = vld [vmem:[#allocation2 + $0x5cc0] sm:$0xff]
    %v3039 = vld [vmem:[#allocation2 + $0x5cc8] sm:$0xff]
    %v3040 = vld [vmem:[#allocation2 + $0x5cd0] sm:$0xff]
    %v3041 = vld [vmem:[#allocation2 + $0x5cd8] sm:$0xff]
    %v3042 = vld [vmem:[#allocation2 + $0x5ce0] sm:$0xff]
    %v3043 = vld [vmem:[#allocation2 + $0x5ce8] sm:$0xff]
    %v3044 = vld [vmem:[#allocation2 + $0x5cf0] sm:$0xff]
    %v3045 = vld [vmem:[#allocation2 + $0x5cf8] sm:$0xff]
    %v3046 = vld [vmem:[#allocation2 + $0x5d00] sm:$0xff]
    %v3047 = vld [vmem:[#allocation2 + $0x5d08] sm:$0xff]
    %v3048 = vld [vmem:[#allocation2 + $0x5d10] sm:$0xff]
    %v3049 = vld [vmem:[#allocation2 + $0x5d18] sm:$0xff]
    %v3050 = vld [vmem:[#allocation2 + $0x5d20] sm:$0xff]
    %v3051 = vld [vmem:[#allocation2 + $0x5d28] sm:$0xff]
    %v3052 = vld [vmem:[#allocation2 + $0x5d30] sm:$0xff]
    %v3053 = vld [vmem:[#allocation2 + $0x5d38] sm:$0xff]
    %v3054 = vld [vmem:[#allocation2 + $0x5d40] sm:$0xff]
    %v3055 = vld [vmem:[#allocation2 + $0x5d48] sm:$0xff]
    %v3056 = vld [vmem:[#allocation2 + $0x5d50] sm:$0xff]
    %v3057 = vld [vmem:[#allocation2 + $0x5d58] sm:$0xff]
    %v3058 = vld [vmem:[#allocation2 + $0x5d60] sm:$0xff]
    %v3059 = vld [vmem:[#allocation2 + $0x5d68] sm:$0xff]
    %v3060 = vld [vmem:[#allocation2 + $0x5d70] sm:$0xff]
    %v3061 = vld [vmem:[#allocation2 + $0x5d78] sm:$0xff]
    %v3062 = vld [vmem:[#allocation2 + $0x5d80] sm:$0xff]
    %v3063 = vld [vmem:[#allocation2 + $0x5d88] sm:$0xff]
    %v3064 = vld [vmem:[#allocation2 + $0x5d90] sm:$0xff]
    %v3065 = vld [vmem:[#allocation2 + $0x5d98] sm:$0xff]
    %v3066 = vld [vmem:[#allocation2 + $0x5da0] sm:$0xff]
    %v3067 = vld [vmem:[#allocation2 + $0x5da8] sm:$0xff]
    %v3068 = vld [vmem:[#allocation2 + $0x5db0] sm:$0xff]
    %v3069 = vld [vmem:[#allocation2 + $0x5db8] sm:$0xff]
    %v3070 = vld [vmem:[#allocation2 + $0x5dc0] sm:$0xff]
    %v3071 = vld [vmem:[#allocation2 + $0x5dc8] sm:$0xff]
    %v3072 = vld [vmem:[#allocation2 + $0x5dd0] sm:$0xff]
    %v3073 = vld [vmem:[#allocation2 + $0x5dd8] sm:$0xff]
    %v3074 = vld [vmem:[#allocation2 + $0x5de0] sm:$0xff]
    %v3075 = vld [vmem:[#allocation2 + $0x5de8] sm:$0xff]
    %v3076 = vld [vmem:[#allocation2 + $0x5df0] sm:$0xff]
    %v3077 = vld [vmem:[#allocation2 + $0x5df8] sm:$0xff]
    %v3078 = vld [vmem:[#allocation2 + $0x5e00] sm:$0xff]
    %v3079 = vld [vmem:[#allocation2 + $0x5e08] sm:$0xff]
    %v3080 = vld [vmem:[#allocation2 + $0x5e10] sm:$0xff]
    %v3081 = vld [vmem:[#allocation2 + $0x5e18] sm:$0xff]
    %v3082 = vld [vmem:[#allocation2 + $0x5e20] sm:$0xff]
    %v3083 = vld [vmem:[#allocation2 + $0x5e28] sm:$0xff]
    %v3084 = vld [vmem:[#allocation2 + $0x5e30] sm:$0xff]
    %v3085 = vld [vmem:[#allocation2 + $0x5e38] sm:$0xff]
    %v3086 = vld [vmem:[#allocation2 + $0x5e40] sm:$0xff]
    %v3087 = vld [vmem:[#allocation2 + $0x5e48] sm:$0xff]
    %v3088 = vld [vmem:[#allocation2 + $0x5e50] sm:$0xff]
    %v3089 = vld [vmem:[#allocation2 + $0x5e58] sm:$0xff]
    %v3090 = vld [vmem:[#allocation2 + $0x5e60] sm:$0xff]
    %v3091 = vld [vmem:[#allocation2 + $0x5e68] sm:$0xff]
    %v3092 = vld [vmem:[#allocation2 + $0x5e70] sm:$0xff]
    %v3093 = vld [vmem:[#allocation2 + $0x5e78] sm:$0xff]
    %v3094 = vld [vmem:[#allocation2 + $0x5e80] sm:$0xff]
    %v3095 = vld [vmem:[#allocation2 + $0x5e88] sm:$0xff]
    %v3096 = vld [vmem:[#allocation2 + $0x5e90] sm:$0xff]
    %v3097 = vld [vmem:[#allocation2 + $0x5e98] sm:$0xff]
    %v3098 = vld [vmem:[#allocation2 + $0x5ea0] sm:$0xff]
    %v3099 = vld [vmem:[#allocation2 + $0x5ea8] sm:$0xff]
    %v3100 = vld [vmem:[#allocation2 + $0x5eb0] sm:$0xff]
    %v3101 = vld [vmem:[#allocation2 + $0x5eb8] sm:$0xff]
    %v3102 = vld [vmem:[#allocation2 + $0x5ec0] sm:$0xff]
    %v3103 = vld [vmem:[#allocation2 + $0x5ec8] sm:$0xff]
    %v3104 = vld [vmem:[#allocation2 + $0x5ed0] sm:$0xff]
    %v3105 = vld [vmem:[#allocation2 + $0x5ed8] sm:$0xff]
    %v3106 = vld [vmem:[#allocation2 + $0x5ee0] sm:$0xff]
    %v3107 = vld [vmem:[#allocation2 + $0x5ee8] sm:$0xff]
    %v3108 = vld [vmem:[#allocation2 + $0x5ef0] sm:$0xff]
    %v3109 = vld [vmem:[#allocation2 + $0x5ef8] sm:$0xff]
    %v3110 = vld [vmem:[#allocation2 + $0x5f00] sm:$0xff]
    %v3111 = vld [vmem:[#allocation2 + $0x5f08] sm:$0xff]
    %v3112 = vld [vmem:[#allocation2 + $0x5f10] sm:$0xff]
    %v3113 = vld [vmem:[#allocation2 + $0x5f18] sm:$0xff]
    %v3114 = vld [vmem:[#allocation2 + $0x5f20] sm:$0xff]
    %v3115 = vld [vmem:[#allocation2 + $0x5f28] sm:$0xff]
    %v3116 = vld [vmem:[#allocation2 + $0x5f30] sm:$0xff]
    %v3117 = vld [vmem:[#allocation2 + $0x5f38] sm:$0xff]
    %v3118 = vld [vmem:[#allocation2 + $0x5f40] sm:$0xff]
    %v3119 = vld [vmem:[#allocation2 + $0x5f48] sm:$0xff]
    %v3120 = vld [vmem:[#allocation2 + $0x5f50] sm:$0xff]
    %v3121 = vld [vmem:[#allocation2 + $0x5f58] sm:$0xff]
    %v3122 = vld [vmem:[#allocation2 + $0x5f60] sm:$0xff]
    %v3123 = vld [vmem:[#allocation2 + $0x5f68] sm:$0xff]
    %v3124 = vld [vmem:[#allocation2 + $0x5f70] sm:$0xff]
    %v3125 = vld [vmem:[#allocation2 + $0x5f78] sm:$0xff]
    %v3126 = vld [vmem:[#allocation2 + $0x5f80] sm:$0xff]
    %v3127 = vld [vmem:[#allocation2 + $0x5f88] sm:$0xff]
    %v3128 = vld [vmem:[#allocation2 + $0x5f90] sm:$0xff]
    %v3129 = vld [vmem:[#allocation2 + $0x5f98] sm:$0xff]
    %v3130 = vld [vmem:[#allocation2 + $0x5fa0] sm:$0xff]
    %v3131 = vld [vmem:[#allocation2 + $0x5fa8] sm:$0xff]
    %v3132 = vld [vmem:[#allocation2 + $0x5fb0] sm:$0xff]
    %v3133 = vld [vmem:[#allocation2 + $0x5fb8] sm:$0xff]
    %v3134 = vld [vmem:[#allocation2 + $0x5fc0] sm:$0xff]
    %v3135 = vld [vmem:[#allocation2 + $0x5fc8] sm:$0xff]
    %v3136 = vld [vmem:[#allocation2 + $0x5fd0] sm:$0xff]
    %v3137 = vld [vmem:[#allocation2 + $0x5fd8] sm:$0xff]
    %v3138 = vld [vmem:[#allocation2 + $0x5fe0] sm:$0xff]
    %v3139 = vld [vmem:[#allocation2 + $0x5fe8] sm:$0xff]
    %v3140 = vld [vmem:[#allocation2 + $0x5ff0] sm:$0xff]
    %v3141 = vld [vmem:[#allocation2 + $0x5ff8] sm:$0xff]
    %v3142 = vld [vmem:[#allocation2 + $0x6000] sm:$0xff]
    %v3143 = vld [vmem:[#allocation2 + $0x6008] sm:$0xff]
    %v3144 = vld [vmem:[#allocation2 + $0x6010] sm:$0xff]
    %v3145 = vld [vmem:[#allocation2 + $0x6018] sm:$0xff]
    %v3146 = vld [vmem:[#allocation2 + $0x6020] sm:$0xff]
    %v3147 = vld [vmem:[#allocation2 + $0x6028] sm:$0xff]
    %v3148 = vld [vmem:[#allocation2 + $0x6030] sm:$0xff]
    %v3149 = vld [vmem:[#allocation2 + $0x6038] sm:$0xff]
    %v3150 = vld [vmem:[#allocation2 + $0x6040] sm:$0xff]
    %v3151 = vld [vmem:[#allocation2 + $0x6048] sm:$0xff]
    %v3152 = vld [vmem:[#allocation2 + $0x6050] sm:$0xff]
    %v3153 = vld [vmem:[#allocation2 + $0x6058] sm:$0xff]
    %v3154 = vld [vmem:[#allocation2 + $0x6060] sm:$0xff]
    %v3155 = vld [vmem:[#allocation2 + $0x6068] sm:$0xff]
    %v3156 = vld [vmem:[#allocation2 + $0x6070] sm:$0xff]
    %v3157 = vld [vmem:[#allocation2 + $0x6078] sm:$0xff]
    %v3158 = vld [vmem:[#allocation2 + $0x6080] sm:$0xff]
    %v3159 = vld [vmem:[#allocation2 + $0x6088] sm:$0xff]
    %v3160 = vld [vmem:[#allocation2 + $0x6090] sm:$0xff]
    %v3161 = vld [vmem:[#allocation2 + $0x6098] sm:$0xff]
    %v3162 = vld [vmem:[#allocation2 + $0x60a0] sm:$0xff]
    %v3163 = vld [vmem:[#allocation2 + $0x60a8] sm:$0xff]
    %v3164 = vld [vmem:[#allocation2 + $0x60b0] sm:$0xff]
    %v3165 = vld [vmem:[#allocation2 + $0x60b8] sm:$0xff]
    %v3166 = vld [vmem:[#allocation2 + $0x60c0] sm:$0xff]
    %v3167 = vld [vmem:[#allocation2 + $0x60c8] sm:$0xff]
    %v3168 = vld [vmem:[#allocation2 + $0x60d0] sm:$0xff]
    %v3169 = vld [vmem:[#allocation2 + $0x60d8] sm:$0xff]
    %v3170 = vld [vmem:[#allocation2 + $0x60e0] sm:$0xff]
    %v3171 = vld [vmem:[#allocation2 + $0x60e8] sm:$0xff]
    %v3172 = vld [vmem:[#allocation2 + $0x60f0] sm:$0xff]
    %v3173 = vld [vmem:[#allocation2 + $0x60f8] sm:$0xff]
    %v3174 = vld [vmem:[#allocation2 + $0x6100] sm:$0xff]
    %v3175 = vld [vmem:[#allocation2 + $0x6108] sm:$0xff]
    %v3176 = vld [vmem:[#allocation2 + $0x6110] sm:$0xff]
    %v3177 = vld [vmem:[#allocation2 + $0x6118] sm:$0xff]
    %v3178 = vld [vmem:[#allocation2 + $0x6120] sm:$0xff]
    %v3179 = vld [vmem:[#allocation2 + $0x6128] sm:$0xff]
    %v3180 = vld [vmem:[#allocation2 + $0x6130] sm:$0xff]
    %v3181 = vld [vmem:[#allocation2 + $0x6138] sm:$0xff]
    %v3182 = vld [vmem:[#allocation2 + $0x6140] sm:$0xff]
    %v3183 = vld [vmem:[#allocation2 + $0x6148] sm:$0xff]
    %v3184 = vld [vmem:[#allocation2 + $0x6150] sm:$0xff]
    %v3185 = vld [vmem:[#allocation2 + $0x6158] sm:$0xff]
    %v3186 = vld [vmem:[#allocation2 + $0x6160] sm:$0xff]
    %v3187 = vld [vmem:[#allocation2 + $0x6168] sm:$0xff]
    %v3188 = vld [vmem:[#allocation2 + $0x6170] sm:$0xff]
    %v3189 = vld [vmem:[#allocation2 + $0x6178] sm:$0xff]
    %v3190 = vld [vmem:[#allocation2 + $0x6180] sm:$0xff]
    %v3191 = vld [vmem:[#allocation2 + $0x6188] sm:$0xff]
    %v3192 = vld [vmem:[#allocation2 + $0x6190] sm:$0xff]
    %v3193 = vld [vmem:[#allocation2 + $0x6198] sm:$0xff]
    %v3194 = vld [vmem:[#allocation2 + $0x61a0] sm:$0xff]
    %v3195 = vld [vmem:[#allocation2 + $0x61a8] sm:$0xff]
    %v3196 = vld [vmem:[#allocation2 + $0x61b0] sm:$0xff]
    %v3197 = vld [vmem:[#allocation2 + $0x61b8] sm:$0xff]
    %v3198 = vld [vmem:[#allocation2 + $0x61c0] sm:$0xff]
    %v3199 = vld [vmem:[#allocation2 + $0x61c8] sm:$0xff]
    %v3200 = vld [vmem:[#allocation2 + $0x61d0] sm:$0xff]
    %v3201 = vld [vmem:[#allocation2 + $0x61d8] sm:$0xff]
    %v3202 = vld [vmem:[#allocation2 + $0x61e0] sm:$0xff]
    %v3203 = vld [vmem:[#allocation2 + $0x61e8] sm:$0xff]
    %v3204 = vld [vmem:[#allocation2 + $0x61f0] sm:$0xff]
    %v3205 = vld [vmem:[#allocation2 + $0x61f8] sm:$0xff]
    %v3206 = vld [vmem:[#allocation2 + $0x6200] sm:$0xff]
    %v3207 = vld [vmem:[#allocation2 + $0x6208] sm:$0xff]
    %v3208 = vld [vmem:[#allocation2 + $0x6210] sm:$0xff]
    %v3209 = vld [vmem:[#allocation2 + $0x6218] sm:$0xff]
    %v3210 = vld [vmem:[#allocation2 + $0x6220] sm:$0xff]
    %v3211 = vld [vmem:[#allocation2 + $0x6228] sm:$0xff]
    %v3212 = vld [vmem:[#allocation2 + $0x6230] sm:$0xff]
    %v3213 = vld [vmem:[#allocation2 + $0x6238] sm:$0xff]
    %v3214 = vld [vmem:[#allocation2 + $0x6240] sm:$0xff]
    %v3215 = vld [vmem:[#allocation2 + $0x6248] sm:$0xff]
    %v3216 = vld [vmem:[#allocation2 + $0x6250] sm:$0xff]
    %v3217 = vld [vmem:[#allocation2 + $0x6258] sm:$0xff]
    %v3218 = vld [vmem:[#allocation2 + $0x6260] sm:$0xff]
    %v3219 = vld [vmem:[#allocation2 + $0x6268] sm:$0xff]
    %v3220 = vld [vmem:[#allocation2 + $0x6270] sm:$0xff]
    %v3221 = vld [vmem:[#allocation2 + $0x6278] sm:$0xff]
    %v3222 = vld [vmem:[#allocation2 + $0x6280] sm:$0xff]
    %v3223 = vld [vmem:[#allocation2 + $0x6288] sm:$0xff]
    %v3224 = vld [vmem:[#allocation2 + $0x6290] sm:$0xff]
    %v3225 = vld [vmem:[#allocation2 + $0x6298] sm:$0xff]
    %v3226 = vld [vmem:[#allocation2 + $0x62a0] sm:$0xff]
    %v3227 = vld [vmem:[#allocation2 + $0x62a8] sm:$0xff]
    %v3228 = vld [vmem:[#allocation2 + $0x62b0] sm:$0xff]
    %v3229 = vld [vmem:[#allocation2 + $0x62b8] sm:$0xff]
    %v3230 = vld [vmem:[#allocation2 + $0x62c0] sm:$0xff]
    %v3231 = vld [vmem:[#allocation2 + $0x62c8] sm:$0xff]
    %v3232 = vld [vmem:[#allocation2 + $0x62d0] sm:$0xff]
    %v3233 = vld [vmem:[#allocation2 + $0x62d8] sm:$0xff]
    %v3234 = vld [vmem:[#allocation2 + $0x62e0] sm:$0xff]
    %v3235 = vld [vmem:[#allocation2 + $0x62e8] sm:$0xff]
    %v3236 = vld [vmem:[#allocation2 + $0x62f0] sm:$0xff]
    %v3237 = vld [vmem:[#allocation2 + $0x62f8] sm:$0xff]
    %v3238 = vld [vmem:[#allocation2 + $0x6300] sm:$0xff]
    %v3239 = vld [vmem:[#allocation2 + $0x6308] sm:$0xff]
    %v3240 = vld [vmem:[#allocation2 + $0x6310] sm:$0xff]
    %v3241 = vld [vmem:[#allocation2 + $0x6318] sm:$0xff]
    %v3242 = vld [vmem:[#allocation2 + $0x6320] sm:$0xff]
    %v3243 = vld [vmem:[#allocation2 + $0x6328] sm:$0xff]
    %v3244 = vld [vmem:[#allocation2 + $0x6330] sm:$0xff]
    %v3245 = vld [vmem:[#allocation2 + $0x6338] sm:$0xff]
    %v3246 = vld [vmem:[#allocation2 + $0x6340] sm:$0xff]
    %v3247 = vld [vmem:[#allocation2 + $0x6348] sm:$0xff]
    %v3248 = vld [vmem:[#allocation2 + $0x6350] sm:$0xff]
    %v3249 = vld [vmem:[#allocation2 + $0x6358] sm:$0xff]
    %v3250 = vld [vmem:[#allocation2 + $0x6360] sm:$0xff]
    %v3251 = vld [vmem:[#allocation2 + $0x6368] sm:$0xff]
    %v3252 = vld [vmem:[#allocation2 + $0x6370] sm:$0xff]
    %v3253 = vld [vmem:[#allocation2 + $0x6378] sm:$0xff]
    %v3254 = vld [vmem:[#allocation2 + $0x6380] sm:$0xff]
    %v3255 = vld [vmem:[#allocation2 + $0x6388] sm:$0xff]
    %v3256 = vld [vmem:[#allocation2 + $0x6390] sm:$0xff]
    %v3257 = vld [vmem:[#allocation2 + $0x6398] sm:$0xff]
    %v3258 = vld [vmem:[#allocation2 + $0x63a0] sm:$0xff]
    %v3259 = vld [vmem:[#allocation2 + $0x63a8] sm:$0xff]
    %v3260 = vld [vmem:[#allocation2 + $0x63b0] sm:$0xff]
    %v3261 = vld [vmem:[#allocation2 + $0x63b8] sm:$0xff]
    %v3262 = vld [vmem:[#allocation2 + $0x63c0] sm:$0xff]
    %v3263 = vld [vmem:[#allocation2 + $0x63c8] sm:$0xff]
    %v3264 = vld [vmem:[#allocation2 + $0x63d0] sm:$0xff]
    %v3265 = vld [vmem:[#allocation2 + $0x63d8] sm:$0xff]
    %v3266 = vld [vmem:[#allocation2 + $0x63e0] sm:$0xff]
    %v3267 = vld [vmem:[#allocation2 + $0x63e8] sm:$0xff]
    %v3268 = vld [vmem:[#allocation2 + $0x63f0] sm:$0xff]
    %v3269 = vld [vmem:[#allocation2 + $0x63f8] sm:$0xff]
    %v3270 = vld [vmem:[#allocation2 + $0x6400] sm:$0xff]
    %v3271 = vld [vmem:[#allocation2 + $0x6408] sm:$0xff]
    %v3272 = vld [vmem:[#allocation2 + $0x6410] sm:$0xff]
    %v3273 = vld [vmem:[#allocation2 + $0x6418] sm:$0xff]
    %v3274 = vld [vmem:[#allocation2 + $0x6420] sm:$0xff]
    %v3275 = vld [vmem:[#allocation2 + $0x6428] sm:$0xff]
    %v3276 = vld [vmem:[#allocation2 + $0x6430] sm:$0xff]
    %v3277 = vld [vmem:[#allocation2 + $0x6438] sm:$0xff]
    %v3278 = vld [vmem:[#allocation2 + $0x6440] sm:$0xff]
    %v3279 = vld [vmem:[#allocation2 + $0x6448] sm:$0xff]
    %v3280 = vld [vmem:[#allocation2 + $0x6450] sm:$0xff]
    %v3281 = vld [vmem:[#allocation2 + $0x6458] sm:$0xff]
    %v3282 = vld [vmem:[#allocation2 + $0x6460] sm:$0xff]
    %v3283 = vld [vmem:[#allocation2 + $0x6468] sm:$0xff]
    %v3284 = vld [vmem:[#allocation2 + $0x6470] sm:$0xff]
    %v3285 = vld [vmem:[#allocation2 + $0x6478] sm:$0xff]
    %v3286 = vld [vmem:[#allocation2 + $0x6480] sm:$0xff]
    %v3287 = vld [vmem:[#allocation2 + $0x6488] sm:$0xff]
    %v3288 = vld [vmem:[#allocation2 + $0x6490] sm:$0xff]
    %v3289 = vld [vmem:[#allocation2 + $0x6498] sm:$0xff]
    %v3290 = vld [vmem:[#allocation2 + $0x64a0] sm:$0xff]
    %v3291 = vld [vmem:[#allocation2 + $0x64a8] sm:$0xff]
    %v3292 = vld [vmem:[#allocation2 + $0x64b0] sm:$0xff]
    %v3293 = vld [vmem:[#allocation2 + $0x64b8] sm:$0xff]
    %v3294 = vld [vmem:[#allocation2 + $0x64c0] sm:$0xff]
    %v3295 = vld [vmem:[#allocation2 + $0x64c8] sm:$0xff]
    %v3296 = vld [vmem:[#allocation2 + $0x64d0] sm:$0xff]
    %v3297 = vld [vmem:[#allocation2 + $0x64d8] sm:$0xff]
    %v3298 = vld [vmem:[#allocation2 + $0x64e0] sm:$0xff]
    %v3299 = vld [vmem:[#allocation2 + $0x64e8] sm:$0xff]
    %v3300 = vld [vmem:[#allocation2 + $0x64f0] sm:$0xff]
    %v3301 = vld [vmem:[#allocation2 + $0x64f8] sm:$0xff]
    %v3302 = vld [vmem:[#allocation2 + $0x6500] sm:$0xff]
    %v3303 = vld [vmem:[#allocation2 + $0x6508] sm:$0xff]
    %v3304 = vld [vmem:[#allocation2 + $0x6510] sm:$0xff]
    %v3305 = vld [vmem:[#allocation2 + $0x6518] sm:$0xff]
    %v3306 = vld [vmem:[#allocation2 + $0x6520] sm:$0xff]
    %v3307 = vld [vmem:[#allocation2 + $0x6528] sm:$0xff]
    %v3308 = vld [vmem:[#allocation2 + $0x6530] sm:$0xff]
    %v3309 = vld [vmem:[#allocation2 + $0x6538] sm:$0xff]
    %v3310 = vld [vmem:[#allocation2 + $0x6540] sm:$0xff]
    %v3311 = vld [vmem:[#allocation2 + $0x6548] sm:$0xff]
    %v3312 = vld [vmem:[#allocation2 + $0x6550] sm:$0xff]
    %v3313 = vld [vmem:[#allocation2 + $0x6558] sm:$0xff]
    %v3314 = vld [vmem:[#allocation2 + $0x6560] sm:$0xff]
    %v3315 = vld [vmem:[#allocation2 + $0x6568] sm:$0xff]
    %v3316 = vld [vmem:[#allocation2 + $0x6570] sm:$0xff]
    %v3317 = vld [vmem:[#allocation2 + $0x6578] sm:$0xff]
    %v3318 = vld [vmem:[#allocation2 + $0x6580] sm:$0xff]
    %v3319 = vld [vmem:[#allocation2 + $0x6588] sm:$0xff]
    %v3320 = vld [vmem:[#allocation2 + $0x6590] sm:$0xff]
    %v3321 = vld [vmem:[#allocation2 + $0x6598] sm:$0xff]
    %v3322 = vld [vmem:[#allocation2 + $0x65a0] sm:$0xff]
    %v3323 = vld [vmem:[#allocation2 + $0x65a8] sm:$0xff]
    %v3324 = vld [vmem:[#allocation2 + $0x65b0] sm:$0xff]
    %v3325 = vld [vmem:[#allocation2 + $0x65b8] sm:$0xff]
    %v3326 = vld [vmem:[#allocation2 + $0x65c0] sm:$0xff]
    %v3327 = vld [vmem:[#allocation2 + $0x65c8] sm:$0xff]
    %v3328 = vld [vmem:[#allocation2 + $0x65d0] sm:$0xff]
    %v3329 = vld [vmem:[#allocation2 + $0x65d8] sm:$0xff]
    %v3330 = vld [vmem:[#allocation2 + $0x65e0] sm:$0xff]
    %v3331 = vld [vmem:[#allocation2 + $0x65e8] sm:$0xff]
    %v3332 = vld [vmem:[#allocation2 + $0x65f0] sm:$0xff]
    %v3333 = vld [vmem:[#allocation2 + $0x65f8] sm:$0xff]
    %v3334 = vld [vmem:[#allocation2 + $0x6600] sm:$0xff]
    %v3335 = vld [vmem:[#allocation2 + $0x6608] sm:$0xff]
    %v3336 = vld [vmem:[#allocation2 + $0x6610] sm:$0xff]
    %v3337 = vld [vmem:[#allocation2 + $0x6618] sm:$0xff]
    %v3338 = vld [vmem:[#allocation2 + $0x6620] sm:$0xff]
    %v3339 = vld [vmem:[#allocation2 + $0x6628] sm:$0xff]
    %v3340 = vld [vmem:[#allocation2 + $0x6630] sm:$0xff]
    %v3341 = vld [vmem:[#allocation2 + $0x6638] sm:$0xff]
    %v3342 = vld [vmem:[#allocation2 + $0x6640] sm:$0xff]
    %v3343 = vld [vmem:[#allocation2 + $0x6648] sm:$0xff]
    %v3344 = vld [vmem:[#allocation2 + $0x6650] sm:$0xff]
    %v3345 = vld [vmem:[#allocation2 + $0x6658] sm:$0xff]
    %v3346 = vld [vmem:[#allocation2 + $0x6660] sm:$0xff]
    %v3347 = vld [vmem:[#allocation2 + $0x6668] sm:$0xff]
    %v3348 = vld [vmem:[#allocation2 + $0x6670] sm:$0xff]
    %v3349 = vld [vmem:[#allocation2 + $0x6678] sm:$0xff]
    %v3350 = vld [vmem:[#allocation2 + $0x6680] sm:$0xff]
    %v3351 = vld [vmem:[#allocation2 + $0x6688] sm:$0xff]
    %v3352 = vld [vmem:[#allocation2 + $0x6690] sm:$0xff]
    %v3353 = vld [vmem:[#allocation2 + $0x6698] sm:$0xff]
    %v3354 = vld [vmem:[#allocation2 + $0x66a0] sm:$0xff]
    %v3355 = vld [vmem:[#allocation2 + $0x66a8] sm:$0xff]
    %v3356 = vld [vmem:[#allocation2 + $0x66b0] sm:$0xff]
    %v3357 = vld [vmem:[#allocation2 + $0x66b8] sm:$0xff]
    %v3358 = vld [vmem:[#allocation2 + $0x66c0] sm:$0xff]
    %v3359 = vld [vmem:[#allocation2 + $0x66c8] sm:$0xff]
    %v3360 = vld [vmem:[#allocation2 + $0x66d0] sm:$0xff]
    %v3361 = vld [vmem:[#allocation2 + $0x66d8] sm:$0xff]
    %v3362 = vld [vmem:[#allocation2 + $0x66e0] sm:$0xff]
    %v3363 = vld [vmem:[#allocation2 + $0x66e8] sm:$0xff]
    %v3364 = vld [vmem:[#allocation2 + $0x66f0] sm:$0xff]
    %v3365 = vld [vmem:[#allocation2 + $0x66f8] sm:$0xff]
    %v3366 = vld [vmem:[#allocation2 + $0x6700] sm:$0xff]
    %v3367 = vld [vmem:[#allocation2 + $0x6708] sm:$0xff]
    %v3368 = vld [vmem:[#allocation2 + $0x6710] sm:$0xff]
    %v3369 = vld [vmem:[#allocation2 + $0x6718] sm:$0xff]
    %v3370 = vld [vmem:[#allocation2 + $0x6720] sm:$0xff]
    %v3371 = vld [vmem:[#allocation2 + $0x6728] sm:$0xff]
    %v3372 = vld [vmem:[#allocation2 + $0x6730] sm:$0xff]
    %v3373 = vld [vmem:[#allocation2 + $0x6738] sm:$0xff]
    %v3374 = vld [vmem:[#allocation2 + $0x6740] sm:$0xff]
    %v3375 = vld [vmem:[#allocation2 + $0x6748] sm:$0xff]
    %v3376 = vld [vmem:[#allocation2 + $0x6750] sm:$0xff]
    %v3377 = vld [vmem:[#allocation2 + $0x6758] sm:$0xff]
    %v3378 = vld [vmem:[#allocation2 + $0x6760] sm:$0xff]
    %v3379 = vld [vmem:[#allocation2 + $0x6768] sm:$0xff]
    %v3380 = vld [vmem:[#allocation2 + $0x6770] sm:$0xff]
    %v3381 = vld [vmem:[#allocation2 + $0x6778] sm:$0xff]
    %v3382 = vld [vmem:[#allocation2 + $0x6780] sm:$0xff]
    %v3383 = vld [vmem:[#allocation2 + $0x6788] sm:$0xff]
    %v3384 = vld [vmem:[#allocation2 + $0x6790] sm:$0xff]
    %v3385 = vld [vmem:[#allocation2 + $0x6798] sm:$0xff]
    %v3386 = vld [vmem:[#allocation2 + $0x67a0] sm:$0xff]
    %v3387 = vld [vmem:[#allocation2 + $0x67a8] sm:$0xff]
    %v3388 = vld [vmem:[#allocation2 + $0x67b0] sm:$0xff]
    %v3389 = vld [vmem:[#allocation2 + $0x67b8] sm:$0xff]
    %v3390 = vld [vmem:[#allocation2 + $0x67c0] sm:$0xff]
    %v3391 = vld [vmem:[#allocation2 + $0x67c8] sm:$0xff]
    %v3392 = vld [vmem:[#allocation2 + $0x67d0] sm:$0xff]
    %v3393 = vld [vmem:[#allocation2 + $0x67d8] sm:$0xff]
    %v3394 = vld [vmem:[#allocation2 + $0x67e0] sm:$0xff]
    %v3395 = vld [vmem:[#allocation2 + $0x67e8] sm:$0xff]
    %v3396 = vld [vmem:[#allocation2 + $0x67f0] sm:$0xff]
    %v3397 = vld [vmem:[#allocation2 + $0x67f8] sm:$0xff]
    %v3398 = vld [vmem:[#allocation2 + $0x6800] sm:$0xff]
    %v3399 = vld [vmem:[#allocation2 + $0x6808] sm:$0xff]
    %v3400 = vld [vmem:[#allocation2 + $0x6810] sm:$0xff]
    %v3401 = vld [vmem:[#allocation2 + $0x6818] sm:$0xff]
    %v3402 = vld [vmem:[#allocation2 + $0x6820] sm:$0xff]
    %v3403 = vld [vmem:[#allocation2 + $0x6828] sm:$0xff]
    %v3404 = vld [vmem:[#allocation2 + $0x6830] sm:$0xff]
    %v3405 = vld [vmem:[#allocation2 + $0x6838] sm:$0xff]
    %v3406 = vld [vmem:[#allocation2 + $0x6840] sm:$0xff]
    %v3407 = vld [vmem:[#allocation2 + $0x6848] sm:$0xff]
    %v3408 = vld [vmem:[#allocation2 + $0x6850] sm:$0xff]
    %v3409 = vld [vmem:[#allocation2 + $0x6858] sm:$0xff]
    %v3410 = vld [vmem:[#allocation2 + $0x6860] sm:$0xff]
    %v3411 = vld [vmem:[#allocation2 + $0x6868] sm:$0xff]
    %v3412 = vld [vmem:[#allocation2 + $0x6870] sm:$0xff]
    %v3413 = vld [vmem:[#allocation2 + $0x6878] sm:$0xff]
    %v3414 = vld [vmem:[#allocation2 + $0x6880] sm:$0xff]
    %v3415 = vld [vmem:[#allocation2 + $0x6888] sm:$0xff]
    %v3416 = vld [vmem:[#allocation2 + $0x6890] sm:$0xff]
    %v3417 = vld [vmem:[#allocation2 + $0x6898] sm:$0xff]
    %v3418 = vld [vmem:[#allocation2 + $0x68a0] sm:$0xff]
    %v3419 = vld [vmem:[#allocation2 + $0x68a8] sm:$0xff]
    %v3420 = vld [vmem:[#allocation2 + $0x68b0] sm:$0xff]
    %v3421 = vld [vmem:[#allocation2 + $0x68b8] sm:$0xff]
    %v3422 = vld [vmem:[#allocation2 + $0x68c0] sm:$0xff]
    %v3423 = vld [vmem:[#allocation2 + $0x68c8] sm:$0xff]
    %v3424 = vld [vmem:[#allocation2 + $0x68d0] sm:$0xff]
    %v3425 = vld [vmem:[#allocation2 + $0x68d8] sm:$0xff]
    %v3426 = vld [vmem:[#allocation2 + $0x68e0] sm:$0xff]
    %v3427 = vld [vmem:[#allocation2 + $0x68e8] sm:$0xff]
    %v3428 = vld [vmem:[#allocation2 + $0x68f0] sm:$0xff]
    %v3429 = vld [vmem:[#allocation2 + $0x68f8] sm:$0xff]
    %v3430 = vld [vmem:[#allocation2 + $0x6900] sm:$0xff]
    %v3431 = vld [vmem:[#allocation2 + $0x6908] sm:$0xff]
    %v3432 = vld [vmem:[#allocation2 + $0x6910] sm:$0xff]
    %v3433 = vld [vmem:[#allocation2 + $0x6918] sm:$0xff]
    %v3434 = vld [vmem:[#allocation2 + $0x6920] sm:$0xff]
    %v3435 = vld [vmem:[#allocation2 + $0x6928] sm:$0xff]
    %v3436 = vld [vmem:[#allocation2 + $0x6930] sm:$0xff]
    %v3437 = vld [vmem:[#allocation2 + $0x6938] sm:$0xff]
    %v3438 = vld [vmem:[#allocation2 + $0x6940] sm:$0xff]
    %v3439 = vld [vmem:[#allocation2 + $0x6948] sm:$0xff]
    %v3440 = vld [vmem:[#allocation2 + $0x6950] sm:$0xff]
    %v3441 = vld [vmem:[#allocation2 + $0x6958] sm:$0xff]
    %v3442 = vld [vmem:[#allocation2 + $0x6960] sm:$0xff]
    %v3443 = vld [vmem:[#allocation2 + $0x6968] sm:$0xff]
    %v3444 = vld [vmem:[#allocation2 + $0x6970] sm:$0xff]
    %v3445 = vld [vmem:[#allocation2 + $0x6978] sm:$0xff]
    %v3446 = vld [vmem:[#allocation2 + $0x6980] sm:$0xff]
    %v3447 = vld [vmem:[#allocation2 + $0x6988] sm:$0xff]
    %v3448 = vld [vmem:[#allocation2 + $0x6990] sm:$0xff]
    %v3449 = vld [vmem:[#allocation2 + $0x6998] sm:$0xff]
    %v3450 = vld [vmem:[#allocation2 + $0x69a0] sm:$0xff]
    %v3451 = vld [vmem:[#allocation2 + $0x69a8] sm:$0xff]
    %v3452 = vld [vmem:[#allocation2 + $0x69b0] sm:$0xff]
    %v3453 = vld [vmem:[#allocation2 + $0x69b8] sm:$0xff]
    %v3454 = vld [vmem:[#allocation2 + $0x69c0] sm:$0xff]
    %v3455 = vld [vmem:[#allocation2 + $0x69c8] sm:$0xff]
    %v3456 = vld [vmem:[#allocation2 + $0x69d0] sm:$0xff]
    %v3457 = vld [vmem:[#allocation2 + $0x69d8] sm:$0xff]
    %v3458 = vld [vmem:[#allocation2 + $0x69e0] sm:$0xff]
    %v3459 = vld [vmem:[#allocation2 + $0x69e8] sm:$0xff]
    %v3460 = vld [vmem:[#allocation2 + $0x69f0] sm:$0xff]
    %v3461 = vld [vmem:[#allocation2 + $0x69f8] sm:$0xff]
    %v3462 = vld [vmem:[#allocation2 + $0x6a00] sm:$0xff]
    %v3463 = vld [vmem:[#allocation2 + $0x6a08] sm:$0xff]
    %v3464 = vld [vmem:[#allocation2 + $0x6a10] sm:$0xff]
    %v3465 = vld [vmem:[#allocation2 + $0x6a18] sm:$0xff]
    %v3466 = vld [vmem:[#allocation2 + $0x6a20] sm:$0xff]
    %v3467 = vld [vmem:[#allocation2 + $0x6a28] sm:$0xff]
    %v3468 = vld [vmem:[#allocation2 + $0x6a30] sm:$0xff]
    %v3469 = vld [vmem:[#allocation2 + $0x6a38] sm:$0xff]
    %v3470 = vld [vmem:[#allocation2 + $0x6a40] sm:$0xff]
    %v3471 = vld [vmem:[#allocation2 + $0x6a48] sm:$0xff]
    %v3472 = vld [vmem:[#allocation2 + $0x6a50] sm:$0xff]
    %v3473 = vld [vmem:[#allocation2 + $0x6a58] sm:$0xff]
    %v3474 = vld [vmem:[#allocation2 + $0x6a60] sm:$0xff]
    %v3475 = vld [vmem:[#allocation2 + $0x6a68] sm:$0xff]
    %v3476 = vld [vmem:[#allocation2 + $0x6a70] sm:$0xff]
    %v3477 = vld [vmem:[#allocation2 + $0x6a78] sm:$0xff]
    %v3478 = vld [vmem:[#allocation2 + $0x6a80] sm:$0xff]
    %v3479 = vld [vmem:[#allocation2 + $0x6a88] sm:$0xff]
    %v3480 = vld [vmem:[#allocation2 + $0x6a90] sm:$0xff]
    %v3481 = vld [vmem:[#allocation2 + $0x6a98] sm:$0xff]
    %v3482 = vld [vmem:[#allocation2 + $0x6aa0] sm:$0xff]
    %v3483 = vld [vmem:[#allocation2 + $0x6aa8] sm:$0xff]
    %v3484 = vld [vmem:[#allocation2 + $0x6ab0] sm:$0xff]
    %v3485 = vld [vmem:[#allocation2 + $0x6ab8] sm:$0xff]
    %v3486 = vld [vmem:[#allocation2 + $0x6ac0] sm:$0xff]
    %v3487 = vld [vmem:[#allocation2 + $0x6ac8] sm:$0xff]
    %v3488 = vld [vmem:[#allocation2 + $0x6ad0] sm:$0xff]
    %v3489 = vld [vmem:[#allocation2 + $0x6ad8] sm:$0xff]
    %v3490 = vld [vmem:[#allocation2 + $0x6ae0] sm:$0xff]
    %v3491 = vld [vmem:[#allocation2 + $0x6ae8] sm:$0xff]
    %v3492 = vld [vmem:[#allocation2 + $0x6af0] sm:$0xff]
    %v3493 = vld [vmem:[#allocation2 + $0x6af8] sm:$0xff]
    %v3494 = vld [vmem:[#allocation2 + $0x6b00] sm:$0xff]
    %v3495 = vld [vmem:[#allocation2 + $0x6b08] sm:$0xff]
    %v3496 = vld [vmem:[#allocation2 + $0x6b10] sm:$0xff]
    %v3497 = vld [vmem:[#allocation2 + $0x6b18] sm:$0xff]
    %v3498 = vld [vmem:[#allocation2 + $0x6b20] sm:$0xff]
    %v3499 = vld [vmem:[#allocation2 + $0x6b28] sm:$0xff]
    %v3500 = vld [vmem:[#allocation2 + $0x6b30] sm:$0xff]
    %v3501 = vld [vmem:[#allocation2 + $0x6b38] sm:$0xff]
    %v3502 = vld [vmem:[#allocation2 + $0x6b40] sm:$0xff]
    %v3503 = vld [vmem:[#allocation2 + $0x6b48] sm:$0xff]
    %v3504 = vld [vmem:[#allocation2 + $0x6b50] sm:$0xff]
    %v3505 = vld [vmem:[#allocation2 + $0x6b58] sm:$0xff]
    %v3506 = vld [vmem:[#allocation2 + $0x6b60] sm:$0xff]
    %v3507 = vld [vmem:[#allocation2 + $0x6b68] sm:$0xff]
    %v3508 = vld [vmem:[#allocation2 + $0x6b70] sm:$0xff]
    %v3509 = vld [vmem:[#allocation2 + $0x6b78] sm:$0xff]
    %v3510 = vld [vmem:[#allocation2 + $0x6b80] sm:$0xff]
    %v3511 = vld [vmem:[#allocation2 + $0x6b88] sm:$0xff]
    %v3512 = vld [vmem:[#allocation2 + $0x6b90] sm:$0xff]
    %v3513 = vld [vmem:[#allocation2 + $0x6b98] sm:$0xff]
    %v3514 = vld [vmem:[#allocation2 + $0x6ba0] sm:$0xff]
    %v3515 = vld [vmem:[#allocation2 + $0x6ba8] sm:$0xff]
    %v3516 = vld [vmem:[#allocation2 + $0x6bb0] sm:$0xff]
    %v3517 = vld [vmem:[#allocation2 + $0x6bb8] sm:$0xff]
    %v3518 = vld [vmem:[#allocation2 + $0x6bc0] sm:$0xff]
    %v3519 = vld [vmem:[#allocation2 + $0x6bc8] sm:$0xff]
    %v3520 = vld [vmem:[#allocation2 + $0x6bd0] sm:$0xff]
    %v3521 = vld [vmem:[#allocation2 + $0x6bd8] sm:$0xff]
    %v3522 = vld [vmem:[#allocation2 + $0x6be0] sm:$0xff]
    %v3523 = vld [vmem:[#allocation2 + $0x6be8] sm:$0xff]
    %v3524 = vld [vmem:[#allocation2 + $0x6bf0] sm:$0xff]
    %v3525 = vld [vmem:[#allocation2 + $0x6bf8] sm:$0xff]
    %v3526 = vld [vmem:[#allocation2 + $0x6c00] sm:$0xff]
    %v3527 = vld [vmem:[#allocation2 + $0x6c08] sm:$0xff]
    %v3528 = vld [vmem:[#allocation2 + $0x6c10] sm:$0xff]
    %v3529 = vld [vmem:[#allocation2 + $0x6c18] sm:$0xff]
    %v3530 = vld [vmem:[#allocation2 + $0x6c20] sm:$0xff]
    %v3531 = vld [vmem:[#allocation2 + $0x6c28] sm:$0xff]
    %v3532 = vld [vmem:[#allocation2 + $0x6c30] sm:$0xff]
    %v3533 = vld [vmem:[#allocation2 + $0x6c38] sm:$0xff]
    %v3534 = vld [vmem:[#allocation2 + $0x6c40] sm:$0xff]
    %v3535 = vld [vmem:[#allocation2 + $0x6c48] sm:$0xff]
    %v3536 = vld [vmem:[#allocation2 + $0x6c50] sm:$0xff]
    %v3537 = vld [vmem:[#allocation2 + $0x6c58] sm:$0xff]
    %v3538 = vld [vmem:[#allocation2 + $0x6c60] sm:$0xff]
    %v3539 = vld [vmem:[#allocation2 + $0x6c68] sm:$0xff]
    %v3540 = vld [vmem:[#allocation2 + $0x6c70] sm:$0xff]
    %v3541 = vld [vmem:[#allocation2 + $0x6c78] sm:$0xff]
    %v3542 = vld [vmem:[#allocation2 + $0x6c80] sm:$0xff]
    %v3543 = vld [vmem:[#allocation2 + $0x6c88] sm:$0xff]
    %v3544 = vld [vmem:[#allocation2 + $0x6c90] sm:$0xff]
    %v3545 = vld [vmem:[#allocation2 + $0x6c98] sm:$0xff]
    %v3546 = vld [vmem:[#allocation2 + $0x6ca0] sm:$0xff]
    %v3547 = vld [vmem:[#allocation2 + $0x6ca8] sm:$0xff]
    %v3548 = vld [vmem:[#allocation2 + $0x6cb0] sm:$0xff]
    %v3549 = vld [vmem:[#allocation2 + $0x6cb8] sm:$0xff]
    %v3550 = vld [vmem:[#allocation2 + $0x6cc0] sm:$0xff]
    %v3551 = vld [vmem:[#allocation2 + $0x6cc8] sm:$0xff]
    %v3552 = vld [vmem:[#allocation2 + $0x6cd0] sm:$0xff]
    %v3553 = vld [vmem:[#allocation2 + $0x6cd8] sm:$0xff]
    %v3554 = vld [vmem:[#allocation2 + $0x6ce0] sm:$0xff]
    %v3555 = vld [vmem:[#allocation2 + $0x6ce8] sm:$0xff]
    %v3556 = vld [vmem:[#allocation2 + $0x6cf0] sm:$0xff]
    %v3557 = vld [vmem:[#allocation2 + $0x6cf8] sm:$0xff]
    %v3558 = vld [vmem:[#allocation2 + $0x6d00] sm:$0xff]
    %v3559 = vld [vmem:[#allocation2 + $0x6d08] sm:$0xff]
    %v3560 = vld [vmem:[#allocation2 + $0x6d10] sm:$0xff]
    %v3561 = vld [vmem:[#allocation2 + $0x6d18] sm:$0xff]
    %v3562 = vld [vmem:[#allocation2 + $0x6d20] sm:$0xff]
    %v3563 = vld [vmem:[#allocation2 + $0x6d28] sm:$0xff]
    %v3564 = vld [vmem:[#allocation2 + $0x6d30] sm:$0xff]
    %v3565 = vld [vmem:[#allocation2 + $0x6d38] sm:$0xff]
    %v3566 = vld [vmem:[#allocation2 + $0x6d40] sm:$0xff]
    %v3567 = vld [vmem:[#allocation2 + $0x6d48] sm:$0xff]
    %v3568 = vld [vmem:[#allocation2 + $0x6d50] sm:$0xff]
    %v3569 = vld [vmem:[#allocation2 + $0x6d58] sm:$0xff]
    %v3570 = vld [vmem:[#allocation2 + $0x6d60] sm:$0xff]
    %v3571 = vld [vmem:[#allocation2 + $0x6d68] sm:$0xff]
    %v3572 = vld [vmem:[#allocation2 + $0x6d70] sm:$0xff]
    %v3573 = vld [vmem:[#allocation2 + $0x6d78] sm:$0xff]
    %v3574 = vld [vmem:[#allocation2 + $0x6d80] sm:$0xff]
    %v3575 = vld [vmem:[#allocation2 + $0x6d88] sm:$0xff]
    %v3576 = vld [vmem:[#allocation2 + $0x6d90] sm:$0xff]
    %v3577 = vld [vmem:[#allocation2 + $0x6d98] sm:$0xff]
    %v3578 = vld [vmem:[#allocation2 + $0x6da0] sm:$0xff]
    %v3579 = vld [vmem:[#allocation2 + $0x6da8] sm:$0xff]
    %v3580 = vld [vmem:[#allocation2 + $0x6db0] sm:$0xff]
    %v3581 = vld [vmem:[#allocation2 + $0x6db8] sm:$0xff]
    %v3582 = vld [vmem:[#allocation2 + $0x6dc0] sm:$0xff]
    %v3583 = vld [vmem:[#allocation2 + $0x6dc8] sm:$0xff]
    %v3584 = vld [vmem:[#allocation2 + $0x6dd0] sm:$0xff]
    %v3585 = vld [vmem:[#allocation2 + $0x6dd8] sm:$0xff]
    %v3586 = vld [vmem:[#allocation2 + $0x6de0] sm:$0xff]
    %v3587 = vld [vmem:[#allocation2 + $0x6de8] sm:$0xff]
    %v3588 = vld [vmem:[#allocation2 + $0x6df0] sm:$0xff]
    %v3589 = vld [vmem:[#allocation2 + $0x6df8] sm:$0xff]
    %v3590 = vld [vmem:[#allocation2 + $0x6e00] sm:$0xff]
    %v3591 = vld [vmem:[#allocation2 + $0x6e08] sm:$0xff]
    %v3592 = vld [vmem:[#allocation2 + $0x6e10] sm:$0xff]
    %v3593 = vld [vmem:[#allocation2 + $0x6e18] sm:$0xff]
    %v3594 = vld [vmem:[#allocation2 + $0x6e20] sm:$0xff]
    %v3595 = vld [vmem:[#allocation2 + $0x6e28] sm:$0xff]
    %v3596 = vld [vmem:[#allocation2 + $0x6e30] sm:$0xff]
    %v3597 = vld [vmem:[#allocation2 + $0x6e38] sm:$0xff]
    %v3598 = vld [vmem:[#allocation2 + $0x6e40] sm:$0xff]
    %v3599 = vld [vmem:[#allocation2 + $0x6e48] sm:$0xff]
    %v3600 = vld [vmem:[#allocation2 + $0x6e50] sm:$0xff]
    %v3601 = vld [vmem:[#allocation2 + $0x6e58] sm:$0xff]
    %v3602 = vld [vmem:[#allocation2 + $0x6e60] sm:$0xff]
    %v3603 = vld [vmem:[#allocation2 + $0x6e68] sm:$0xff]
    %v3604 = vld [vmem:[#allocation2 + $0x6e70] sm:$0xff]
    %v3605 = vld [vmem:[#allocation2 + $0x6e78] sm:$0xff]
    %v3606 = vld [vmem:[#allocation2 + $0x6e80] sm:$0xff]
    %v3607 = vld [vmem:[#allocation2 + $0x6e88] sm:$0xff]
    %v3608 = vld [vmem:[#allocation2 + $0x6e90] sm:$0xff]
    %v3609 = vld [vmem:[#allocation2 + $0x6e98] sm:$0xff]
    %v3610 = vld [vmem:[#allocation2 + $0x6ea0] sm:$0xff]
    %v3611 = vld [vmem:[#allocation2 + $0x6ea8] sm:$0xff]
    %v3612 = vld [vmem:[#allocation2 + $0x6eb0] sm:$0xff]
    %v3613 = vld [vmem:[#allocation2 + $0x6eb8] sm:$0xff]
    %v3614 = vld [vmem:[#allocation2 + $0x6ec0] sm:$0xff]
    %v3615 = vld [vmem:[#allocation2 + $0x6ec8] sm:$0xff]
    %v3616 = vld [vmem:[#allocation2 + $0x6ed0] sm:$0xff]
    %v3617 = vld [vmem:[#allocation2 + $0x6ed8] sm:$0xff]
    %v3618 = vld [vmem:[#allocation2 + $0x6ee0] sm:$0xff]
    %v3619 = vld [vmem:[#allocation2 + $0x6ee8] sm:$0xff]
    %v3620 = vld [vmem:[#allocation2 + $0x6ef0] sm:$0xff]
    %v3621 = vld [vmem:[#allocation2 + $0x6ef8] sm:$0xff]
    %v3622 = vld [vmem:[#allocation2 + $0x6f00] sm:$0xff]
    %v3623 = vld [vmem:[#allocation2 + $0x6f08] sm:$0xff]
    %v3624 = vld [vmem:[#allocation2 + $0x6f10] sm:$0xff]
    %v3625 = vld [vmem:[#allocation2 + $0x6f18] sm:$0xff]
    %v3626 = vld [vmem:[#allocation2 + $0x6f20] sm:$0xff]
    %v3627 = vld [vmem:[#allocation2 + $0x6f28] sm:$0xff]
    %v3628 = vld [vmem:[#allocation2 + $0x6f30] sm:$0xff]
    %v3629 = vld [vmem:[#allocation2 + $0x6f38] sm:$0xff]
    %v3630 = vld [vmem:[#allocation2 + $0x6f40] sm:$0xff]
    %v3631 = vld [vmem:[#allocation2 + $0x6f48] sm:$0xff]
    %v3632 = vld [vmem:[#allocation2 + $0x6f50] sm:$0xff]
    %v3633 = vld [vmem:[#allocation2 + $0x6f58] sm:$0xff]
    %v3634 = vld [vmem:[#allocation2 + $0x6f60] sm:$0xff]
    %v3635 = vld [vmem:[#allocation2 + $0x6f68] sm:$0xff]
    %v3636 = vld [vmem:[#allocation2 + $0x6f70] sm:$0xff]
    %v3637 = vld [vmem:[#allocation2 + $0x6f78] sm:$0xff]
    %v3638 = vld [vmem:[#allocation2 + $0x6f80] sm:$0xff]
    %v3639 = vld [vmem:[#allocation2 + $0x6f88] sm:$0xff]
    %v3640 = vld [vmem:[#allocation2 + $0x6f90] sm:$0xff]
    %v3641 = vld [vmem:[#allocation2 + $0x6f98] sm:$0xff]
    %v3642 = vld [vmem:[#allocation2 + $0x6fa0] sm:$0xff]
    %v3643 = vld [vmem:[#allocation2 + $0x6fa8] sm:$0xff]
    %v3644 = vld [vmem:[#allocation2 + $0x6fb0] sm:$0xff]
    %v3645 = vld [vmem:[#allocation2 + $0x6fb8] sm:$0xff]
    %v3646 = vld [vmem:[#allocation2 + $0x6fc0] sm:$0xff]
    %v3647 = vld [vmem:[#allocation2 + $0x6fc8] sm:$0xff]
    %v3648 = vld [vmem:[#allocation2 + $0x6fd0] sm:$0xff]
    %v3649 = vld [vmem:[#allocation2 + $0x6fd8] sm:$0xff]
    %v3650 = vld [vmem:[#allocation2 + $0x6fe0] sm:$0xff]
    %v3651 = vld [vmem:[#allocation2 + $0x6fe8] sm:$0xff]
    %v3652 = vld [vmem:[#allocation2 + $0x6ff0] sm:$0xff]
    %v3653 = vld [vmem:[#allocation2 + $0x6ff8] sm:$0xff]
    %v3654 = vld [vmem:[#allocation2 + $0x7000] sm:$0xff]
    %v3655 = vld [vmem:[#allocation2 + $0x7008] sm:$0xff]
    %v3656 = vld [vmem:[#allocation2 + $0x7010] sm:$0xff]
    %v3657 = vld [vmem:[#allocation2 + $0x7018] sm:$0xff]
    %v3658 = vld [vmem:[#allocation2 + $0x7020] sm:$0xff]
    %v3659 = vld [vmem:[#allocation2 + $0x7028] sm:$0xff]
    %v3660 = vld [vmem:[#allocation2 + $0x7030] sm:$0xff]
    %v3661 = vld [vmem:[#allocation2 + $0x7038] sm:$0xff]
    %v3662 = vld [vmem:[#allocation2 + $0x7040] sm:$0xff]
    %v3663 = vld [vmem:[#allocation2 + $0x7048] sm:$0xff]
    %v3664 = vld [vmem:[#allocation2 + $0x7050] sm:$0xff]
    %v3665 = vld [vmem:[#allocation2 + $0x7058] sm:$0xff]
    %v3666 = vld [vmem:[#allocation2 + $0x7060] sm:$0xff]
    %v3667 = vld [vmem:[#allocation2 + $0x7068] sm:$0xff]
    %v3668 = vld [vmem:[#allocation2 + $0x7070] sm:$0xff]
    %v3669 = vld [vmem:[#allocation2 + $0x7078] sm:$0xff]
    %v3670 = vld [vmem:[#allocation2 + $0x7080] sm:$0xff]
    %v3671 = vld [vmem:[#allocation2 + $0x7088] sm:$0xff]
    %v3672 = vld [vmem:[#allocation2 + $0x7090] sm:$0xff]
    %v3673 = vld [vmem:[#allocation2 + $0x7098] sm:$0xff]
    %v3674 = vld [vmem:[#allocation2 + $0x70a0] sm:$0xff]
    %v3675 = vld [vmem:[#allocation2 + $0x70a8] sm:$0xff]
    %v3676 = vld [vmem:[#allocation2 + $0x70b0] sm:$0xff]
    %v3677 = vld [vmem:[#allocation2 + $0x70b8] sm:$0xff]
    %v3678 = vld [vmem:[#allocation2 + $0x70c0] sm:$0xff]
    %v3679 = vld [vmem:[#allocation2 + $0x70c8] sm:$0xff]
    %v3680 = vld [vmem:[#allocation2 + $0x70d0] sm:$0xff]
    %v3681 = vld [vmem:[#allocation2 + $0x70d8] sm:$0xff]
    %v3682 = vld [vmem:[#allocation2 + $0x70e0] sm:$0xff]
    %v3683 = vld [vmem:[#allocation2 + $0x70e8] sm:$0xff]
    %v3684 = vld [vmem:[#allocation2 + $0x70f0] sm:$0xff]
    %v3685 = vld [vmem:[#allocation2 + $0x70f8] sm:$0xff]
    %v3686 = vld [vmem:[#allocation2 + $0x7100] sm:$0xff]
    %v3687 = vld [vmem:[#allocation2 + $0x7108] sm:$0xff]
    %v3688 = vld [vmem:[#allocation2 + $0x7110] sm:$0xff]
    %v3689 = vld [vmem:[#allocation2 + $0x7118] sm:$0xff]
    %v3690 = vld [vmem:[#allocation2 + $0x7120] sm:$0xff]
    %v3691 = vld [vmem:[#allocation2 + $0x7128] sm:$0xff]
    %v3692 = vld [vmem:[#allocation2 + $0x7130] sm:$0xff]
    %v3693 = vld [vmem:[#allocation2 + $0x7138] sm:$0xff]
    %v3694 = vld [vmem:[#allocation2 + $0x7140] sm:$0xff]
    %v3695 = vld [vmem:[#allocation2 + $0x7148] sm:$0xff]
    %v3696 = vld [vmem:[#allocation2 + $0x7150] sm:$0xff]
    %v3697 = vld [vmem:[#allocation2 + $0x7158] sm:$0xff]
    %v3698 = vld [vmem:[#allocation2 + $0x7160] sm:$0xff]
    %v3699 = vld [vmem:[#allocation2 + $0x7168] sm:$0xff]
    %v3700 = vld [vmem:[#allocation2 + $0x7170] sm:$0xff]
    %v3701 = vld [vmem:[#allocation2 + $0x7178] sm:$0xff]
    %v3702 = vld [vmem:[#allocation2 + $0x7180] sm:$0xff]
    %v3703 = vld [vmem:[#allocation2 + $0x7188] sm:$0xff]
    %v3704 = vld [vmem:[#allocation2 + $0x7190] sm:$0xff]
    %v3705 = vld [vmem:[#allocation2 + $0x7198] sm:$0xff]
    %v3706 = vld [vmem:[#allocation2 + $0x71a0] sm:$0xff]
    %v3707 = vld [vmem:[#allocation2 + $0x71a8] sm:$0xff]
    %v3708 = vld [vmem:[#allocation2 + $0x71b0] sm:$0xff]
    %v3709 = vld [vmem:[#allocation2 + $0x71b8] sm:$0xff]
    %v3710 = vld [vmem:[#allocation2 + $0x71c0] sm:$0xff]
    %v3711 = vld [vmem:[#allocation2 + $0x71c8] sm:$0xff]
    %v3712 = vld [vmem:[#allocation2 + $0x71d0] sm:$0xff]
    %v3713 = vld [vmem:[#allocation2 + $0x71d8] sm:$0xff]
    %v3714 = vld [vmem:[#allocation2 + $0x71e0] sm:$0xff]
    %v3715 = vld [vmem:[#allocation2 + $0x71e8] sm:$0xff]
    %v3716 = vld [vmem:[#allocation2 + $0x71f0] sm:$0xff]
    %v3717 = vld [vmem:[#allocation2 + $0x71f8] sm:$0xff]
    %v3718 = vld [vmem:[#allocation2 + $0x7200] sm:$0xff]
    %v3719 = vld [vmem:[#allocation2 + $0x7208] sm:$0xff]
    %v3720 = vld [vmem:[#allocation2 + $0x7210] sm:$0xff]
    %v3721 = vld [vmem:[#allocation2 + $0x7218] sm:$0xff]
    %v3722 = vld [vmem:[#allocation2 + $0x7220] sm:$0xff]
    %v3723 = vld [vmem:[#allocation2 + $0x7228] sm:$0xff]
    %v3724 = vld [vmem:[#allocation2 + $0x7230] sm:$0xff]
    %v3725 = vld [vmem:[#allocation2 + $0x7238] sm:$0xff]
    %v3726 = vld [vmem:[#allocation2 + $0x7240] sm:$0xff]
    %v3727 = vld [vmem:[#allocation2 + $0x7248] sm:$0xff]
    %v3728 = vld [vmem:[#allocation2 + $0x7250] sm:$0xff]
    %v3729 = vld [vmem:[#allocation2 + $0x7258] sm:$0xff]
    %v3730 = vld [vmem:[#allocation2 + $0x7260] sm:$0xff]
    %v3731 = vld [vmem:[#allocation2 + $0x7268] sm:$0xff]
    %v3732 = vld [vmem:[#allocation2 + $0x7270] sm:$0xff]
    %v3733 = vld [vmem:[#allocation2 + $0x7278] sm:$0xff]
    %v3734 = vld [vmem:[#allocation2 + $0x7280] sm:$0xff]
    %v3735 = vld [vmem:[#allocation2 + $0x7288] sm:$0xff]
    %v3736 = vld [vmem:[#allocation2 + $0x7290] sm:$0xff]
    %v3737 = vld [vmem:[#allocation2 + $0x7298] sm:$0xff]
    %v3738 = vld [vmem:[#allocation2 + $0x72a0] sm:$0xff]
    %v3739 = vld [vmem:[#allocation2 + $0x72a8] sm:$0xff]
    %v3740 = vld [vmem:[#allocation2 + $0x72b0] sm:$0xff]
    %v3741 = vld [vmem:[#allocation2 + $0x72b8] sm:$0xff]
    %v3742 = vld [vmem:[#allocation2 + $0x72c0] sm:$0xff]
    %v3743 = vld [vmem:[#allocation2 + $0x72c8] sm:$0xff]
    %v3744 = vld [vmem:[#allocation2 + $0x72d0] sm:$0xff]
    %v3745 = vld [vmem:[#allocation2 + $0x72d8] sm:$0xff]
    %v3746 = vld [vmem:[#allocation2 + $0x72e0] sm:$0xff]
    %v3747 = vld [vmem:[#allocation2 + $0x72e8] sm:$0xff]
    %v3748 = vld [vmem:[#allocation2 + $0x72f0] sm:$0xff]
    %v3749 = vld [vmem:[#allocation2 + $0x72f8] sm:$0xff]
    %v3750 = vld [vmem:[#allocation2 + $0x7300] sm:$0xff]
    %v3751 = vld [vmem:[#allocation2 + $0x7308] sm:$0xff]
    %v3752 = vld [vmem:[#allocation2 + $0x7310] sm:$0xff]
    %v3753 = vld [vmem:[#allocation2 + $0x7318] sm:$0xff]
    %v3754 = vld [vmem:[#allocation2 + $0x7320] sm:$0xff]
    %v3755 = vld [vmem:[#allocation2 + $0x7328] sm:$0xff]
    %v3756 = vld [vmem:[#allocation2 + $0x7330] sm:$0xff]
    %v3757 = vld [vmem:[#allocation2 + $0x7338] sm:$0xff]
    %v3758 = vld [vmem:[#allocation2 + $0x7340] sm:$0xff]
    %v3759 = vld [vmem:[#allocation2 + $0x7348] sm:$0xff]
    %v3760 = vld [vmem:[#allocation2 + $0x7350] sm:$0xff]
    %v3761 = vld [vmem:[#allocation2 + $0x7358] sm:$0xff]
    %v3762 = vld [vmem:[#allocation2 + $0x7360] sm:$0xff]
    %v3763 = vld [vmem:[#allocation2 + $0x7368] sm:$0xff]
    %v3764 = vld [vmem:[#allocation2 + $0x7370] sm:$0xff]
    %v3765 = vld [vmem:[#allocation2 + $0x7378] sm:$0xff]
    %v3766 = vld [vmem:[#allocation2 + $0x7380] sm:$0xff]
    %v3767 = vld [vmem:[#allocation2 + $0x7388] sm:$0xff]
    %v3768 = vld [vmem:[#allocation2 + $0x7390] sm:$0xff]
    %v3769 = vld [vmem:[#allocation2 + $0x7398] sm:$0xff]
    %v3770 = vld [vmem:[#allocation2 + $0x73a0] sm:$0xff]
    %v3771 = vld [vmem:[#allocation2 + $0x73a8] sm:$0xff]
    %v3772 = vld [vmem:[#allocation2 + $0x73b0] sm:$0xff]
    %v3773 = vld [vmem:[#allocation2 + $0x73b8] sm:$0xff]
    %v3774 = vld [vmem:[#allocation2 + $0x73c0] sm:$0xff]
    %v3775 = vld [vmem:[#allocation2 + $0x73c8] sm:$0xff]
    %v3776 = vld [vmem:[#allocation2 + $0x73d0] sm:$0xff]
    %v3777 = vld [vmem:[#allocation2 + $0x73d8] sm:$0xff]
    %v3778 = vld [vmem:[#allocation2 + $0x73e0] sm:$0xff]
    %v3779 = vld [vmem:[#allocation2 + $0x73e8] sm:$0xff]
    %v3780 = vld [vmem:[#allocation2 + $0x73f0] sm:$0xff]
    %v3781 = vld [vmem:[#allocation2 + $0x73f8] sm:$0xff]
    %v3782 = vld [vmem:[#allocation2 + $0x7400] sm:$0xff]
    %v3783 = vld [vmem:[#allocation2 + $0x7408] sm:$0xff]
    %v3784 = vld [vmem:[#allocation2 + $0x7410] sm:$0xff]
    %v3785 = vld [vmem:[#allocation2 + $0x7418] sm:$0xff]
    %v3786 = vld [vmem:[#allocation2 + $0x7420] sm:$0xff]
    %v3787 = vld [vmem:[#allocation2 + $0x7428] sm:$0xff]
    %v3788 = vld [vmem:[#allocation2 + $0x7430] sm:$0xff]
    %v3789 = vld [vmem:[#allocation2 + $0x7438] sm:$0xff]
    %v3790 = vld [vmem:[#allocation2 + $0x7440] sm:$0xff]
    %v3791 = vld [vmem:[#allocation2 + $0x7448] sm:$0xff]
    %v3792 = vld [vmem:[#allocation2 + $0x7450] sm:$0xff]
    %v3793 = vld [vmem:[#allocation2 + $0x7458] sm:$0xff]
    %v3794 = vld [vmem:[#allocation2 + $0x7460] sm:$0xff]
    %v3795 = vld [vmem:[#allocation2 + $0x7468] sm:$0xff]
    %v3796 = vld [vmem:[#allocation2 + $0x7470] sm:$0xff]
    %v3797 = vld [vmem:[#allocation2 + $0x7478] sm:$0xff]
    %v3798 = vld [vmem:[#allocation2 + $0x7480] sm:$0xff]
    %v3799 = vld [vmem:[#allocation2 + $0x7488] sm:$0xff]
    %v3800 = vld [vmem:[#allocation2 + $0x7490] sm:$0xff]
    %v3801 = vld [vmem:[#allocation2 + $0x7498] sm:$0xff]
    %v3802 = vld [vmem:[#allocation2 + $0x74a0] sm:$0xff]
    %v3803 = vld [vmem:[#allocation2 + $0x74a8] sm:$0xff]
    %v3804 = vld [vmem:[#allocation2 + $0x74b0] sm:$0xff]
    %v3805 = vld [vmem:[#allocation2 + $0x74b8] sm:$0xff]
    %v3806 = vld [vmem:[#allocation2 + $0x74c0] sm:$0xff]
    %v3807 = vld [vmem:[#allocation2 + $0x74c8] sm:$0xff]
    %v3808 = vld [vmem:[#allocation2 + $0x74d0] sm:$0xff]
    %v3809 = vld [vmem:[#allocation2 + $0x74d8] sm:$0xff]
    %v3810 = vld [vmem:[#allocation2 + $0x74e0] sm:$0xff]
    %v3811 = vld [vmem:[#allocation2 + $0x74e8] sm:$0xff]
    %v3812 = vld [vmem:[#allocation2 + $0x74f0] sm:$0xff]
    %v3813 = vld [vmem:[#allocation2 + $0x74f8] sm:$0xff]
    %v3814 = vld [vmem:[#allocation2 + $0x7500] sm:$0xff]
    %v3815 = vld [vmem:[#allocation2 + $0x7508] sm:$0xff]
    %v3816 = vld [vmem:[#allocation2 + $0x7510] sm:$0xff]
    %v3817 = vld [vmem:[#allocation2 + $0x7518] sm:$0xff]
    %v3818 = vld [vmem:[#allocation2 + $0x7520] sm:$0xff]
    %v3819 = vld [vmem:[#allocation2 + $0x7528] sm:$0xff]
    %v3820 = vld [vmem:[#allocation2 + $0x7530] sm:$0xff]
    %v3821 = vld [vmem:[#allocation2 + $0x7538] sm:$0xff]
    %v3822 = vld [vmem:[#allocation2 + $0x7540] sm:$0xff]
    %v3823 = vld [vmem:[#allocation2 + $0x7548] sm:$0xff]
    %v3824 = vld [vmem:[#allocation2 + $0x7550] sm:$0xff]
    %v3825 = vld [vmem:[#allocation2 + $0x7558] sm:$0xff]
    %v3826 = vld [vmem:[#allocation2 + $0x7560] sm:$0xff]
    %v3827 = vld [vmem:[#allocation2 + $0x7568] sm:$0xff]
    %v3828 = vld [vmem:[#allocation2 + $0x7570] sm:$0xff]
    %v3829 = vld [vmem:[#allocation2 + $0x7578] sm:$0xff]
    %v3830 = vld [vmem:[#allocation2 + $0x7580] sm:$0xff]
    %v3831 = vld [vmem:[#allocation2 + $0x7588] sm:$0xff]
    %v3832 = vld [vmem:[#allocation2 + $0x7590] sm:$0xff]
    %v3833 = vld [vmem:[#allocation2 + $0x7598] sm:$0xff]
    %v3834 = vld [vmem:[#allocation2 + $0x75a0] sm:$0xff]
    %v3835 = vld [vmem:[#allocation2 + $0x75a8] sm:$0xff]
    %v3836 = vld [vmem:[#allocation2 + $0x75b0] sm:$0xff]
    %v3837 = vld [vmem:[#allocation2 + $0x75b8] sm:$0xff]
    %v3838 = vld [vmem:[#allocation2 + $0x75c0] sm:$0xff]
    %v3839 = vld [vmem:[#allocation2 + $0x75c8] sm:$0xff]
    %v3840 = vld [vmem:[#allocation2 + $0x75d0] sm:$0xff]
    %v3841 = vld [vmem:[#allocation2 + $0x75d8] sm:$0xff]
    %v3842 = vld [vmem:[#allocation2 + $0x75e0] sm:$0xff]
    %v3843 = vld [vmem:[#allocation2 + $0x75e8] sm:$0xff]
    %v3844 = vld [vmem:[#allocation2 + $0x75f0] sm:$0xff]
    %v3845 = vld [vmem:[#allocation2 + $0x75f8] sm:$0xff]
    %v3846 = vld [vmem:[#allocation2 + $0x7600] sm:$0xff]
    %v3847 = vld [vmem:[#allocation2 + $0x7608] sm:$0xff]
    %v3848 = vld [vmem:[#allocation2 + $0x7610] sm:$0xff]
    %v3849 = vld [vmem:[#allocation2 + $0x7618] sm:$0xff]
    %v3850 = vld [vmem:[#allocation2 + $0x7620] sm:$0xff]
    %v3851 = vld [vmem:[#allocation2 + $0x7628] sm:$0xff]
    %v3852 = vld [vmem:[#allocation2 + $0x7630] sm:$0xff]
    %v3853 = vld [vmem:[#allocation2 + $0x7638] sm:$0xff]
    %v3854 = vld [vmem:[#allocation2 + $0x7640] sm:$0xff]
    %v3855 = vld [vmem:[#allocation2 + $0x7648] sm:$0xff]
    %v3856 = vld [vmem:[#allocation2 + $0x7650] sm:$0xff]
    %v3857 = vld [vmem:[#allocation2 + $0x7658] sm:$0xff]
    %v3858 = vld [vmem:[#allocation2 + $0x7660] sm:$0xff]
    %v3859 = vld [vmem:[#allocation2 + $0x7668] sm:$0xff]
    %v3860 = vld [vmem:[#allocation2 + $0x7670] sm:$0xff]
    %v3861 = vld [vmem:[#allocation2 + $0x7678] sm:$0xff]
    %v3862 = vld [vmem:[#allocation2 + $0x7680] sm:$0xff]
    %v3863 = vld [vmem:[#allocation2 + $0x7688] sm:$0xff]
    %v3864 = vld [vmem:[#allocation2 + $0x7690] sm:$0xff]
    %v3865 = vld [vmem:[#allocation2 + $0x7698] sm:$0xff]
    %v3866 = vld [vmem:[#allocation2 + $0x76a0] sm:$0xff]
    %v3867 = vld [vmem:[#allocation2 + $0x76a8] sm:$0xff]
    %v3868 = vld [vmem:[#allocation2 + $0x76b0] sm:$0xff]
    %v3869 = vld [vmem:[#allocation2 + $0x76b8] sm:$0xff]
    %v3870 = vld [vmem:[#allocation2 + $0x76c0] sm:$0xff]
    %v3871 = vld [vmem:[#allocation2 + $0x76c8] sm:$0xff]
    %v3872 = vld [vmem:[#allocation2 + $0x76d0] sm:$0xff]
    %v3873 = vld [vmem:[#allocation2 + $0x76d8] sm:$0xff]
    %v3874 = vld [vmem:[#allocation2 + $0x76e0] sm:$0xff]
    %v3875 = vld [vmem:[#allocation2 + $0x76e8] sm:$0xff]
    %v3876 = vld [vmem:[#allocation2 + $0x76f0] sm:$0xff]
    %v3877 = vld [vmem:[#allocation2 + $0x76f8] sm:$0xff]
    %v3878 = vld [vmem:[#allocation2 + $0x7700] sm:$0xff]
    %v3879 = vld [vmem:[#allocation2 + $0x7708] sm:$0xff]
    %v3880 = vld [vmem:[#allocation2 + $0x7710] sm:$0xff]
    %v3881 = vld [vmem:[#allocation2 + $0x7718] sm:$0xff]
    %v3882 = vld [vmem:[#allocation2 + $0x7720] sm:$0xff]
    %v3883 = vld [vmem:[#allocation2 + $0x7728] sm:$0xff]
    %v3884 = vld [vmem:[#allocation2 + $0x7730] sm:$0xff]
    %v3885 = vld [vmem:[#allocation2 + $0x7738] sm:$0xff]
    %v3886 = vld [vmem:[#allocation2 + $0x7740] sm:$0xff]
    %v3887 = vld [vmem:[#allocation2 + $0x7748] sm:$0xff]
    %v3888 = vld [vmem:[#allocation2 + $0x7750] sm:$0xff]
    %v3889 = vld [vmem:[#allocation2 + $0x7758] sm:$0xff]
    %v3890 = vld [vmem:[#allocation2 + $0x7760] sm:$0xff]
    %v3891 = vld [vmem:[#allocation2 + $0x7768] sm:$0xff]
    %v3892 = vld [vmem:[#allocation2 + $0x7770] sm:$0xff]
    %v3893 = vld [vmem:[#allocation2 + $0x7778] sm:$0xff]
    %v3894 = vld [vmem:[#allocation2 + $0x7780] sm:$0xff]
    %v3895 = vld [vmem:[#allocation2 + $0x7788] sm:$0xff]
    %v3896 = vld [vmem:[#allocation2 + $0x7790] sm:$0xff]
    %v3897 = vld [vmem:[#allocation2 + $0x7798] sm:$0xff]
    %v3898 = vld [vmem:[#allocation2 + $0x77a0] sm:$0xff]
    %v3899 = vld [vmem:[#allocation2 + $0x77a8] sm:$0xff]
    %v3900 = vld [vmem:[#allocation2 + $0x77b0] sm:$0xff]
    %v3901 = vld [vmem:[#allocation2 + $0x77b8] sm:$0xff]
    %v3902 = vld [vmem:[#allocation2 + $0x77c0] sm:$0xff]
    %v3903 = vld [vmem:[#allocation2 + $0x77c8] sm:$0xff]
    %v3904 = vld [vmem:[#allocation2 + $0x77d0] sm:$0xff]
    %v3905 = vld [vmem:[#allocation2 + $0x77d8] sm:$0xff]
    %v3906 = vld [vmem:[#allocation2 + $0x77e0] sm:$0xff]
    %v3907 = vld [vmem:[#allocation2 + $0x77e8] sm:$0xff]
    %v3908 = vld [vmem:[#allocation2 + $0x77f0] sm:$0xff]
    %v3909 = vld [vmem:[#allocation2 + $0x77f8] sm:$0xff]
    %v3910 = vld [vmem:[#allocation4] sm:$0x3]
    %v3912 = vlaneseq
    %v3913 = vshrl.u32 %v3912, 7
    %v3914 = vsub.s32 0, %v3913
    %v3915 = vrot.slane %v3910, %v3914
    %v3916 = vlaneseq
    %v3917 = vshrl.u32 %v3916, 7
    %v3918 = vsub.s32 1, %v3917
    %v3919 = vrot.slane %v3910, %v3918
    %v3952 = vcombine.high %v40, %v40
    %v3954 = vunpack.c.l.s4 1983009808
    %v3955 = vunpack.c.0.s8 %v3954
    %v3956 = vlaneseq
    %v3957 = vshrl.u32 %v3956, 7
    %v3958 = vsub.s32 %v3955, %v3957
    %v3959 = vrot.slane %v40, %v3958
    %v3961 = vunpack.c.l.s4 1983009808
    %v3962 = vunpack.c.0.s8 %v3961
    %v3963 = vlaneseq
    %v3964 = vshrl.u32 %v3963, 7
    %v3965 = vsub.s32 %v3962, %v3964
    %v3966 = vrot.slane %v3952, %v3965
    %v3967 = vcombine.high %v3959, %v3959
    %v3968 = vcombine.high %v3966, %v3966
    %v3969 = vcombine.high %v41, %v41
    %v3971 = vunpack.c.l.s4 1983009808
    %v3972 = vunpack.c.0.s8 %v3971
    %v3973 = vlaneseq
    %v3974 = vshrl.u32 %v3973, 7
    %v3975 = vsub.s32 %v3972, %v3974
    %v3976 = vrot.slane %v41, %v3975
    %v3978 = vunpack.c.l.s4 1983009808
    %v3979 = vunpack.c.0.s8 %v3978
    %v3980 = vlaneseq
    %v3981 = vshrl.u32 %v3980, 7
    %v3982 = vsub.s32 %v3979, %v3981
    %v3983 = vrot.slane %v3969, %v3982
    %v3984 = vcombine.high %v3976, %v3976
    %v3985 = vcombine.high %v3983, %v3983
    %v3986 = vcombine.high %v42, %v42
    %v3988 = vunpack.c.l.s4 1983009808
    %v3989 = vunpack.c.0.s8 %v3988
    %v3990 = vlaneseq
    %v3991 = vshrl.u32 %v3990, 7
    %v3992 = vsub.s32 %v3989, %v3991
    %v3993 = vrot.slane %v42, %v3992
    %v3995 = vunpack.c.l.s4 1983009808
    %v3996 = vunpack.c.0.s8 %v3995
    %v3997 = vlaneseq
    %v3998 = vshrl.u32 %v3997, 7
    %v3999 = vsub.s32 %v3996, %v3998
    %v4000 = vrot.slane %v3986, %v3999
    %v4001 = vcombine.high %v3993, %v3993
    %v4002 = vcombine.high %v4000, %v4000
    %v4003 = vcombine.high %v43, %v43
    %v4005 = vunpack.c.l.s4 1983009808
    %v4006 = vunpack.c.0.s8 %v4005
    %v4007 = vlaneseq
    %v4008 = vshrl.u32 %v4007, 7
    %v4009 = vsub.s32 %v4006, %v4008
    %v4010 = vrot.slane %v43, %v4009
    %v4012 = vunpack.c.l.s4 1983009808
    %v4013 = vunpack.c.0.s8 %v4012
    %v4014 = vlaneseq
    %v4015 = vshrl.u32 %v4014, 7
    %v4016 = vsub.s32 %v4013, %v4015
    %v4017 = vrot.slane %v4003, %v4016
    %v4018 = vcombine.high %v4010, %v4010
    %v4019 = vcombine.high %v4017, %v4017
    %v4020 = vcombine.high %v44, %v44
    %v4022 = vunpack.c.l.s4 1983009808
    %v4023 = vunpack.c.0.s8 %v4022
    %v4024 = vlaneseq
    %v4025 = vshrl.u32 %v4024, 7
    %v4026 = vsub.s32 %v4023, %v4025
    %v4027 = vrot.slane %v44, %v4026
    %v4029 = vunpack.c.l.s4 1983009808
    %v4030 = vunpack.c.0.s8 %v4029
    %v4031 = vlaneseq
    %v4032 = vshrl.u32 %v4031, 7
    %v4033 = vsub.s32 %v4030, %v4032
    %v4034 = vrot.slane %v4020, %v4033
    %v4035 = vcombine.high %v4027, %v4027
    %v4036 = vcombine.high %v4034, %v4034
    %v4037 = vcombine.high %v45, %v45
    %v4039 = vunpack.c.l.s4 1983009808
    %v4040 = vunpack.c.0.s8 %v4039
    %v4041 = vlaneseq
    %v4042 = vshrl.u32 %v4041, 7
    %v4043 = vsub.s32 %v4040, %v4042
    %v4044 = vrot.slane %v45, %v4043
    %v4046 = vunpack.c.l.s4 1983009808
    %v4047 = vunpack.c.0.s8 %v4046
    %v4048 = vlaneseq
    %v4049 = vshrl.u32 %v4048, 7
    %v4050 = vsub.s32 %v4047, %v4049
    %v4051 = vrot.slane %v4037, %v4050
    %v4052 = vcombine.high %v4044, %v4044
    %v4053 = vcombine.high %v4051, %v4051
    %v4054 = vcombine.high %v46, %v46
    %v4056 = vunpack.c.l.s4 1983009808
    %v4057 = vunpack.c.0.s8 %v4056
    %v4058 = vlaneseq
    %v4059 = vshrl.u32 %v4058, 7
    %v4060 = vsub.s32 %v4057, %v4059
    %v4061 = vrot.slane %v46, %v4060
    %v4063 = vunpack.c.l.s4 1983009808
    %v4064 = vunpack.c.0.s8 %v4063
    %v4065 = vlaneseq
    %v4066 = vshrl.u32 %v4065, 7
    %v4067 = vsub.s32 %v4064, %v4066
    %v4068 = vrot.slane %v4054, %v4067
    %v4069 = vcombine.high %v4061, %v4061
    %v4070 = vcombine.high %v4068, %v4068
    %v4071 = vcombine.high %v47, %v47
    %v4073 = vunpack.c.l.s4 1983009808
    %v4074 = vunpack.c.0.s8 %v4073
    %v4075 = vlaneseq
    %v4076 = vshrl.u32 %v4075, 7
    %v4077 = vsub.s32 %v4074, %v4076
    %v4078 = vrot.slane %v47, %v4077
    %v4080 = vunpack.c.l.s4 1983009808
    %v4081 = vunpack.c.0.s8 %v4080
    %v4082 = vlaneseq
    %v4083 = vshrl.u32 %v4082, 7
    %v4084 = vsub.s32 %v4081, %v4083
    %v4085 = vrot.slane %v4071, %v4084
    %v4086 = vcombine.high %v4078, %v4078
    %v4087 = vcombine.high %v4085, %v4085
    %v4088 = vcombine.high %v48, %v48
    %v4090 = vunpack.c.l.s4 1983009808
    %v4091 = vunpack.c.0.s8 %v4090
    %v4092 = vlaneseq
    %v4093 = vshrl.u32 %v4092, 7
    %v4094 = vsub.s32 %v4091, %v4093
    %v4095 = vrot.slane %v48, %v4094
    %v4097 = vunpack.c.l.s4 1983009808
    %v4098 = vunpack.c.0.s8 %v4097
    %v4099 = vlaneseq
    %v4100 = vshrl.u32 %v4099, 7
    %v4101 = vsub.s32 %v4098, %v4100
    %v4102 = vrot.slane %v4088, %v4101
    %v4103 = vcombine.high %v4095, %v4095
    %v4104 = vcombine.high %v4102, %v4102
    %v4105 = vcombine.high %v49, %v49
    %v4107 = vunpack.c.l.s4 1983009808
    %v4108 = vunpack.c.0.s8 %v4107
    %v4109 = vlaneseq
    %v4110 = vshrl.u32 %v4109, 7
    %v4111 = vsub.s32 %v4108, %v4110
    %v4112 = vrot.slane %v49, %v4111
    %v4114 = vunpack.c.l.s4 1983009808
    %v4115 = vunpack.c.0.s8 %v4114
    %v4116 = vlaneseq
    %v4117 = vshrl.u32 %v4116, 7
    %v4118 = vsub.s32 %v4115, %v4117
    %v4119 = vrot.slane %v4105, %v4118
    %v4120 = vcombine.high %v4112, %v4112
    %v4121 = vcombine.high %v4119, %v4119
    %v4122 = vcombine.high %v50, %v50
    %v4124 = vunpack.c.l.s4 1983009808
    %v4125 = vunpack.c.0.s8 %v4124
    %v4126 = vlaneseq
    %v4127 = vshrl.u32 %v4126, 7
    %v4128 = vsub.s32 %v4125, %v4127
    %v4129 = vrot.slane %v50, %v4128
    %v4131 = vunpack.c.l.s4 1983009808
    %v4132 = vunpack.c.0.s8 %v4131
    %v4133 = vlaneseq
    %v4134 = vshrl.u32 %v4133, 7
    %v4135 = vsub.s32 %v4132, %v4134
    %v4136 = vrot.slane %v4122, %v4135
    %v4137 = vcombine.high %v4129, %v4129
    %v4138 = vcombine.high %v4136, %v4136
    %v4139 = vcombine.high %v51, %v51
    %v4141 = vunpack.c.l.s4 1983009808
    %v4142 = vunpack.c.0.s8 %v4141
    %v4143 = vlaneseq
    %v4144 = vshrl.u32 %v4143, 7
    %v4145 = vsub.s32 %v4142, %v4144
    %v4146 = vrot.slane %v51, %v4145
    %v4148 = vunpack.c.l.s4 1983009808
    %v4149 = vunpack.c.0.s8 %v4148
    %v4150 = vlaneseq
    %v4151 = vshrl.u32 %v4150, 7
    %v4152 = vsub.s32 %v4149, %v4151
    %v4153 = vrot.slane %v4139, %v4152
    %v4154 = vcombine.high %v4146, %v4146
    %v4155 = vcombine.high %v4153, %v4153
    %v4156 = vcombine.high %v52, %v52
    %v4158 = vunpack.c.l.s4 1983009808
    %v4159 = vunpack.c.0.s8 %v4158
    %v4160 = vlaneseq
    %v4161 = vshrl.u32 %v4160, 7
    %v4162 = vsub.s32 %v4159, %v4161
    %v4163 = vrot.slane %v52, %v4162
    %v4165 = vunpack.c.l.s4 1983009808
    %v4166 = vunpack.c.0.s8 %v4165
    %v4167 = vlaneseq
    %v4168 = vshrl.u32 %v4167, 7
    %v4169 = vsub.s32 %v4166, %v4168
    %v4170 = vrot.slane %v4156, %v4169
    %v4171 = vcombine.high %v4163, %v4163
    %v4172 = vcombine.high %v4170, %v4170
    %v4173 = vcombine.high %v53, %v53
    %v4175 = vunpack.c.l.s4 1983009808
    %v4176 = vunpack.c.0.s8 %v4175
    %v4177 = vlaneseq
    %v4178 = vshrl.u32 %v4177, 7
    %v4179 = vsub.s32 %v4176, %v4178
    %v4180 = vrot.slane %v53, %v4179
    %v4182 = vunpack.c.l.s4 1983009808
    %v4183 = vunpack.c.0.s8 %v4182
    %v4184 = vlaneseq
    %v4185 = vshrl.u32 %v4184, 7
    %v4186 = vsub.s32 %v4183, %v4185
    %v4187 = vrot.slane %v4173, %v4186
    %v4188 = vcombine.high %v4180, %v4180
    %v4189 = vcombine.high %v4187, %v4187
    %v4190 = vcombine.high %v54, %v54
    %v4192 = vunpack.c.l.s4 1983009808
    %v4193 = vunpack.c.0.s8 %v4192
    %v4194 = vlaneseq
    %v4195 = vshrl.u32 %v4194, 7
    %v4196 = vsub.s32 %v4193, %v4195
    %v4197 = vrot.slane %v54, %v4196
    %v4199 = vunpack.c.l.s4 1983009808
    %v4200 = vunpack.c.0.s8 %v4199
    %v4201 = vlaneseq
    %v4202 = vshrl.u32 %v4201, 7
    %v4203 = vsub.s32 %v4200, %v4202
    %v4204 = vrot.slane %v4190, %v4203
    %v4205 = vcombine.high %v4197, %v4197
    %v4206 = vcombine.high %v4204, %v4204
    %v4207 = vcombine.high %v55, %v55
    %v4209 = vunpack.c.l.s4 1983009808
    %v4210 = vunpack.c.0.s8 %v4209
    %v4211 = vlaneseq
    %v4212 = vshrl.u32 %v4211, 7
    %v4213 = vsub.s32 %v4210, %v4212
    %v4214 = vrot.slane %v55, %v4213
    %v4216 = vunpack.c.l.s4 1983009808
    %v4217 = vunpack.c.0.s8 %v4216
    %v4218 = vlaneseq
    %v4219 = vshrl.u32 %v4218, 7
    %v4220 = vsub.s32 %v4217, %v4219
    %v4221 = vrot.slane %v4207, %v4220
    %v4222 = vcombine.high %v4214, %v4214
    %v4223 = vcombine.high %v4221, %v4221
    %v4224 = vcombine.high %v56, %v56
    %v4226 = vunpack.c.l.s4 1983009808
    %v4227 = vunpack.c.0.s8 %v4226
    %v4228 = vlaneseq
    %v4229 = vshrl.u32 %v4228, 7
    %v4230 = vsub.s32 %v4227, %v4229
    %v4231 = vrot.slane %v56, %v4230
    %v4233 = vunpack.c.l.s4 1983009808
    %v4234 = vunpack.c.0.s8 %v4233
    %v4235 = vlaneseq
    %v4236 = vshrl.u32 %v4235, 7
    %v4237 = vsub.s32 %v4234, %v4236
    %v4238 = vrot.slane %v4224, %v4237
    %v4239 = vcombine.high %v4231, %v4231
    %v4240 = vcombine.high %v4238, %v4238
    %v4241 = vcombine.high %v57, %v57
    %v4243 = vunpack.c.l.s4 1983009808
    %v4244 = vunpack.c.0.s8 %v4243
    %v4245 = vlaneseq
    %v4246 = vshrl.u32 %v4245, 7
    %v4247 = vsub.s32 %v4244, %v4246
    %v4248 = vrot.slane %v57, %v4247
    %v4250 = vunpack.c.l.s4 1983009808
    %v4251 = vunpack.c.0.s8 %v4250
    %v4252 = vlaneseq
    %v4253 = vshrl.u32 %v4252, 7
    %v4254 = vsub.s32 %v4251, %v4253
    %v4255 = vrot.slane %v4241, %v4254
    %v4256 = vcombine.high %v4248, %v4248
    %v4257 = vcombine.high %v4255, %v4255
    %v4258 = vcombine.high %v58, %v58
    %v4260 = vunpack.c.l.s4 1983009808
    %v4261 = vunpack.c.0.s8 %v4260
    %v4262 = vlaneseq
    %v4263 = vshrl.u32 %v4262, 7
    %v4264 = vsub.s32 %v4261, %v4263
    %v4265 = vrot.slane %v58, %v4264
    %v4267 = vunpack.c.l.s4 1983009808
    %v4268 = vunpack.c.0.s8 %v4267
    %v4269 = vlaneseq
    %v4270 = vshrl.u32 %v4269, 7
    %v4271 = vsub.s32 %v4268, %v4270
    %v4272 = vrot.slane %v4258, %v4271
    %v4273 = vcombine.high %v4265, %v4265
    %v4274 = vcombine.high %v4272, %v4272
    %v4275 = vcombine.high %v59, %v59
    %v4277 = vunpack.c.l.s4 1983009808
    %v4278 = vunpack.c.0.s8 %v4277
    %v4279 = vlaneseq
    %v4280 = vshrl.u32 %v4279, 7
    %v4281 = vsub.s32 %v4278, %v4280
    %v4282 = vrot.slane %v59, %v4281
    %v4284 = vunpack.c.l.s4 1983009808
    %v4285 = vunpack.c.0.s8 %v4284
    %v4286 = vlaneseq
    %v4287 = vshrl.u32 %v4286, 7
    %v4288 = vsub.s32 %v4285, %v4287
    %v4289 = vrot.slane %v4275, %v4288
    %v4290 = vcombine.high %v4282, %v4282
    %v4291 = vcombine.high %v4289, %v4289
    %v4292 = vcombine.high %v60, %v60
    %v4294 = vunpack.c.l.s4 1983009808
    %v4295 = vunpack.c.0.s8 %v4294
    %v4296 = vlaneseq
    %v4297 = vshrl.u32 %v4296, 7
    %v4298 = vsub.s32 %v4295, %v4297
    %v4299 = vrot.slane %v60, %v4298
    %v4301 = vunpack.c.l.s4 1983009808
    %v4302 = vunpack.c.0.s8 %v4301
    %v4303 = vlaneseq
    %v4304 = vshrl.u32 %v4303, 7
    %v4305 = vsub.s32 %v4302, %v4304
    %v4306 = vrot.slane %v4292, %v4305
    %v4307 = vcombine.high %v4299, %v4299
    %v4308 = vcombine.high %v4306, %v4306
    %v4309 = vcombine.high %v61, %v61
    %v4311 = vunpack.c.l.s4 1983009808
    %v4312 = vunpack.c.0.s8 %v4311
    %v4313 = vlaneseq
    %v4314 = vshrl.u32 %v4313, 7
    %v4315 = vsub.s32 %v4312, %v4314
    %v4316 = vrot.slane %v61, %v4315
    %v4318 = vunpack.c.l.s4 1983009808
    %v4319 = vunpack.c.0.s8 %v4318
    %v4320 = vlaneseq
    %v4321 = vshrl.u32 %v4320, 7
    %v4322 = vsub.s32 %v4319, %v4321
    %v4323 = vrot.slane %v4309, %v4322
    %v4324 = vcombine.high %v4316, %v4316
    %v4325 = vcombine.high %v4323, %v4323
    %v4326 = vcombine.high %v62, %v62
    %v4328 = vunpack.c.l.s4 1983009808
    %v4329 = vunpack.c.0.s8 %v4328
    %v4330 = vlaneseq
    %v4331 = vshrl.u32 %v4330, 7
    %v4332 = vsub.s32 %v4329, %v4331
    %v4333 = vrot.slane %v62, %v4332
    %v4335 = vunpack.c.l.s4 1983009808
    %v4336 = vunpack.c.0.s8 %v4335
    %v4337 = vlaneseq
    %v4338 = vshrl.u32 %v4337, 7
    %v4339 = vsub.s32 %v4336, %v4338
    %v4340 = vrot.slane %v4326, %v4339
    %v4341 = vcombine.high %v4333, %v4333
    %v4342 = vcombine.high %v4340, %v4340
    %v4343 = vcombine.high %v63, %v63
    %v4345 = vunpack.c.l.s4 1983009808
    %v4346 = vunpack.c.0.s8 %v4345
    %v4347 = vlaneseq
    %v4348 = vshrl.u32 %v4347, 7
    %v4349 = vsub.s32 %v4346, %v4348
    %v4350 = vrot.slane %v63, %v4349
    %v4352 = vunpack.c.l.s4 1983009808
    %v4353 = vunpack.c.0.s8 %v4352
    %v4354 = vlaneseq
    %v4355 = vshrl.u32 %v4354, 7
    %v4356 = vsub.s32 %v4353, %v4355
    %v4357 = vrot.slane %v4343, %v4356
    %v4358 = vcombine.high %v4350, %v4350
    %v4359 = vcombine.high %v4357, %v4357
    %v4360 = vcombine.high %v64, %v64
    %v4362 = vunpack.c.l.s4 1983009808
    %v4363 = vunpack.c.0.s8 %v4362
    %v4364 = vlaneseq
    %v4365 = vshrl.u32 %v4364, 7
    %v4366 = vsub.s32 %v4363, %v4365
    %v4367 = vrot.slane %v64, %v4366
    %v4369 = vunpack.c.l.s4 1983009808
    %v4370 = vunpack.c.0.s8 %v4369
    %v4371 = vlaneseq
    %v4372 = vshrl.u32 %v4371, 7
    %v4373 = vsub.s32 %v4370, %v4372
    %v4374 = vrot.slane %v4360, %v4373
    %v4375 = vcombine.high %v4367, %v4367
    %v4376 = vcombine.high %v4374, %v4374
    %v4377 = vcombine.high %v65, %v65
    %v4379 = vunpack.c.l.s4 1983009808
    %v4380 = vunpack.c.0.s8 %v4379
    %v4381 = vlaneseq
    %v4382 = vshrl.u32 %v4381, 7
    %v4383 = vsub.s32 %v4380, %v4382
    %v4384 = vrot.slane %v65, %v4383
    %v4386 = vunpack.c.l.s4 1983009808
    %v4387 = vunpack.c.0.s8 %v4386
    %v4388 = vlaneseq
    %v4389 = vshrl.u32 %v4388, 7
    %v4390 = vsub.s32 %v4387, %v4389
    %v4391 = vrot.slane %v4377, %v4390
    %v4392 = vcombine.high %v4384, %v4384
    %v4393 = vcombine.high %v4391, %v4391
    %v4394 = vcombine.high %v66, %v66
    %v4396 = vunpack.c.l.s4 1983009808
    %v4397 = vunpack.c.0.s8 %v4396
    %v4398 = vlaneseq
    %v4399 = vshrl.u32 %v4398, 7
    %v4400 = vsub.s32 %v4397, %v4399
    %v4401 = vrot.slane %v66, %v4400
    %v4403 = vunpack.c.l.s4 1983009808
    %v4404 = vunpack.c.0.s8 %v4403
    %v4405 = vlaneseq
    %v4406 = vshrl.u32 %v4405, 7
    %v4407 = vsub.s32 %v4404, %v4406
    %v4408 = vrot.slane %v4394, %v4407
    %v4409 = vcombine.high %v4401, %v4401
    %v4410 = vcombine.high %v4408, %v4408
    %v4411 = vcombine.high %v67, %v67
    %v4413 = vunpack.c.l.s4 1983009808
    %v4414 = vunpack.c.0.s8 %v4413
    %v4415 = vlaneseq
    %v4416 = vshrl.u32 %v4415, 7
    %v4417 = vsub.s32 %v4414, %v4416
    %v4418 = vrot.slane %v67, %v4417
    %v4420 = vunpack.c.l.s4 1983009808
    %v4421 = vunpack.c.0.s8 %v4420
    %v4422 = vlaneseq
    %v4423 = vshrl.u32 %v4422, 7
    %v4424 = vsub.s32 %v4421, %v4423
    %v4425 = vrot.slane %v4411, %v4424
    %v4426 = vcombine.high %v4418, %v4418
    %v4427 = vcombine.high %v4425, %v4425
    %v4428 = vcombine.high %v68, %v68
    %v4430 = vunpack.c.l.s4 1983009808
    %v4431 = vunpack.c.0.s8 %v4430
    %v4432 = vlaneseq
    %v4433 = vshrl.u32 %v4432, 7
    %v4434 = vsub.s32 %v4431, %v4433
    %v4435 = vrot.slane %v68, %v4434
    %v4437 = vunpack.c.l.s4 1983009808
    %v4438 = vunpack.c.0.s8 %v4437
    %v4439 = vlaneseq
    %v4440 = vshrl.u32 %v4439, 7
    %v4441 = vsub.s32 %v4438, %v4440
    %v4442 = vrot.slane %v4428, %v4441
    %v4443 = vcombine.high %v4435, %v4435
    %v4444 = vcombine.high %v4442, %v4442
    %v4445 = vcombine.high %v69, %v69
    %v4447 = vunpack.c.l.s4 1983009808
    %v4448 = vunpack.c.0.s8 %v4447
    %v4449 = vlaneseq
    %v4450 = vshrl.u32 %v4449, 7
    %v4451 = vsub.s32 %v4448, %v4450
    %v4452 = vrot.slane %v69, %v4451
    %v4454 = vunpack.c.l.s4 1983009808
    %v4455 = vunpack.c.0.s8 %v4454
    %v4456 = vlaneseq
    %v4457 = vshrl.u32 %v4456, 7
    %v4458 = vsub.s32 %v4455, %v4457
    %v4459 = vrot.slane %v4445, %v4458
    %v4460 = vcombine.high %v4452, %v4452
    %v4461 = vcombine.high %v4459, %v4459
    %4582 = vmatprep.subr.mxu0 %v71
    %4583 = vmatpush1.msra.mxu0 %v70
    %4584 = vmatprep.subr.mxu0 %v73
    %4585 = vmatpush1.msra.mxu0 %v72
    %4586 = vmatprep.subr.mxu0 %v75
    %4587 = vmatpush1.msra.mxu0 %v74
    %4588 = vmatprep.subr.mxu0 %v77
    %4589 = vmatpush1.msra.mxu0 %v76
    %4590 = vmatprep.subr.mxu0 %v79
    %4591 = vmatpush1.msra.mxu0 %v78
    %4592 = vmatprep.subr.mxu0 %v81
    %4593 = vmatpush1.msra.mxu0 %v80
    %4594 = vmatprep.subr.mxu0 %v83
    %4595 = vmatpush1.msra.mxu0 %v82
    %4596 = vmatprep.subr.mxu0 %v85
    %4597 = vmatpush1.msra.mxu0 %v84
    %4598 = vmatprep.subr.mxu0 %v87
    %4599 = vmatpush1.msra.mxu0 %v86
    %4600 = vmatprep.subr.mxu0 %v89
    %4601 = vmatpush1.msra.mxu0 %v88
    %4602 = vmatprep.subr.mxu0 %v91
    %4603 = vmatpush1.msra.mxu0 %v90
    %4604 = vmatprep.subr.mxu0 %v93
    %4605 = vmatpush1.msra.mxu0 %v92
    %4606 = vmatprep.subr.mxu0 %v95
    %4607 = vmatpush1.msra.mxu0 %v94
    %4608 = vmatprep.subr.mxu0 %v97
    %4609 = vmatpush1.msra.mxu0 %v96
    %4610 = vmatprep.subr.mxu0 %v99
    %4611 = vmatpush1.msra.mxu0 %v98
    %4612 = vmatprep.subr.mxu0 %v101
    %4613 = vmatpush1.msra.mxu0 %v100
    %4614 = vmatprep.subr.mxu0 %v103
    %4615 = vmatpush1.msra.mxu0 %v102
    %4616 = vmatprep.subr.mxu0 %v105
    %4617 = vmatpush1.msra.mxu0 %v104
    %4618 = vmatprep.subr.mxu0 %v107
    %4619 = vmatpush1.msra.mxu0 %v106
    %4620 = vmatprep.subr.mxu0 %v109
    %4621 = vmatpush1.msra.mxu0 %v108
    %4622 = vmatprep.subr.mxu0 %v111
    %4623 = vmatpush1.msra.mxu0 %v110
    %4624 = vmatprep.subr.mxu0 %v113
    %4625 = vmatpush1.msra.mxu0 %v112
    %4626 = vmatprep.subr.mxu0 %v115
    %4627 = vmatpush1.msra.mxu0 %v114
    %4628 = vmatprep.subr.mxu0 %v117
    %4629 = vmatpush1.msra.mxu0 %v116
    %4630 = vmatprep.subr.mxu0 %v119
    %4631 = vmatpush1.msra.mxu0 %v118
    %4632 = vmatprep.subr.mxu0 %v121
    %4633 = vmatpush1.msra.mxu0 %v120
    %4634 = vmatprep.subr.mxu0 %v123
    %4635 = vmatpush1.msra.mxu0 %v122
    %4636 = vmatprep.subr.mxu0 %v125
    %4637 = vmatpush1.msra.mxu0 %v124
    %4638 = vmatprep.subr.mxu0 %v127
    %4639 = vmatpush1.msra.mxu0 %v126
    %4640 = vmatprep.subr.mxu0 %v129
    %4641 = vmatpush1.msra.mxu0 %v128
    %4642 = vmatprep.subr.mxu0 %v131
    %4643 = vmatpush1.msra.mxu0 %v130
    %4644 = vmatprep.subr.mxu0 %v133
    %4645 = vmatpush1.msra.mxu0 %v132
    %4646 = vmatprep.mubr.f32.mxu0 %v3967
    %4647 = vmatmul.mubr.f32.gmra.mrb[0].mxu0 %v3959
    %v4648 = vpop.f32.mrb[0].mxu0
    %v4649 = vadd.f32 %v3915, %v4648
    %v4650 = vpop.f32.mrb[0].mxu0
    %v4651 = vadd.f32 %v3919, %v4650
    %4652 = vdwg.mxu0
    %4653 = vmatprep.subr.mxu0 %v135
    %4654 = vmatpush1.msra.mxu0 %v134
    %4655 = vmatprep.subr.mxu0 %v137
    %4656 = vmatpush1.msra.mxu0 %v136
    %4657 = vmatprep.subr.mxu0 %v139
    %4658 = vmatpush1.msra.mxu0 %v138
    %4659 = vmatprep.subr.mxu0 %v141
    %4660 = vmatpush1.msra.mxu0 %v140
    %4661 = vmatprep.subr.mxu0 %v143
    %4662 = vmatpush1.msra.mxu0 %v142
    %4663 = vmatprep.subr.mxu0 %v145
    %4664 = vmatpush1.msra.mxu0 %v144
    %4665 = vmatprep.subr.mxu0 %v147
    %4666 = vmatpush1.msra.mxu0 %v146
    %4667 = vmatprep.subr.mxu0 %v149
    %4668 = vmatpush1.msra.mxu0 %v148
    %4669 = vmatprep.subr.mxu0 %v151
    %4670 = vmatpush1.msra.mxu0 %v150
    %4671 = vmatprep.subr.mxu0 %v153
    %4672 = vmatpush1.msra.mxu0 %v152
    %4673 = vmatprep.subr.mxu0 %v155
    %4674 = vmatpush1.msra.mxu0 %v154
    %4675 = vmatprep.subr.mxu0 %v157
    %4676 = vmatpush1.msra.mxu0 %v156
    %4677 = vmatprep.subr.mxu0 %v159
    %4678 = vmatpush1.msra.mxu0 %v158
    %4679 = vmatprep.subr.mxu0 %v161
    %4680 = vmatpush1.msra.mxu0 %v160
    %4681 = vmatprep.subr.mxu0 %v163
    %4682 = vmatpush1.msra.mxu0 %v162
    %4683 = vmatprep.subr.mxu0 %v165
    %4684 = vmatpush1.msra.mxu0 %v164
    %4685 = vmatprep.subr.mxu0 %v167
    %4686 = vmatpush1.msra.mxu0 %v166
    %4687 = vmatprep.subr.mxu0 %v169
    %4688 = vmatpush1.msra.mxu0 %v168
    %4689 = vmatprep.subr.mxu0 %v171
    %4690 = vmatpush1.msra.mxu0 %v170
    %4691 = vmatprep.subr.mxu0 %v173
    %4692 = vmatpush1.msra.mxu0 %v172
    %4693 = vmatprep.subr.mxu0 %v175
    %4694 = vmatpush1.msra.mxu0 %v174
    %4695 = vmatprep.subr.mxu0 %v177
    %4696 = vmatpush1.msra.mxu0 %v176
    %4697 = vmatprep.subr.mxu0 %v179
    %4698 = vmatpush1.msra.mxu0 %v178
    %4699 = vmatprep.subr.mxu0 %v181
    %4700 = vmatpush1.msra.mxu0 %v180
    %4701 = vmatprep.subr.mxu0 %v183
    %4702 = vmatpush1.msra.mxu0 %v182
    %4703 = vmatprep.subr.mxu0 %v185
    %4704 = vmatpush1.msra.mxu0 %v184
    %4705 = vmatprep.subr.mxu0 %v187
    %4706 = vmatpush1.msra.mxu0 %v186
    %4707 = vmatprep.subr.mxu0 %v189
    %4708 = vmatpush1.msra.mxu0 %v188
    %4709 = vmatprep.subr.mxu0 %v191
    %4710 = vmatpush1.msra.mxu0 %v190
    %4711 = vmatprep.subr.mxu0 %v193
    %4712 = vmatpush1.msra.mxu0 %v192
    %4713 = vmatprep.subr.mxu0 %v195
    %4714 = vmatpush1.msra.mxu0 %v194
    %4715 = vmatprep.subr.mxu0 %v197
    %4716 = vmatpush1.msra.mxu0 %v196
    %4717 = vmatprep.mubr.f32.mxu0 %v3968
    %4718 = vmatmul.mubr.f32.gmra.mrb[0].mxu0 %v3966
    %v4719 = vpop.f32.mrb[0].mxu0
    %v4720 = vadd.f32 %v4649, %v4719
    %v4721 = vpop.f32.mrb[0].mxu0
    %v4722 = vadd.f32 %v4651, %v4721
    %4723 = vdwg.mxu0
    %4724 = vmatprep.subr.mxu0 %v199
    %4725 = vmatpush1.msra.mxu0 %v198
    %4726 = vmatprep.subr.mxu0 %v201
    %4727 = vmatpush1.msra.mxu0 %v200
    %4728 = vmatprep.subr.mxu0 %v203
    %4729 = vmatpush1.msra.mxu0 %v202
    %4730 = vmatprep.subr.mxu0 %v205
    %4731 = vmatpush1.msra.mxu0 %v204
    %4732 = vmatprep.subr.mxu0 %v207
    %4733 = vmatpush1.msra.mxu0 %v206
    %4734 = vmatprep.subr.mxu0 %v209
    %4735 = vmatpush1.msra.mxu0 %v208
    %4736 = vmatprep.subr.mxu0 %v211
    %4737 = vmatpush1.msra.mxu0 %v210
    %4738 = vmatprep.subr.mxu0 %v213
    %4739 = vmatpush1.msra.mxu0 %v212
    %4740 = vmatprep.subr.mxu0 %v215
    %4741 = vmatpush1.msra.mxu0 %v214
    %4742 = vmatprep.subr.mxu0 %v217
    %4743 = vmatpush1.msra.mxu0 %v216
    %4744 = vmatprep.subr.mxu0 %v219
    %4745 = vmatpush1.msra.mxu0 %v218
    %4746 = vmatprep.subr.mxu0 %v221
    %4747 = vmatpush1.msra.mxu0 %v220
    %4748 = vmatprep.subr.mxu0 %v223
    %4749 = vmatpush1.msra.mxu0 %v222
    %4750 = vmatprep.subr.mxu0 %v225
    %4751 = vmatpush1.msra.mxu0 %v224
    %4752 = vmatprep.subr.mxu0 %v227
    %4753 = vmatpush1.msra.mxu0 %v226
    %4754 = vmatprep.subr.mxu0 %v229
    %4755 = vmatpush1.msra.mxu0 %v228
    %4756 = vmatprep.subr.mxu0 %v231
    %4757 = vmatpush1.msra.mxu0 %v230
    %4758 = vmatprep.subr.mxu0 %v233
    %4759 = vmatpush1.msra.mxu0 %v232
    %4760 = vmatprep.subr.mxu0 %v235
    %4761 = vmatpush1.msra.mxu0 %v234
    %4762 = vmatprep.subr.mxu0 %v237
    %4763 = vmatpush1.msra.mxu0 %v236
    %4764 = vmatprep.subr.mxu0 %v239
    %4765 = vmatpush1.msra.mxu0 %v238
    %4766 = vmatprep.subr.mxu0 %v241
    %4767 = vmatpush1.msra.mxu0 %v240
    %4768 = vmatprep.subr.mxu0 %v243
    %4769 = vmatpush1.msra.mxu0 %v242
    %4770 = vmatprep.subr.mxu0 %v245
    %4771 = vmatpush1.msra.mxu0 %v244
    %4772 = vmatprep.subr.mxu0 %v247
    %4773 = vmatpush1.msra.mxu0 %v246
    %4774 = vmatprep.subr.mxu0 %v249
    %4775 = vmatpush1.msra.mxu0 %v248
    %4776 = vmatprep.subr.mxu0 %v251
    %4777 = vmatpush1.msra.mxu0 %v250
    %4778 = vmatprep.subr.mxu0 %v253
    %4779 = vmatpush1.msra.mxu0 %v252
    %4780 = vmatprep.subr.mxu0 %v255
    %4781 = vmatpush1.msra.mxu0 %v254
    %4782 = vmatprep.subr.mxu0 %v257
    %4783 = vmatpush1.msra.mxu0 %v256
    %4784 = vmatprep.subr.mxu0 %v259
    %4785 = vmatpush1.msra.mxu0 %v258
    %4786 = vmatprep.subr.mxu0 %v261
    %4787 = vmatpush1.msra.mxu0 %v260
    %4788 = vmatprep.mubr.f32.mxu0 %v3984
    %4789 = vmatmul.mubr.f32.gmra.mrb[0].mxu0 %v3976
    %v4790 = vpop.f32.mrb[0].mxu0
    %v4791 = vadd.f32 %v4720, %v4790
    %v4792 = vpop.f32.mrb[0].mxu0
    %v4793 = vadd.f32 %v4722, %v4792
    %4794 = vdwg.mxu0
    %4795 = vmatprep.subr.mxu0 %v263
    %4796 = vmatpush1.msra.mxu0 %v262
    %4797 = vmatprep.subr.mxu0 %v265
    %4798 = vmatpush1.msra.mxu0 %v264
    %4799 = vmatprep.subr.mxu0 %v267
    %4800 = vmatpush1.msra.mxu0 %v266
    %4801 = vmatprep.subr.mxu0 %v269
    %4802 = vmatpush1.msra.mxu0 %v268
    %4803 = vmatprep.subr.mxu0 %v271
    %4804 = vmatpush1.msra.mxu0 %v270
    %4805 = vmatprep.subr.mxu0 %v273
    %4806 = vmatpush1.msra.mxu0 %v272
    %4807 = vmatprep.subr.mxu0 %v275
    %4808 = vmatpush1.msra.mxu0 %v274
    %4809 = vmatprep.subr.mxu0 %v277
    %4810 = vmatpush1.msra.mxu0 %v276
    %4811 = vmatprep.subr.mxu0 %v279
    %4812 = vmatpush1.msra.mxu0 %v278
    %4813 = vmatprep.subr.mxu0 %v281
    %4814 = vmatpush1.msra.mxu0 %v280
    %4815 = vmatprep.subr.mxu0 %v283
    %4816 = vmatpush1.msra.mxu0 %v282
    %4817 = vmatprep.subr.mxu0 %v285
    %4818 = vmatpush1.msra.mxu0 %v284
    %4819 = vmatprep.subr.mxu0 %v287
    %4820 = vmatpush1.msra.mxu0 %v286
    %4821 = vmatprep.subr.mxu0 %v289
    %4822 = vmatpush1.msra.mxu0 %v288
    %4823 = vmatprep.subr.mxu0 %v291
    %4824 = vmatpush1.msra.mxu0 %v290
    %4825 = vmatprep.subr.mxu0 %v293
    %4826 = vmatpush1.msra.mxu0 %v292
    %4827 = vmatprep.subr.mxu0 %v295
    %4828 = vmatpush1.msra.mxu0 %v294
    %4829 = vmatprep.subr.mxu0 %v297
    %4830 = vmatpush1.msra.mxu0 %v296
    %4831 = vmatprep.subr.mxu0 %v299
    %4832 = vmatpush1.msra.mxu0 %v298
    %4833 = vmatprep.subr.mxu0 %v301
    %4834 = vmatpush1.msra.mxu0 %v300
    %4835 = vmatprep.subr.mxu0 %v303
    %4836 = vmatpush1.msra.mxu0 %v302
    %4837 = vmatprep.subr.mxu0 %v305
    %4838 = vmatpush1.msra.mxu0 %v304
    %4839 = vmatprep.subr.mxu0 %v307
    %4840 = vmatpush1.msra.mxu0 %v306
    %4841 = vmatprep.subr.mxu0 %v309
    %4842 = vmatpush1.msra.mxu0 %v308
    %4843 = vmatprep.subr.mxu0 %v311
    %4844 = vmatpush1.msra.mxu0 %v310
    %4845 = vmatprep.subr.mxu0 %v313
    %4846 = vmatpush1.msra.mxu0 %v312
    %4847 = vmatprep.subr.mxu0 %v315
    %4848 = vmatpush1.msra.mxu0 %v314
    %4849 = vmatprep.subr.mxu0 %v317
    %4850 = vmatpush1.msra.mxu0 %v316
    %4851 = vmatprep.subr.mxu0 %v319
    %4852 = vmatpush1.msra.mxu0 %v318
    %4853 = vmatprep.subr.mxu0 %v321
    %4854 = vmatpush1.msra.mxu0 %v320
    %4855 = vmatprep.subr.mxu0 %v323
    %4856 = vmatpush1.msra.mxu0 %v322
    %4857 = vmatprep.subr.mxu0 %v325
    %4858 = vmatpush1.msra.mxu0 %v324
    %4859 = vmatprep.mubr.f32.mxu0 %v3985
    %4860 = vmatmul.mubr.f32.gmra.mrb[0].mxu0 %v3983
    %v4861 = vpop.f32.mrb[0].mxu0
    %v4862 = vadd.f32 %v4791, %v4861
    %v4863 = vpop.f32.mrb[0].mxu0
    %v4864 = vadd.f32 %v4793, %v4863
    %4865 = vdwg.mxu0
    %4866 = vmatprep.subr.mxu0 %v327
    %4867 = vmatpush1.msra.mxu0 %v326
    %4868 = vmatprep.subr.mxu0 %v329
    %4869 = vmatpush1.msra.mxu0 %v328
    %4870 = vmatprep.subr.mxu0 %v331
    %4871 = vmatpush1.msra.mxu0 %v330
    %4872 = vmatprep.subr.mxu0 %v333
    %4873 = vmatpush1.msra.mxu0 %v332
    %4874 = vmatprep.subr.mxu0 %v335
    %4875 = vmatpush1.msra.mxu0 %v334
    %4876 = vmatprep.subr.mxu0 %v337
    %4877 = vmatpush1.msra.mxu0 %v336
    %4878 = vmatprep.subr.mxu0 %v339
    %4879 = vmatpush1.msra.mxu0 %v338
    %4880 = vmatprep.subr.mxu0 %v341
    %4881 = vmatpush1.msra.mxu0 %v340
    %4882 = vmatprep.subr.mxu0 %v343
    %4883 = vmatpush1.msra.mxu0 %v342
    %4884 = vmatprep.subr.mxu0 %v345
    %4885 = vmatpush1.msra.mxu0 %v344
    %4886 = vmatprep.subr.mxu0 %v347
    %4887 = vmatpush1.msra.mxu0 %v346
    %4888 = vmatprep.subr.mxu0 %v349
    %4889 = vmatpush1.msra.mxu0 %v348
    %4890 = vmatprep.subr.mxu0 %v351
    %4891 = vmatpush1.msra.mxu0 %v350
    %4892 = vmatprep.subr.mxu0 %v353
    %4893 = vmatpush1.msra.mxu0 %v352
    %4894 = vmatprep.subr.mxu0 %v355
    %4895 = vmatpush1.msra.mxu0 %v354
    %4896 = vmatprep.subr.mxu0 %v357
    %4897 = vmatpush1.msra.mxu0 %v356
    %4898 = vmatprep.subr.mxu0 %v359
    %4899 = vmatpush1.msra.mxu0 %v358
    %4900 = vmatprep.subr.mxu0 %v361
    %4901 = vmatpush1.msra.mxu0 %v360
    %4902 = vmatprep.subr.mxu0 %v363
    %4903 = vmatpush1.msra.mxu0 %v362
    %4904 = vmatprep.subr.mxu0 %v365
    %4905 = vmatpush1.msra.mxu0 %v364
    %4906 = vmatprep.subr.mxu0 %v367
    %4907 = vmatpush1.msra.mxu0 %v366
    %4908 = vmatprep.subr.mxu0 %v369
    %4909 = vmatpush1.msra.mxu0 %v368
    %4910 = vmatprep.subr.mxu0 %v371
    %4911 = vmatpush1.msra.mxu0 %v370
    %4912 = vmatprep.subr.mxu0 %v373
    %4913 = vmatpush1.msra.mxu0 %v372
    %4914 = vmatprep.subr.mxu0 %v375
    %4915 = vmatpush1.msra.mxu0 %v374
    %4916 = vmatprep.subr.mxu0 %v377
    %4917 = vmatpush1.msra.mxu0 %v376
    %4918 = vmatprep.subr.mxu0 %v379
    %4919 = vmatpush1.msra.mxu0 %v378
    %4920 = vmatprep.subr.mxu0 %v381
    %4921 = vmatpush1.msra.mxu0 %v380
    %4922 = vmatprep.subr.mxu0 %v383
    %4923 = vmatpush1.msra.mxu0 %v382
    %4924 = vmatprep.subr.mxu0 %v385
    %4925 = vmatpush1.msra.mxu0 %v384
    %4926 = vmatprep.subr.mxu0 %v387
    %4927 = vmatpush1.msra.mxu0 %v386
    %4928 = vmatprep.subr.mxu0 %v389
    %4929 = vmatpush1.msra.mxu0 %v388
    %4930 = vmatprep.mubr.f32.mxu0 %v4001
    %4931 = vmatmul.mubr.f32.gmra.mrb[0].mxu0 %v3993
    %v4932 = vpop.f32.mrb[0].mxu0
    %v4933 = vadd.f32 %v4862, %v4932
    %v4934 = vpop.f32.mrb[0].mxu0
    %v4935 = vadd.f32 %v4864, %v4934
    %4936 = vdwg.mxu0
    %4937 = vmatprep.subr.mxu0 %v391
    %4938 = vmatpush1.msra.mxu0 %v390
    %4939 = vmatprep.subr.mxu0 %v393
    %4940 = vmatpush1.msra.mxu0 %v392
    %4941 = vmatprep.subr.mxu0 %v395
    %4942 = vmatpush1.msra.mxu0 %v394
    %4943 = vmatprep.subr.mxu0 %v397
    %4944 = vmatpush1.msra.mxu0 %v396
    %4945 = vmatprep.subr.mxu0 %v399
    %4946 = vmatpush1.msra.mxu0 %v398
    %4947 = vmatprep.subr.mxu0 %v401
    %4948 = vmatpush1.msra.mxu0 %v400
    %4949 = vmatprep.subr.mxu0 %v403
    %4950 = vmatpush1.msra.mxu0 %v402
    %4951 = vmatprep.subr.mxu0 %v405
    %4952 = vmatpush1.msra.mxu0 %v404
    %4953 = vmatprep.subr.mxu0 %v407
    %4954 = vmatpush1.msra.mxu0 %v406
    %4955 = vmatprep.subr.mxu0 %v409
    %4956 = vmatpush1.msra.mxu0 %v408
    %4957 = vmatprep.subr.mxu0 %v411
    %4958 = vmatpush1.msra.mxu0 %v410
    %4959 = vmatprep.subr.mxu0 %v413
    %4960 = vmatpush1.msra.mxu0 %v412
    %4961 = vmatprep.subr.mxu0 %v415
    %4962 = vmatpush1.msra.mxu0 %v414
    %4963 = vmatprep.subr.mxu0 %v417
    %4964 = vmatpush1.msra.mxu0 %v416
    %4965 = vmatprep.subr.mxu0 %v419
    %4966 = vmatpush1.msra.mxu0 %v418
    %4967 = vmatprep.subr.mxu0 %v421
    %4968 = vmatpush1.msra.mxu0 %v420
    %4969 = vmatprep.subr.mxu0 %v423
    %4970 = vmatpush1.msra.mxu0 %v422
    %4971 = vmatprep.subr.mxu0 %v425
    %4972 = vmatpush1.msra.mxu0 %v424
    %4973 = vmatprep.subr.mxu0 %v427
    %4974 = vmatpush1.msra.mxu0 %v426
    %4975 = vmatprep.subr.mxu0 %v429
    %4976 = vmatpush1.msra.mxu0 %v428
    %4977 = vmatprep.subr.mxu0 %v431
    %4978 = vmatpush1.msra.mxu0 %v430
    %4979 = vmatprep.subr.mxu0 %v433
    %4980 = vmatpush1.msra.mxu0 %v432
    %4981 = vmatprep.subr.mxu0 %v435
    %4982 = vmatpush1.msra.mxu0 %v434
    %4983 = vmatprep.subr.mxu0 %v437
    %4984 = vmatpush1.msra.mxu0 %v436
    %4985 = vmatprep.subr.mxu0 %v439
    %4986 = vmatpush1.msra.mxu0 %v438
    %4987 = vmatprep.subr.mxu0 %v441
    %4988 = vmatpush1.msra.mxu0 %v440
    %4989 = vmatprep.subr.mxu0 %v443
    %4990 = vmatpush1.msra.mxu0 %v442
    %4991 = vmatprep.subr.mxu0 %v445
    %4992 = vmatpush1.msra.mxu0 %v444
    %4993 = vmatprep.subr.mxu0 %v447
    %4994 = vmatpush1.msra.mxu0 %v446
    %4995 = vmatprep.subr.mxu0 %v449
    %4996 = vmatpush1.msra.mxu0 %v448
    %4997 = vmatprep.subr.mxu0 %v451
    %4998 = vmatpush1.msra.mxu0 %v450
    %4999 = vmatprep.subr.mxu0 %v453
    %5000 = vmatpush1.msra.mxu0 %v452
    %5001 = vmatprep.mubr.f32.mxu0 %v4002
    %5002 = vmatmul.mubr.f32.gmra.mrb[0].mxu0 %v4000
    %v5003 = vpop.f32.mrb[0].mxu0
    %v5004 = vadd.f32 %v4933, %v5003
    %v5005 = vpop.f32.mrb[0].mxu0
    %v5006 = vadd.f32 %v4935, %v5005
    %5007 = vdwg.mxu0
    %5008 = vmatprep.subr.mxu0 %v455
    %5009 = vmatpush1.msra.mxu0 %v454
    %5010 = vmatprep.subr.mxu0 %v457
    %5011 = vmatpush1.msra.mxu0 %v456
    %5012 = vmatprep.subr.mxu0 %v459
    %5013 = vmatpush1.msra.mxu0 %v458
    %5014 = vmatprep.subr.mxu0 %v461
    %5015 = vmatpush1.msra.mxu0 %v460
    %5016 = vmatprep.subr.mxu0 %v463
    %5017 = vmatpush1.msra.mxu0 %v462
    %5018 = vmatprep.subr.mxu0 %v465
    %5019 = vmatpush1.msra.mxu0 %v464
    %5020 = vmatprep.subr.mxu0 %v467
    %5021 = vmatpush1.msra.mxu0 %v466
    %5022 = vmatprep.subr.mxu0 %v469
    %5023 = vmatpush1.msra.mxu0 %v468
    %5024 = vmatprep.subr.mxu0 %v471
    %5025 = vmatpush1.msra.mxu0 %v470
    %5026 = vmatprep.subr.mxu0 %v473
    %5027 = vmatpush1.msra.mxu0 %v472
    %5028 = vmatprep.subr.mxu0 %v475
    %5029 = vmatpush1.msra.mxu0 %v474
    %5030 = vmatprep.subr.mxu0 %v477
    %5031 = vmatpush1.msra.mxu0 %v476
    %5032 = vmatprep.subr.mxu0 %v479
    %5033 = vmatpush1.msra.mxu0 %v478
    %5034 = vmatprep.subr.mxu0 %v481
    %5035 = vmatpush1.msra.mxu0 %v480
    %5036 = vmatprep.subr.mxu0 %v483
    %5037 = vmatpush1.msra.mxu0 %v482
    %5038 = vmatprep.subr.mxu0 %v485
    %5039 = vmatpush1.msra.mxu0 %v484
    %5040 = vmatprep.subr.mxu0 %v487
    %5041 = vmatpush1.msra.mxu0 %v486
    %5042 = vmatprep.subr.mxu0 %v489
    %5043 = vmatpush1.msra.mxu0 %v488
    %5044 = vmatprep.subr.mxu0 %v491
    %5045 = vmatpush1.msra.mxu0 %v490
    %5046 = vmatprep.subr.mxu0 %v493
    %5047 = vmatpush1.msra.mxu0 %v492
    %5048 = vmatprep.subr.mxu0 %v495
    %5049 = vmatpush1.msra.mxu0 %v494
    %5050 = vmatprep.subr.mxu0 %v497
    %5051 = vmatpush1.msra.mxu0 %v496
    %5052 = vmatprep.subr.mxu0 %v499
    %5053 = vmatpush1.msra.mxu0 %v498
    %5054 = vmatprep.subr.mxu0 %v501
    %5055 = vmatpush1.msra.mxu0 %v500
    %5056 = vmatprep.subr.mxu0 %v503
    %5057 = vmatpush1.msra.mxu0 %v502
    %5058 = vmatprep.subr.mxu0 %v505
    %5059 = vmatpush1.msra.mxu0 %v504
    %5060 = vmatprep.subr.mxu0 %v507
    %5061 = vmatpush1.msra.mxu0 %v506
    %5062 = vmatprep.subr.mxu0 %v509
    %5063 = vmatpush1.msra.mxu0 %v508
    %5064 = vmatprep.subr.mxu0 %v511
    %5065 = vmatpush1.msra.mxu0 %v510
    %5066 = vmatprep.subr.mxu0 %v513
    %5067 = vmatpush1.msra.mxu0 %v512
    %5068 = vmatprep.subr.mxu0 %v515
    %5069 = vmatpush1.msra.mxu0 %v514
    %5070 = vmatprep.subr.mxu0 %v517
    %5071 = vmatpush1.msra.mxu0 %v516
    %5072 = vmatprep.mubr.f32.mxu0 %v4018
    %5073 = vmatmul.mubr.f32.gmra.mrb[0].mxu0 %v4010
    %v5074 = vpop.f32.mrb[0].mxu0
    %v5075 = vadd.f32 %v5004, %v5074
    %v5076 = vpop.f32.mrb[0].mxu0
    %v5077 = vadd.f32 %v5006, %v5076
    %5078 = vdwg.mxu0
    %5079 = vmatprep.subr.mxu0 %v519
    %5080 = vmatpush1.msra.mxu0 %v518
    %5081 = vmatprep.subr.mxu0 %v521
    %5082 = vmatpush1.msra.mxu0 %v520
    %5083 = vmatprep.subr.mxu0 %v523
    %5084 = vmatpush1.msra.mxu0 %v522
    %5085 = vmatprep.subr.mxu0 %v525
    %5086 = vmatpush1.msra.mxu0 %v524
    %5087 = vmatprep.subr.mxu0 %v527
    %5088 = vmatpush1.msra.mxu0 %v526
    %5089 = vmatprep.subr.mxu0 %v529
    %5090 = vmatpush1.msra.mxu0 %v528
    %5091 = vmatprep.subr.mxu0 %v531
    %5092 = vmatpush1.msra.mxu0 %v530
    %5093 = vmatprep.subr.mxu0 %v533
    %5094 = vmatpush1.msra.mxu0 %v532
    %5095 = vmatprep.subr.mxu0 %v535
    %5096 = vmatpush1.msra.mxu0 %v534
    %5097 = vmatprep.subr.mxu0 %v537
    %5098 = vmatpush1.msra.mxu0 %v536
    %5099 = vmatprep.subr.mxu0 %v539
    %5100 = vmatpush1.msra.mxu0 %v538
    %5101 = vmatprep.subr.mxu0 %v541
    %5102 = vmatpush1.msra.mxu0 %v540
    %5103 = vmatprep.subr.mxu0 %v543
    %5104 = vmatpush1.msra.mxu0 %v542
    %5105 = vmatprep.subr.mxu0 %v545
    %5106 = vmatpush1.msra.mxu0 %v544
    %5107 = vmatprep.subr.mxu0 %v547
    %5108 = vmatpush1.msra.mxu0 %v546
    %5109 = vmatprep.subr.mxu0 %v549
    %5110 = vmatpush1.msra.mxu0 %v548
    %5111 = vmatprep.subr.mxu0 %v551
    %5112 = vmatpush1.msra.mxu0 %v550
    %5113 = vmatprep.subr.mxu0 %v553
    %5114 = vmatpush1.msra.mxu0 %v552
    %5115 = vmatprep.subr.mxu0 %v555
    %5116 = vmatpush1.msra.mxu0 %v554
    %5117 = vmatprep.subr.mxu0 %v557
    %5118 = vmatpush1.msra.mxu0 %v556
    %5119 = vmatprep.subr.mxu0 %v559
    %5120 = vmatpush1.msra.mxu0 %v558
    %5121 = vmatprep.subr.mxu0 %v561
    %5122 = vmatpush1.msra.mxu0 %v560
    %5123 = vmatprep.subr.mxu0 %v563
    %5124 = vmatpush1.msra.mxu0 %v562
    %5125 = vmatprep.subr.mxu0 %v565
    %5126 = vmatpush1.msra.mxu0 %v564
    %5127 = vmatprep.subr.mxu0 %v567
    %5128 = vmatpush1.msra.mxu0 %v566
    %5129 = vmatprep.subr.mxu0 %v569
    %5130 = vmatpush1.msra.mxu0 %v568
    %5131 = vmatprep.subr.mxu0 %v571
    %5132 = vmatpush1.msra.mxu0 %v570
    %5133 = vmatprep.subr.mxu0 %v573
    %5134 = vmatpush1.msra.mxu0 %v572
    %5135 = vmatprep.subr.mxu0 %v575
    %5136 = vmatpush1.msra.mxu0 %v574
    %5137 = vmatprep.subr.mxu0 %v577
    %5138 = vmatpush1.msra.mxu0 %v576
    %5139 = vmatprep.subr.mxu0 %v579
    %5140 = vmatpush1.msra.mxu0 %v578
    %5141 = vmatprep.subr.mxu0 %v581
    %5142 = vmatpush1.msra.mxu0 %v580
    %5143 = vmatprep.mubr.f32.mxu0 %v4019
    %5144 = vmatmul.mubr.f32.gmra.mrb[0].mxu0 %v4017
    %v5145 = vpop.f32.mrb[0].mxu0
    %v5146 = vadd.f32 %v5075, %v5145
    %v5147 = vpop.f32.mrb[0].mxu0
    %v5148 = vadd.f32 %v5077, %v5147
    %5149 = vdwg.mxu0
    %5150 = vmatprep.subr.mxu0 %v583
    %5151 = vmatpush1.msra.mxu0 %v582
    %5152 = vmatprep.subr.mxu0 %v585
    %5153 = vmatpush1.msra.mxu0 %v584
    %5154 = vmatprep.subr.mxu0 %v587
    %5155 = vmatpush1.msra.mxu0 %v586
    %5156 = vmatprep.subr.mxu0 %v589
    %5157 = vmatpush1.msra.mxu0 %v588
    %5158 = vmatprep.subr.mxu0 %v591
    %5159 = vmatpush1.msra.mxu0 %v590
    %5160 = vmatprep.subr.mxu0 %v593
    %5161 = vmatpush1.msra.mxu0 %v592
    %5162 = vmatprep.subr.mxu0 %v595
    %5163 = vmatpush1.msra.mxu0 %v594
    %5164 = vmatprep.subr.mxu0 %v597
    %5165 = vmatpush1.msra.mxu0 %v596
    %5166 = vmatprep.subr.mxu0 %v599
    %5167 = vmatpush1.msra.mxu0 %v598
    %5168 = vmatprep.subr.mxu0 %v601
    %5169 = vmatpush1.msra.mxu0 %v600
    %5170 = vmatprep.subr.mxu0 %v603
    %5171 = vmatpush1.msra.mxu0 %v602
    %5172 = vmatprep.subr.mxu0 %v605
    %5173 = vmatpush1.msra.mxu0 %v604
    %5174 = vmatprep.subr.mxu0 %v607
    %5175 = vmatpush1.msra.mxu0 %v606
    %5176 = vmatprep.subr.mxu0 %v609
    %5177 = vmatpush1.msra.mxu0 %v608
    %5178 = vmatprep.subr.mxu0 %v611
    %5179 = vmatpush1.msra.mxu0 %v610
    %5180 = vmatprep.subr.mxu0 %v613
    %5181 = vmatpush1.msra.mxu0 %v612
    %5182 = vmatprep.subr.mxu0 %v615
    %5183 = vmatpush1.msra.mxu0 %v614
    %5184 = vmatprep.subr.mxu0 %v617
    %5185 = vmatpush1.msra.mxu0 %v616
    %5186 = vmatprep.subr.mxu0 %v619
    %5187 = vmatpush1.msra.mxu0 %v618
    %5188 = vmatprep.subr.mxu0 %v621
    %5189 = vmatpush1.msra.mxu0 %v620
    %5190 = vmatprep.subr.mxu0 %v623
    %5191 = vmatpush1.msra.mxu0 %v622
    %5192 = vmatprep.subr.mxu0 %v625
    %5193 = vmatpush1.msra.mxu0 %v624
    %5194 = vmatprep.subr.mxu0 %v627
    %5195 = vmatpush1.msra.mxu0 %v626
    %5196 = vmatprep.subr.mxu0 %v629
    %5197 = vmatpush1.msra.mxu0 %v628
    %5198 = vmatprep.subr.mxu0 %v631
    %5199 = vmatpush1.msra.mxu0 %v630
    %5200 = vmatprep.subr.mxu0 %v633
    %5201 = vmatpush1.msra.mxu0 %v632
    %5202 = vmatprep.subr.mxu0 %v635
    %5203 = vmatpush1.msra.mxu0 %v634
    %5204 = vmatprep.subr.mxu0 %v637
    %5205 = vmatpush1.msra.mxu0 %v636
    %5206 = vmatprep.subr.mxu0 %v639
    %5207 = vmatpush1.msra.mxu0 %v638
    %5208 = vmatprep.subr.mxu0 %v641
    %5209 = vmatpush1.msra.mxu0 %v640
    %5210 = vmatprep.subr.mxu0 %v643
    %5211 = vmatpush1.msra.mxu0 %v642
    %5212 = vmatprep.subr.mxu0 %v645
    %5213 = vmatpush1.msra.mxu0 %v644
    %5214 = vmatprep.mubr.f32.mxu0 %v4035
    %5215 = vmatmul.mubr.f32.gmra.mrb[0].mxu0 %v4027
    %v5216 = vpop.f32.mrb[0].mxu0
    %v5217 = vadd.f32 %v5146, %v5216
    %v5218 = vpop.f32.mrb[0].mxu0
    %v5219 = vadd.f32 %v5148, %v5218
    %5220 = vdwg.mxu0
    %5221 = vmatprep.subr.mxu0 %v647
    %5222 = vmatpush1.msra.mxu0 %v646
    %5223 = vmatprep.subr.mxu0 %v649
    %5224 = vmatpush1.msra.mxu0 %v648
    %5225 = vmatprep.subr.mxu0 %v651
    %5226 = vmatpush1.msra.mxu0 %v650
    %5227 = vmatprep.subr.mxu0 %v653
    %5228 = vmatpush1.msra.mxu0 %v652
    %5229 = vmatprep.subr.mxu0 %v655
    %5230 = vmatpush1.msra.mxu0 %v654
    %5231 = vmatprep.subr.mxu0 %v657
    %5232 = vmatpush1.msra.mxu0 %v656
    %5233 = vmatprep.subr.mxu0 %v659
    %5234 = vmatpush1.msra.mxu0 %v658
    %5235 = vmatprep.subr.mxu0 %v661
    %5236 = vmatpush1.msra.mxu0 %v660
    %5237 = vmatprep.subr.mxu0 %v663
    %5238 = vmatpush1.msra.mxu0 %v662
    %5239 = vmatprep.subr.mxu0 %v665
    %5240 = vmatpush1.msra.mxu0 %v664
    %5241 = vmatprep.subr.mxu0 %v667
    %5242 = vmatpush1.msra.mxu0 %v666
    %5243 = vmatprep.subr.mxu0 %v669
    %5244 = vmatpush1.msra.mxu0 %v668
    %5245 = vmatprep.subr.mxu0 %v671
    %5246 = vmatpush1.msra.mxu0 %v670
    %5247 = vmatprep.subr.mxu0 %v673
    %5248 = vmatpush1.msra.mxu0 %v672
    %5249 = vmatprep.subr.mxu0 %v675
    %5250 = vmatpush1.msra.mxu0 %v674
    %5251 = vmatprep.subr.mxu0 %v677
    %5252 = vmatpush1.msra.mxu0 %v676
    %5253 = vmatprep.subr.mxu0 %v679
    %5254 = vmatpush1.msra.mxu0 %v678
    %5255 = vmatprep.subr.mxu0 %v681
    %5256 = vmatpush1.msra.mxu0 %v680
    %5257 = vmatprep.subr.mxu0 %v683
    %5258 = vmatpush1.msra.mxu0 %v682
    %5259 = vmatprep.subr.mxu0 %v685
    %5260 = vmatpush1.msra.mxu0 %v684
    %5261 = vmatprep.subr.mxu0 %v687
    %5262 = vmatpush1.msra.mxu0 %v686
    %5263 = vmatprep.subr.mxu0 %v689
    %5264 = vmatpush1.msra.mxu0 %v688
    %5265 = vmatprep.subr.mxu0 %v691
    %5266 = vmatpush1.msra.mxu0 %v690
    %5267 = vmatprep.subr.mxu0 %v693
    %5268 = vmatpush1.msra.mxu0 %v692
    %5269 = vmatprep.subr.mxu0 %v695
    %5270 = vmatpush1.msra.mxu0 %v694
    %5271 = vmatprep.subr.mxu0 %v697
    %5272 = vmatpush1.msra.mxu0 %v696
    %5273 = vmatprep.subr.mxu0 %v699
    %5274 = vmatpush1.msra.mxu0 %v698
    %5275 = vmatprep.subr.mxu0 %v701
    %5276 = vmatpush1.msra.mxu0 %v700
    %5277 = vmatprep.subr.mxu0 %v703
    %5278 = vmatpush1.msra.mxu0 %v702
    %5279 = vmatprep.subr.mxu0 %v705
    %5280 = vmatpush1.msra.mxu0 %v704
    %5281 = vmatprep.subr.mxu0 %v707
    %5282 = vmatpush1.msra.mxu0 %v706
    %5283 = vmatprep.subr.mxu0 %v709
    %5284 = vmatpush1.msra.mxu0 %v708
    %5285 = vmatprep.mubr.f32.mxu0 %v4036
    %5286 = vmatmul.mubr.f32.gmra.mrb[0].mxu0 %v4034
    %v5287 = vpop.f32.mrb[0].mxu0
    %v5288 = vadd.f32 %v5217, %v5287
    %v5289 = vpop.f32.mrb[0].mxu0
    %v5290 = vadd.f32 %v5219, %v5289
    %5291 = vdwg.mxu0
    %5292 = vmatprep.subr.mxu0 %v711
    %5293 = vmatpush1.msra.mxu0 %v710
    %5294 = vmatprep.subr.mxu0 %v713
    %5295 = vmatpush1.msra.mxu0 %v712
    %5296 = vmatprep.subr.mxu0 %v715
    %5297 = vmatpush1.msra.mxu0 %v714
    %5298 = vmatprep.subr.mxu0 %v717
    %5299 = vmatpush1.msra.mxu0 %v716
    %5300 = vmatprep.subr.mxu0 %v719
    %5301 = vmatpush1.msra.mxu0 %v718
    %5302 = vmatprep.subr.mxu0 %v721
    %5303 = vmatpush1.msra.mxu0 %v720
    %5304 = vmatprep.subr.mxu0 %v723
    %5305 = vmatpush1.msra.mxu0 %v722
    %5306 = vmatprep.subr.mxu0 %v725
    %5307 = vmatpush1.msra.mxu0 %v724
    %5308 = vmatprep.subr.mxu0 %v727
    %5309 = vmatpush1.msra.mxu0 %v726
    %5310 = vmatprep.subr.mxu0 %v729
    %5311 = vmatpush1.msra.mxu0 %v728
    %5312 = vmatprep.subr.mxu0 %v731
    %5313 = vmatpush1.msra.mxu0 %v730
    %5314 = vmatprep.subr.mxu0 %v733
    %5315 = vmatpush1.msra.mxu0 %v732
    %5316 = vmatprep.subr.mxu0 %v735
    %5317 = vmatpush1.msra.mxu0 %v734
    %5318 = vmatprep.subr.mxu0 %v737
    %5319 = vmatpush1.msra.mxu0 %v736
    %5320 = vmatprep.subr.mxu0 %v739
    %5321 = vmatpush1.msra.mxu0 %v738
    %5322 = vmatprep.subr.mxu0 %v741
    %5323 = vmatpush1.msra.mxu0 %v740
    %5324 = vmatprep.subr.mxu0 %v743
    %5325 = vmatpush1.msra.mxu0 %v742
    %5326 = vmatprep.subr.mxu0 %v745
    %5327 = vmatpush1.msra.mxu0 %v744
    %5328 = vmatprep.subr.mxu0 %v747
    %5329 = vmatpush1.msra.mxu0 %v746
    %5330 = vmatprep.subr.mxu0 %v749
    %5331 = vmatpush1.msra.mxu0 %v748
    %5332 = vmatprep.subr.mxu0 %v751
    %5333 = vmatpush1.msra.mxu0 %v750
    %5334 = vmatprep.subr.mxu0 %v753
    %5335 = vmatpush1.msra.mxu0 %v752
    %5336 = vmatprep.subr.mxu0 %v755
    %5337 = vmatpush1.msra.mxu0 %v754
    %5338 = vmatprep.subr.mxu0 %v757
    %5339 = vmatpush1.msra.mxu0 %v756
    %5340 = vmatprep.subr.mxu0 %v759
    %5341 = vmatpush1.msra.mxu0 %v758
    %5342 = vmatprep.subr.mxu0 %v761
    %5343 = vmatpush1.msra.mxu0 %v760
    %5344 = vmatprep.subr.mxu0 %v763
    %5345 = vmatpush1.msra.mxu0 %v762
    %5346 = vmatprep.subr.mxu0 %v765
    %5347 = vmatpush1.msra.mxu0 %v764
    %5348 = vmatprep.subr.mxu0 %v767
    %5349 = vmatpush1.msra.mxu0 %v766
    %5350 = vmatprep.subr.mxu0 %v769
    %5351 = vmatpush1.msra.mxu0 %v768
    %5352 = vmatprep.subr.mxu0 %v771
    %5353 = vmatpush1.msra.mxu0 %v770
    %5354 = vmatprep.subr.mxu0 %v773
    %5355 = vmatpush1.msra.mxu0 %v772
    %5356 = vmatprep.mubr.f32.mxu0 %v4052
    %5357 = vmatmul.mubr.f32.gmra.mrb[0].mxu0 %v4044
    %v5358 = vpop.f32.mrb[0].mxu0
    %v5359 = vadd.f32 %v5288, %v5358
    %v5360 = vpop.f32.mrb[0].mxu0
    %v5361 = vadd.f32 %v5290, %v5360
    %5362 = vdwg.mxu0
    %5363 = vmatprep.subr.mxu0 %v775
    %5364 = vmatpush1.msra.mxu0 %v774
    %5365 = vmatprep.subr.mxu0 %v777
    %5366 = vmatpush1.msra.mxu0 %v776
    %5367 = vmatprep.subr.mxu0 %v779
    %5368 = vmatpush1.msra.mxu0 %v778
    %5369 = vmatprep.subr.mxu0 %v781
    %5370 = vmatpush1.msra.mxu0 %v780
    %5371 = vmatprep.subr.mxu0 %v783
    %5372 = vmatpush1.msra.mxu0 %v782
    %5373 = vmatprep.subr.mxu0 %v785
    %5374 = vmatpush1.msra.mxu0 %v784
    %5375 = vmatprep.subr.mxu0 %v787
    %5376 = vmatpush1.msra.mxu0 %v786
    %5377 = vmatprep.subr.mxu0 %v789
    %5378 = vmatpush1.msra.mxu0 %v788
    %5379 = vmatprep.subr.mxu0 %v791
    %5380 = vmatpush1.msra.mxu0 %v790
    %5381 = vmatprep.subr.mxu0 %v793
    %5382 = vmatpush1.msra.mxu0 %v792
    %5383 = vmatprep.subr.mxu0 %v795
    %5384 = vmatpush1.msra.mxu0 %v794
    %5385 = vmatprep.subr.mxu0 %v797
    %5386 = vmatpush1.msra.mxu0 %v796
    %5387 = vmatprep.subr.mxu0 %v799
    %5388 = vmatpush1.msra.mxu0 %v798
    %5389 = vmatprep.subr.mxu0 %v801
    %5390 = vmatpush1.msra.mxu0 %v800
    %5391 = vmatprep.subr.mxu0 %v803
    %5392 = vmatpush1.msra.mxu0 %v802
    %5393 = vmatprep.subr.mxu0 %v805
    %5394 = vmatpush1.msra.mxu0 %v804
    %5395 = vmatprep.subr.mxu0 %v807
    %5396 = vmatpush1.msra.mxu0 %v806
    %5397 = vmatprep.subr.mxu0 %v809
    %5398 = vmatpush1.msra.mxu0 %v808
    %5399 = vmatprep.subr.mxu0 %v811
    %5400 = vmatpush1.msra.mxu0 %v810
    %5401 = vmatprep.subr.mxu0 %v813
    %5402 = vmatpush1.msra.mxu0 %v812
    %5403 = vmatprep.subr.mxu0 %v815
    %5404 = vmatpush1.msra.mxu0 %v814
    %5405 = vmatprep.subr.mxu0 %v817
    %5406 = vmatpush1.msra.mxu0 %v816
    %5407 = vmatprep.subr.mxu0 %v819
    %5408 = vmatpush1.msra.mxu0 %v818
    %5409 = vmatprep.subr.mxu0 %v821
    %5410 = vmatpush1.msra.mxu0 %v820
    %5411 = vmatprep.subr.mxu0 %v823
    %5412 = vmatpush1.msra.mxu0 %v822
    %5413 = vmatprep.subr.mxu0 %v825
    %5414 = vmatpush1.msra.mxu0 %v824
    %5415 = vmatprep.subr.mxu0 %v827
    %5416 = vmatpush1.msra.mxu0 %v826
    %5417 = vmatprep.subr.mxu0 %v829
    %5418 = vmatpush1.msra.mxu0 %v828
    %5419 = vmatprep.subr.mxu0 %v831
    %5420 = vmatpush1.msra.mxu0 %v830
    %5421 = vmatprep.subr.mxu0 %v833
    %5422 = vmatpush1.msra.mxu0 %v832
    %5423 = vmatprep.subr.mxu0 %v835
    %5424 = vmatpush1.msra.mxu0 %v834
    %5425 = vmatprep.subr.mxu0 %v837
    %5426 = vmatpush1.msra.mxu0 %v836
    %5427 = vmatprep.mubr.f32.mxu0 %v4053
    %5428 = vmatmul.mubr.f32.gmra.mrb[0].mxu0 %v4051
    %v5429 = vpop.f32.mrb[0].mxu0
    %v5430 = vadd.f32 %v5359, %v5429
    %v5431 = vpop.f32.mrb[0].mxu0
    %v5432 = vadd.f32 %v5361, %v5431
    %5433 = vdwg.mxu0
    %5434 = vmatprep.subr.mxu0 %v839
    %5435 = vmatpush1.msra.mxu0 %v838
    %5436 = vmatprep.subr.mxu0 %v841
    %5437 = vmatpush1.msra.mxu0 %v840
    %5438 = vmatprep.subr.mxu0 %v843
    %5439 = vmatpush1.msra.mxu0 %v842
    %5440 = vmatprep.subr.mxu0 %v845
    %5441 = vmatpush1.msra.mxu0 %v844
    %5442 = vmatprep.subr.mxu0 %v847
    %5443 = vmatpush1.msra.mxu0 %v846
    %5444 = vmatprep.subr.mxu0 %v849
    %5445 = vmatpush1.msra.mxu0 %v848
    %5446 = vmatprep.subr.mxu0 %v851
    %5447 = vmatpush1.msra.mxu0 %v850
    %5448 = vmatprep.subr.mxu0 %v853
    %5449 = vmatpush1.msra.mxu0 %v852
    %5450 = vmatprep.subr.mxu0 %v855
    %5451 = vmatpush1.msra.mxu0 %v854
    %5452 = vmatprep.subr.mxu0 %v857
    %5453 = vmatpush1.msra.mxu0 %v856
    %5454 = vmatprep.subr.mxu0 %v859
    %5455 = vmatpush1.msra.mxu0 %v858
    %5456 = vmatprep.subr.mxu0 %v861
    %5457 = vmatpush1.msra.mxu0 %v860
    %5458 = vmatprep.subr.mxu0 %v863
    %5459 = vmatpush1.msra.mxu0 %v862
    %5460 = vmatprep.subr.mxu0 %v865
    %5461 = vmatpush1.msra.mxu0 %v864
    %5462 = vmatprep.subr.mxu0 %v867
    %5463 = vmatpush1.msra.mxu0 %v866
    %5464 = vmatprep.subr.mxu0 %v869
    %5465 = vmatpush1.msra.mxu0 %v868
    %5466 = vmatprep.subr.mxu0 %v871
    %5467 = vmatpush1.msra.mxu0 %v870
    %5468 = vmatprep.subr.mxu0 %v873
    %5469 = vmatpush1.msra.mxu0 %v872
    %5470 = vmatprep.subr.mxu0 %v875
    %5471 = vmatpush1.msra.mxu0 %v874
    %5472 = vmatprep.subr.mxu0 %v877
    %5473 = vmatpush1.msra.mxu0 %v876
    %5474 = vmatprep.subr.mxu0 %v879
    %5475 = vmatpush1.msra.mxu0 %v878
    %5476 = vmatprep.subr.mxu0 %v881
    %5477 = vmatpush1.msra.mxu0 %v880
    %5478 = vmatprep.subr.mxu0 %v883
    %5479 = vmatpush1.msra.mxu0 %v882
    %5480 = vmatprep.subr.mxu0 %v885
    %5481 = vmatpush1.msra.mxu0 %v884
    %5482 = vmatprep.subr.mxu0 %v887
    %5483 = vmatpush1.msra.mxu0 %v886
    %5484 = vmatprep.subr.mxu0 %v889
    %5485 = vmatpush1.msra.mxu0 %v888
    %5486 = vmatprep.subr.mxu0 %v891
    %5487 = vmatpush1.msra.mxu0 %v890
    %5488 = vmatprep.subr.mxu0 %v893
    %5489 = vmatpush1.msra.mxu0 %v892
    %5490 = vmatprep.subr.mxu0 %v895
    %5491 = vmatpush1.msra.mxu0 %v894
    %5492 = vmatprep.subr.mxu0 %v897
    %5493 = vmatpush1.msra.mxu0 %v896
    %5494 = vmatprep.subr.mxu0 %v899
    %5495 = vmatpush1.msra.mxu0 %v898
    %5496 = vmatprep.subr.mxu0 %v901
    %5497 = vmatpush1.msra.mxu0 %v900
    %5498 = vmatprep.mubr.f32.mxu0 %v4069
    %5499 = vmatmul.mubr.f32.gmra.mrb[0].mxu0 %v4061
    %v5500 = vpop.f32.mrb[0].mxu0
    %v5501 = vadd.f32 %v5430, %v5500
    %v5502 = vpop.f32.mrb[0].mxu0
    %v5503 = vadd.f32 %v5432, %v5502
    %5504 = vdwg.mxu0
    %5505 = vmatprep.subr.mxu0 %v903
    %5506 = vmatpush1.msra.mxu0 %v902
    %5507 = vmatprep.subr.mxu0 %v905
    %5508 = vmatpush1.msra.mxu0 %v904
    %5509 = vmatprep.subr.mxu0 %v907
    %5510 = vmatpush1.msra.mxu0 %v906
    %5511 = vmatprep.subr.mxu0 %v909
    %5512 = vmatpush1.msra.mxu0 %v908
    %5513 = vmatprep.subr.mxu0 %v911
    %5514 = vmatpush1.msra.mxu0 %v910
    %5515 = vmatprep.subr.mxu0 %v913
    %5516 = vmatpush1.msra.mxu0 %v912
    %5517 = vmatprep.subr.mxu0 %v915
    %5518 = vmatpush1.msra.mxu0 %v914
    %5519 = vmatprep.subr.mxu0 %v917
    %5520 = vmatpush1.msra.mxu0 %v916
    %5521 = vmatprep.subr.mxu0 %v919
    %5522 = vmatpush1.msra.mxu0 %v918
    %5523 = vmatprep.subr.mxu0 %v921
    %5524 = vmatpush1.msra.mxu0 %v920
    %5525 = vmatprep.subr.mxu0 %v923
    %5526 = vmatpush1.msra.mxu0 %v922
    %5527 = vmatprep.subr.mxu0 %v925
    %5528 = vmatpush1.msra.mxu0 %v924
    %5529 = vmatprep.subr.mxu0 %v927
    %5530 = vmatpush1.msra.mxu0 %v926
    %5531 = vmatprep.subr.mxu0 %v929
    %5532 = vmatpush1.msra.mxu0 %v928
    %5533 = vmatprep.subr.mxu0 %v931
    %5534 = vmatpush1.msra.mxu0 %v930
    %5535 = vmatprep.subr.mxu0 %v933
    %5536 = vmatpush1.msra.mxu0 %v932
    %5537 = vmatprep.subr.mxu0 %v935
    %5538 = vmatpush1.msra.mxu0 %v934
    %5539 = vmatprep.subr.mxu0 %v937
    %5540 = vmatpush1.msra.mxu0 %v936
    %5541 = vmatprep.subr.mxu0 %v939
    %5542 = vmatpush1.msra.mxu0 %v938
    %5543 = vmatprep.subr.mxu0 %v941
    %5544 = vmatpush1.msra.mxu0 %v940
    %5545 = vmatprep.subr.mxu0 %v943
    %5546 = vmatpush1.msra.mxu0 %v942
    %5547 = vmatprep.subr.mxu0 %v945
    %5548 = vmatpush1.msra.mxu0 %v944
    %5549 = vmatprep.subr.mxu0 %v947
    %5550 = vmatpush1.msra.mxu0 %v946
    %5551 = vmatprep.subr.mxu0 %v949
    %5552 = vmatpush1.msra.mxu0 %v948
    %5553 = vmatprep.subr.mxu0 %v951
    %5554 = vmatpush1.msra.mxu0 %v950
    %5555 = vmatprep.subr.mxu0 %v953
    %5556 = vmatpush1.msra.mxu0 %v952
    %5557 = vmatprep.subr.mxu0 %v955
    %5558 = vmatpush1.msra.mxu0 %v954
    %5559 = vmatprep.subr.mxu0 %v957
    %5560 = vmatpush1.msra.mxu0 %v956
    %5561 = vmatprep.subr.mxu0 %v959
    %5562 = vmatpush1.msra.mxu0 %v958
    %5563 = vmatprep.subr.mxu0 %v961
    %5564 = vmatpush1.msra.mxu0 %v960
    %5565 = vmatprep.subr.mxu0 %v963
    %5566 = vmatpush1.msra.mxu0 %v962
    %5567 = vmatprep.subr.mxu0 %v965
    %5568 = vmatpush1.msra.mxu0 %v964
    %5569 = vmatprep.mubr.f32.mxu0 %v4070
    %5570 = vmatmul.mubr.f32.gmra.mrb[0].mxu0 %v4068
    %v5571 = vpop.f32.mrb[0].mxu0
    %v5572 = vadd.f32 %v5501, %v5571
    %v5573 = vpop.f32.mrb[0].mxu0
    %v5574 = vadd.f32 %v5503, %v5573
    %5575 = vdwg.mxu0
    %5576 = vmatprep.subr.mxu0 %v967
    %5577 = vmatpush1.msra.mxu0 %v966
    %5578 = vmatprep.subr.mxu0 %v969
    %5579 = vmatpush1.msra.mxu0 %v968
    %5580 = vmatprep.subr.mxu0 %v971
    %5581 = vmatpush1.msra.mxu0 %v970
    %5582 = vmatprep.subr.mxu0 %v973
    %5583 = vmatpush1.msra.mxu0 %v972
    %5584 = vmatprep.subr.mxu0 %v975
    %5585 = vmatpush1.msra.mxu0 %v974
    %5586 = vmatprep.subr.mxu0 %v977
    %5587 = vmatpush1.msra.mxu0 %v976
    %5588 = vmatprep.subr.mxu0 %v979
    %5589 = vmatpush1.msra.mxu0 %v978
    %5590 = vmatprep.subr.mxu0 %v981
    %5591 = vmatpush1.msra.mxu0 %v980
    %5592 = vmatprep.subr.mxu0 %v983
    %5593 = vmatpush1.msra.mxu0 %v982
    %5594 = vmatprep.subr.mxu0 %v985
    %5595 = vmatpush1.msra.mxu0 %v984
    %5596 = vmatprep.subr.mxu0 %v987
    %5597 = vmatpush1.msra.mxu0 %v986
    %5598 = vmatprep.subr.mxu0 %v989
    %5599 = vmatpush1.msra.mxu0 %v988
    %5600 = vmatprep.subr.mxu0 %v991
    %5601 = vmatpush1.msra.mxu0 %v990
    %5602 = vmatprep.subr.mxu0 %v993
    %5603 = vmatpush1.msra.mxu0 %v992
    %5604 = vmatprep.subr.mxu0 %v995
    %5605 = vmatpush1.msra.mxu0 %v994
    %5606 = vmatprep.subr.mxu0 %v997
    %5607 = vmatpush1.msra.mxu0 %v996
    %5608 = vmatprep.subr.mxu0 %v999
    %5609 = vmatpush1.msra.mxu0 %v998
    %5610 = vmatprep.subr.mxu0 %v1001
    %5611 = vmatpush1.msra.mxu0 %v1000
    %5612 = vmatprep.subr.mxu0 %v1003
    %5613 = vmatpush1.msra.mxu0 %v1002
    %5614 = vmatprep.subr.mxu0 %v1005
    %5615 = vmatpush1.msra.mxu0 %v1004
    %5616 = vmatprep.subr.mxu0 %v1007
    %5617 = vmatpush1.msra.mxu0 %v1006
    %5618 = vmatprep.subr.mxu0 %v1009
    %5619 = vmatpush1.msra.mxu0 %v1008
    %5620 = vmatprep.subr.mxu0 %v1011
    %5621 = vmatpush1.msra.mxu0 %v1010
    %5622 = vmatprep.subr.mxu0 %v1013
    %5623 = vmatpush1.msra.mxu0 %v1012
    %5624 = vmatprep.subr.mxu0 %v1015
    %5625 = vmatpush1.msra.mxu0 %v1014
    %5626 = vmatprep.subr.mxu0 %v1017
    %5627 = vmatpush1.msra.mxu0 %v1016
    %5628 = vmatprep.subr.mxu0 %v1019
    %5629 = vmatpush1.msra.mxu0 %v1018
    %5630 = vmatprep.subr.mxu0 %v1021
    %5631 = vmatpush1.msra.mxu0 %v1020
    %5632 = vmatprep.subr.mxu0 %v1023
    %5633 = vmatpush1.msra.mxu0 %v1022
    %5634 = vmatprep.subr.mxu0 %v1025
    %5635 = vmatpush1.msra.mxu0 %v1024
    %5636 = vmatprep.subr.mxu0 %v1027
    %5637 = vmatpush1.msra.mxu0 %v1026
    %5638 = vmatprep.subr.mxu0 %v1029
    %5639 = vmatpush1.msra.mxu0 %v1028
    %5640 = vmatprep.mubr.f32.mxu0 %v4086
    %5641 = vmatmul.mubr.f32.gmra.mrb[0].mxu0 %v4078
    %v5642 = vpop.f32.mrb[0].mxu0
    %v5643 = vadd.f32 %v5572, %v5642
    %v5644 = vpop.f32.mrb[0].mxu0
    %v5645 = vadd.f32 %v5574, %v5644
    %5646 = vdwg.mxu0
    %5647 = vmatprep.subr.mxu0 %v1031
    %5648 = vmatpush1.msra.mxu0 %v1030
    %5649 = vmatprep.subr.mxu0 %v1033
    %5650 = vmatpush1.msra.mxu0 %v1032
    %5651 = vmatprep.subr.mxu0 %v1035
    %5652 = vmatpush1.msra.mxu0 %v1034
    %5653 = vmatprep.subr.mxu0 %v1037
    %5654 = vmatpush1.msra.mxu0 %v1036
    %5655 = vmatprep.subr.mxu0 %v1039
    %5656 = vmatpush1.msra.mxu0 %v1038
    %5657 = vmatprep.subr.mxu0 %v1041
    %5658 = vmatpush1.msra.mxu0 %v1040
    %5659 = vmatprep.subr.mxu0 %v1043
    %5660 = vmatpush1.msra.mxu0 %v1042
    %5661 = vmatprep.subr.mxu0 %v1045
    %5662 = vmatpush1.msra.mxu0 %v1044
    %5663 = vmatprep.subr.mxu0 %v1047
    %5664 = vmatpush1.msra.mxu0 %v1046
    %5665 = vmatprep.subr.mxu0 %v1049
    %5666 = vmatpush1.msra.mxu0 %v1048
    %5667 = vmatprep.subr.mxu0 %v1051
    %5668 = vmatpush1.msra.mxu0 %v1050
    %5669 = vmatprep.subr.mxu0 %v1053
    %5670 = vmatpush1.msra.mxu0 %v1052
    %5671 = vmatprep.subr.mxu0 %v1055
    %5672 = vmatpush1.msra.mxu0 %v1054
    %5673 = vmatprep.subr.mxu0 %v1057
    %5674 = vmatpush1.msra.mxu0 %v1056
    %5675 = vmatprep.subr.mxu0 %v1059
    %5676 = vmatpush1.msra.mxu0 %v1058
    %5677 = vmatprep.subr.mxu0 %v1061
    %5678 = vmatpush1.msra.mxu0 %v1060
    %5679 = vmatprep.subr.mxu0 %v1063
    %5680 = vmatpush1.msra.mxu0 %v1062
    %5681 = vmatprep.subr.mxu0 %v1065
    %5682 = vmatpush1.msra.mxu0 %v1064
    %5683 = vmatprep.subr.mxu0 %v1067
    %5684 = vmatpush1.msra.mxu0 %v1066
    %5685 = vmatprep.subr.mxu0 %v1069
    %5686 = vmatpush1.msra.mxu0 %v1068
    %5687 = vmatprep.subr.mxu0 %v1071
    %5688 = vmatpush1.msra.mxu0 %v1070
    %5689 = vmatprep.subr.mxu0 %v1073
    %5690 = vmatpush1.msra.mxu0 %v1072
    %5691 = vmatprep.subr.mxu0 %v1075
    %5692 = vmatpush1.msra.mxu0 %v1074
    %5693 = vmatprep.subr.mxu0 %v1077
    %5694 = vmatpush1.msra.mxu0 %v1076
    %5695 = vmatprep.subr.mxu0 %v1079
    %5696 = vmatpush1.msra.mxu0 %v1078
    %5697 = vmatprep.subr.mxu0 %v1081
    %5698 = vmatpush1.msra.mxu0 %v1080
    %5699 = vmatprep.subr.mxu0 %v1083
    %5700 = vmatpush1.msra.mxu0 %v1082
    %5701 = vmatprep.subr.mxu0 %v1085
    %5702 = vmatpush1.msra.mxu0 %v1084
    %5703 = vmatprep.subr.mxu0 %v1087
    %5704 = vmatpush1.msra.mxu0 %v1086
    %5705 = vmatprep.subr.mxu0 %v1089
    %5706 = vmatpush1.msra.mxu0 %v1088
    %5707 = vmatprep.subr.mxu0 %v1091
    %5708 = vmatpush1.msra.mxu0 %v1090
    %5709 = vmatprep.subr.mxu0 %v1093
    %5710 = vmatpush1.msra.mxu0 %v1092
    %5711 = vmatprep.mubr.f32.mxu0 %v4087
    %5712 = vmatmul.mubr.f32.gmra.mrb[0].mxu0 %v4085
    %v5713 = vpop.f32.mrb[0].mxu0
    %v5714 = vadd.f32 %v5643, %v5713
    %v5715 = vpop.f32.mrb[0].mxu0
    %v5716 = vadd.f32 %v5645, %v5715
    %5717 = vdwg.mxu0
    %5718 = vmatprep.subr.mxu0 %v1095
    %5719 = vmatpush1.msra.mxu0 %v1094
    %5720 = vmatprep.subr.mxu0 %v1097
    %5721 = vmatpush1.msra.mxu0 %v1096
    %5722 = vmatprep.subr.mxu0 %v1099
    %5723 = vmatpush1.msra.mxu0 %v1098
    %5724 = vmatprep.subr.mxu0 %v1101
    %5725 = vmatpush1.msra.mxu0 %v1100
    %5726 = vmatprep.subr.mxu0 %v1103
    %5727 = vmatpush1.msra.mxu0 %v1102
    %5728 = vmatprep.subr.mxu0 %v1105
    %5729 = vmatpush1.msra.mxu0 %v1104
    %5730 = vmatprep.subr.mxu0 %v1107
    %5731 = vmatpush1.msra.mxu0 %v1106
    %5732 = vmatprep.subr.mxu0 %v1109
    %5733 = vmatpush1.msra.mxu0 %v1108
    %5734 = vmatprep.subr.mxu0 %v1111
    %5735 = vmatpush1.msra.mxu0 %v1110
    %5736 = vmatprep.subr.mxu0 %v1113
    %5737 = vmatpush1.msra.mxu0 %v1112
    %5738 = vmatprep.subr.mxu0 %v1115
    %5739 = vmatpush1.msra.mxu0 %v1114
    %5740 = vmatprep.subr.mxu0 %v1117
    %5741 = vmatpush1.msra.mxu0 %v1116
    %5742 = vmatprep.subr.mxu0 %v1119
    %5743 = vmatpush1.msra.mxu0 %v1118
    %5744 = vmatprep.subr.mxu0 %v1121
    %5745 = vmatpush1.msra.mxu0 %v1120
    %5746 = vmatprep.subr.mxu0 %v1123
    %5747 = vmatpush1.msra.mxu0 %v1122
    %5748 = vmatprep.subr.mxu0 %v1125
    %5749 = vmatpush1.msra.mxu0 %v1124
    %5750 = vmatprep.subr.mxu0 %v1127
    %5751 = vmatpush1.msra.mxu0 %v1126
    %5752 = vmatprep.subr.mxu0 %v1129
    %5753 = vmatpush1.msra.mxu0 %v1128
    %5754 = vmatprep.subr.mxu0 %v1131
    %5755 = vmatpush1.msra.mxu0 %v1130
    %5756 = vmatprep.subr.mxu0 %v1133
    %5757 = vmatpush1.msra.mxu0 %v1132
    %5758 = vmatprep.subr.mxu0 %v1135
    %5759 = vmatpush1.msra.mxu0 %v1134
    %5760 = vmatprep.subr.mxu0 %v1137
    %5761 = vmatpush1.msra.mxu0 %v1136
    %5762 = vmatprep.subr.mxu0 %v1139
    %5763 = vmatpush1.msra.mxu0 %v1138
    %5764 = vmatprep.subr.mxu0 %v1141
    %5765 = vmatpush1.msra.mxu0 %v1140
    %5766 = vmatprep.subr.mxu0 %v1143
    %5767 = vmatpush1.msra.mxu0 %v1142
    %5768 = vmatprep.subr.mxu0 %v1145
    %5769 = vmatpush1.msra.mxu0 %v1144
    %5770 = vmatprep.subr.mxu0 %v1147
    %5771 = vmatpush1.msra.mxu0 %v1146
    %5772 = vmatprep.subr.mxu0 %v1149
    %5773 = vmatpush1.msra.mxu0 %v1148
    %5774 = vmatprep.subr.mxu0 %v1151
    %5775 = vmatpush1.msra.mxu0 %v1150
    %5776 = vmatprep.subr.mxu0 %v1153
    %5777 = vmatpush1.msra.mxu0 %v1152
    %5778 = vmatprep.subr.mxu0 %v1155
    %5779 = vmatpush1.msra.mxu0 %v1154
    %5780 = vmatprep.subr.mxu0 %v1157
    %5781 = vmatpush1.msra.mxu0 %v1156
    %5782 = vmatprep.mubr.f32.mxu0 %v4103
    %5783 = vmatmul.mubr.f32.gmra.mrb[0].mxu0 %v4095
    %v5784 = vpop.f32.mrb[0].mxu0
    %v5785 = vadd.f32 %v5714, %v5784
    %v5786 = vpop.f32.mrb[0].mxu0
    %v5787 = vadd.f32 %v5716, %v5786
    %5788 = vdwg.mxu0
    %5789 = vmatprep.subr.mxu0 %v1159
    %5790 = vmatpush1.msra.mxu0 %v1158
    %5791 = vmatprep.subr.mxu0 %v1161
    %5792 = vmatpush1.msra.mxu0 %v1160
    %5793 = vmatprep.subr.mxu0 %v1163
    %5794 = vmatpush1.msra.mxu0 %v1162
    %5795 = vmatprep.subr.mxu0 %v1165
    %5796 = vmatpush1.msra.mxu0 %v1164
    %5797 = vmatprep.subr.mxu0 %v1167
    %5798 = vmatpush1.msra.mxu0 %v1166
    %5799 = vmatprep.subr.mxu0 %v1169
    %5800 = vmatpush1.msra.mxu0 %v1168
    %5801 = vmatprep.subr.mxu0 %v1171
    %5802 = vmatpush1.msra.mxu0 %v1170
    %5803 = vmatprep.subr.mxu0 %v1173
    %5804 = vmatpush1.msra.mxu0 %v1172
    %5805 = vmatprep.subr.mxu0 %v1175
    %5806 = vmatpush1.msra.mxu0 %v1174
    %5807 = vmatprep.subr.mxu0 %v1177
    %5808 = vmatpush1.msra.mxu0 %v1176
    %5809 = vmatprep.subr.mxu0 %v1179
    %5810 = vmatpush1.msra.mxu0 %v1178
    %5811 = vmatprep.subr.mxu0 %v1181
    %5812 = vmatpush1.msra.mxu0 %v1180
    %5813 = vmatprep.subr.mxu0 %v1183
    %5814 = vmatpush1.msra.mxu0 %v1182
    %5815 = vmatprep.subr.mxu0 %v1185
    %5816 = vmatpush1.msra.mxu0 %v1184
    %5817 = vmatprep.subr.mxu0 %v1187
    %5818 = vmatpush1.msra.mxu0 %v1186
    %5819 = vmatprep.subr.mxu0 %v1189
    %5820 = vmatpush1.msra.mxu0 %v1188
    %5821 = vmatprep.subr.mxu0 %v1191
    %5822 = vmatpush1.msra.mxu0 %v1190
    %5823 = vmatprep.subr.mxu0 %v1193
    %5824 = vmatpush1.msra.mxu0 %v1192
    %5825 = vmatprep.subr.mxu0 %v1195
    %5826 = vmatpush1.msra.mxu0 %v1194
    %5827 = vmatprep.subr.mxu0 %v1197
    %5828 = vmatpush1.msra.mxu0 %v1196
    %5829 = vmatprep.subr.mxu0 %v1199
    %5830 = vmatpush1.msra.mxu0 %v1198
    %5831 = vmatprep.subr.mxu0 %v1201
    %5832 = vmatpush1.msra.mxu0 %v1200
    %5833 = vmatprep.subr.mxu0 %v1203
    %5834 = vmatpush1.msra.mxu0 %v1202
    %5835 = vmatprep.subr.mxu0 %v1205
    %5836 = vmatpush1.msra.mxu0 %v1204
    %5837 = vmatprep.subr.mxu0 %v1207
    %5838 = vmatpush1.msra.mxu0 %v1206
    %5839 = vmatprep.subr.mxu0 %v1209
    %5840 = vmatpush1.msra.mxu0 %v1208
    %5841 = vmatprep.subr.mxu0 %v1211
    %5842 = vmatpush1.msra.mxu0 %v1210
    %5843 = vmatprep.subr.mxu0 %v1213
    %5844 = vmatpush1.msra.mxu0 %v1212
    %5845 = vmatprep.subr.mxu0 %v1215
    %5846 = vmatpush1.msra.mxu0 %v1214
    %5847 = vmatprep.subr.mxu0 %v1217
    %5848 = vmatpush1.msra.mxu0 %v1216
    %5849 = vmatprep.subr.mxu0 %v1219
    %5850 = vmatpush1.msra.mxu0 %v1218
    %5851 = vmatprep.subr.mxu0 %v1221
    %5852 = vmatpush1.msra.mxu0 %v1220
    %5853 = vmatprep.mubr.f32.mxu0 %v4104
    %5854 = vmatmul.mubr.f32.gmra.mrb[0].mxu0 %v4102
    %v5855 = vpop.f32.mrb[0].mxu0
    %v5856 = vadd.f32 %v5785, %v5855
    %v5857 = vpop.f32.mrb[0].mxu0
    %v5858 = vadd.f32 %v5787, %v5857
    %5859 = vdwg.mxu0
    %5860 = vmatprep.subr.mxu0 %v1223
    %5861 = vmatpush1.msra.mxu0 %v1222
    %5862 = vmatprep.subr.mxu0 %v1225
    %5863 = vmatpush1.msra.mxu0 %v1224
    %5864 = vmatprep.subr.mxu0 %v1227
    %5865 = vmatpush1.msra.mxu0 %v1226
    %5866 = vmatprep.subr.mxu0 %v1229
    %5867 = vmatpush1.msra.mxu0 %v1228
    %5868 = vmatprep.subr.mxu0 %v1231
    %5869 = vmatpush1.msra.mxu0 %v1230
    %5870 = vmatprep.subr.mxu0 %v1233
    %5871 = vmatpush1.msra.mxu0 %v1232
    %5872 = vmatprep.subr.mxu0 %v1235
    %5873 = vmatpush1.msra.mxu0 %v1234
    %5874 = vmatprep.subr.mxu0 %v1237
    %5875 = vmatpush1.msra.mxu0 %v1236
    %5876 = vmatprep.subr.mxu0 %v1239
    %5877 = vmatpush1.msra.mxu0 %v1238
    %5878 = vmatprep.subr.mxu0 %v1241
    %5879 = vmatpush1.msra.mxu0 %v1240
    %5880 = vmatprep.subr.mxu0 %v1243
    %5881 = vmatpush1.msra.mxu0 %v1242
    %5882 = vmatprep.subr.mxu0 %v1245
    %5883 = vmatpush1.msra.mxu0 %v1244
    %5884 = vmatprep.subr.mxu0 %v1247
    %5885 = vmatpush1.msra.mxu0 %v1246
    %5886 = vmatprep.subr.mxu0 %v1249
    %5887 = vmatpush1.msra.mxu0 %v1248
    %5888 = vmatprep.subr.mxu0 %v1251
    %5889 = vmatpush1.msra.mxu0 %v1250
    %5890 = vmatprep.subr.mxu0 %v1253
    %5891 = vmatpush1.msra.mxu0 %v1252
    %5892 = vmatprep.subr.mxu0 %v1255
    %5893 = vmatpush1.msra.mxu0 %v1254
    %5894 = vmatprep.subr.mxu0 %v1257
    %5895 = vmatpush1.msra.mxu0 %v1256
    %5896 = vmatprep.subr.mxu0 %v1259
    %5897 = vmatpush1.msra.mxu0 %v1258
    %5898 = vmatprep.subr.mxu0 %v1261
    %5899 = vmatpush1.msra.mxu0 %v1260
    %5900 = vmatprep.subr.mxu0 %v1263
    %5901 = vmatpush1.msra.mxu0 %v1262
    %5902 = vmatprep.subr.mxu0 %v1265
    %5903 = vmatpush1.msra.mxu0 %v1264
    %5904 = vmatprep.subr.mxu0 %v1267
    %5905 = vmatpush1.msra.mxu0 %v1266
    %5906 = vmatprep.subr.mxu0 %v1269
    %5907 = vmatpush1.msra.mxu0 %v1268
    %5908 = vmatprep.subr.mxu0 %v1271
    %5909 = vmatpush1.msra.mxu0 %v1270
    %5910 = vmatprep.subr.mxu0 %v1273
    %5911 = vmatpush1.msra.mxu0 %v1272
    %5912 = vmatprep.subr.mxu0 %v1275
    %5913 = vmatpush1.msra.mxu0 %v1274
    %5914 = vmatprep.subr.mxu0 %v1277
    %5915 = vmatpush1.msra.mxu0 %v1276
    %5916 = vmatprep.subr.mxu0 %v1279
    %5917 = vmatpush1.msra.mxu0 %v1278
    %5918 = vmatprep.subr.mxu0 %v1281
    %5919 = vmatpush1.msra.mxu0 %v1280
    %5920 = vmatprep.subr.mxu0 %v1283
    %5921 = vmatpush1.msra.mxu0 %v1282
    %5922 = vmatprep.subr.mxu0 %v1285
    %5923 = vmatpush1.msra.mxu0 %v1284
    %5924 = vmatprep.mubr.f32.mxu0 %v4120
    %5925 = vmatmul.mubr.f32.gmra.mrb[0].mxu0 %v4112
    %v5926 = vpop.f32.mrb[0].mxu0
    %v5927 = vadd.f32 %v5856, %v5926
    %v5928 = vpop.f32.mrb[0].mxu0
    %v5929 = vadd.f32 %v5858, %v5928
    %5930 = vdwg.mxu0
    %5931 = vmatprep.subr.mxu0 %v1287
    %5932 = vmatpush1.msra.mxu0 %v1286
    %5933 = vmatprep.subr.mxu0 %v1289
    %5934 = vmatpush1.msra.mxu0 %v1288
    %5935 = vmatprep.subr.mxu0 %v1291
    %5936 = vmatpush1.msra.mxu0 %v1290
    %5937 = vmatprep.subr.mxu0 %v1293
    %5938 = vmatpush1.msra.mxu0 %v1292
    %5939 = vmatprep.subr.mxu0 %v1295
    %5940 = vmatpush1.msra.mxu0 %v1294
    %5941 = vmatprep.subr.mxu0 %v1297
    %5942 = vmatpush1.msra.mxu0 %v1296
    %5943 = vmatprep.subr.mxu0 %v1299
    %5944 = vmatpush1.msra.mxu0 %v1298
    %5945 = vmatprep.subr.mxu0 %v1301
    %5946 = vmatpush1.msra.mxu0 %v1300
    %5947 = vmatprep.subr.mxu0 %v1303
    %5948 = vmatpush1.msra.mxu0 %v1302
    %5949 = vmatprep.subr.mxu0 %v1305
    %5950 = vmatpush1.msra.mxu0 %v1304
    %5951 = vmatprep.subr.mxu0 %v1307
    %5952 = vmatpush1.msra.mxu0 %v1306
    %5953 = vmatprep.subr.mxu0 %v1309
    %5954 = vmatpush1.msra.mxu0 %v1308
    %5955 = vmatprep.subr.mxu0 %v1311
    %5956 = vmatpush1.msra.mxu0 %v1310
    %5957 = vmatprep.subr.mxu0 %v1313
    %5958 = vmatpush1.msra.mxu0 %v1312
    %5959 = vmatprep.subr.mxu0 %v1315
    %5960 = vmatpush1.msra.mxu0 %v1314
    %5961 = vmatprep.subr.mxu0 %v1317
    %5962 = vmatpush1.msra.mxu0 %v1316
    %5963 = vmatprep.subr.mxu0 %v1319
    %5964 = vmatpush1.msra.mxu0 %v1318
    %5965 = vmatprep.subr.mxu0 %v1321
    %5966 = vmatpush1.msra.mxu0 %v1320
    %5967 = vmatprep.subr.mxu0 %v1323
    %5968 = vmatpush1.msra.mxu0 %v1322
    %5969 = vmatprep.subr.mxu0 %v1325
    %5970 = vmatpush1.msra.mxu0 %v1324
    %5971 = vmatprep.subr.mxu0 %v1327
    %5972 = vmatpush1.msra.mxu0 %v1326
    %5973 = vmatprep.subr.mxu0 %v1329
    %5974 = vmatpush1.msra.mxu0 %v1328
    %5975 = vmatprep.subr.mxu0 %v1331
    %5976 = vmatpush1.msra.mxu0 %v1330
    %5977 = vmatprep.subr.mxu0 %v1333
    %5978 = vmatpush1.msra.mxu0 %v1332
    %5979 = vmatprep.subr.mxu0 %v1335
    %5980 = vmatpush1.msra.mxu0 %v1334
    %5981 = vmatprep.subr.mxu0 %v1337
    %5982 = vmatpush1.msra.mxu0 %v1336
    %5983 = vmatprep.subr.mxu0 %v1339
    %5984 = vmatpush1.msra.mxu0 %v1338
    %5985 = vmatprep.subr.mxu0 %v1341
    %5986 = vmatpush1.msra.mxu0 %v1340
    %5987 = vmatprep.subr.mxu0 %v1343
    %5988 = vmatpush1.msra.mxu0 %v1342
    %5989 = vmatprep.subr.mxu0 %v1345
    %5990 = vmatpush1.msra.mxu0 %v1344
    %5991 = vmatprep.subr.mxu0 %v1347
    %5992 = vmatpush1.msra.mxu0 %v1346
    %5993 = vmatprep.subr.mxu0 %v1349
    %5994 = vmatpush1.msra.mxu0 %v1348
    %5995 = vmatprep.mubr.f32.mxu0 %v4121
    %5996 = vmatmul.mubr.f32.gmra.mrb[0].mxu0 %v4119
    %v5997 = vpop.f32.mrb[0].mxu0
    %v5998 = vadd.f32 %v5927, %v5997
    %v5999 = vpop.f32.mrb[0].mxu0
    %v6000 = vadd.f32 %v5929, %v5999
    %6001 = vdwg.mxu0
    %6002 = vmatprep.subr.mxu0 %v1351
    %6003 = vmatpush1.msra.mxu0 %v1350
    %6004 = vmatprep.subr.mxu0 %v1353
    %6005 = vmatpush1.msra.mxu0 %v1352
    %6006 = vmatprep.subr.mxu0 %v1355
    %6007 = vmatpush1.msra.mxu0 %v1354
    %6008 = vmatprep.subr.mxu0 %v1357
    %6009 = vmatpush1.msra.mxu0 %v1356
    %6010 = vmatprep.subr.mxu0 %v1359
    %6011 = vmatpush1.msra.mxu0 %v1358
    %6012 = vmatprep.subr.mxu0 %v1361
    %6013 = vmatpush1.msra.mxu0 %v1360
    %6014 = vmatprep.subr.mxu0 %v1363
    %6015 = vmatpush1.msra.mxu0 %v1362
    %6016 = vmatprep.subr.mxu0 %v1365
    %6017 = vmatpush1.msra.mxu0 %v1364
    %6018 = vmatprep.subr.mxu0 %v1367
    %6019 = vmatpush1.msra.mxu0 %v1366
    %6020 = vmatprep.subr.mxu0 %v1369
    %6021 = vmatpush1.msra.mxu0 %v1368
    %6022 = vmatprep.subr.mxu0 %v1371
    %6023 = vmatpush1.msra.mxu0 %v1370
    %6024 = vmatprep.subr.mxu0 %v1373
    %6025 = vmatpush1.msra.mxu0 %v1372
    %6026 = vmatprep.subr.mxu0 %v1375
    %6027 = vmatpush1.msra.mxu0 %v1374
    %6028 = vmatprep.subr.mxu0 %v1377
    %6029 = vmatpush1.msra.mxu0 %v1376
    %6030 = vmatprep.subr.mxu0 %v1379
    %6031 = vmatpush1.msra.mxu0 %v1378
    %6032 = vmatprep.subr.mxu0 %v1381
    %6033 = vmatpush1.msra.mxu0 %v1380
    %6034 = vmatprep.subr.mxu0 %v1383
    %6035 = vmatpush1.msra.mxu0 %v1382
    %6036 = vmatprep.subr.mxu0 %v1385
    %6037 = vmatpush1.msra.mxu0 %v1384
    %6038 = vmatprep.subr.mxu0 %v1387
    %6039 = vmatpush1.msra.mxu0 %v1386
    %6040 = vmatprep.subr.mxu0 %v1389
    %6041 = vmatpush1.msra.mxu0 %v1388
    %6042 = vmatprep.subr.mxu0 %v1391
    %6043 = vmatpush1.msra.mxu0 %v1390
    %6044 = vmatprep.subr.mxu0 %v1393
    %6045 = vmatpush1.msra.mxu0 %v1392
    %6046 = vmatprep.subr.mxu0 %v1395
    %6047 = vmatpush1.msra.mxu0 %v1394
    %6048 = vmatprep.subr.mxu0 %v1397
    %6049 = vmatpush1.msra.mxu0 %v1396
    %6050 = vmatprep.subr.mxu0 %v1399
    %6051 = vmatpush1.msra.mxu0 %v1398
    %6052 = vmatprep.subr.mxu0 %v1401
    %6053 = vmatpush1.msra.mxu0 %v1400
    %6054 = vmatprep.subr.mxu0 %v1403
    %6055 = vmatpush1.msra.mxu0 %v1402
    %6056 = vmatprep.subr.mxu0 %v1405
    %6057 = vmatpush1.msra.mxu0 %v1404
    %6058 = vmatprep.subr.mxu0 %v1407
    %6059 = vmatpush1.msra.mxu0 %v1406
    %6060 = vmatprep.subr.mxu0 %v1409
    %6061 = vmatpush1.msra.mxu0 %v1408
    %6062 = vmatprep.subr.mxu0 %v1411
    %6063 = vmatpush1.msra.mxu0 %v1410
    %6064 = vmatprep.subr.mxu0 %v1413
    %6065 = vmatpush1.msra.mxu0 %v1412
    %6066 = vmatprep.mubr.f32.mxu0 %v4137
    %6067 = vmatmul.mubr.f32.gmra.mrb[0].mxu0 %v4129
    %v6068 = vpop.f32.mrb[0].mxu0
    %v6069 = vadd.f32 %v5998, %v6068
    %v6070 = vpop.f32.mrb[0].mxu0
    %v6071 = vadd.f32 %v6000, %v6070
    %6072 = vdwg.mxu0
    %6073 = vmatprep.subr.mxu0 %v1415
    %6074 = vmatpush1.msra.mxu0 %v1414
    %6075 = vmatprep.subr.mxu0 %v1417
    %6076 = vmatpush1.msra.mxu0 %v1416
    %6077 = vmatprep.subr.mxu0 %v1419
    %6078 = vmatpush1.msra.mxu0 %v1418
    %6079 = vmatprep.subr.mxu0 %v1421
    %6080 = vmatpush1.msra.mxu0 %v1420
    %6081 = vmatprep.subr.mxu0 %v1423
    %6082 = vmatpush1.msra.mxu0 %v1422
    %6083 = vmatprep.subr.mxu0 %v1425
    %6084 = vmatpush1.msra.mxu0 %v1424
    %6085 = vmatprep.subr.mxu0 %v1427
    %6086 = vmatpush1.msra.mxu0 %v1426
    %6087 = vmatprep.subr.mxu0 %v1429
    %6088 = vmatpush1.msra.mxu0 %v1428
    %6089 = vmatprep.subr.mxu0 %v1431
    %6090 = vmatpush1.msra.mxu0 %v1430
    %6091 = vmatprep.subr.mxu0 %v1433
    %6092 = vmatpush1.msra.mxu0 %v1432
    %6093 = vmatprep.subr.mxu0 %v1435
    %6094 = vmatpush1.msra.mxu0 %v1434
    %6095 = vmatprep.subr.mxu0 %v1437
    %6096 = vmatpush1.msra.mxu0 %v1436
    %6097 = vmatprep.subr.mxu0 %v1439
    %6098 = vmatpush1.msra.mxu0 %v1438
    %6099 = vmatprep.subr.mxu0 %v1441
    %6100 = vmatpush1.msra.mxu0 %v1440
    %6101 = vmatprep.subr.mxu0 %v1443
    %6102 = vmatpush1.msra.mxu0 %v1442
    %6103 = vmatprep.subr.mxu0 %v1445
    %6104 = vmatpush1.msra.mxu0 %v1444
    %6105 = vmatprep.subr.mxu0 %v1447
    %6106 = vmatpush1.msra.mxu0 %v1446
    %6107 = vmatprep.subr.mxu0 %v1449
    %6108 = vmatpush1.msra.mxu0 %v1448
    %6109 = vmatprep.subr.mxu0 %v1451
    %6110 = vmatpush1.msra.mxu0 %v1450
    %6111 = vmatprep.subr.mxu0 %v1453
    %6112 = vmatpush1.msra.mxu0 %v1452
    %6113 = vmatprep.subr.mxu0 %v1455
    %6114 = vmatpush1.msra.mxu0 %v1454
    %6115 = vmatprep.subr.mxu0 %v1457
    %6116 = vmatpush1.msra.mxu0 %v1456
    %6117 = vmatprep.subr.mxu0 %v1459
    %6118 = vmatpush1.msra.mxu0 %v1458
    %6119 = vmatprep.subr.mxu0 %v1461
    %6120 = vmatpush1.msra.mxu0 %v1460
    %6121 = vmatprep.subr.mxu0 %v1463
    %6122 = vmatpush1.msra.mxu0 %v1462
    %6123 = vmatprep.subr.mxu0 %v1465
    %6124 = vmatpush1.msra.mxu0 %v1464
    %6125 = vmatprep.subr.mxu0 %v1467
    %6126 = vmatpush1.msra.mxu0 %v1466
    %6127 = vmatprep.subr.mxu0 %v1469
    %6128 = vmatpush1.msra.mxu0 %v1468
    %6129 = vmatprep.subr.mxu0 %v1471
    %6130 = vmatpush1.msra.mxu0 %v1470
    %6131 = vmatprep.subr.mxu0 %v1473
    %6132 = vmatpush1.msra.mxu0 %v1472
    %6133 = vmatprep.subr.mxu0 %v1475
    %6134 = vmatpush1.msra.mxu0 %v1474
    %6135 = vmatprep.subr.mxu0 %v1477
    %6136 = vmatpush1.msra.mxu0 %v1476
    %6137 = vmatprep.mubr.f32.mxu0 %v4138
    %6138 = vmatmul.mubr.f32.gmra.mrb[0].mxu0 %v4136
    %v6139 = vpop.f32.mrb[0].mxu0
    %v6140 = vadd.f32 %v6069, %v6139
    %v6141 = vpop.f32.mrb[0].mxu0
    %v6142 = vadd.f32 %v6071, %v6141
    %6143 = vdwg.mxu0
    %6144 = vmatprep.subr.mxu0 %v1479
    %6145 = vmatpush1.msra.mxu0 %v1478
    %6146 = vmatprep.subr.mxu0 %v1481
    %6147 = vmatpush1.msra.mxu0 %v1480
    %6148 = vmatprep.subr.mxu0 %v1483
    %6149 = vmatpush1.msra.mxu0 %v1482
    %6150 = vmatprep.subr.mxu0 %v1485
    %6151 = vmatpush1.msra.mxu0 %v1484
    %6152 = vmatprep.subr.mxu0 %v1487
    %6153 = vmatpush1.msra.mxu0 %v1486
    %6154 = vmatprep.subr.mxu0 %v1489
    %6155 = vmatpush1.msra.mxu0 %v1488
    %6156 = vmatprep.subr.mxu0 %v1491
    %6157 = vmatpush1.msra.mxu0 %v1490
    %6158 = vmatprep.subr.mxu0 %v1493
    %6159 = vmatpush1.msra.mxu0 %v1492
    %6160 = vmatprep.subr.mxu0 %v1495
    %6161 = vmatpush1.msra.mxu0 %v1494
    %6162 = vmatprep.subr.mxu0 %v1497
    %6163 = vmatpush1.msra.mxu0 %v1496
    %6164 = vmatprep.subr.mxu0 %v1499
    %6165 = vmatpush1.msra.mxu0 %v1498
    %6166 = vmatprep.subr.mxu0 %v1501
    %6167 = vmatpush1.msra.mxu0 %v1500
    %6168 = vmatprep.subr.mxu0 %v1503
    %6169 = vmatpush1.msra.mxu0 %v1502
    %6170 = vmatprep.subr.mxu0 %v1505
    %6171 = vmatpush1.msra.mxu0 %v1504
    %6172 = vmatprep.subr.mxu0 %v1507
    %6173 = vmatpush1.msra.mxu0 %v1506
    %6174 = vmatprep.subr.mxu0 %v1509
    %6175 = vmatpush1.msra.mxu0 %v1508
    %6176 = vmatprep.subr.mxu0 %v1511
    %6177 = vmatpush1.msra.mxu0 %v1510
    %6178 = vmatprep.subr.mxu0 %v1513
    %6179 = vmatpush1.msra.mxu0 %v1512
    %6180 = vmatprep.subr.mxu0 %v1515
    %6181 = vmatpush1.msra.mxu0 %v1514
    %6182 = vmatprep.subr.mxu0 %v1517
    %6183 = vmatpush1.msra.mxu0 %v1516
    %6184 = vmatprep.subr.mxu0 %v1519
    %6185 = vmatpush1.msra.mxu0 %v1518
    %6186 = vmatprep.subr.mxu0 %v1521
    %6187 = vmatpush1.msra.mxu0 %v1520
    %6188 = vmatprep.subr.mxu0 %v1523
    %6189 = vmatpush1.msra.mxu0 %v1522
    %6190 = vmatprep.subr.mxu0 %v1525
    %6191 = vmatpush1.msra.mxu0 %v1524
    %6192 = vmatprep.subr.mxu0 %v1527
    %6193 = vmatpush1.msra.mxu0 %v1526
    %6194 = vmatprep.subr.mxu0 %v1529
    %6195 = vmatpush1.msra.mxu0 %v1528
    %6196 = vmatprep.subr.mxu0 %v1531
    %6197 = vmatpush1.msra.mxu0 %v1530
    %6198 = vmatprep.subr.mxu0 %v1533
    %6199 = vmatpush1.msra.mxu0 %v1532
    %6200 = vmatprep.subr.mxu0 %v1535
    %6201 = vmatpush1.msra.mxu0 %v1534
    %6202 = vmatprep.subr.mxu0 %v1537
    %6203 = vmatpush1.msra.mxu0 %v1536
    %6204 = vmatprep.subr.mxu0 %v1539
    %6205 = vmatpush1.msra.mxu0 %v1538
    %6206 = vmatprep.subr.mxu0 %v1541
    %6207 = vmatpush1.msra.mxu0 %v1540
    %6208 = vmatprep.mubr.f32.mxu0 %v4154
    %6209 = vmatmul.mubr.f32.gmra.mrb[0].mxu0 %v4146
    %v6210 = vpop.f32.mrb[0].mxu0
    %v6211 = vadd.f32 %v6140, %v6210
    %v6212 = vpop.f32.mrb[0].mxu0
    %v6213 = vadd.f32 %v6142, %v6212
    %6214 = vdwg.mxu0
    %6215 = vmatprep.subr.mxu0 %v1543
    %6216 = vmatpush1.msra.mxu0 %v1542
    %6217 = vmatprep.subr.mxu0 %v1545
    %6218 = vmatpush1.msra.mxu0 %v1544
    %6219 = vmatprep.subr.mxu0 %v1547
    %6220 = vmatpush1.msra.mxu0 %v1546
    %6221 = vmatprep.subr.mxu0 %v1549
    %6222 = vmatpush1.msra.mxu0 %v1548
    %6223 = vmatprep.subr.mxu0 %v1551
    %6224 = vmatpush1.msra.mxu0 %v1550
    %6225 = vmatprep.subr.mxu0 %v1553
    %6226 = vmatpush1.msra.mxu0 %v1552
    %6227 = vmatprep.subr.mxu0 %v1555
    %6228 = vmatpush1.msra.mxu0 %v1554
    %6229 = vmatprep.subr.mxu0 %v1557
    %6230 = vmatpush1.msra.mxu0 %v1556
    %6231 = vmatprep.subr.mxu0 %v1559
    %6232 = vmatpush1.msra.mxu0 %v1558
    %6233 = vmatprep.subr.mxu0 %v1561
    %6234 = vmatpush1.msra.mxu0 %v1560
    %6235 = vmatprep.subr.mxu0 %v1563
    %6236 = vmatpush1.msra.mxu0 %v1562
    %6237 = vmatprep.subr.mxu0 %v1565
    %6238 = vmatpush1.msra.mxu0 %v1564
    %6239 = vmatprep.subr.mxu0 %v1567
    %6240 = vmatpush1.msra.mxu0 %v1566
    %6241 = vmatprep.subr.mxu0 %v1569
    %6242 = vmatpush1.msra.mxu0 %v1568
    %6243 = vmatprep.subr.mxu0 %v1571
    %6244 = vmatpush1.msra.mxu0 %v1570
    %6245 = vmatprep.subr.mxu0 %v1573
    %6246 = vmatpush1.msra.mxu0 %v1572
    %6247 = vmatprep.subr.mxu0 %v1575
    %6248 = vmatpush1.msra.mxu0 %v1574
    %6249 = vmatprep.subr.mxu0 %v1577
    %6250 = vmatpush1.msra.mxu0 %v1576
    %6251 = vmatprep.subr.mxu0 %v1579
    %6252 = vmatpush1.msra.mxu0 %v1578
    %6253 = vmatprep.subr.mxu0 %v1581
    %6254 = vmatpush1.msra.mxu0 %v1580
    %6255 = vmatprep.subr.mxu0 %v1583
    %6256 = vmatpush1.msra.mxu0 %v1582
    %6257 = vmatprep.subr.mxu0 %v1585
    %6258 = vmatpush1.msra.mxu0 %v1584
    %6259 = vmatprep.subr.mxu0 %v1587
    %6260 = vmatpush1.msra.mxu0 %v1586
    %6261 = vmatprep.subr.mxu0 %v1589
    %6262 = vmatpush1.msra.mxu0 %v1588
    %6263 = vmatprep.subr.mxu0 %v1591
    %6264 = vmatpush1.msra.mxu0 %v1590
    %6265 = vmatprep.subr.mxu0 %v1593
    %6266 = vmatpush1.msra.mxu0 %v1592
    %6267 = vmatprep.subr.mxu0 %v1595
    %6268 = vmatpush1.msra.mxu0 %v1594
    %6269 = vmatprep.subr.mxu0 %v1597
    %6270 = vmatpush1.msra.mxu0 %v1596
    %6271 = vmatprep.subr.mxu0 %v1599
    %6272 = vmatpush1.msra.mxu0 %v1598
    %6273 = vmatprep.subr.mxu0 %v1601
    %6274 = vmatpush1.msra.mxu0 %v1600
    %6275 = vmatprep.subr.mxu0 %v1603
    %6276 = vmatpush1.msra.mxu0 %v1602
    %6277 = vmatprep.subr.mxu0 %v1605
    %6278 = vmatpush1.msra.mxu0 %v1604
    %6279 = vmatprep.mubr.f32.mxu0 %v4155
    %6280 = vmatmul.mubr.f32.gmra.mrb[0].mxu0 %v4153
    %v6281 = vpop.f32.mrb[0].mxu0
    %v6282 = vadd.f32 %v6211, %v6281
    %v6283 = vpop.f32.mrb[0].mxu0
    %v6284 = vadd.f32 %v6213, %v6283
    %6285 = vdwg.mxu0
    %6286 = vmatprep.subr.mxu0 %v1607
    %6287 = vmatpush1.msra.mxu0 %v1606
    %6288 = vmatprep.subr.mxu0 %v1609
    %6289 = vmatpush1.msra.mxu0 %v1608
    %6290 = vmatprep.subr.mxu0 %v1611
    %6291 = vmatpush1.msra.mxu0 %v1610
    %6292 = vmatprep.subr.mxu0 %v1613
    %6293 = vmatpush1.msra.mxu0 %v1612
    %6294 = vmatprep.subr.mxu0 %v1615
    %6295 = vmatpush1.msra.mxu0 %v1614
    %6296 = vmatprep.subr.mxu0 %v1617
    %6297 = vmatpush1.msra.mxu0 %v1616
    %6298 = vmatprep.subr.mxu0 %v1619
    %6299 = vmatpush1.msra.mxu0 %v1618
    %6300 = vmatprep.subr.mxu0 %v1621
    %6301 = vmatpush1.msra.mxu0 %v1620
    %6302 = vmatprep.subr.mxu0 %v1623
    %6303 = vmatpush1.msra.mxu0 %v1622
    %6304 = vmatprep.subr.mxu0 %v1625
    %6305 = vmatpush1.msra.mxu0 %v1624
    %6306 = vmatprep.subr.mxu0 %v1627
    %6307 = vmatpush1.msra.mxu0 %v1626
    %6308 = vmatprep.subr.mxu0 %v1629
    %6309 = vmatpush1.msra.mxu0 %v1628
    %6310 = vmatprep.subr.mxu0 %v1631
    %6311 = vmatpush1.msra.mxu0 %v1630
    %6312 = vmatprep.subr.mxu0 %v1633
    %6313 = vmatpush1.msra.mxu0 %v1632
    %6314 = vmatprep.subr.mxu0 %v1635
    %6315 = vmatpush1.msra.mxu0 %v1634
    %6316 = vmatprep.subr.mxu0 %v1637
    %6317 = vmatpush1.msra.mxu0 %v1636
    %6318 = vmatprep.subr.mxu0 %v1639
    %6319 = vmatpush1.msra.mxu0 %v1638
    %6320 = vmatprep.subr.mxu0 %v1641
    %6321 = vmatpush1.msra.mxu0 %v1640
    %6322 = vmatprep.subr.mxu0 %v1643
    %6323 = vmatpush1.msra.mxu0 %v1642
    %6324 = vmatprep.subr.mxu0 %v1645
    %6325 = vmatpush1.msra.mxu0 %v1644
    %6326 = vmatprep.subr.mxu0 %v1647
    %6327 = vmatpush1.msra.mxu0 %v1646
    %6328 = vmatprep.subr.mxu0 %v1649
    %6329 = vmatpush1.msra.mxu0 %v1648
    %6330 = vmatprep.subr.mxu0 %v1651
    %6331 = vmatpush1.msra.mxu0 %v1650
    %6332 = vmatprep.subr.mxu0 %v1653
    %6333 = vmatpush1.msra.mxu0 %v1652
    %6334 = vmatprep.subr.mxu0 %v1655
    %6335 = vmatpush1.msra.mxu0 %v1654
    %6336 = vmatprep.subr.mxu0 %v1657
    %6337 = vmatpush1.msra.mxu0 %v1656
    %6338 = vmatprep.subr.mxu0 %v1659
    %6339 = vmatpush1.msra.mxu0 %v1658
    %6340 = vmatprep.subr.mxu0 %v1661
    %6341 = vmatpush1.msra.mxu0 %v1660
    %6342 = vmatprep.subr.mxu0 %v1663
    %6343 = vmatpush1.msra.mxu0 %v1662
    %6344 = vmatprep.subr.mxu0 %v1665
    %6345 = vmatpush1.msra.mxu0 %v1664
    %6346 = vmatprep.subr.mxu0 %v1667
    %6347 = vmatpush1.msra.mxu0 %v1666
    %6348 = vmatprep.subr.mxu0 %v1669
    %6349 = vmatpush1.msra.mxu0 %v1668
    %6350 = vmatprep.mubr.f32.mxu0 %v4171
    %6351 = vmatmul.mubr.f32.gmra.mrb[0].mxu0 %v4163
    %v6352 = vpop.f32.mrb[0].mxu0
    %v6353 = vadd.f32 %v6282, %v6352
    %v6354 = vpop.f32.mrb[0].mxu0
    %v6355 = vadd.f32 %v6284, %v6354
    %6356 = vdwg.mxu0
    %6357 = vmatprep.subr.mxu0 %v1671
    %6358 = vmatpush1.msra.mxu0 %v1670
    %6359 = vmatprep.subr.mxu0 %v1673
    %6360 = vmatpush1.msra.mxu0 %v1672
    %6361 = vmatprep.subr.mxu0 %v1675
    %6362 = vmatpush1.msra.mxu0 %v1674
    %6363 = vmatprep.subr.mxu0 %v1677
    %6364 = vmatpush1.msra.mxu0 %v1676
    %6365 = vmatprep.subr.mxu0 %v1679
    %6366 = vmatpush1.msra.mxu0 %v1678
    %6367 = vmatprep.subr.mxu0 %v1681
    %6368 = vmatpush1.msra.mxu0 %v1680
    %6369 = vmatprep.subr.mxu0 %v1683
    %6370 = vmatpush1.msra.mxu0 %v1682
    %6371 = vmatprep.subr.mxu0 %v1685
    %6372 = vmatpush1.msra.mxu0 %v1684
    %6373 = vmatprep.subr.mxu0 %v1687
    %6374 = vmatpush1.msra.mxu0 %v1686
    %6375 = vmatprep.subr.mxu0 %v1689
    %6376 = vmatpush1.msra.mxu0 %v1688
    %6377 = vmatprep.subr.mxu0 %v1691
    %6378 = vmatpush1.msra.mxu0 %v1690
    %6379 = vmatprep.subr.mxu0 %v1693
    %6380 = vmatpush1.msra.mxu0 %v1692
    %6381 = vmatprep.subr.mxu0 %v1695
    %6382 = vmatpush1.msra.mxu0 %v1694
    %6383 = vmatprep.subr.mxu0 %v1697
    %6384 = vmatpush1.msra.mxu0 %v1696
    %6385 = vmatprep.subr.mxu0 %v1699
    %6386 = vmatpush1.msra.mxu0 %v1698
    %6387 = vmatprep.subr.mxu0 %v1701
    %6388 = vmatpush1.msra.mxu0 %v1700
    %6389 = vmatprep.subr.mxu0 %v1703
    %6390 = vmatpush1.msra.mxu0 %v1702
    %6391 = vmatprep.subr.mxu0 %v1705
    %6392 = vmatpush1.msra.mxu0 %v1704
    %6393 = vmatprep.subr.mxu0 %v1707
    %6394 = vmatpush1.msra.mxu0 %v1706
    %6395 = vmatprep.subr.mxu0 %v1709
    %6396 = vmatpush1.msra.mxu0 %v1708
    %6397 = vmatprep.subr.mxu0 %v1711
    %6398 = vmatpush1.msra.mxu0 %v1710
    %6399 = vmatprep.subr.mxu0 %v1713
    %6400 = vmatpush1.msra.mxu0 %v1712
    %6401 = vmatprep.subr.mxu0 %v1715
    %6402 = vmatpush1.msra.mxu0 %v1714
    %6403 = vmatprep.subr.mxu0 %v1717
    %6404 = vmatpush1.msra.mxu0 %v1716
    %6405 = vmatprep.subr.mxu0 %v1719
    %6406 = vmatpush1.msra.mxu0 %v1718
    %6407 = vmatprep.subr.mxu0 %v1721
    %6408 = vmatpush1.msra.mxu0 %v1720
    %6409 = vmatprep.subr.mxu0 %v1723
    %6410 = vmatpush1.msra.mxu0 %v1722
    %6411 = vmatprep.subr.mxu0 %v1725
    %6412 = vmatpush1.msra.mxu0 %v1724
    %6413 = vmatprep.subr.mxu0 %v1727
    %6414 = vmatpush1.msra.mxu0 %v1726
    %6415 = vmatprep.subr.mxu0 %v1729
    %6416 = vmatpush1.msra.mxu0 %v1728
    %6417 = vmatprep.subr.mxu0 %v1731
    %6418 = vmatpush1.msra.mxu0 %v1730
    %6419 = vmatprep.subr.mxu0 %v1733
    %6420 = vmatpush1.msra.mxu0 %v1732
    %6421 = vmatprep.mubr.f32.mxu0 %v4172
    %6422 = vmatmul.mubr.f32.gmra.mrb[0].mxu0 %v4170
    %v6423 = vpop.f32.mrb[0].mxu0
    %v6424 = vadd.f32 %v6353, %v6423
    %v6425 = vpop.f32.mrb[0].mxu0
    %v6426 = vadd.f32 %v6355, %v6425
    %6427 = vdwg.mxu0
    %6428 = vmatprep.subr.mxu0 %v1735
    %6429 = vmatpush1.msra.mxu0 %v1734
    %6430 = vmatprep.subr.mxu0 %v1737
    %6431 = vmatpush1.msra.mxu0 %v1736
    %6432 = vmatprep.subr.mxu0 %v1739
    %6433 = vmatpush1.msra.mxu0 %v1738
    %6434 = vmatprep.subr.mxu0 %v1741
    %6435 = vmatpush1.msra.mxu0 %v1740
    %6436 = vmatprep.subr.mxu0 %v1743
    %6437 = vmatpush1.msra.mxu0 %v1742
    %6438 = vmatprep.subr.mxu0 %v1745
    %6439 = vmatpush1.msra.mxu0 %v1744
    %6440 = vmatprep.subr.mxu0 %v1747
    %6441 = vmatpush1.msra.mxu0 %v1746
    %6442 = vmatprep.subr.mxu0 %v1749
    %6443 = vmatpush1.msra.mxu0 %v1748
    %6444 = vmatprep.subr.mxu0 %v1751
    %6445 = vmatpush1.msra.mxu0 %v1750
    %6446 = vmatprep.subr.mxu0 %v1753
    %6447 = vmatpush1.msra.mxu0 %v1752
    %6448 = vmatprep.subr.mxu0 %v1755
    %6449 = vmatpush1.msra.mxu0 %v1754
    %6450 = vmatprep.subr.mxu0 %v1757
    %6451 = vmatpush1.msra.mxu0 %v1756
    %6452 = vmatprep.subr.mxu0 %v1759
    %6453 = vmatpush1.msra.mxu0 %v1758
    %6454 = vmatprep.subr.mxu0 %v1761
    %6455 = vmatpush1.msra.mxu0 %v1760
    %6456 = vmatprep.subr.mxu0 %v1763
    %6457 = vmatpush1.msra.mxu0 %v1762
    %6458 = vmatprep.subr.mxu0 %v1765
    %6459 = vmatpush1.msra.mxu0 %v1764
    %6460 = vmatprep.subr.mxu0 %v1767
    %6461 = vmatpush1.msra.mxu0 %v1766
    %6462 = vmatprep.subr.mxu0 %v1769
    %6463 = vmatpush1.msra.mxu0 %v1768
    %6464 = vmatprep.subr.mxu0 %v1771
    %6465 = vmatpush1.msra.mxu0 %v1770
    %6466 = vmatprep.subr.mxu0 %v1773
    %6467 = vmatpush1.msra.mxu0 %v1772
    %6468 = vmatprep.subr.mxu0 %v1775
    %6469 = vmatpush1.msra.mxu0 %v1774
    %6470 = vmatprep.subr.mxu0 %v1777
    %6471 = vmatpush1.msra.mxu0 %v1776
    %6472 = vmatprep.subr.mxu0 %v1779
    %6473 = vmatpush1.msra.mxu0 %v1778
    %6474 = vmatprep.subr.mxu0 %v1781
    %6475 = vmatpush1.msra.mxu0 %v1780
    %6476 = vmatprep.subr.mxu0 %v1783
    %6477 = vmatpush1.msra.mxu0 %v1782
    %6478 = vmatprep.subr.mxu0 %v1785
    %6479 = vmatpush1.msra.mxu0 %v1784
    %6480 = vmatprep.subr.mxu0 %v1787
    %6481 = vmatpush1.msra.mxu0 %v1786
    %6482 = vmatprep.subr.mxu0 %v1789
    %6483 = vmatpush1.msra.mxu0 %v1788
    %6484 = vmatprep.subr.mxu0 %v1791
    %6485 = vmatpush1.msra.mxu0 %v1790
    %6486 = vmatprep.subr.mxu0 %v1793
    %6487 = vmatpush1.msra.mxu0 %v1792
    %6488 = vmatprep.subr.mxu0 %v1795
    %6489 = vmatpush1.msra.mxu0 %v1794
    %6490 = vmatprep.subr.mxu0 %v1797
    %6491 = vmatpush1.msra.mxu0 %v1796
    %6492 = vmatprep.mubr.f32.mxu0 %v4188
    %6493 = vmatmul.mubr.f32.gmra.mrb[0].mxu0 %v4180
    %v6494 = vpop.f32.mrb[0].mxu0
    %v6495 = vadd.f32 %v6424, %v6494
    %v6496 = vpop.f32.mrb[0].mxu0
    %v6497 = vadd.f32 %v6426, %v6496
    %6498 = vdwg.mxu0
    %6499 = vmatprep.subr.mxu0 %v1799
    %6500 = vmatpush1.msra.mxu0 %v1798
    %6501 = vmatprep.subr.mxu0 %v1801
    %6502 = vmatpush1.msra.mxu0 %v1800
    %6503 = vmatprep.subr.mxu0 %v1803
    %6504 = vmatpush1.msra.mxu0 %v1802
    %6505 = vmatprep.subr.mxu0 %v1805
    %6506 = vmatpush1.msra.mxu0 %v1804
    %6507 = vmatprep.subr.mxu0 %v1807
    %6508 = vmatpush1.msra.mxu0 %v1806
    %6509 = vmatprep.subr.mxu0 %v1809
    %6510 = vmatpush1.msra.mxu0 %v1808
    %6511 = vmatprep.subr.mxu0 %v1811
    %6512 = vmatpush1.msra.mxu0 %v1810
    %6513 = vmatprep.subr.mxu0 %v1813
    %6514 = vmatpush1.msra.mxu0 %v1812
    %6515 = vmatprep.subr.mxu0 %v1815
    %6516 = vmatpush1.msra.mxu0 %v1814
    %6517 = vmatprep.subr.mxu0 %v1817
    %6518 = vmatpush1.msra.mxu0 %v1816
    %6519 = vmatprep.subr.mxu0 %v1819
    %6520 = vmatpush1.msra.mxu0 %v1818
    %6521 = vmatprep.subr.mxu0 %v1821
    %6522 = vmatpush1.msra.mxu0 %v1820
    %6523 = vmatprep.subr.mxu0 %v1823
    %6524 = vmatpush1.msra.mxu0 %v1822
    %6525 = vmatprep.subr.mxu0 %v1825
    %6526 = vmatpush1.msra.mxu0 %v1824
    %6527 = vmatprep.subr.mxu0 %v1827
    %6528 = vmatpush1.msra.mxu0 %v1826
    %6529 = vmatprep.subr.mxu0 %v1829
    %6530 = vmatpush1.msra.mxu0 %v1828
    %6531 = vmatprep.subr.mxu0 %v1831
    %6532 = vmatpush1.msra.mxu0 %v1830
    %6533 = vmatprep.subr.mxu0 %v1833
    %6534 = vmatpush1.msra.mxu0 %v1832
    %6535 = vmatprep.subr.mxu0 %v1835
    %6536 = vmatpush1.msra.mxu0 %v1834
    %6537 = vmatprep.subr.mxu0 %v1837
    %6538 = vmatpush1.msra.mxu0 %v1836
    %6539 = vmatprep.subr.mxu0 %v1839
    %6540 = vmatpush1.msra.mxu0 %v1838
    %6541 = vmatprep.subr.mxu0 %v1841
    %6542 = vmatpush1.msra.mxu0 %v1840
    %6543 = vmatprep.subr.mxu0 %v1843
    %6544 = vmatpush1.msra.mxu0 %v1842
    %6545 = vmatprep.subr.mxu0 %v1845
    %6546 = vmatpush1.msra.mxu0 %v1844
    %6547 = vmatprep.subr.mxu0 %v1847
    %6548 = vmatpush1.msra.mxu0 %v1846
    %6549 = vmatprep.subr.mxu0 %v1849
    %6550 = vmatpush1.msra.mxu0 %v1848
    %6551 = vmatprep.subr.mxu0 %v1851
    %6552 = vmatpush1.msra.mxu0 %v1850
    %6553 = vmatprep.subr.mxu0 %v1853
    %6554 = vmatpush1.msra.mxu0 %v1852
    %6555 = vmatprep.subr.mxu0 %v1855
    %6556 = vmatpush1.msra.mxu0 %v1854
    %6557 = vmatprep.subr.mxu0 %v1857
    %6558 = vmatpush1.msra.mxu0 %v1856
    %6559 = vmatprep.subr.mxu0 %v1859
    %6560 = vmatpush1.msra.mxu0 %v1858
    %6561 = vmatprep.subr.mxu0 %v1861
    %6562 = vmatpush1.msra.mxu0 %v1860
    %6563 = vmatprep.mubr.f32.mxu0 %v4189
    %6564 = vmatmul.mubr.f32.gmra.mrb[0].mxu0 %v4187
    %v6565 = vpop.f32.mrb[0].mxu0
    %v6566 = vadd.f32 %v6495, %v6565
    %v6567 = vpop.f32.mrb[0].mxu0
    %v6568 = vadd.f32 %v6497, %v6567
    %6569 = vdwg.mxu0
    %6570 = vmatprep.subr.mxu0 %v1863
    %6571 = vmatpush1.msra.mxu0 %v1862
    %6572 = vmatprep.subr.mxu0 %v1865
    %6573 = vmatpush1.msra.mxu0 %v1864
    %6574 = vmatprep.subr.mxu0 %v1867
    %6575 = vmatpush1.msra.mxu0 %v1866
    %6576 = vmatprep.subr.mxu0 %v1869
    %6577 = vmatpush1.msra.mxu0 %v1868
    %6578 = vmatprep.subr.mxu0 %v1871
    %6579 = vmatpush1.msra.mxu0 %v1870
    %6580 = vmatprep.subr.mxu0 %v1873
    %6581 = vmatpush1.msra.mxu0 %v1872
    %6582 = vmatprep.subr.mxu0 %v1875
    %6583 = vmatpush1.msra.mxu0 %v1874
    %6584 = vmatprep.subr.mxu0 %v1877
    %6585 = vmatpush1.msra.mxu0 %v1876
    %6586 = vmatprep.subr.mxu0 %v1879
    %6587 = vmatpush1.msra.mxu0 %v1878
    %6588 = vmatprep.subr.mxu0 %v1881
    %6589 = vmatpush1.msra.mxu0 %v1880
    %6590 = vmatprep.subr.mxu0 %v1883
    %6591 = vmatpush1.msra.mxu0 %v1882
    %6592 = vmatprep.subr.mxu0 %v1885
    %6593 = vmatpush1.msra.mxu0 %v1884
    %6594 = vmatprep.subr.mxu0 %v1887
    %6595 = vmatpush1.msra.mxu0 %v1886
    %6596 = vmatprep.subr.mxu0 %v1889
    %6597 = vmatpush1.msra.mxu0 %v1888
    %6598 = vmatprep.subr.mxu0 %v1891
    %6599 = vmatpush1.msra.mxu0 %v1890
    %6600 = vmatprep.subr.mxu0 %v1893
    %6601 = vmatpush1.msra.mxu0 %v1892
    %6602 = vmatprep.subr.mxu0 %v1895
    %6603 = vmatpush1.msra.mxu0 %v1894
    %6604 = vmatprep.subr.mxu0 %v1897
    %6605 = vmatpush1.msra.mxu0 %v1896
    %6606 = vmatprep.subr.mxu0 %v1899
    %6607 = vmatpush1.msra.mxu0 %v1898
    %6608 = vmatprep.subr.mxu0 %v1901
    %6609 = vmatpush1.msra.mxu0 %v1900
    %6610 = vmatprep.subr.mxu0 %v1903
    %6611 = vmatpush1.msra.mxu0 %v1902
    %6612 = vmatprep.subr.mxu0 %v1905
    %6613 = vmatpush1.msra.mxu0 %v1904
    %6614 = vmatprep.subr.mxu0 %v1907
    %6615 = vmatpush1.msra.mxu0 %v1906
    %6616 = vmatprep.subr.mxu0 %v1909
    %6617 = vmatpush1.msra.mxu0 %v1908
    %6618 = vmatprep.subr.mxu0 %v1911
    %6619 = vmatpush1.msra.mxu0 %v1910
    %6620 = vmatprep.subr.mxu0 %v1913
    %6621 = vmatpush1.msra.mxu0 %v1912
    %6622 = vmatprep.subr.mxu0 %v1915
    %6623 = vmatpush1.msra.mxu0 %v1914
    %6624 = vmatprep.subr.mxu0 %v1917
    %6625 = vmatpush1.msra.mxu0 %v1916
    %6626 = vmatprep.subr.mxu0 %v1919
    %6627 = vmatpush1.msra.mxu0 %v1918
    %6628 = vmatprep.subr.mxu0 %v1921
    %6629 = vmatpush1.msra.mxu0 %v1920
    %6630 = vmatprep.subr.mxu0 %v1923
    %6631 = vmatpush1.msra.mxu0 %v1922
    %6632 = vmatprep.subr.mxu0 %v1925
    %6633 = vmatpush1.msra.mxu0 %v1924
    %6634 = vmatprep.mubr.f32.mxu0 %v4205
    %6635 = vmatmul.mubr.f32.gmra.mrb[0].mxu0 %v4197
    %v6636 = vpop.f32.mrb[0].mxu0
    %v6637 = vadd.f32 %v6566, %v6636
    %v6638 = vpop.f32.mrb[0].mxu0
    %v6639 = vadd.f32 %v6568, %v6638
    %6640 = vdwg.mxu0
    %6641 = vmatprep.subr.mxu0 %v1927
    %6642 = vmatpush1.msra.mxu0 %v1926
    %6643 = vmatprep.subr.mxu0 %v1929
    %6644 = vmatpush1.msra.mxu0 %v1928
    %6645 = vmatprep.subr.mxu0 %v1931
    %6646 = vmatpush1.msra.mxu0 %v1930
    %6647 = vmatprep.subr.mxu0 %v1933
    %6648 = vmatpush1.msra.mxu0 %v1932
    %6649 = vmatprep.subr.mxu0 %v1935
    %6650 = vmatpush1.msra.mxu0 %v1934
    %6651 = vmatprep.subr.mxu0 %v1937
    %6652 = vmatpush1.msra.mxu0 %v1936
    %6653 = vmatprep.subr.mxu0 %v1939
    %6654 = vmatpush1.msra.mxu0 %v1938
    %6655 = vmatprep.subr.mxu0 %v1941
    %6656 = vmatpush1.msra.mxu0 %v1940
    %6657 = vmatprep.subr.mxu0 %v1943
    %6658 = vmatpush1.msra.mxu0 %v1942
    %6659 = vmatprep.subr.mxu0 %v1945
    %6660 = vmatpush1.msra.mxu0 %v1944
    %6661 = vmatprep.subr.mxu0 %v1947
    %6662 = vmatpush1.msra.mxu0 %v1946
    %6663 = vmatprep.subr.mxu0 %v1949
    %6664 = vmatpush1.msra.mxu0 %v1948
    %6665 = vmatprep.subr.mxu0 %v1951
    %6666 = vmatpush1.msra.mxu0 %v1950
    %6667 = vmatprep.subr.mxu0 %v1953
    %6668 = vmatpush1.msra.mxu0 %v1952
    %6669 = vmatprep.subr.mxu0 %v1955
    %6670 = vmatpush1.msra.mxu0 %v1954
    %6671 = vmatprep.subr.mxu0 %v1957
    %6672 = vmatpush1.msra.mxu0 %v1956
    %6673 = vmatprep.subr.mxu0 %v1959
    %6674 = vmatpush1.msra.mxu0 %v1958
    %6675 = vmatprep.subr.mxu0 %v1961
    %6676 = vmatpush1.msra.mxu0 %v1960
    %6677 = vmatprep.subr.mxu0 %v1963
    %6678 = vmatpush1.msra.mxu0 %v1962
    %6679 = vmatprep.subr.mxu0 %v1965
    %6680 = vmatpush1.msra.mxu0 %v1964
    %6681 = vmatprep.subr.mxu0 %v1967
    %6682 = vmatpush1.msra.mxu0 %v1966
    %6683 = vmatprep.subr.mxu0 %v1969
    %6684 = vmatpush1.msra.mxu0 %v1968
    %6685 = vmatprep.subr.mxu0 %v1971
    %6686 = vmatpush1.msra.mxu0 %v1970
    %6687 = vmatprep.subr.mxu0 %v1973
    %6688 = vmatpush1.msra.mxu0 %v1972
    %6689 = vmatprep.subr.mxu0 %v1975
    %6690 = vmatpush1.msra.mxu0 %v1974
    %6691 = vmatprep.subr.mxu0 %v1977
    %6692 = vmatpush1.msra.mxu0 %v1976
    %6693 = vmatprep.subr.mxu0 %v1979
    %6694 = vmatpush1.msra.mxu0 %v1978
    %6695 = vmatprep.subr.mxu0 %v1981
    %6696 = vmatpush1.msra.mxu0 %v1980
    %6697 = vmatprep.subr.mxu0 %v1983
    %6698 = vmatpush1.msra.mxu0 %v1982
    %6699 = vmatprep.subr.mxu0 %v1985
    %6700 = vmatpush1.msra.mxu0 %v1984
    %6701 = vmatprep.subr.mxu0 %v1987
    %6702 = vmatpush1.msra.mxu0 %v1986
    %6703 = vmatprep.subr.mxu0 %v1989
    %6704 = vmatpush1.msra.mxu0 %v1988
    %6705 = vmatprep.mubr.f32.mxu0 %v4206
    %6706 = vmatmul.mubr.f32.gmra.mrb[0].mxu0 %v4204
    %v6707 = vpop.f32.mrb[0].mxu0
    %v6708 = vadd.f32 %v6637, %v6707
    %v6709 = vpop.f32.mrb[0].mxu0
    %v6710 = vadd.f32 %v6639, %v6709
    %6711 = vdwg.mxu0
    %6712 = vmatprep.subr.mxu0 %v1991
    %6713 = vmatpush1.msra.mxu0 %v1990
    %6714 = vmatprep.subr.mxu0 %v1993
    %6715 = vmatpush1.msra.mxu0 %v1992
    %6716 = vmatprep.subr.mxu0 %v1995
    %6717 = vmatpush1.msra.mxu0 %v1994
    %6718 = vmatprep.subr.mxu0 %v1997
    %6719 = vmatpush1.msra.mxu0 %v1996
    %6720 = vmatprep.subr.mxu0 %v1999
    %6721 = vmatpush1.msra.mxu0 %v1998
    %6722 = vmatprep.subr.mxu0 %v2001
    %6723 = vmatpush1.msra.mxu0 %v2000
    %6724 = vmatprep.subr.mxu0 %v2003
    %6725 = vmatpush1.msra.mxu0 %v2002
    %6726 = vmatprep.subr.mxu0 %v2005
    %6727 = vmatpush1.msra.mxu0 %v2004
    %6728 = vmatprep.subr.mxu0 %v2007
    %6729 = vmatpush1.msra.mxu0 %v2006
    %6730 = vmatprep.subr.mxu0 %v2009
    %6731 = vmatpush1.msra.mxu0 %v2008
    %6732 = vmatprep.subr.mxu0 %v2011
    %6733 = vmatpush1.msra.mxu0 %v2010
    %6734 = vmatprep.subr.mxu0 %v2013
    %6735 = vmatpush1.msra.mxu0 %v2012
    %6736 = vmatprep.subr.mxu0 %v2015
    %6737 = vmatpush1.msra.mxu0 %v2014
    %6738 = vmatprep.subr.mxu0 %v2017
    %6739 = vmatpush1.msra.mxu0 %v2016
    %6740 = vmatprep.subr.mxu0 %v2019
    %6741 = vmatpush1.msra.mxu0 %v2018
    %6742 = vmatprep.subr.mxu0 %v2021
    %6743 = vmatpush1.msra.mxu0 %v2020
    %6744 = vmatprep.subr.mxu0 %v2023
    %6745 = vmatpush1.msra.mxu0 %v2022
    %6746 = vmatprep.subr.mxu0 %v2025
    %6747 = vmatpush1.msra.mxu0 %v2024
    %6748 = vmatprep.subr.mxu0 %v2027
    %6749 = vmatpush1.msra.mxu0 %v2026
    %6750 = vmatprep.subr.mxu0 %v2029
    %6751 = vmatpush1.msra.mxu0 %v2028
    %6752 = vmatprep.subr.mxu0 %v2031
    %6753 = vmatpush1.msra.mxu0 %v2030
    %6754 = vmatprep.subr.mxu0 %v2033
    %6755 = vmatpush1.msra.mxu0 %v2032
    %6756 = vmatprep.subr.mxu0 %v2035
    %6757 = vmatpush1.msra.mxu0 %v2034
    %6758 = vmatprep.subr.mxu0 %v2037
    %6759 = vmatpush1.msra.mxu0 %v2036
    %6760 = vmatprep.subr.mxu0 %v2039
    %6761 = vmatpush1.msra.mxu0 %v2038
    %6762 = vmatprep.subr.mxu0 %v2041
    %6763 = vmatpush1.msra.mxu0 %v2040
    %6764 = vmatprep.subr.mxu0 %v2043
    %6765 = vmatpush1.msra.mxu0 %v2042
    %6766 = vmatprep.subr.mxu0 %v2045
    %6767 = vmatpush1.msra.mxu0 %v2044
    %6768 = vmatprep.subr.mxu0 %v2047
    %6769 = vmatpush1.msra.mxu0 %v2046
    %6770 = vmatprep.subr.mxu0 %v2049
    %6771 = vmatpush1.msra.mxu0 %v2048
    %6772 = vmatprep.subr.mxu0 %v2051
    %6773 = vmatpush1.msra.mxu0 %v2050
    %6774 = vmatprep.subr.mxu0 %v2053
    %6775 = vmatpush1.msra.mxu0 %v2052
    %6776 = vmatprep.mubr.f32.mxu0 %v4222
    %6777 = vmatmul.mubr.f32.gmra.mrb[0].mxu0 %v4214
    %v6778 = vpop.f32.mrb[0].mxu0
    %v6779 = vadd.f32 %v6708, %v6778
    %v6780 = vpop.f32.mrb[0].mxu0
    %v6781 = vadd.f32 %v6710, %v6780
    %6782 = vdwg.mxu0
    %6783 = vmatprep.subr.mxu0 %v2055
    %6784 = vmatpush1.msra.mxu0 %v2054
    %6785 = vmatprep.subr.mxu0 %v2057
    %6786 = vmatpush1.msra.mxu0 %v2056
    %6787 = vmatprep.subr.mxu0 %v2059
    %6788 = vmatpush1.msra.mxu0 %v2058
    %6789 = vmatprep.subr.mxu0 %v2061
    %6790 = vmatpush1.msra.mxu0 %v2060
    %6791 = vmatprep.subr.mxu0 %v2063
    %6792 = vmatpush1.msra.mxu0 %v2062
    %6793 = vmatprep.subr.mxu0 %v2065
    %6794 = vmatpush1.msra.mxu0 %v2064
    %6795 = vmatprep.subr.mxu0 %v2067
    %6796 = vmatpush1.msra.mxu0 %v2066
    %6797 = vmatprep.subr.mxu0 %v2069
    %6798 = vmatpush1.msra.mxu0 %v2068
    %6799 = vmatprep.subr.mxu0 %v2071
    %6800 = vmatpush1.msra.mxu0 %v2070
    %6801 = vmatprep.subr.mxu0 %v2073
    %6802 = vmatpush1.msra.mxu0 %v2072
    %6803 = vmatprep.subr.mxu0 %v2075
    %6804 = vmatpush1.msra.mxu0 %v2074
    %6805 = vmatprep.subr.mxu0 %v2077
    %6806 = vmatpush1.msra.mxu0 %v2076
    %6807 = vmatprep.subr.mxu0 %v2079
    %6808 = vmatpush1.msra.mxu0 %v2078
    %6809 = vmatprep.subr.mxu0 %v2081
    %6810 = vmatpush1.msra.mxu0 %v2080
    %6811 = vmatprep.subr.mxu0 %v2083
    %6812 = vmatpush1.msra.mxu0 %v2082
    %6813 = vmatprep.subr.mxu0 %v2085
    %6814 = vmatpush1.msra.mxu0 %v2084
    %6815 = vmatprep.subr.mxu0 %v2087
    %6816 = vmatpush1.msra.mxu0 %v2086
    %6817 = vmatprep.subr.mxu0 %v2089
    %6818 = vmatpush1.msra.mxu0 %v2088
    %6819 = vmatprep.subr.mxu0 %v2091
    %6820 = vmatpush1.msra.mxu0 %v2090
    %6821 = vmatprep.subr.mxu0 %v2093
    %6822 = vmatpush1.msra.mxu0 %v2092
    %6823 = vmatprep.subr.mxu0 %v2095
    %6824 = vmatpush1.msra.mxu0 %v2094
    %6825 = vmatprep.subr.mxu0 %v2097
    %6826 = vmatpush1.msra.mxu0 %v2096
    %6827 = vmatprep.subr.mxu0 %v2099
    %6828 = vmatpush1.msra.mxu0 %v2098
    %6829 = vmatprep.subr.mxu0 %v2101
    %6830 = vmatpush1.msra.mxu0 %v2100
    %6831 = vmatprep.subr.mxu0 %v2103
    %6832 = vmatpush1.msra.mxu0 %v2102
    %6833 = vmatprep.subr.mxu0 %v2105
    %6834 = vmatpush1.msra.mxu0 %v2104
    %6835 = vmatprep.subr.mxu0 %v2107
    %6836 = vmatpush1.msra.mxu0 %v2106
    %6837 = vmatprep.subr.mxu0 %v2109
    %6838 = vmatpush1.msra.mxu0 %v2108
    %6839 = vmatprep.subr.mxu0 %v2111
    %6840 = vmatpush1.msra.mxu0 %v2110
    %6841 = vmatprep.subr.mxu0 %v2113
    %6842 = vmatpush1.msra.mxu0 %v2112
    %6843 = vmatprep.subr.mxu0 %v2115
    %6844 = vmatpush1.msra.mxu0 %v2114
    %6845 = vmatprep.subr.mxu0 %v2117
    %6846 = vmatpush1.msra.mxu0 %v2116
    %6847 = vmatprep.mubr.f32.mxu0 %v4223
    %6848 = vmatmul.mubr.f32.gmra.mrb[0].mxu0 %v4221
    %v6849 = vpop.f32.mrb[0].mxu0
    %v6850 = vadd.f32 %v6779, %v6849
    %v6851 = vpop.f32.mrb[0].mxu0
    %v6852 = vadd.f32 %v6781, %v6851
    %6853 = vdwg.mxu0
    %6854 = vmatprep.subr.mxu0 %v2119
    %6855 = vmatpush1.msra.mxu0 %v2118
    %6856 = vmatprep.subr.mxu0 %v2121
    %6857 = vmatpush1.msra.mxu0 %v2120
    %6858 = vmatprep.subr.mxu0 %v2123
    %6859 = vmatpush1.msra.mxu0 %v2122
    %6860 = vmatprep.subr.mxu0 %v2125
    %6861 = vmatpush1.msra.mxu0 %v2124
    %6862 = vmatprep.subr.mxu0 %v2127
    %6863 = vmatpush1.msra.mxu0 %v2126
    %6864 = vmatprep.subr.mxu0 %v2129
    %6865 = vmatpush1.msra.mxu0 %v2128
    %6866 = vmatprep.subr.mxu0 %v2131
    %6867 = vmatpush1.msra.mxu0 %v2130
    %6868 = vmatprep.subr.mxu0 %v2133
    %6869 = vmatpush1.msra.mxu0 %v2132
    %6870 = vmatprep.subr.mxu0 %v2135
    %6871 = vmatpush1.msra.mxu0 %v2134
    %6872 = vmatprep.subr.mxu0 %v2137
    %6873 = vmatpush1.msra.mxu0 %v2136
    %6874 = vmatprep.subr.mxu0 %v2139
    %6875 = vmatpush1.msra.mxu0 %v2138
    %6876 = vmatprep.subr.mxu0 %v2141
    %6877 = vmatpush1.msra.mxu0 %v2140
    %6878 = vmatprep.subr.mxu0 %v2143
    %6879 = vmatpush1.msra.mxu0 %v2142
    %6880 = vmatprep.subr.mxu0 %v2145
    %6881 = vmatpush1.msra.mxu0 %v2144
    %6882 = vmatprep.subr.mxu0 %v2147
    %6883 = vmatpush1.msra.mxu0 %v2146
    %6884 = vmatprep.subr.mxu0 %v2149
    %6885 = vmatpush1.msra.mxu0 %v2148
    %6886 = vmatprep.subr.mxu0 %v2151
    %6887 = vmatpush1.msra.mxu0 %v2150
    %6888 = vmatprep.subr.mxu0 %v2153
    %6889 = vmatpush1.msra.mxu0 %v2152
    %6890 = vmatprep.subr.mxu0 %v2155
    %6891 = vmatpush1.msra.mxu0 %v2154
    %6892 = vmatprep.subr.mxu0 %v2157
    %6893 = vmatpush1.msra.mxu0 %v2156
    %6894 = vmatprep.subr.mxu0 %v2159
    %6895 = vmatpush1.msra.mxu0 %v2158
    %6896 = vmatprep.subr.mxu0 %v2161
    %6897 = vmatpush1.msra.mxu0 %v2160
    %6898 = vmatprep.subr.mxu0 %v2163
    %6899 = vmatpush1.msra.mxu0 %v2162
    %6900 = vmatprep.subr.mxu0 %v2165
    %6901 = vmatpush1.msra.mxu0 %v2164
    %6902 = vmatprep.subr.mxu0 %v2167
    %6903 = vmatpush1.msra.mxu0 %v2166
    %6904 = vmatprep.subr.mxu0 %v2169
    %6905 = vmatpush1.msra.mxu0 %v2168
    %6906 = vmatprep.subr.mxu0 %v2171
    %6907 = vmatpush1.msra.mxu0 %v2170
    %6908 = vmatprep.subr.mxu0 %v2173
    %6909 = vmatpush1.msra.mxu0 %v2172
    %6910 = vmatprep.subr.mxu0 %v2175
    %6911 = vmatpush1.msra.mxu0 %v2174
    %6912 = vmatprep.subr.mxu0 %v2177
    %6913 = vmatpush1.msra.mxu0 %v2176
    %6914 = vmatprep.subr.mxu0 %v2179
    %6915 = vmatpush1.msra.mxu0 %v2178
    %6916 = vmatprep.subr.mxu0 %v2181
    %6917 = vmatpush1.msra.mxu0 %v2180
    %6918 = vmatprep.mubr.f32.mxu0 %v4239
    %6919 = vmatmul.mubr.f32.gmra.mrb[0].mxu0 %v4231
    %v6920 = vpop.f32.mrb[0].mxu0
    %v6921 = vadd.f32 %v6850, %v6920
    %v6922 = vpop.f32.mrb[0].mxu0
    %v6923 = vadd.f32 %v6852, %v6922
    %6924 = vdwg.mxu0
    %6925 = vmatprep.subr.mxu0 %v2183
    %6926 = vmatpush1.msra.mxu0 %v2182
    %6927 = vmatprep.subr.mxu0 %v2185
    %6928 = vmatpush1.msra.mxu0 %v2184
    %6929 = vmatprep.subr.mxu0 %v2187
    %6930 = vmatpush1.msra.mxu0 %v2186
    %6931 = vmatprep.subr.mxu0 %v2189
    %6932 = vmatpush1.msra.mxu0 %v2188
    %6933 = vmatprep.subr.mxu0 %v2191
    %6934 = vmatpush1.msra.mxu0 %v2190
    %6935 = vmatprep.subr.mxu0 %v2193
    %6936 = vmatpush1.msra.mxu0 %v2192
    %6937 = vmatprep.subr.mxu0 %v2195
    %6938 = vmatpush1.msra.mxu0 %v2194
    %6939 = vmatprep.subr.mxu0 %v2197
    %6940 = vmatpush1.msra.mxu0 %v2196
    %6941 = vmatprep.subr.mxu0 %v2199
    %6942 = vmatpush1.msra.mxu0 %v2198
    %6943 = vmatprep.subr.mxu0 %v2201
    %6944 = vmatpush1.msra.mxu0 %v2200
    %6945 = vmatprep.subr.mxu0 %v2203
    %6946 = vmatpush1.msra.mxu0 %v2202
    %6947 = vmatprep.subr.mxu0 %v2205
    %6948 = vmatpush1.msra.mxu0 %v2204
    %6949 = vmatprep.subr.mxu0 %v2207
    %6950 = vmatpush1.msra.mxu0 %v2206
    %6951 = vmatprep.subr.mxu0 %v2209
    %6952 = vmatpush1.msra.mxu0 %v2208
    %6953 = vmatprep.subr.mxu0 %v2211
    %6954 = vmatpush1.msra.mxu0 %v2210
    %6955 = vmatprep.subr.mxu0 %v2213
    %6956 = vmatpush1.msra.mxu0 %v2212
    %6957 = vmatprep.subr.mxu0 %v2215
    %6958 = vmatpush1.msra.mxu0 %v2214
    %6959 = vmatprep.subr.mxu0 %v2217
    %6960 = vmatpush1.msra.mxu0 %v2216
    %6961 = vmatprep.subr.mxu0 %v2219
    %6962 = vmatpush1.msra.mxu0 %v2218
    %6963 = vmatprep.subr.mxu0 %v2221
    %6964 = vmatpush1.msra.mxu0 %v2220
    %6965 = vmatprep.subr.mxu0 %v2223
    %6966 = vmatpush1.msra.mxu0 %v2222
    %6967 = vmatprep.subr.mxu0 %v2225
    %6968 = vmatpush1.msra.mxu0 %v2224
    %6969 = vmatprep.subr.mxu0 %v2227
    %6970 = vmatpush1.msra.mxu0 %v2226
    %6971 = vmatprep.subr.mxu0 %v2229
    %6972 = vmatpush1.msra.mxu0 %v2228
    %6973 = vmatprep.subr.mxu0 %v2231
    %6974 = vmatpush1.msra.mxu0 %v2230
    %6975 = vmatprep.subr.mxu0 %v2233
    %6976 = vmatpush1.msra.mxu0 %v2232
    %6977 = vmatprep.subr.mxu0 %v2235
    %6978 = vmatpush1.msra.mxu0 %v2234
    %6979 = vmatprep.subr.mxu0 %v2237
    %6980 = vmatpush1.msra.mxu0 %v2236
    %6981 = vmatprep.subr.mxu0 %v2239
    %6982 = vmatpush1.msra.mxu0 %v2238
    %6983 = vmatprep.subr.mxu0 %v2241
    %6984 = vmatpush1.msra.mxu0 %v2240
    %6985 = vmatprep.subr.mxu0 %v2243
    %6986 = vmatpush1.msra.mxu0 %v2242
    %6987 = vmatprep.subr.mxu0 %v2245
    %6988 = vmatpush1.msra.mxu0 %v2244
    %6989 = vmatprep.mubr.f32.mxu0 %v4240
    %6990 = vmatmul.mubr.f32.gmra.mrb[0].mxu0 %v4238
    %v6991 = vpop.f32.mrb[0].mxu0
    %v6992 = vadd.f32 %v6921, %v6991
    %v6993 = vpop.f32.mrb[0].mxu0
    %v6994 = vadd.f32 %v6923, %v6993
    %6995 = vdwg.mxu0
    %6996 = vmatprep.subr.mxu0 %v2247
    %6997 = vmatpush1.msra.mxu0 %v2246
    %6998 = vmatprep.subr.mxu0 %v2249
    %6999 = vmatpush1.msra.mxu0 %v2248
    %7000 = vmatprep.subr.mxu0 %v2251
    %7001 = vmatpush1.msra.mxu0 %v2250
    %7002 = vmatprep.subr.mxu0 %v2253
    %7003 = vmatpush1.msra.mxu0 %v2252
    %7004 = vmatprep.subr.mxu0 %v2255
    %7005 = vmatpush1.msra.mxu0 %v2254
    %7006 = vmatprep.subr.mxu0 %v2257
    %7007 = vmatpush1.msra.mxu0 %v2256
    %7008 = vmatprep.subr.mxu0 %v2259
    %7009 = vmatpush1.msra.mxu0 %v2258
    %7010 = vmatprep.subr.mxu0 %v2261
    %7011 = vmatpush1.msra.mxu0 %v2260
    %7012 = vmatprep.subr.mxu0 %v2263
    %7013 = vmatpush1.msra.mxu0 %v2262
    %7014 = vmatprep.subr.mxu0 %v2265
    %7015 = vmatpush1.msra.mxu0 %v2264
    %7016 = vmatprep.subr.mxu0 %v2267
    %7017 = vmatpush1.msra.mxu0 %v2266
    %7018 = vmatprep.subr.mxu0 %v2269
    %7019 = vmatpush1.msra.mxu0 %v2268
    %7020 = vmatprep.subr.mxu0 %v2271
    %7021 = vmatpush1.msra.mxu0 %v2270
    %7022 = vmatprep.subr.mxu0 %v2273
    %7023 = vmatpush1.msra.mxu0 %v2272
    %7024 = vmatprep.subr.mxu0 %v2275
    %7025 = vmatpush1.msra.mxu0 %v2274
    %7026 = vmatprep.subr.mxu0 %v2277
    %7027 = vmatpush1.msra.mxu0 %v2276
    %7028 = vmatprep.subr.mxu0 %v2279
    %7029 = vmatpush1.msra.mxu0 %v2278
    %7030 = vmatprep.subr.mxu0 %v2281
    %7031 = vmatpush1.msra.mxu0 %v2280
    %7032 = vmatprep.subr.mxu0 %v2283
    %7033 = vmatpush1.msra.mxu0 %v2282
    %7034 = vmatprep.subr.mxu0 %v2285
    %7035 = vmatpush1.msra.mxu0 %v2284
    %7036 = vmatprep.subr.mxu0 %v2287
    %7037 = vmatpush1.msra.mxu0 %v2286
    %7038 = vmatprep.subr.mxu0 %v2289
    %7039 = vmatpush1.msra.mxu0 %v2288
    %7040 = vmatprep.subr.mxu0 %v2291
    %7041 = vmatpush1.msra.mxu0 %v2290
    %7042 = vmatprep.subr.mxu0 %v2293
    %7043 = vmatpush1.msra.mxu0 %v2292
    %7044 = vmatprep.subr.mxu0 %v2295
    %7045 = vmatpush1.msra.mxu0 %v2294
    %7046 = vmatprep.subr.mxu0 %v2297
    %7047 = vmatpush1.msra.mxu0 %v2296
    %7048 = vmatprep.subr.mxu0 %v2299
    %7049 = vmatpush1.msra.mxu0 %v2298
    %7050 = vmatprep.subr.mxu0 %v2301
    %7051 = vmatpush1.msra.mxu0 %v2300
    %7052 = vmatprep.subr.mxu0 %v2303
    %7053 = vmatpush1.msra.mxu0 %v2302
    %7054 = vmatprep.subr.mxu0 %v2305
    %7055 = vmatpush1.msra.mxu0 %v2304
    %7056 = vmatprep.subr.mxu0 %v2307
    %7057 = vmatpush1.msra.mxu0 %v2306
    %7058 = vmatprep.subr.mxu0 %v2309
    %7059 = vmatpush1.msra.mxu0 %v2308
    %7060 = vmatprep.mubr.f32.mxu0 %v4256
    %7061 = vmatmul.mubr.f32.gmra.mrb[0].mxu0 %v4248
    %v7062 = vpop.f32.mrb[0].mxu0
    %v7063 = vadd.f32 %v6992, %v7062
    %v7064 = vpop.f32.mrb[0].mxu0
    %v7065 = vadd.f32 %v6994, %v7064
    %7066 = vdwg.mxu0
    %7067 = vmatprep.subr.mxu0 %v2311
    %7068 = vmatpush1.msra.mxu0 %v2310
    %7069 = vmatprep.subr.mxu0 %v2313
    %7070 = vmatpush1.msra.mxu0 %v2312
    %7071 = vmatprep.subr.mxu0 %v2315
    %7072 = vmatpush1.msra.mxu0 %v2314
    %7073 = vmatprep.subr.mxu0 %v2317
    %7074 = vmatpush1.msra.mxu0 %v2316
    %7075 = vmatprep.subr.mxu0 %v2319
    %7076 = vmatpush1.msra.mxu0 %v2318
    %7077 = vmatprep.subr.mxu0 %v2321
    %7078 = vmatpush1.msra.mxu0 %v2320
    %7079 = vmatprep.subr.mxu0 %v2323
    %7080 = vmatpush1.msra.mxu0 %v2322
    %7081 = vmatprep.subr.mxu0 %v2325
    %7082 = vmatpush1.msra.mxu0 %v2324
    %7083 = vmatprep.subr.mxu0 %v2327
    %7084 = vmatpush1.msra.mxu0 %v2326
    %7085 = vmatprep.subr.mxu0 %v2329
    %7086 = vmatpush1.msra.mxu0 %v2328
    %7087 = vmatprep.subr.mxu0 %v2331
    %7088 = vmatpush1.msra.mxu0 %v2330
    %7089 = vmatprep.subr.mxu0 %v2333
    %7090 = vmatpush1.msra.mxu0 %v2332
    %7091 = vmatprep.subr.mxu0 %v2335
    %7092 = vmatpush1.msra.mxu0 %v2334
    %7093 = vmatprep.subr.mxu0 %v2337
    %7094 = vmatpush1.msra.mxu0 %v2336
    %7095 = vmatprep.subr.mxu0 %v2339
    %7096 = vmatpush1.msra.mxu0 %v2338
    %7097 = vmatprep.subr.mxu0 %v2341
    %7098 = vmatpush1.msra.mxu0 %v2340
    %7099 = vmatprep.subr.mxu0 %v2343
    %7100 = vmatpush1.msra.mxu0 %v2342
    %7101 = vmatprep.subr.mxu0 %v2345
    %7102 = vmatpush1.msra.mxu0 %v2344
    %7103 = vmatprep.subr.mxu0 %v2347
    %7104 = vmatpush1.msra.mxu0 %v2346
    %7105 = vmatprep.subr.mxu0 %v2349
    %7106 = vmatpush1.msra.mxu0 %v2348
    %7107 = vmatprep.subr.mxu0 %v2351
    %7108 = vmatpush1.msra.mxu0 %v2350
    %7109 = vmatprep.subr.mxu0 %v2353
    %7110 = vmatpush1.msra.mxu0 %v2352
    %7111 = vmatprep.subr.mxu0 %v2355
    %7112 = vmatpush1.msra.mxu0 %v2354
    %7113 = vmatprep.subr.mxu0 %v2357
    %7114 = vmatpush1.msra.mxu0 %v2356
    %7115 = vmatprep.subr.mxu0 %v2359
    %7116 = vmatpush1.msra.mxu0 %v2358
    %7117 = vmatprep.subr.mxu0 %v2361
    %7118 = vmatpush1.msra.mxu0 %v2360
    %7119 = vmatprep.subr.mxu0 %v2363
    %7120 = vmatpush1.msra.mxu0 %v2362
    %7121 = vmatprep.subr.mxu0 %v2365
    %7122 = vmatpush1.msra.mxu0 %v2364
    %7123 = vmatprep.subr.mxu0 %v2367
    %7124 = vmatpush1.msra.mxu0 %v2366
    %7125 = vmatprep.subr.mxu0 %v2369
    %7126 = vmatpush1.msra.mxu0 %v2368
    %7127 = vmatprep.subr.mxu0 %v2371
    %7128 = vmatpush1.msra.mxu0 %v2370
    %7129 = vmatprep.subr.mxu0 %v2373
    %7130 = vmatpush1.msra.mxu0 %v2372
    %7131 = vmatprep.mubr.f32.mxu0 %v4257
    %7132 = vmatmul.mubr.f32.gmra.mrb[0].mxu0 %v4255
    %v7133 = vpop.f32.mrb[0].mxu0
    %v7134 = vadd.f32 %v7063, %v7133
    %v7135 = vpop.f32.mrb[0].mxu0
    %v7136 = vadd.f32 %v7065, %v7135
    %7137 = vdwg.mxu0
    %7138 = vmatprep.subr.mxu0 %v2375
    %7139 = vmatpush1.msra.mxu0 %v2374
    %7140 = vmatprep.subr.mxu0 %v2377
    %7141 = vmatpush1.msra.mxu0 %v2376
    %7142 = vmatprep.subr.mxu0 %v2379
    %7143 = vmatpush1.msra.mxu0 %v2378
    %7144 = vmatprep.subr.mxu0 %v2381
    %7145 = vmatpush1.msra.mxu0 %v2380
    %7146 = vmatprep.subr.mxu0 %v2383
    %7147 = vmatpush1.msra.mxu0 %v2382
    %7148 = vmatprep.subr.mxu0 %v2385
    %7149 = vmatpush1.msra.mxu0 %v2384
    %7150 = vmatprep.subr.mxu0 %v2387
    %7151 = vmatpush1.msra.mxu0 %v2386
    %7152 = vmatprep.subr.mxu0 %v2389
    %7153 = vmatpush1.msra.mxu0 %v2388
    %7154 = vmatprep.subr.mxu0 %v2391
    %7155 = vmatpush1.msra.mxu0 %v2390
    %7156 = vmatprep.subr.mxu0 %v2393
    %7157 = vmatpush1.msra.mxu0 %v2392
    %7158 = vmatprep.subr.mxu0 %v2395
    %7159 = vmatpush1.msra.mxu0 %v2394
    %7160 = vmatprep.subr.mxu0 %v2397
    %7161 = vmatpush1.msra.mxu0 %v2396
    %7162 = vmatprep.subr.mxu0 %v2399
    %7163 = vmatpush1.msra.mxu0 %v2398
    %7164 = vmatprep.subr.mxu0 %v2401
    %7165 = vmatpush1.msra.mxu0 %v2400
    %7166 = vmatprep.subr.mxu0 %v2403
    %7167 = vmatpush1.msra.mxu0 %v2402
    %7168 = vmatprep.subr.mxu0 %v2405
    %7169 = vmatpush1.msra.mxu0 %v2404
    %7170 = vmatprep.subr.mxu0 %v2407
    %7171 = vmatpush1.msra.mxu0 %v2406
    %7172 = vmatprep.subr.mxu0 %v2409
    %7173 = vmatpush1.msra.mxu0 %v2408
    %7174 = vmatprep.subr.mxu0 %v2411
    %7175 = vmatpush1.msra.mxu0 %v2410
    %7176 = vmatprep.subr.mxu0 %v2413
    %7177 = vmatpush1.msra.mxu0 %v2412
    %7178 = vmatprep.subr.mxu0 %v2415
    %7179 = vmatpush1.msra.mxu0 %v2414
    %7180 = vmatprep.subr.mxu0 %v2417
    %7181 = vmatpush1.msra.mxu0 %v2416
    %7182 = vmatprep.subr.mxu0 %v2419
    %7183 = vmatpush1.msra.mxu0 %v2418
    %7184 = vmatprep.subr.mxu0 %v2421
    %7185 = vmatpush1.msra.mxu0 %v2420
    %7186 = vmatprep.subr.mxu0 %v2423
    %7187 = vmatpush1.msra.mxu0 %v2422
    %7188 = vmatprep.subr.mxu0 %v2425
    %7189 = vmatpush1.msra.mxu0 %v2424
    %7190 = vmatprep.subr.mxu0 %v2427
    %7191 = vmatpush1.msra.mxu0 %v2426
    %7192 = vmatprep.subr.mxu0 %v2429
    %7193 = vmatpush1.msra.mxu0 %v2428
    %7194 = vmatprep.subr.mxu0 %v2431
    %7195 = vmatpush1.msra.mxu0 %v2430
    %7196 = vmatprep.subr.mxu0 %v2433
    %7197 = vmatpush1.msra.mxu0 %v2432
    %7198 = vmatprep.subr.mxu0 %v2435
    %7199 = vmatpush1.msra.mxu0 %v2434
    %7200 = vmatprep.subr.mxu0 %v2437
    %7201 = vmatpush1.msra.mxu0 %v2436
    %7202 = vmatprep.mubr.f32.mxu0 %v4273
    %7203 = vmatmul.mubr.f32.gmra.mrb[0].mxu0 %v4265
    %v7204 = vpop.f32.mrb[0].mxu0
    %v7205 = vadd.f32 %v7134, %v7204
    %v7206 = vpop.f32.mrb[0].mxu0
    %v7207 = vadd.f32 %v7136, %v7206
    %7208 = vdwg.mxu0
    %7209 = vmatprep.subr.mxu0 %v2439
    %7210 = vmatpush1.msra.mxu0 %v2438
    %7211 = vmatprep.subr.mxu0 %v2441
    %7212 = vmatpush1.msra.mxu0 %v2440
    %7213 = vmatprep.subr.mxu0 %v2443
    %7214 = vmatpush1.msra.mxu0 %v2442
    %7215 = vmatprep.subr.mxu0 %v2445
    %7216 = vmatpush1.msra.mxu0 %v2444
    %7217 = vmatprep.subr.mxu0 %v2447
    %7218 = vmatpush1.msra.mxu0 %v2446
    %7219 = vmatprep.subr.mxu0 %v2449
    %7220 = vmatpush1.msra.mxu0 %v2448
    %7221 = vmatprep.subr.mxu0 %v2451
    %7222 = vmatpush1.msra.mxu0 %v2450
    %7223 = vmatprep.subr.mxu0 %v2453
    %7224 = vmatpush1.msra.mxu0 %v2452
    %7225 = vmatprep.subr.mxu0 %v2455
    %7226 = vmatpush1.msra.mxu0 %v2454
    %7227 = vmatprep.subr.mxu0 %v2457
    %7228 = vmatpush1.msra.mxu0 %v2456
    %7229 = vmatprep.subr.mxu0 %v2459
    %7230 = vmatpush1.msra.mxu0 %v2458
    %7231 = vmatprep.subr.mxu0 %v2461
    %7232 = vmatpush1.msra.mxu0 %v2460
    %7233 = vmatprep.subr.mxu0 %v2463
    %7234 = vmatpush1.msra.mxu0 %v2462
    %7235 = vmatprep.subr.mxu0 %v2465
    %7236 = vmatpush1.msra.mxu0 %v2464
    %7237 = vmatprep.subr.mxu0 %v2467
    %7238 = vmatpush1.msra.mxu0 %v2466
    %7239 = vmatprep.subr.mxu0 %v2469
    %7240 = vmatpush1.msra.mxu0 %v2468
    %7241 = vmatprep.subr.mxu0 %v2471
    %7242 = vmatpush1.msra.mxu0 %v2470
    %7243 = vmatprep.subr.mxu0 %v2473
    %7244 = vmatpush1.msra.mxu0 %v2472
    %7245 = vmatprep.subr.mxu0 %v2475
    %7246 = vmatpush1.msra.mxu0 %v2474
    %7247 = vmatprep.subr.mxu0 %v2477
    %7248 = vmatpush1.msra.mxu0 %v2476
    %7249 = vmatprep.subr.mxu0 %v2479
    %7250 = vmatpush1.msra.mxu0 %v2478
    %7251 = vmatprep.subr.mxu0 %v2481
    %7252 = vmatpush1.msra.mxu0 %v2480
    %7253 = vmatprep.subr.mxu0 %v2483
    %7254 = vmatpush1.msra.mxu0 %v2482
    %7255 = vmatprep.subr.mxu0 %v2485
    %7256 = vmatpush1.msra.mxu0 %v2484
    %7257 = vmatprep.subr.mxu0 %v2487
    %7258 = vmatpush1.msra.mxu0 %v2486
    %7259 = vmatprep.subr.mxu0 %v2489
    %7260 = vmatpush1.msra.mxu0 %v2488
    %7261 = vmatprep.subr.mxu0 %v2491
    %7262 = vmatpush1.msra.mxu0 %v2490
    %7263 = vmatprep.subr.mxu0 %v2493
    %7264 = vmatpush1.msra.mxu0 %v2492
    %7265 = vmatprep.subr.mxu0 %v2495
    %7266 = vmatpush1.msra.mxu0 %v2494
    %7267 = vmatprep.subr.mxu0 %v2497
    %7268 = vmatpush1.msra.mxu0 %v2496
    %7269 = vmatprep.subr.mxu0 %v2499
    %7270 = vmatpush1.msra.mxu0 %v2498
    %7271 = vmatprep.subr.mxu0 %v2501
    %7272 = vmatpush1.msra.mxu0 %v2500
    %7273 = vmatprep.mubr.f32.mxu0 %v4274
    %7274 = vmatmul.mubr.f32.gmra.mrb[0].mxu0 %v4272
    %v7275 = vpop.f32.mrb[0].mxu0
    %v7276 = vadd.f32 %v7205, %v7275
    %v7277 = vpop.f32.mrb[0].mxu0
    %v7278 = vadd.f32 %v7207, %v7277
    %7279 = vdwg.mxu0
    %7280 = vmatprep.subr.mxu0 %v2503
    %7281 = vmatpush1.msra.mxu0 %v2502
    %7282 = vmatprep.subr.mxu0 %v2505
    %7283 = vmatpush1.msra.mxu0 %v2504
    %7284 = vmatprep.subr.mxu0 %v2507
    %7285 = vmatpush1.msra.mxu0 %v2506
    %7286 = vmatprep.subr.mxu0 %v2509
    %7287 = vmatpush1.msra.mxu0 %v2508
    %7288 = vmatprep.subr.mxu0 %v2511
    %7289 = vmatpush1.msra.mxu0 %v2510
    %7290 = vmatprep.subr.mxu0 %v2513
    %7291 = vmatpush1.msra.mxu0 %v2512
    %7292 = vmatprep.subr.mxu0 %v2515
    %7293 = vmatpush1.msra.mxu0 %v2514
    %7294 = vmatprep.subr.mxu0 %v2517
    %7295 = vmatpush1.msra.mxu0 %v2516
    %7296 = vmatprep.subr.mxu0 %v2519
    %7297 = vmatpush1.msra.mxu0 %v2518
    %7298 = vmatprep.subr.mxu0 %v2521
    %7299 = vmatpush1.msra.mxu0 %v2520
    %7300 = vmatprep.subr.mxu0 %v2523
    %7301 = vmatpush1.msra.mxu0 %v2522
    %7302 = vmatprep.subr.mxu0 %v2525
    %7303 = vmatpush1.msra.mxu0 %v2524
    %7304 = vmatprep.subr.mxu0 %v2527
    %7305 = vmatpush1.msra.mxu0 %v2526
    %7306 = vmatprep.subr.mxu0 %v2529
    %7307 = vmatpush1.msra.mxu0 %v2528
    %7308 = vmatprep.subr.mxu0 %v2531
    %7309 = vmatpush1.msra.mxu0 %v2530
    %7310 = vmatprep.subr.mxu0 %v2533
    %7311 = vmatpush1.msra.mxu0 %v2532
    %7312 = vmatprep.subr.mxu0 %v2535
    %7313 = vmatpush1.msra.mxu0 %v2534
    %7314 = vmatprep.subr.mxu0 %v2537
    %7315 = vmatpush1.msra.mxu0 %v2536
    %7316 = vmatprep.subr.mxu0 %v2539
    %7317 = vmatpush1.msra.mxu0 %v2538
    %7318 = vmatprep.subr.mxu0 %v2541
    %7319 = vmatpush1.msra.mxu0 %v2540
    %7320 = vmatprep.subr.mxu0 %v2543
    %7321 = vmatpush1.msra.mxu0 %v2542
    %7322 = vmatprep.subr.mxu0 %v2545
    %7323 = vmatpush1.msra.mxu0 %v2544
    %7324 = vmatprep.subr.mxu0 %v2547
    %7325 = vmatpush1.msra.mxu0 %v2546
    %7326 = vmatprep.subr.mxu0 %v2549
    %7327 = vmatpush1.msra.mxu0 %v2548
    %7328 = vmatprep.subr.mxu0 %v2551
    %7329 = vmatpush1.msra.mxu0 %v2550
    %7330 = vmatprep.subr.mxu0 %v2553
    %7331 = vmatpush1.msra.mxu0 %v2552
    %7332 = vmatprep.subr.mxu0 %v2555
    %7333 = vmatpush1.msra.mxu0 %v2554
    %7334 = vmatprep.subr.mxu0 %v2557
    %7335 = vmatpush1.msra.mxu0 %v2556
    %7336 = vmatprep.subr.mxu0 %v2559
    %7337 = vmatpush1.msra.mxu0 %v2558
    %7338 = vmatprep.subr.mxu0 %v2561
    %7339 = vmatpush1.msra.mxu0 %v2560
    %7340 = vmatprep.subr.mxu0 %v2563
    %7341 = vmatpush1.msra.mxu0 %v2562
    %7342 = vmatprep.subr.mxu0 %v2565
    %7343 = vmatpush1.msra.mxu0 %v2564
    %7344 = vmatprep.mubr.f32.mxu0 %v4290
    %7345 = vmatmul.mubr.f32.gmra.mrb[0].mxu0 %v4282
    %v7346 = vpop.f32.mrb[0].mxu0
    %v7347 = vadd.f32 %v7276, %v7346
    %v7348 = vpop.f32.mrb[0].mxu0
    %v7349 = vadd.f32 %v7278, %v7348
    %7350 = vdwg.mxu0
    %7351 = vmatprep.subr.mxu0 %v2567
    %7352 = vmatpush1.msra.mxu0 %v2566
    %7353 = vmatprep.subr.mxu0 %v2569
    %7354 = vmatpush1.msra.mxu0 %v2568
    %7355 = vmatprep.subr.mxu0 %v2571
    %7356 = vmatpush1.msra.mxu0 %v2570
    %7357 = vmatprep.subr.mxu0 %v2573
    %7358 = vmatpush1.msra.mxu0 %v2572
    %7359 = vmatprep.subr.mxu0 %v2575
    %7360 = vmatpush1.msra.mxu0 %v2574
    %7361 = vmatprep.subr.mxu0 %v2577
    %7362 = vmatpush1.msra.mxu0 %v2576
    %7363 = vmatprep.subr.mxu0 %v2579
    %7364 = vmatpush1.msra.mxu0 %v2578
    %7365 = vmatprep.subr.mxu0 %v2581
    %7366 = vmatpush1.msra.mxu0 %v2580
    %7367 = vmatprep.subr.mxu0 %v2583
    %7368 = vmatpush1.msra.mxu0 %v2582
    %7369 = vmatprep.subr.mxu0 %v2585
    %7370 = vmatpush1.msra.mxu0 %v2584
    %7371 = vmatprep.subr.mxu0 %v2587
    %7372 = vmatpush1.msra.mxu0 %v2586
    %7373 = vmatprep.subr.mxu0 %v2589
    %7374 = vmatpush1.msra.mxu0 %v2588
    %7375 = vmatprep.subr.mxu0 %v2591
    %7376 = vmatpush1.msra.mxu0 %v2590
    %7377 = vmatprep.subr.mxu0 %v2593
    %7378 = vmatpush1.msra.mxu0 %v2592
    %7379 = vmatprep.subr.mxu0 %v2595
    %7380 = vmatpush1.msra.mxu0 %v2594
    %7381 = vmatprep.subr.mxu0 %v2597
    %7382 = vmatpush1.msra.mxu0 %v2596
    %7383 = vmatprep.subr.mxu0 %v2599
    %7384 = vmatpush1.msra.mxu0 %v2598
    %7385 = vmatprep.subr.mxu0 %v2601
    %7386 = vmatpush1.msra.mxu0 %v2600
    %7387 = vmatprep.subr.mxu0 %v2603
    %7388 = vmatpush1.msra.mxu0 %v2602
    %7389 = vmatprep.subr.mxu0 %v2605
    %7390 = vmatpush1.msra.mxu0 %v2604
    %7391 = vmatprep.subr.mxu0 %v2607
    %7392 = vmatpush1.msra.mxu0 %v2606
    %7393 = vmatprep.subr.mxu0 %v2609
    %7394 = vmatpush1.msra.mxu0 %v2608
    %7395 = vmatprep.subr.mxu0 %v2611
    %7396 = vmatpush1.msra.mxu0 %v2610
    %7397 = vmatprep.subr.mxu0 %v2613
    %7398 = vmatpush1.msra.mxu0 %v2612
    %7399 = vmatprep.subr.mxu0 %v2615
    %7400 = vmatpush1.msra.mxu0 %v2614
    %7401 = vmatprep.subr.mxu0 %v2617
    %7402 = vmatpush1.msra.mxu0 %v2616
    %7403 = vmatprep.subr.mxu0 %v2619
    %7404 = vmatpush1.msra.mxu0 %v2618
    %7405 = vmatprep.subr.mxu0 %v2621
    %7406 = vmatpush1.msra.mxu0 %v2620
    %7407 = vmatprep.subr.mxu0 %v2623
    %7408 = vmatpush1.msra.mxu0 %v2622
    %7409 = vmatprep.subr.mxu0 %v2625
    %7410 = vmatpush1.msra.mxu0 %v2624
    %7411 = vmatprep.subr.mxu0 %v2627
    %7412 = vmatpush1.msra.mxu0 %v2626
    %7413 = vmatprep.subr.mxu0 %v2629
    %7414 = vmatpush1.msra.mxu0 %v2628
    %7415 = vmatprep.mubr.f32.mxu0 %v4291
    %7416 = vmatmul.mubr.f32.gmra.mrb[0].mxu0 %v4289
    %v7417 = vpop.f32.mrb[0].mxu0
    %v7418 = vadd.f32 %v7347, %v7417
    %v7419 = vpop.f32.mrb[0].mxu0
    %v7420 = vadd.f32 %v7349, %v7419
    %7421 = vdwg.mxu0
    %7422 = vmatprep.subr.mxu0 %v2631
    %7423 = vmatpush1.msra.mxu0 %v2630
    %7424 = vmatprep.subr.mxu0 %v2633
    %7425 = vmatpush1.msra.mxu0 %v2632
    %7426 = vmatprep.subr.mxu0 %v2635
    %7427 = vmatpush1.msra.mxu0 %v2634
    %7428 = vmatprep.subr.mxu0 %v2637
    %7429 = vmatpush1.msra.mxu0 %v2636
    %7430 = vmatprep.subr.mxu0 %v2639
    %7431 = vmatpush1.msra.mxu0 %v2638
    %7432 = vmatprep.subr.mxu0 %v2641
    %7433 = vmatpush1.msra.mxu0 %v2640
    %7434 = vmatprep.subr.mxu0 %v2643
    %7435 = vmatpush1.msra.mxu0 %v2642
    %7436 = vmatprep.subr.mxu0 %v2645
    %7437 = vmatpush1.msra.mxu0 %v2644
    %7438 = vmatprep.subr.mxu0 %v2647
    %7439 = vmatpush1.msra.mxu0 %v2646
    %7440 = vmatprep.subr.mxu0 %v2649
    %7441 = vmatpush1.msra.mxu0 %v2648
    %7442 = vmatprep.subr.mxu0 %v2651
    %7443 = vmatpush1.msra.mxu0 %v2650
    %7444 = vmatprep.subr.mxu0 %v2653
    %7445 = vmatpush1.msra.mxu0 %v2652
    %7446 = vmatprep.subr.mxu0 %v2655
    %7447 = vmatpush1.msra.mxu0 %v2654
    %7448 = vmatprep.subr.mxu0 %v2657
    %7449 = vmatpush1.msra.mxu0 %v2656
    %7450 = vmatprep.subr.mxu0 %v2659
    %7451 = vmatpush1.msra.mxu0 %v2658
    %7452 = vmatprep.subr.mxu0 %v2661
    %7453 = vmatpush1.msra.mxu0 %v2660
    %7454 = vmatprep.subr.mxu0 %v2663
    %7455 = vmatpush1.msra.mxu0 %v2662
    %7456 = vmatprep.subr.mxu0 %v2665
    %7457 = vmatpush1.msra.mxu0 %v2664
    %7458 = vmatprep.subr.mxu0 %v2667
    %7459 = vmatpush1.msra.mxu0 %v2666
    %7460 = vmatprep.subr.mxu0 %v2669
    %7461 = vmatpush1.msra.mxu0 %v2668
    %7462 = vmatprep.subr.mxu0 %v2671
    %7463 = vmatpush1.msra.mxu0 %v2670
    %7464 = vmatprep.subr.mxu0 %v2673
    %7465 = vmatpush1.msra.mxu0 %v2672
    %7466 = vmatprep.subr.mxu0 %v2675
    %7467 = vmatpush1.msra.mxu0 %v2674
    %7468 = vmatprep.subr.mxu0 %v2677
    %7469 = vmatpush1.msra.mxu0 %v2676
    %7470 = vmatprep.subr.mxu0 %v2679
    %7471 = vmatpush1.msra.mxu0 %v2678
    %7472 = vmatprep.subr.mxu0 %v2681
    %7473 = vmatpush1.msra.mxu0 %v2680
    %7474 = vmatprep.subr.mxu0 %v2683
    %7475 = vmatpush1.msra.mxu0 %v2682
    %7476 = vmatprep.subr.mxu0 %v2685
    %7477 = vmatpush1.msra.mxu0 %v2684
    %7478 = vmatprep.subr.mxu0 %v2687
    %7479 = vmatpush1.msra.mxu0 %v2686
    %7480 = vmatprep.subr.mxu0 %v2689
    %7481 = vmatpush1.msra.mxu0 %v2688
    %7482 = vmatprep.subr.mxu0 %v2691
    %7483 = vmatpush1.msra.mxu0 %v2690
    %7484 = vmatprep.subr.mxu0 %v2693
    %7485 = vmatpush1.msra.mxu0 %v2692
    %7486 = vmatprep.mubr.f32.mxu0 %v4307
    %7487 = vmatmul.mubr.f32.gmra.mrb[0].mxu0 %v4299
    %v7488 = vpop.f32.mrb[0].mxu0
    %v7489 = vadd.f32 %v7418, %v7488
    %v7490 = vpop.f32.mrb[0].mxu0
    %v7491 = vadd.f32 %v7420, %v7490
    %7492 = vdwg.mxu0
    %7493 = vmatprep.subr.mxu0 %v2695
    %7494 = vmatpush1.msra.mxu0 %v2694
    %7495 = vmatprep.subr.mxu0 %v2697
    %7496 = vmatpush1.msra.mxu0 %v2696
    %7497 = vmatprep.subr.mxu0 %v2699
    %7498 = vmatpush1.msra.mxu0 %v2698
    %7499 = vmatprep.subr.mxu0 %v2701
    %7500 = vmatpush1.msra.mxu0 %v2700
    %7501 = vmatprep.subr.mxu0 %v2703
    %7502 = vmatpush1.msra.mxu0 %v2702
    %7503 = vmatprep.subr.mxu0 %v2705
    %7504 = vmatpush1.msra.mxu0 %v2704
    %7505 = vmatprep.subr.mxu0 %v2707
    %7506 = vmatpush1.msra.mxu0 %v2706
    %7507 = vmatprep.subr.mxu0 %v2709
    %7508 = vmatpush1.msra.mxu0 %v2708
    %7509 = vmatprep.subr.mxu0 %v2711
    %7510 = vmatpush1.msra.mxu0 %v2710
    %7511 = vmatprep.subr.mxu0 %v2713
    %7512 = vmatpush1.msra.mxu0 %v2712
    %7513 = vmatprep.subr.mxu0 %v2715
    %7514 = vmatpush1.msra.mxu0 %v2714
    %7515 = vmatprep.subr.mxu0 %v2717
    %7516 = vmatpush1.msra.mxu0 %v2716
    %7517 = vmatprep.subr.mxu0 %v2719
    %7518 = vmatpush1.msra.mxu0 %v2718
    %7519 = vmatprep.subr.mxu0 %v2721
    %7520 = vmatpush1.msra.mxu0 %v2720
    %7521 = vmatprep.subr.mxu0 %v2723
    %7522 = vmatpush1.msra.mxu0 %v2722
    %7523 = vmatprep.subr.mxu0 %v2725
    %7524 = vmatpush1.msra.mxu0 %v2724
    %7525 = vmatprep.subr.mxu0 %v2727
    %7526 = vmatpush1.msra.mxu0 %v2726
    %7527 = vmatprep.subr.mxu0 %v2729
    %7528 = vmatpush1.msra.mxu0 %v2728
    %7529 = vmatprep.subr.mxu0 %v2731
    %7530 = vmatpush1.msra.mxu0 %v2730
    %7531 = vmatprep.subr.mxu0 %v2733
    %7532 = vmatpush1.msra.mxu0 %v2732
    %7533 = vmatprep.subr.mxu0 %v2735
    %7534 = vmatpush1.msra.mxu0 %v2734
    %7535 = vmatprep.subr.mxu0 %v2737
    %7536 = vmatpush1.msra.mxu0 %v2736
    %7537 = vmatprep.subr.mxu0 %v2739
    %7538 = vmatpush1.msra.mxu0 %v2738
    %7539 = vmatprep.subr.mxu0 %v2741
    %7540 = vmatpush1.msra.mxu0 %v2740
    %7541 = vmatprep.subr.mxu0 %v2743
    %7542 = vmatpush1.msra.mxu0 %v2742
    %7543 = vmatprep.subr.mxu0 %v2745
    %7544 = vmatpush1.msra.mxu0 %v2744
    %7545 = vmatprep.subr.mxu0 %v2747
    %7546 = vmatpush1.msra.mxu0 %v2746
    %7547 = vmatprep.subr.mxu0 %v2749
    %7548 = vmatpush1.msra.mxu0 %v2748
    %7549 = vmatprep.subr.mxu0 %v2751
    %7550 = vmatpush1.msra.mxu0 %v2750
    %7551 = vmatprep.subr.mxu0 %v2753
    %7552 = vmatpush1.msra.mxu0 %v2752
    %7553 = vmatprep.subr.mxu0 %v2755
    %7554 = vmatpush1.msra.mxu0 %v2754
    %7555 = vmatprep.subr.mxu0 %v2757
    %7556 = vmatpush1.msra.mxu0 %v2756
    %7557 = vmatprep.mubr.f32.mxu0 %v4308
    %7558 = vmatmul.mubr.f32.gmra.mrb[0].mxu0 %v4306
    %v7559 = vpop.f32.mrb[0].mxu0
    %v7560 = vadd.f32 %v7489, %v7559
    %v7561 = vpop.f32.mrb[0].mxu0
    %v7562 = vadd.f32 %v7491, %v7561
    %7563 = vdwg.mxu0
    %7564 = vmatprep.subr.mxu0 %v2759
    %7565 = vmatpush1.msra.mxu0 %v2758
    %7566 = vmatprep.subr.mxu0 %v2761
    %7567 = vmatpush1.msra.mxu0 %v2760
    %7568 = vmatprep.subr.mxu0 %v2763
    %7569 = vmatpush1.msra.mxu0 %v2762
    %7570 = vmatprep.subr.mxu0 %v2765
    %7571 = vmatpush1.msra.mxu0 %v2764
    %7572 = vmatprep.subr.mxu0 %v2767
    %7573 = vmatpush1.msra.mxu0 %v2766
    %7574 = vmatprep.subr.mxu0 %v2769
    %7575 = vmatpush1.msra.mxu0 %v2768
    %7576 = vmatprep.subr.mxu0 %v2771
    %7577 = vmatpush1.msra.mxu0 %v2770
    %7578 = vmatprep.subr.mxu0 %v2773
    %7579 = vmatpush1.msra.mxu0 %v2772
    %7580 = vmatprep.subr.mxu0 %v2775
    %7581 = vmatpush1.msra.mxu0 %v2774
    %7582 = vmatprep.subr.mxu0 %v2777
    %7583 = vmatpush1.msra.mxu0 %v2776
    %7584 = vmatprep.subr.mxu0 %v2779
    %7585 = vmatpush1.msra.mxu0 %v2778
    %7586 = vmatprep.subr.mxu0 %v2781
    %7587 = vmatpush1.msra.mxu0 %v2780
    %7588 = vmatprep.subr.mxu0 %v2783
    %7589 = vmatpush1.msra.mxu0 %v2782
    %7590 = vmatprep.subr.mxu0 %v2785
    %7591 = vmatpush1.msra.mxu0 %v2784
    %7592 = vmatprep.subr.mxu0 %v2787
    %7593 = vmatpush1.msra.mxu0 %v2786
    %7594 = vmatprep.subr.mxu0 %v2789
    %7595 = vmatpush1.msra.mxu0 %v2788
    %7596 = vmatprep.subr.mxu0 %v2791
    %7597 = vmatpush1.msra.mxu0 %v2790
    %7598 = vmatprep.subr.mxu0 %v2793
    %7599 = vmatpush1.msra.mxu0 %v2792
    %7600 = vmatprep.subr.mxu0 %v2795
    %7601 = vmatpush1.msra.mxu0 %v2794
    %7602 = vmatprep.subr.mxu0 %v2797
    %7603 = vmatpush1.msra.mxu0 %v2796
    %7604 = vmatprep.subr.mxu0 %v2799
    %7605 = vmatpush1.msra.mxu0 %v2798
    %7606 = vmatprep.subr.mxu0 %v2801
    %7607 = vmatpush1.msra.mxu0 %v2800
    %7608 = vmatprep.subr.mxu0 %v2803
    %7609 = vmatpush1.msra.mxu0 %v2802
    %7610 = vmatprep.subr.mxu0 %v2805
    %7611 = vmatpush1.msra.mxu0 %v2804
    %7612 = vmatprep.subr.mxu0 %v2807
    %7613 = vmatpush1.msra.mxu0 %v2806
    %7614 = vmatprep.subr.mxu0 %v2809
    %7615 = vmatpush1.msra.mxu0 %v2808
    %7616 = vmatprep.subr.mxu0 %v2811
    %7617 = vmatpush1.msra.mxu0 %v2810
    %7618 = vmatprep.subr.mxu0 %v2813
    %7619 = vmatpush1.msra.mxu0 %v2812
    %7620 = vmatprep.subr.mxu0 %v2815
    %7621 = vmatpush1.msra.mxu0 %v2814
    %7622 = vmatprep.subr.mxu0 %v2817
    %7623 = vmatpush1.msra.mxu0 %v2816
    %7624 = vmatprep.subr.mxu0 %v2819
    %7625 = vmatpush1.msra.mxu0 %v2818
    %7626 = vmatprep.subr.mxu0 %v2821
    %7627 = vmatpush1.msra.mxu0 %v2820
    %7628 = vmatprep.mubr.f32.mxu0 %v4324
    %7629 = vmatmul.mubr.f32.gmra.mrb[0].mxu0 %v4316
    %v7630 = vpop.f32.mrb[0].mxu0
    %v7631 = vadd.f32 %v7560, %v7630
    %v7632 = vpop.f32.mrb[0].mxu0
    %v7633 = vadd.f32 %v7562, %v7632
    %7634 = vdwg.mxu0
    %7635 = vmatprep.subr.mxu0 %v2823
    %7636 = vmatpush1.msra.mxu0 %v2822
    %7637 = vmatprep.subr.mxu0 %v2825
    %7638 = vmatpush1.msra.mxu0 %v2824
    %7639 = vmatprep.subr.mxu0 %v2827
    %7640 = vmatpush1.msra.mxu0 %v2826
    %7641 = vmatprep.subr.mxu0 %v2829
    %7642 = vmatpush1.msra.mxu0 %v2828
    %7643 = vmatprep.subr.mxu0 %v2831
    %7644 = vmatpush1.msra.mxu0 %v2830
    %7645 = vmatprep.subr.mxu0 %v2833
    %7646 = vmatpush1.msra.mxu0 %v2832
    %7647 = vmatprep.subr.mxu0 %v2835
    %7648 = vmatpush1.msra.mxu0 %v2834
    %7649 = vmatprep.subr.mxu0 %v2837
    %7650 = vmatpush1.msra.mxu0 %v2836
    %7651 = vmatprep.subr.mxu0 %v2839
    %7652 = vmatpush1.msra.mxu0 %v2838
    %7653 = vmatprep.subr.mxu0 %v2841
    %7654 = vmatpush1.msra.mxu0 %v2840
    %7655 = vmatprep.subr.mxu0 %v2843
    %7656 = vmatpush1.msra.mxu0 %v2842
    %7657 = vmatprep.subr.mxu0 %v2845
    %7658 = vmatpush1.msra.mxu0 %v2844
    %7659 = vmatprep.subr.mxu0 %v2847
    %7660 = vmatpush1.msra.mxu0 %v2846
    %7661 = vmatprep.subr.mxu0 %v2849
    %7662 = vmatpush1.msra.mxu0 %v2848
    %7663 = vmatprep.subr.mxu0 %v2851
    %7664 = vmatpush1.msra.mxu0 %v2850
    %7665 = vmatprep.subr.mxu0 %v2853
    %7666 = vmatpush1.msra.mxu0 %v2852
    %7667 = vmatprep.subr.mxu0 %v2855
    %7668 = vmatpush1.msra.mxu0 %v2854
    %7669 = vmatprep.subr.mxu0 %v2857
    %7670 = vmatpush1.msra.mxu0 %v2856
    %7671 = vmatprep.subr.mxu0 %v2859
    %7672 = vmatpush1.msra.mxu0 %v2858
    %7673 = vmatprep.subr.mxu0 %v2861
    %7674 = vmatpush1.msra.mxu0 %v2860
    %7675 = vmatprep.subr.mxu0 %v2863
    %7676 = vmatpush1.msra.mxu0 %v2862
    %7677 = vmatprep.subr.mxu0 %v2865
    %7678 = vmatpush1.msra.mxu0 %v2864
    %7679 = vmatprep.subr.mxu0 %v2867
    %7680 = vmatpush1.msra.mxu0 %v2866
    %7681 = vmatprep.subr.mxu0 %v2869
    %7682 = vmatpush1.msra.mxu0 %v2868
    %7683 = vmatprep.subr.mxu0 %v2871
    %7684 = vmatpush1.msra.mxu0 %v2870
    %7685 = vmatprep.subr.mxu0 %v2873
    %7686 = vmatpush1.msra.mxu0 %v2872
    %7687 = vmatprep.subr.mxu0 %v2875
    %7688 = vmatpush1.msra.mxu0 %v2874
    %7689 = vmatprep.subr.mxu0 %v2877
    %7690 = vmatpush1.msra.mxu0 %v2876
    %7691 = vmatprep.subr.mxu0 %v2879
    %7692 = vmatpush1.msra.mxu0 %v2878
    %7693 = vmatprep.subr.mxu0 %v2881
    %7694 = vmatpush1.msra.mxu0 %v2880
    %7695 = vmatprep.subr.mxu0 %v2883
    %7696 = vmatpush1.msra.mxu0 %v2882
    %7697 = vmatprep.subr.mxu0 %v2885
    %7698 = vmatpush1.msra.mxu0 %v2884
    %7699 = vmatprep.mubr.f32.mxu0 %v4325
    %7700 = vmatmul.mubr.f32.gmra.mrb[0].mxu0 %v4323
    %v7701 = vpop.f32.mrb[0].mxu0
    %v7702 = vadd.f32 %v7631, %v7701
    %v7703 = vpop.f32.mrb[0].mxu0
    %v7704 = vadd.f32 %v7633, %v7703
    %7705 = vdwg.mxu0
    %7706 = vmatprep.subr.mxu0 %v2887
    %7707 = vmatpush1.msra.mxu0 %v2886
    %7708 = vmatprep.subr.mxu0 %v2889
    %7709 = vmatpush1.msra.mxu0 %v2888
    %7710 = vmatprep.subr.mxu0 %v2891
    %7711 = vmatpush1.msra.mxu0 %v2890
    %7712 = vmatprep.subr.mxu0 %v2893
    %7713 = vmatpush1.msra.mxu0 %v2892
    %7714 = vmatprep.subr.mxu0 %v2895
    %7715 = vmatpush1.msra.mxu0 %v2894
    %7716 = vmatprep.subr.mxu0 %v2897
    %7717 = vmatpush1.msra.mxu0 %v2896
    %7718 = vmatprep.subr.mxu0 %v2899
    %7719 = vmatpush1.msra.mxu0 %v2898
    %7720 = vmatprep.subr.mxu0 %v2901
    %7721 = vmatpush1.msra.mxu0 %v2900
    %7722 = vmatprep.subr.mxu0 %v2903
    %7723 = vmatpush1.msra.mxu0 %v2902
    %7724 = vmatprep.subr.mxu0 %v2905
    %7725 = vmatpush1.msra.mxu0 %v2904
    %7726 = vmatprep.subr.mxu0 %v2907
    %7727 = vmatpush1.msra.mxu0 %v2906
    %7728 = vmatprep.subr.mxu0 %v2909
    %7729 = vmatpush1.msra.mxu0 %v2908
    %7730 = vmatprep.subr.mxu0 %v2911
    %7731 = vmatpush1.msra.mxu0 %v2910
    %7732 = vmatprep.subr.mxu0 %v2913
    %7733 = vmatpush1.msra.mxu0 %v2912
    %7734 = vmatprep.subr.mxu0 %v2915
    %7735 = vmatpush1.msra.mxu0 %v2914
    %7736 = vmatprep.subr.mxu0 %v2917
    %7737 = vmatpush1.msra.mxu0 %v2916
    %7738 = vmatprep.subr.mxu0 %v2919
    %7739 = vmatpush1.msra.mxu0 %v2918
    %7740 = vmatprep.subr.mxu0 %v2921
    %7741 = vmatpush1.msra.mxu0 %v2920
    %7742 = vmatprep.subr.mxu0 %v2923
    %7743 = vmatpush1.msra.mxu0 %v2922
    %7744 = vmatprep.subr.mxu0 %v2925
    %7745 = vmatpush1.msra.mxu0 %v2924
    %7746 = vmatprep.subr.mxu0 %v2927
    %7747 = vmatpush1.msra.mxu0 %v2926
    %7748 = vmatprep.subr.mxu0 %v2929
    %7749 = vmatpush1.msra.mxu0 %v2928
    %7750 = vmatprep.subr.mxu0 %v2931
    %7751 = vmatpush1.msra.mxu0 %v2930
    %7752 = vmatprep.subr.mxu0 %v2933
    %7753 = vmatpush1.msra.mxu0 %v2932
    %7754 = vmatprep.subr.mxu0 %v2935
    %7755 = vmatpush1.msra.mxu0 %v2934
    %7756 = vmatprep.subr.mxu0 %v2937
    %7757 = vmatpush1.msra.mxu0 %v2936
    %7758 = vmatprep.subr.mxu0 %v2939
    %7759 = vmatpush1.msra.mxu0 %v2938
    %7760 = vmatprep.subr.mxu0 %v2941
    %7761 = vmatpush1.msra.mxu0 %v2940
    %7762 = vmatprep.subr.mxu0 %v2943
    %7763 = vmatpush1.msra.mxu0 %v2942
    %7764 = vmatprep.subr.mxu0 %v2945
    %7765 = vmatpush1.msra.mxu0 %v2944
    %7766 = vmatprep.subr.mxu0 %v2947
    %7767 = vmatpush1.msra.mxu0 %v2946
    %7768 = vmatprep.subr.mxu0 %v2949
    %7769 = vmatpush1.msra.mxu0 %v2948
    %7770 = vmatprep.mubr.f32.mxu0 %v4341
    %7771 = vmatmul.mubr.f32.gmra.mrb[0].mxu0 %v4333
    %v7772 = vpop.f32.mrb[0].mxu0
    %v7773 = vadd.f32 %v7702, %v7772
    %v7774 = vpop.f32.mrb[0].mxu0
    %v7775 = vadd.f32 %v7704, %v7774
    %7776 = vdwg.mxu0
    %7777 = vmatprep.subr.mxu0 %v2951
    %7778 = vmatpush1.msra.mxu0 %v2950
    %7779 = vmatprep.subr.mxu0 %v2953
    %7780 = vmatpush1.msra.mxu0 %v2952
    %7781 = vmatprep.subr.mxu0 %v2955
    %7782 = vmatpush1.msra.mxu0 %v2954
    %7783 = vmatprep.subr.mxu0 %v2957
    %7784 = vmatpush1.msra.mxu0 %v2956
    %7785 = vmatprep.subr.mxu0 %v2959
    %7786 = vmatpush1.msra.mxu0 %v2958
    %7787 = vmatprep.subr.mxu0 %v2961
    %7788 = vmatpush1.msra.mxu0 %v2960
    %7789 = vmatprep.subr.mxu0 %v2963
    %7790 = vmatpush1.msra.mxu0 %v2962
    %7791 = vmatprep.subr.mxu0 %v2965
    %7792 = vmatpush1.msra.mxu0 %v2964
    %7793 = vmatprep.subr.mxu0 %v2967
    %7794 = vmatpush1.msra.mxu0 %v2966
    %7795 = vmatprep.subr.mxu0 %v2969
    %7796 = vmatpush1.msra.mxu0 %v2968
    %7797 = vmatprep.subr.mxu0 %v2971
    %7798 = vmatpush1.msra.mxu0 %v2970
    %7799 = vmatprep.subr.mxu0 %v2973
    %7800 = vmatpush1.msra.mxu0 %v2972
    %7801 = vmatprep.subr.mxu0 %v2975
    %7802 = vmatpush1.msra.mxu0 %v2974
    %7803 = vmatprep.subr.mxu0 %v2977
    %7804 = vmatpush1.msra.mxu0 %v2976
    %7805 = vmatprep.subr.mxu0 %v2979
    %7806 = vmatpush1.msra.mxu0 %v2978
    %7807 = vmatprep.subr.mxu0 %v2981
    %7808 = vmatpush1.msra.mxu0 %v2980
    %7809 = vmatprep.subr.mxu0 %v2983
    %7810 = vmatpush1.msra.mxu0 %v2982
    %7811 = vmatprep.subr.mxu0 %v2985
    %7812 = vmatpush1.msra.mxu0 %v2984
    %7813 = vmatprep.subr.mxu0 %v2987
    %7814 = vmatpush1.msra.mxu0 %v2986
    %7815 = vmatprep.subr.mxu0 %v2989
    %7816 = vmatpush1.msra.mxu0 %v2988
    %7817 = vmatprep.subr.mxu0 %v2991
    %7818 = vmatpush1.msra.mxu0 %v2990
    %7819 = vmatprep.subr.mxu0 %v2993
    %7820 = vmatpush1.msra.mxu0 %v2992
    %7821 = vmatprep.subr.mxu0 %v2995
    %7822 = vmatpush1.msra.mxu0 %v2994
    %7823 = vmatprep.subr.mxu0 %v2997
    %7824 = vmatpush1.msra.mxu0 %v2996
    %7825 = vmatprep.subr.mxu0 %v2999
    %7826 = vmatpush1.msra.mxu0 %v2998
    %7827 = vmatprep.subr.mxu0 %v3001
    %7828 = vmatpush1.msra.mxu0 %v3000
    %7829 = vmatprep.subr.mxu0 %v3003
    %7830 = vmatpush1.msra.mxu0 %v3002
    %7831 = vmatprep.subr.mxu0 %v3005
    %7832 = vmatpush1.msra.mxu0 %v3004
    %7833 = vmatprep.subr.mxu0 %v3007
    %7834 = vmatpush1.msra.mxu0 %v3006
    %7835 = vmatprep.subr.mxu0 %v3009
    %7836 = vmatpush1.msra.mxu0 %v3008
    %7837 = vmatprep.subr.mxu0 %v3011
    %7838 = vmatpush1.msra.mxu0 %v3010
    %7839 = vmatprep.subr.mxu0 %v3013
    %7840 = vmatpush1.msra.mxu0 %v3012
    %7841 = vmatprep.mubr.f32.mxu0 %v4342
    %7842 = vmatmul.mubr.f32.gmra.mrb[0].mxu0 %v4340
    %v7843 = vpop.f32.mrb[0].mxu0
    %v7844 = vadd.f32 %v7773, %v7843
    %v7845 = vpop.f32.mrb[0].mxu0
    %v7846 = vadd.f32 %v7775, %v7845
    %7847 = vdwg.mxu0
    %7848 = vmatprep.subr.mxu0 %v3015
    %7849 = vmatpush1.msra.mxu0 %v3014
    %7850 = vmatprep.subr.mxu0 %v3017
    %7851 = vmatpush1.msra.mxu0 %v3016
    %7852 = vmatprep.subr.mxu0 %v3019
    %7853 = vmatpush1.msra.mxu0 %v3018
    %7854 = vmatprep.subr.mxu0 %v3021
    %7855 = vmatpush1.msra.mxu0 %v3020
    %7856 = vmatprep.subr.mxu0 %v3023
    %7857 = vmatpush1.msra.mxu0 %v3022
    %7858 = vmatprep.subr.mxu0 %v3025
    %7859 = vmatpush1.msra.mxu0 %v3024
    %7860 = vmatprep.subr.mxu0 %v3027
    %7861 = vmatpush1.msra.mxu0 %v3026
    %7862 = vmatprep.subr.mxu0 %v3029
    %7863 = vmatpush1.msra.mxu0 %v3028
    %7864 = vmatprep.subr.mxu0 %v3031
    %7865 = vmatpush1.msra.mxu0 %v3030
    %7866 = vmatprep.subr.mxu0 %v3033
    %7867 = vmatpush1.msra.mxu0 %v3032
    %7868 = vmatprep.subr.mxu0 %v3035
    %7869 = vmatpush1.msra.mxu0 %v3034
    %7870 = vmatprep.subr.mxu0 %v3037
    %7871 = vmatpush1.msra.mxu0 %v3036
    %7872 = vmatprep.subr.mxu0 %v3039
    %7873 = vmatpush1.msra.mxu0 %v3038
    %7874 = vmatprep.subr.mxu0 %v3041
    %7875 = vmatpush1.msra.mxu0 %v3040
    %7876 = vmatprep.subr.mxu0 %v3043
    %7877 = vmatpush1.msra.mxu0 %v3042
    %7878 = vmatprep.subr.mxu0 %v3045
    %7879 = vmatpush1.msra.mxu0 %v3044
    %7880 = vmatprep.subr.mxu0 %v3047
    %7881 = vmatpush1.msra.mxu0 %v3046
    %7882 = vmatprep.subr.mxu0 %v3049
    %7883 = vmatpush1.msra.mxu0 %v3048
    %7884 = vmatprep.subr.mxu0 %v3051
    %7885 = vmatpush1.msra.mxu0 %v3050
    %7886 = vmatprep.subr.mxu0 %v3053
    %7887 = vmatpush1.msra.mxu0 %v3052
    %7888 = vmatprep.subr.mxu0 %v3055
    %7889 = vmatpush1.msra.mxu0 %v3054
    %7890 = vmatprep.subr.mxu0 %v3057
    %7891 = vmatpush1.msra.mxu0 %v3056
    %7892 = vmatprep.subr.mxu0 %v3059
    %7893 = vmatpush1.msra.mxu0 %v3058
    %7894 = vmatprep.subr.mxu0 %v3061
    %7895 = vmatpush1.msra.mxu0 %v3060
    %7896 = vmatprep.subr.mxu0 %v3063
    %7897 = vmatpush1.msra.mxu0 %v3062
    %7898 = vmatprep.subr.mxu0 %v3065
    %7899 = vmatpush1.msra.mxu0 %v3064
    %7900 = vmatprep.subr.mxu0 %v3067
    %7901 = vmatpush1.msra.mxu0 %v3066
    %7902 = vmatprep.subr.mxu0 %v3069
    %7903 = vmatpush1.msra.mxu0 %v3068
    %7904 = vmatprep.subr.mxu0 %v3071
    %7905 = vmatpush1.msra.mxu0 %v3070
    %7906 = vmatprep.subr.mxu0 %v3073
    %7907 = vmatpush1.msra.mxu0 %v3072
    %7908 = vmatprep.subr.mxu0 %v3075
    %7909 = vmatpush1.msra.mxu0 %v3074
    %7910 = vmatprep.subr.mxu0 %v3077
    %7911 = vmatpush1.msra.mxu0 %v3076
    %7912 = vmatprep.mubr.f32.mxu0 %v4358
    %7913 = vmatmul.mubr.f32.gmra.mrb[0].mxu0 %v4350
    %v7914 = vpop.f32.mrb[0].mxu0
    %v7915 = vadd.f32 %v7844, %v7914
    %v7916 = vpop.f32.mrb[0].mxu0
    %v7917 = vadd.f32 %v7846, %v7916
    %7918 = vdwg.mxu0
    %7919 = vmatprep.subr.mxu0 %v3079
    %7920 = vmatpush1.msra.mxu0 %v3078
    %7921 = vmatprep.subr.mxu0 %v3081
    %7922 = vmatpush1.msra.mxu0 %v3080
    %7923 = vmatprep.subr.mxu0 %v3083
    %7924 = vmatpush1.msra.mxu0 %v3082
    %7925 = vmatprep.subr.mxu0 %v3085
    %7926 = vmatpush1.msra.mxu0 %v3084
    %7927 = vmatprep.subr.mxu0 %v3087
    %7928 = vmatpush1.msra.mxu0 %v3086
    %7929 = vmatprep.subr.mxu0 %v3089
    %7930 = vmatpush1.msra.mxu0 %v3088
    %7931 = vmatprep.subr.mxu0 %v3091
    %7932 = vmatpush1.msra.mxu0 %v3090
    %7933 = vmatprep.subr.mxu0 %v3093
    %7934 = vmatpush1.msra.mxu0 %v3092
    %7935 = vmatprep.subr.mxu0 %v3095
    %7936 = vmatpush1.msra.mxu0 %v3094
    %7937 = vmatprep.subr.mxu0 %v3097
    %7938 = vmatpush1.msra.mxu0 %v3096
    %7939 = vmatprep.subr.mxu0 %v3099
    %7940 = vmatpush1.msra.mxu0 %v3098
    %7941 = vmatprep.subr.mxu0 %v3101
    %7942 = vmatpush1.msra.mxu0 %v3100
    %7943 = vmatprep.subr.mxu0 %v3103
    %7944 = vmatpush1.msra.mxu0 %v3102
    %7945 = vmatprep.subr.mxu0 %v3105
    %7946 = vmatpush1.msra.mxu0 %v3104
    %7947 = vmatprep.subr.mxu0 %v3107
    %7948 = vmatpush1.msra.mxu0 %v3106
    %7949 = vmatprep.subr.mxu0 %v3109
    %7950 = vmatpush1.msra.mxu0 %v3108
    %7951 = vmatprep.subr.mxu0 %v3111
    %7952 = vmatpush1.msra.mxu0 %v3110
    %7953 = vmatprep.subr.mxu0 %v3113
    %7954 = vmatpush1.msra.mxu0 %v3112
    %7955 = vmatprep.subr.mxu0 %v3115
    %7956 = vmatpush1.msra.mxu0 %v3114
    %7957 = vmatprep.subr.mxu0 %v3117
    %7958 = vmatpush1.msra.mxu0 %v3116
    %7959 = vmatprep.subr.mxu0 %v3119
    %7960 = vmatpush1.msra.mxu0 %v3118
    %7961 = vmatprep.subr.mxu0 %v3121
    %7962 = vmatpush1.msra.mxu0 %v3120
    %7963 = vmatprep.subr.mxu0 %v3123
    %7964 = vmatpush1.msra.mxu0 %v3122
    %7965 = vmatprep.subr.mxu0 %v3125
    %7966 = vmatpush1.msra.mxu0 %v3124
    %7967 = vmatprep.subr.mxu0 %v3127
    %7968 = vmatpush1.msra.mxu0 %v3126
    %7969 = vmatprep.subr.mxu0 %v3129
    %7970 = vmatpush1.msra.mxu0 %v3128
    %7971 = vmatprep.subr.mxu0 %v3131
    %7972 = vmatpush1.msra.mxu0 %v3130
    %7973 = vmatprep.subr.mxu0 %v3133
    %7974 = vmatpush1.msra.mxu0 %v3132
    %7975 = vmatprep.subr.mxu0 %v3135
    %7976 = vmatpush1.msra.mxu0 %v3134
    %7977 = vmatprep.subr.mxu0 %v3137
    %7978 = vmatpush1.msra.mxu0 %v3136
    %7979 = vmatprep.subr.mxu0 %v3139
    %7980 = vmatpush1.msra.mxu0 %v3138
    %7981 = vmatprep.subr.mxu0 %v3141
    %7982 = vmatpush1.msra.mxu0 %v3140
    %7983 = vmatprep.mubr.f32.mxu0 %v4359
    %7984 = vmatmul.mubr.f32.gmra.mrb[0].mxu0 %v4357
    %v7985 = vpop.f32.mrb[0].mxu0
    %v7986 = vadd.f32 %v7915, %v7985
    %v7987 = vpop.f32.mrb[0].mxu0
    %v7988 = vadd.f32 %v7917, %v7987
    %7989 = vdwg.mxu0
    %7990 = vmatprep.subr.mxu0 %v3143
    %7991 = vmatpush1.msra.mxu0 %v3142
    %7992 = vmatprep.subr.mxu0 %v3145
    %7993 = vmatpush1.msra.mxu0 %v3144
    %7994 = vmatprep.subr.mxu0 %v3147
    %7995 = vmatpush1.msra.mxu0 %v3146
    %7996 = vmatprep.subr.mxu0 %v3149
    %7997 = vmatpush1.msra.mxu0 %v3148
    %7998 = vmatprep.subr.mxu0 %v3151
    %7999 = vmatpush1.msra.mxu0 %v3150
    %8000 = vmatprep.subr.mxu0 %v3153
    %8001 = vmatpush1.msra.mxu0 %v3152
    %8002 = vmatprep.subr.mxu0 %v3155
    %8003 = vmatpush1.msra.mxu0 %v3154
    %8004 = vmatprep.subr.mxu0 %v3157
    %8005 = vmatpush1.msra.mxu0 %v3156
    %8006 = vmatprep.subr.mxu0 %v3159
    %8007 = vmatpush1.msra.mxu0 %v3158
    %8008 = vmatprep.subr.mxu0 %v3161
    %8009 = vmatpush1.msra.mxu0 %v3160
    %8010 = vmatprep.subr.mxu0 %v3163
    %8011 = vmatpush1.msra.mxu0 %v3162
    %8012 = vmatprep.subr.mxu0 %v3165
    %8013 = vmatpush1.msra.mxu0 %v3164
    %8014 = vmatprep.subr.mxu0 %v3167
    %8015 = vmatpush1.msra.mxu0 %v3166
    %8016 = vmatprep.subr.mxu0 %v3169
    %8017 = vmatpush1.msra.mxu0 %v3168
    %8018 = vmatprep.subr.mxu0 %v3171
    %8019 = vmatpush1.msra.mxu0 %v3170
    %8020 = vmatprep.subr.mxu0 %v3173
    %8021 = vmatpush1.msra.mxu0 %v3172
    %8022 = vmatprep.subr.mxu0 %v3175
    %8023 = vmatpush1.msra.mxu0 %v3174
    %8024 = vmatprep.subr.mxu0 %v3177
    %8025 = vmatpush1.msra.mxu0 %v3176
    %8026 = vmatprep.subr.mxu0 %v3179
    %8027 = vmatpush1.msra.mxu0 %v3178
    %8028 = vmatprep.subr.mxu0 %v3181
    %8029 = vmatpush1.msra.mxu0 %v3180
    %8030 = vmatprep.subr.mxu0 %v3183
    %8031 = vmatpush1.msra.mxu0 %v3182
    %8032 = vmatprep.subr.mxu0 %v3185
    %8033 = vmatpush1.msra.mxu0 %v3184
    %8034 = vmatprep.subr.mxu0 %v3187
    %8035 = vmatpush1.msra.mxu0 %v3186
    %8036 = vmatprep.subr.mxu0 %v3189
    %8037 = vmatpush1.msra.mxu0 %v3188
    %8038 = vmatprep.subr.mxu0 %v3191
    %8039 = vmatpush1.msra.mxu0 %v3190
    %8040 = vmatprep.subr.mxu0 %v3193
    %8041 = vmatpush1.msra.mxu0 %v3192
    %8042 = vmatprep.subr.mxu0 %v3195
    %8043 = vmatpush1.msra.mxu0 %v3194
    %8044 = vmatprep.subr.mxu0 %v3197
    %8045 = vmatpush1.msra.mxu0 %v3196
    %8046 = vmatprep.subr.mxu0 %v3199
    %8047 = vmatpush1.msra.mxu0 %v3198
    %8048 = vmatprep.subr.mxu0 %v3201
    %8049 = vmatpush1.msra.mxu0 %v3200
    %8050 = vmatprep.subr.mxu0 %v3203
    %8051 = vmatpush1.msra.mxu0 %v3202
    %8052 = vmatprep.subr.mxu0 %v3205
    %8053 = vmatpush1.msra.mxu0 %v3204
    %8054 = vmatprep.mubr.f32.mxu0 %v4375
    %8055 = vmatmul.mubr.f32.gmra.mrb[0].mxu0 %v4367
    %v8056 = vpop.f32.mrb[0].mxu0
    %v8057 = vadd.f32 %v7986, %v8056
    %v8058 = vpop.f32.mrb[0].mxu0
    %v8059 = vadd.f32 %v7988, %v8058
    %8060 = vdwg.mxu0
    %8061 = vmatprep.subr.mxu0 %v3207
    %8062 = vmatpush1.msra.mxu0 %v3206
    %8063 = vmatprep.subr.mxu0 %v3209
    %8064 = vmatpush1.msra.mxu0 %v3208
    %8065 = vmatprep.subr.mxu0 %v3211
    %8066 = vmatpush1.msra.mxu0 %v3210
    %8067 = vmatprep.subr.mxu0 %v3213
    %8068 = vmatpush1.msra.mxu0 %v3212
    %8069 = vmatprep.subr.mxu0 %v3215
    %8070 = vmatpush1.msra.mxu0 %v3214
    %8071 = vmatprep.subr.mxu0 %v3217
    %8072 = vmatpush1.msra.mxu0 %v3216
    %8073 = vmatprep.subr.mxu0 %v3219
    %8074 = vmatpush1.msra.mxu0 %v3218
    %8075 = vmatprep.subr.mxu0 %v3221
    %8076 = vmatpush1.msra.mxu0 %v3220
    %8077 = vmatprep.subr.mxu0 %v3223
    %8078 = vmatpush1.msra.mxu0 %v3222
    %8079 = vmatprep.subr.mxu0 %v3225
    %8080 = vmatpush1.msra.mxu0 %v3224
    %8081 = vmatprep.subr.mxu0 %v3227
    %8082 = vmatpush1.msra.mxu0 %v3226
    %8083 = vmatprep.subr.mxu0 %v3229
    %8084 = vmatpush1.msra.mxu0 %v3228
    %8085 = vmatprep.subr.mxu0 %v3231
    %8086 = vmatpush1.msra.mxu0 %v3230
    %8087 = vmatprep.subr.mxu0 %v3233
    %8088 = vmatpush1.msra.mxu0 %v3232
    %8089 = vmatprep.subr.mxu0 %v3235
    %8090 = vmatpush1.msra.mxu0 %v3234
    %8091 = vmatprep.subr.mxu0 %v3237
    %8092 = vmatpush1.msra.mxu0 %v3236
    %8093 = vmatprep.subr.mxu0 %v3239
    %8094 = vmatpush1.msra.mxu0 %v3238
    %8095 = vmatprep.subr.mxu0 %v3241
    %8096 = vmatpush1.msra.mxu0 %v3240
    %8097 = vmatprep.subr.mxu0 %v3243
    %8098 = vmatpush1.msra.mxu0 %v3242
    %8099 = vmatprep.subr.mxu0 %v3245
    %8100 = vmatpush1.msra.mxu0 %v3244
    %8101 = vmatprep.subr.mxu0 %v3247
    %8102 = vmatpush1.msra.mxu0 %v3246
    %8103 = vmatprep.subr.mxu0 %v3249
    %8104 = vmatpush1.msra.mxu0 %v3248
    %8105 = vmatprep.subr.mxu0 %v3251
    %8106 = vmatpush1.msra.mxu0 %v3250
    %8107 = vmatprep.subr.mxu0 %v3253
    %8108 = vmatpush1.msra.mxu0 %v3252
    %8109 = vmatprep.subr.mxu0 %v3255
    %8110 = vmatpush1.msra.mxu0 %v3254
    %8111 = vmatprep.subr.mxu0 %v3257
    %8112 = vmatpush1.msra.mxu0 %v3256
    %8113 = vmatprep.subr.mxu0 %v3259
    %8114 = vmatpush1.msra.mxu0 %v3258
    %8115 = vmatprep.subr.mxu0 %v3261
    %8116 = vmatpush1.msra.mxu0 %v3260
    %8117 = vmatprep.subr.mxu0 %v3263
    %8118 = vmatpush1.msra.mxu0 %v3262
    %8119 = vmatprep.subr.mxu0 %v3265
    %8120 = vmatpush1.msra.mxu0 %v3264
    %8121 = vmatprep.subr.mxu0 %v3267
    %8122 = vmatpush1.msra.mxu0 %v3266
    %8123 = vmatprep.subr.mxu0 %v3269
    %8124 = vmatpush1.msra.mxu0 %v3268
    %8125 = vmatprep.mubr.f32.mxu0 %v4376
    %8126 = vmatmul.mubr.f32.gmra.mrb[0].mxu0 %v4374
    %v8127 = vpop.f32.mrb[0].mxu0
    %v8128 = vadd.f32 %v8057, %v8127
    %v8129 = vpop.f32.mrb[0].mxu0
    %v8130 = vadd.f32 %v8059, %v8129
    %8131 = vdwg.mxu0
    %8132 = vmatprep.subr.mxu0 %v3271
    %8133 = vmatpush1.msra.mxu0 %v3270
    %8134 = vmatprep.subr.mxu0 %v3273
    %8135 = vmatpush1.msra.mxu0 %v3272
    %8136 = vmatprep.subr.mxu0 %v3275
    %8137 = vmatpush1.msra.mxu0 %v3274
    %8138 = vmatprep.subr.mxu0 %v3277
    %8139 = vmatpush1.msra.mxu0 %v3276
    %8140 = vmatprep.subr.mxu0 %v3279
    %8141 = vmatpush1.msra.mxu0 %v3278
    %8142 = vmatprep.subr.mxu0 %v3281
    %8143 = vmatpush1.msra.mxu0 %v3280
    %8144 = vmatprep.subr.mxu0 %v3283
    %8145 = vmatpush1.msra.mxu0 %v3282
    %8146 = vmatprep.subr.mxu0 %v3285
    %8147 = vmatpush1.msra.mxu0 %v3284
    %8148 = vmatprep.subr.mxu0 %v3287
    %8149 = vmatpush1.msra.mxu0 %v3286
    %8150 = vmatprep.subr.mxu0 %v3289
    %8151 = vmatpush1.msra.mxu0 %v3288
    %8152 = vmatprep.subr.mxu0 %v3291
    %8153 = vmatpush1.msra.mxu0 %v3290
    %8154 = vmatprep.subr.mxu0 %v3293
    %8155 = vmatpush1.msra.mxu0 %v3292
    %8156 = vmatprep.subr.mxu0 %v3295
    %8157 = vmatpush1.msra.mxu0 %v3294
    %8158 = vmatprep.subr.mxu0 %v3297
    %8159 = vmatpush1.msra.mxu0 %v3296
    %8160 = vmatprep.subr.mxu0 %v3299
    %8161 = vmatpush1.msra.mxu0 %v3298
    %8162 = vmatprep.subr.mxu0 %v3301
    %8163 = vmatpush1.msra.mxu0 %v3300
    %8164 = vmatprep.subr.mxu0 %v3303
    %8165 = vmatpush1.msra.mxu0 %v3302
    %8166 = vmatprep.subr.mxu0 %v3305
    %8167 = vmatpush1.msra.mxu0 %v3304
    %8168 = vmatprep.subr.mxu0 %v3307
    %8169 = vmatpush1.msra.mxu0 %v3306
    %8170 = vmatprep.subr.mxu0 %v3309
    %8171 = vmatpush1.msra.mxu0 %v3308
    %8172 = vmatprep.subr.mxu0 %v3311
    %8173 = vmatpush1.msra.mxu0 %v3310
    %8174 = vmatprep.subr.mxu0 %v3313
    %8175 = vmatpush1.msra.mxu0 %v3312
    %8176 = vmatprep.subr.mxu0 %v3315
    %8177 = vmatpush1.msra.mxu0 %v3314
    %8178 = vmatprep.subr.mxu0 %v3317
    %8179 = vmatpush1.msra.mxu0 %v3316
    %8180 = vmatprep.subr.mxu0 %v3319
    %8181 = vmatpush1.msra.mxu0 %v3318
    %8182 = vmatprep.subr.mxu0 %v3321
    %8183 = vmatpush1.msra.mxu0 %v3320
    %8184 = vmatprep.subr.mxu0 %v3323
    %8185 = vmatpush1.msra.mxu0 %v3322
    %8186 = vmatprep.subr.mxu0 %v3325
    %8187 = vmatpush1.msra.mxu0 %v3324
    %8188 = vmatprep.subr.mxu0 %v3327
    %8189 = vmatpush1.msra.mxu0 %v3326
    %8190 = vmatprep.subr.mxu0 %v3329
    %8191 = vmatpush1.msra.mxu0 %v3328
    %8192 = vmatprep.subr.mxu0 %v3331
    %8193 = vmatpush1.msra.mxu0 %v3330
    %8194 = vmatprep.subr.mxu0 %v3333
    %8195 = vmatpush1.msra.mxu0 %v3332
    %8196 = vmatprep.mubr.f32.mxu0 %v4392
    %8197 = vmatmul.mubr.f32.gmra.mrb[0].mxu0 %v4384
    %v8198 = vpop.f32.mrb[0].mxu0
    %v8199 = vadd.f32 %v8128, %v8198
    %v8200 = vpop.f32.mrb[0].mxu0
    %v8201 = vadd.f32 %v8130, %v8200
    %8202 = vdwg.mxu0
    %8203 = vmatprep.subr.mxu0 %v3335
    %8204 = vmatpush1.msra.mxu0 %v3334
    %8205 = vmatprep.subr.mxu0 %v3337
    %8206 = vmatpush1.msra.mxu0 %v3336
    %8207 = vmatprep.subr.mxu0 %v3339
    %8208 = vmatpush1.msra.mxu0 %v3338
    %8209 = vmatprep.subr.mxu0 %v3341
    %8210 = vmatpush1.msra.mxu0 %v3340
    %8211 = vmatprep.subr.mxu0 %v3343
    %8212 = vmatpush1.msra.mxu0 %v3342
    %8213 = vmatprep.subr.mxu0 %v3345
    %8214 = vmatpush1.msra.mxu0 %v3344
    %8215 = vmatprep.subr.mxu0 %v3347
    %8216 = vmatpush1.msra.mxu0 %v3346
    %8217 = vmatprep.subr.mxu0 %v3349
    %8218 = vmatpush1.msra.mxu0 %v3348
    %8219 = vmatprep.subr.mxu0 %v3351
    %8220 = vmatpush1.msra.mxu0 %v3350
    %8221 = vmatprep.subr.mxu0 %v3353
    %8222 = vmatpush1.msra.mxu0 %v3352
    %8223 = vmatprep.subr.mxu0 %v3355
    %8224 = vmatpush1.msra.mxu0 %v3354
    %8225 = vmatprep.subr.mxu0 %v3357
    %8226 = vmatpush1.msra.mxu0 %v3356
    %8227 = vmatprep.subr.mxu0 %v3359
    %8228 = vmatpush1.msra.mxu0 %v3358
    %8229 = vmatprep.subr.mxu0 %v3361
    %8230 = vmatpush1.msra.mxu0 %v3360
    %8231 = vmatprep.subr.mxu0 %v3363
    %8232 = vmatpush1.msra.mxu0 %v3362
    %8233 = vmatprep.subr.mxu0 %v3365
    %8234 = vmatpush1.msra.mxu0 %v3364
    %8235 = vmatprep.subr.mxu0 %v3367
    %8236 = vmatpush1.msra.mxu0 %v3366
    %8237 = vmatprep.subr.mxu0 %v3369
    %8238 = vmatpush1.msra.mxu0 %v3368
    %8239 = vmatprep.subr.mxu0 %v3371
    %8240 = vmatpush1.msra.mxu0 %v3370
    %8241 = vmatprep.subr.mxu0 %v3373
    %8242 = vmatpush1.msra.mxu0 %v3372
    %8243 = vmatprep.subr.mxu0 %v3375
    %8244 = vmatpush1.msra.mxu0 %v3374
    %8245 = vmatprep.subr.mxu0 %v3377
    %8246 = vmatpush1.msra.mxu0 %v3376
    %8247 = vmatprep.subr.mxu0 %v3379
    %8248 = vmatpush1.msra.mxu0 %v3378
    %8249 = vmatprep.subr.mxu0 %v3381
    %8250 = vmatpush1.msra.mxu0 %v3380
    %8251 = vmatprep.subr.mxu0 %v3383
    %8252 = vmatpush1.msra.mxu0 %v3382
    %8253 = vmatprep.subr.mxu0 %v3385
    %8254 = vmatpush1.msra.mxu0 %v3384
    %8255 = vmatprep.subr.mxu0 %v3387
    %8256 = vmatpush1.msra.mxu0 %v3386
    %8257 = vmatprep.subr.mxu0 %v3389
    %8258 = vmatpush1.msra.mxu0 %v3388
    %8259 = vmatprep.subr.mxu0 %v3391
    %8260 = vmatpush1.msra.mxu0 %v3390
    %8261 = vmatprep.subr.mxu0 %v3393
    %8262 = vmatpush1.msra.mxu0 %v3392
    %8263 = vmatprep.subr.mxu0 %v3395
    %8264 = vmatpush1.msra.mxu0 %v3394
    %8265 = vmatprep.subr.mxu0 %v3397
    %8266 = vmatpush1.msra.mxu0 %v3396
    %8267 = vmatprep.mubr.f32.mxu0 %v4393
    %8268 = vmatmul.mubr.f32.gmra.mrb[0].mxu0 %v4391
    %v8269 = vpop.f32.mrb[0].mxu0
    %v8270 = vadd.f32 %v8199, %v8269
    %v8271 = vpop.f32.mrb[0].mxu0
    %v8272 = vadd.f32 %v8201, %v8271
    %8273 = vdwg.mxu0
    %8274 = vmatprep.subr.mxu0 %v3399
    %8275 = vmatpush1.msra.mxu0 %v3398
    %8276 = vmatprep.subr.mxu0 %v3401
    %8277 = vmatpush1.msra.mxu0 %v3400
    %8278 = vmatprep.subr.mxu0 %v3403
    %8279 = vmatpush1.msra.mxu0 %v3402
    %8280 = vmatprep.subr.mxu0 %v3405
    %8281 = vmatpush1.msra.mxu0 %v3404
    %8282 = vmatprep.subr.mxu0 %v3407
    %8283 = vmatpush1.msra.mxu0 %v3406
    %8284 = vmatprep.subr.mxu0 %v3409
    %8285 = vmatpush1.msra.mxu0 %v3408
    %8286 = vmatprep.subr.mxu0 %v3411
    %8287 = vmatpush1.msra.mxu0 %v3410
    %8288 = vmatprep.subr.mxu0 %v3413
    %8289 = vmatpush1.msra.mxu0 %v3412
    %8290 = vmatprep.subr.mxu0 %v3415
    %8291 = vmatpush1.msra.mxu0 %v3414
    %8292 = vmatprep.subr.mxu0 %v3417
    %8293 = vmatpush1.msra.mxu0 %v3416
    %8294 = vmatprep.subr.mxu0 %v3419
    %8295 = vmatpush1.msra.mxu0 %v3418
    %8296 = vmatprep.subr.mxu0 %v3421
    %8297 = vmatpush1.msra.mxu0 %v3420
    %8298 = vmatprep.subr.mxu0 %v3423
    %8299 = vmatpush1.msra.mxu0 %v3422
    %8300 = vmatprep.subr.mxu0 %v3425
    %8301 = vmatpush1.msra.mxu0 %v3424
    %8302 = vmatprep.subr.mxu0 %v3427
    %8303 = vmatpush1.msra.mxu0 %v3426
    %8304 = vmatprep.subr.mxu0 %v3429
    %8305 = vmatpush1.msra.mxu0 %v3428
    %8306 = vmatprep.subr.mxu0 %v3431
    %8307 = vmatpush1.msra.mxu0 %v3430
    %8308 = vmatprep.subr.mxu0 %v3433
    %8309 = vmatpush1.msra.mxu0 %v3432
    %8310 = vmatprep.subr.mxu0 %v3435
    %8311 = vmatpush1.msra.mxu0 %v3434
    %8312 = vmatprep.subr.mxu0 %v3437
    %8313 = vmatpush1.msra.mxu0 %v3436
    %8314 = vmatprep.subr.mxu0 %v3439
    %8315 = vmatpush1.msra.mxu0 %v3438
    %8316 = vmatprep.subr.mxu0 %v3441
    %8317 = vmatpush1.msra.mxu0 %v3440
    %8318 = vmatprep.subr.mxu0 %v3443
    %8319 = vmatpush1.msra.mxu0 %v3442
    %8320 = vmatprep.subr.mxu0 %v3445
    %8321 = vmatpush1.msra.mxu0 %v3444
    %8322 = vmatprep.subr.mxu0 %v3447
    %8323 = vmatpush1.msra.mxu0 %v3446
    %8324 = vmatprep.subr.mxu0 %v3449
    %8325 = vmatpush1.msra.mxu0 %v3448
    %8326 = vmatprep.subr.mxu0 %v3451
    %8327 = vmatpush1.msra.mxu0 %v3450
    %8328 = vmatprep.subr.mxu0 %v3453
    %8329 = vmatpush1.msra.mxu0 %v3452
    %8330 = vmatprep.subr.mxu0 %v3455
    %8331 = vmatpush1.msra.mxu0 %v3454
    %8332 = vmatprep.subr.mxu0 %v3457
    %8333 = vmatpush1.msra.mxu0 %v3456
    %8334 = vmatprep.subr.mxu0 %v3459
    %8335 = vmatpush1.msra.mxu0 %v3458
    %8336 = vmatprep.subr.mxu0 %v3461
    %8337 = vmatpush1.msra.mxu0 %v3460
    %8338 = vmatprep.mubr.f32.mxu0 %v4409
    %8339 = vmatmul.mubr.f32.gmra.mrb[0].mxu0 %v4401
    %v8340 = vpop.f32.mrb[0].mxu0
    %v8341 = vadd.f32 %v8270, %v8340
    %v8342 = vpop.f32.mrb[0].mxu0
    %v8343 = vadd.f32 %v8272, %v8342
    %8344 = vdwg.mxu0
    %8345 = vmatprep.subr.mxu0 %v3463
    %8346 = vmatpush1.msra.mxu0 %v3462
    %8347 = vmatprep.subr.mxu0 %v3465
    %8348 = vmatpush1.msra.mxu0 %v3464
    %8349 = vmatprep.subr.mxu0 %v3467
    %8350 = vmatpush1.msra.mxu0 %v3466
    %8351 = vmatprep.subr.mxu0 %v3469
    %8352 = vmatpush1.msra.mxu0 %v3468
    %8353 = vmatprep.subr.mxu0 %v3471
    %8354 = vmatpush1.msra.mxu0 %v3470
    %8355 = vmatprep.subr.mxu0 %v3473
    %8356 = vmatpush1.msra.mxu0 %v3472
    %8357 = vmatprep.subr.mxu0 %v3475
    %8358 = vmatpush1.msra.mxu0 %v3474
    %8359 = vmatprep.subr.mxu0 %v3477
    %8360 = vmatpush1.msra.mxu0 %v3476
    %8361 = vmatprep.subr.mxu0 %v3479
    %8362 = vmatpush1.msra.mxu0 %v3478
    %8363 = vmatprep.subr.mxu0 %v3481
    %8364 = vmatpush1.msra.mxu0 %v3480
    %8365 = vmatprep.subr.mxu0 %v3483
    %8366 = vmatpush1.msra.mxu0 %v3482
    %8367 = vmatprep.subr.mxu0 %v3485
    %8368 = vmatpush1.msra.mxu0 %v3484
    %8369 = vmatprep.subr.mxu0 %v3487
    %8370 = vmatpush1.msra.mxu0 %v3486
    %8371 = vmatprep.subr.mxu0 %v3489
    %8372 = vmatpush1.msra.mxu0 %v3488
    %8373 = vmatprep.subr.mxu0 %v3491
    %8374 = vmatpush1.msra.mxu0 %v3490
    %8375 = vmatprep.subr.mxu0 %v3493
    %8376 = vmatpush1.msra.mxu0 %v3492
    %8377 = vmatprep.subr.mxu0 %v3495
    %8378 = vmatpush1.msra.mxu0 %v3494
    %8379 = vmatprep.subr.mxu0 %v3497
    %8380 = vmatpush1.msra.mxu0 %v3496
    %8381 = vmatprep.subr.mxu0 %v3499
    %8382 = vmatpush1.msra.mxu0 %v3498
    %8383 = vmatprep.subr.mxu0 %v3501
    %8384 = vmatpush1.msra.mxu0 %v3500
    %8385 = vmatprep.subr.mxu0 %v3503
    %8386 = vmatpush1.msra.mxu0 %v3502
    %8387 = vmatprep.subr.mxu0 %v3505
    %8388 = vmatpush1.msra.mxu0 %v3504
    %8389 = vmatprep.subr.mxu0 %v3507
    %8390 = vmatpush1.msra.mxu0 %v3506
    %8391 = vmatprep.subr.mxu0 %v3509
    %8392 = vmatpush1.msra.mxu0 %v3508
    %8393 = vmatprep.subr.mxu0 %v3511
    %8394 = vmatpush1.msra.mxu0 %v3510
    %8395 = vmatprep.subr.mxu0 %v3513
    %8396 = vmatpush1.msra.mxu0 %v3512
    %8397 = vmatprep.subr.mxu0 %v3515
    %8398 = vmatpush1.msra.mxu0 %v3514
    %8399 = vmatprep.subr.mxu0 %v3517
    %8400 = vmatpush1.msra.mxu0 %v3516
    %8401 = vmatprep.subr.mxu0 %v3519
    %8402 = vmatpush1.msra.mxu0 %v3518
    %8403 = vmatprep.subr.mxu0 %v3521
    %8404 = vmatpush1.msra.mxu0 %v3520
    %8405 = vmatprep.subr.mxu0 %v3523
    %8406 = vmatpush1.msra.mxu0 %v3522
    %8407 = vmatprep.subr.mxu0 %v3525
    %8408 = vmatpush1.msra.mxu0 %v3524
    %8409 = vmatprep.mubr.f32.mxu0 %v4410
    %8410 = vmatmul.mubr.f32.gmra.mrb[0].mxu0 %v4408
    %v8411 = vpop.f32.mrb[0].mxu0
    %v8412 = vadd.f32 %v8341, %v8411
    %v8413 = vpop.f32.mrb[0].mxu0
    %v8414 = vadd.f32 %v8343, %v8413
    %8415 = vdwg.mxu0
    %8416 = vmatprep.subr.mxu0 %v3527
    %8417 = vmatpush1.msra.mxu0 %v3526
    %8418 = vmatprep.subr.mxu0 %v3529
    %8419 = vmatpush1.msra.mxu0 %v3528
    %8420 = vmatprep.subr.mxu0 %v3531
    %8421 = vmatpush1.msra.mxu0 %v3530
    %8422 = vmatprep.subr.mxu0 %v3533
    %8423 = vmatpush1.msra.mxu0 %v3532
    %8424 = vmatprep.subr.mxu0 %v3535
    %8425 = vmatpush1.msra.mxu0 %v3534
    %8426 = vmatprep.subr.mxu0 %v3537
    %8427 = vmatpush1.msra.mxu0 %v3536
    %8428 = vmatprep.subr.mxu0 %v3539
    %8429 = vmatpush1.msra.mxu0 %v3538
    %8430 = vmatprep.subr.mxu0 %v3541
    %8431 = vmatpush1.msra.mxu0 %v3540
    %8432 = vmatprep.subr.mxu0 %v3543
    %8433 = vmatpush1.msra.mxu0 %v3542
    %8434 = vmatprep.subr.mxu0 %v3545
    %8435 = vmatpush1.msra.mxu0 %v3544
    %8436 = vmatprep.subr.mxu0 %v3547
    %8437 = vmatpush1.msra.mxu0 %v3546
    %8438 = vmatprep.subr.mxu0 %v3549
    %8439 = vmatpush1.msra.mxu0 %v3548
    %8440 = vmatprep.subr.mxu0 %v3551
    %8441 = vmatpush1.msra.mxu0 %v3550
    %8442 = vmatprep.subr.mxu0 %v3553
    %8443 = vmatpush1.msra.mxu0 %v3552
    %8444 = vmatprep.subr.mxu0 %v3555
    %8445 = vmatpush1.msra.mxu0 %v3554
    %8446 = vmatprep.subr.mxu0 %v3557
    %8447 = vmatpush1.msra.mxu0 %v3556
    %8448 = vmatprep.subr.mxu0 %v3559
    %8449 = vmatpush1.msra.mxu0 %v3558
    %8450 = vmatprep.subr.mxu0 %v3561
    %8451 = vmatpush1.msra.mxu0 %v3560
    %8452 = vmatprep.subr.mxu0 %v3563
    %8453 = vmatpush1.msra.mxu0 %v3562
    %8454 = vmatprep.subr.mxu0 %v3565
    %8455 = vmatpush1.msra.mxu0 %v3564
    %8456 = vmatprep.subr.mxu0 %v3567
    %8457 = vmatpush1.msra.mxu0 %v3566
    %8458 = vmatprep.subr.mxu0 %v3569
    %8459 = vmatpush1.msra.mxu0 %v3568
    %8460 = vmatprep.subr.mxu0 %v3571
    %8461 = vmatpush1.msra.mxu0 %v3570
    %8462 = vmatprep.subr.mxu0 %v3573
    %8463 = vmatpush1.msra.mxu0 %v3572
    %8464 = vmatprep.subr.mxu0 %v3575
    %8465 = vmatpush1.msra.mxu0 %v3574
    %8466 = vmatprep.subr.mxu0 %v3577
    %8467 = vmatpush1.msra.mxu0 %v3576
    %8468 = vmatprep.subr.mxu0 %v3579
    %8469 = vmatpush1.msra.mxu0 %v3578
    %8470 = vmatprep.subr.mxu0 %v3581
    %8471 = vmatpush1.msra.mxu0 %v3580
    %8472 = vmatprep.subr.mxu0 %v3583
    %8473 = vmatpush1.msra.mxu0 %v3582
    %8474 = vmatprep.subr.mxu0 %v3585
    %8475 = vmatpush1.msra.mxu0 %v3584
    %8476 = vmatprep.subr.mxu0 %v3587
    %8477 = vmatpush1.msra.mxu0 %v3586
    %8478 = vmatprep.subr.mxu0 %v3589
    %8479 = vmatpush1.msra.mxu0 %v3588
    %8480 = vmatprep.mubr.f32.mxu0 %v4426
    %8481 = vmatmul.mubr.f32.gmra.mrb[0].mxu0 %v4418
    %v8482 = vpop.f32.mrb[0].mxu0
    %v8483 = vadd.f32 %v8412, %v8482
    %v8484 = vpop.f32.mrb[0].mxu0
    %v8485 = vadd.f32 %v8414, %v8484
    %8486 = vdwg.mxu0
    %8487 = vmatprep.subr.mxu0 %v3591
    %8488 = vmatpush1.msra.mxu0 %v3590
    %8489 = vmatprep.subr.mxu0 %v3593
    %8490 = vmatpush1.msra.mxu0 %v3592
    %8491 = vmatprep.subr.mxu0 %v3595
    %8492 = vmatpush1.msra.mxu0 %v3594
    %8493 = vmatprep.subr.mxu0 %v3597
    %8494 = vmatpush1.msra.mxu0 %v3596
    %8495 = vmatprep.subr.mxu0 %v3599
    %8496 = vmatpush1.msra.mxu0 %v3598
    %8497 = vmatprep.subr.mxu0 %v3601
    %8498 = vmatpush1.msra.mxu0 %v3600
    %8499 = vmatprep.subr.mxu0 %v3603
    %8500 = vmatpush1.msra.mxu0 %v3602
    %8501 = vmatprep.subr.mxu0 %v3605
    %8502 = vmatpush1.msra.mxu0 %v3604
    %8503 = vmatprep.subr.mxu0 %v3607
    %8504 = vmatpush1.msra.mxu0 %v3606
    %8505 = vmatprep.subr.mxu0 %v3609
    %8506 = vmatpush1.msra.mxu0 %v3608
    %8507 = vmatprep.subr.mxu0 %v3611
    %8508 = vmatpush1.msra.mxu0 %v3610
    %8509 = vmatprep.subr.mxu0 %v3613
    %8510 = vmatpush1.msra.mxu0 %v3612
    %8511 = vmatprep.subr.mxu0 %v3615
    %8512 = vmatpush1.msra.mxu0 %v3614
    %8513 = vmatprep.subr.mxu0 %v3617
    %8514 = vmatpush1.msra.mxu0 %v3616
    %8515 = vmatprep.subr.mxu0 %v3619
    %8516 = vmatpush1.msra.mxu0 %v3618
    %8517 = vmatprep.subr.mxu0 %v3621
    %8518 = vmatpush1.msra.mxu0 %v3620
    %8519 = vmatprep.subr.mxu0 %v3623
    %8520 = vmatpush1.msra.mxu0 %v3622
    %8521 = vmatprep.subr.mxu0 %v3625
    %8522 = vmatpush1.msra.mxu0 %v3624
    %8523 = vmatprep.subr.mxu0 %v3627
    %8524 = vmatpush1.msra.mxu0 %v3626
    %8525 = vmatprep.subr.mxu0 %v3629
    %8526 = vmatpush1.msra.mxu0 %v3628
    %8527 = vmatprep.subr.mxu0 %v3631
    %8528 = vmatpush1.msra.mxu0 %v3630
    %8529 = vmatprep.subr.mxu0 %v3633
    %8530 = vmatpush1.msra.mxu0 %v3632
    %8531 = vmatprep.subr.mxu0 %v3635
    %8532 = vmatpush1.msra.mxu0 %v3634
    %8533 = vmatprep.subr.mxu0 %v3637
    %8534 = vmatpush1.msra.mxu0 %v3636
    %8535 = vmatprep.subr.mxu0 %v3639
    %8536 = vmatpush1.msra.mxu0 %v3638
    %8537 = vmatprep.subr.mxu0 %v3641
    %8538 = vmatpush1.msra.mxu0 %v3640
    %8539 = vmatprep.subr.mxu0 %v3643
    %8540 = vmatpush1.msra.mxu0 %v3642
    %8541 = vmatprep.subr.mxu0 %v3645
    %8542 = vmatpush1.msra.mxu0 %v3644
    %8543 = vmatprep.subr.mxu0 %v3647
    %8544 = vmatpush1.msra.mxu0 %v3646
    %8545 = vmatprep.subr.mxu0 %v3649
    %8546 = vmatpush1.msra.mxu0 %v3648
    %8547 = vmatprep.subr.mxu0 %v3651
    %8548 = vmatpush1.msra.mxu0 %v3650
    %8549 = vmatprep.subr.mxu0 %v3653
    %8550 = vmatpush1.msra.mxu0 %v3652
    %8551 = vmatprep.mubr.f32.mxu0 %v4427
    %8552 = vmatmul.mubr.f32.gmra.mrb[0].mxu0 %v4425
    %v8553 = vpop.f32.mrb[0].mxu0
    %v8554 = vadd.f32 %v8483, %v8553
    %v8555 = vpop.f32.mrb[0].mxu0
    %v8556 = vadd.f32 %v8485, %v8555
    %8557 = vdwg.mxu0
    %8558 = vmatprep.subr.mxu0 %v3655
    %8559 = vmatpush1.msra.mxu0 %v3654
    %8560 = vmatprep.subr.mxu0 %v3657
    %8561 = vmatpush1.msra.mxu0 %v3656
    %8562 = vmatprep.subr.mxu0 %v3659
    %8563 = vmatpush1.msra.mxu0 %v3658
    %8564 = vmatprep.subr.mxu0 %v3661
    %8565 = vmatpush1.msra.mxu0 %v3660
    %8566 = vmatprep.subr.mxu0 %v3663
    %8567 = vmatpush1.msra.mxu0 %v3662
    %8568 = vmatprep.subr.mxu0 %v3665
    %8569 = vmatpush1.msra.mxu0 %v3664
    %8570 = vmatprep.subr.mxu0 %v3667
    %8571 = vmatpush1.msra.mxu0 %v3666
    %8572 = vmatprep.subr.mxu0 %v3669
    %8573 = vmatpush1.msra.mxu0 %v3668
    %8574 = vmatprep.subr.mxu0 %v3671
    %8575 = vmatpush1.msra.mxu0 %v3670
    %8576 = vmatprep.subr.mxu0 %v3673
    %8577 = vmatpush1.msra.mxu0 %v3672
    %8578 = vmatprep.subr.mxu0 %v3675
    %8579 = vmatpush1.msra.mxu0 %v3674
    %8580 = vmatprep.subr.mxu0 %v3677
    %8581 = vmatpush1.msra.mxu0 %v3676
    %8582 = vmatprep.subr.mxu0 %v3679
    %8583 = vmatpush1.msra.mxu0 %v3678
    %8584 = vmatprep.subr.mxu0 %v3681
    %8585 = vmatpush1.msra.mxu0 %v3680
    %8586 = vmatprep.subr.mxu0 %v3683
    %8587 = vmatpush1.msra.mxu0 %v3682
    %8588 = vmatprep.subr.mxu0 %v3685
    %8589 = vmatpush1.msra.mxu0 %v3684
    %8590 = vmatprep.subr.mxu0 %v3687
    %8591 = vmatpush1.msra.mxu0 %v3686
    %8592 = vmatprep.subr.mxu0 %v3689
    %8593 = vmatpush1.msra.mxu0 %v3688
    %8594 = vmatprep.subr.mxu0 %v3691
    %8595 = vmatpush1.msra.mxu0 %v3690
    %8596 = vmatprep.subr.mxu0 %v3693
    %8597 = vmatpush1.msra.mxu0 %v3692
    %8598 = vmatprep.subr.mxu0 %v3695
    %8599 = vmatpush1.msra.mxu0 %v3694
    %8600 = vmatprep.subr.mxu0 %v3697
    %8601 = vmatpush1.msra.mxu0 %v3696
    %8602 = vmatprep.subr.mxu0 %v3699
    %8603 = vmatpush1.msra.mxu0 %v3698
    %8604 = vmatprep.subr.mxu0 %v3701
    %8605 = vmatpush1.msra.mxu0 %v3700
    %8606 = vmatprep.subr.mxu0 %v3703
    %8607 = vmatpush1.msra.mxu0 %v3702
    %8608 = vmatprep.subr.mxu0 %v3705
    %8609 = vmatpush1.msra.mxu0 %v3704
    %8610 = vmatprep.subr.mxu0 %v3707
    %8611 = vmatpush1.msra.mxu0 %v3706
    %8612 = vmatprep.subr.mxu0 %v3709
    %8613 = vmatpush1.msra.mxu0 %v3708
    %8614 = vmatprep.subr.mxu0 %v3711
    %8615 = vmatpush1.msra.mxu0 %v3710
    %8616 = vmatprep.subr.mxu0 %v3713
    %8617 = vmatpush1.msra.mxu0 %v3712
    %8618 = vmatprep.subr.mxu0 %v3715
    %8619 = vmatpush1.msra.mxu0 %v3714
    %8620 = vmatprep.subr.mxu0 %v3717
    %8621 = vmatpush1.msra.mxu0 %v3716
    %8622 = vmatprep.mubr.f32.mxu0 %v4443
    %8623 = vmatmul.mubr.f32.gmra.mrb[0].mxu0 %v4435
    %v8624 = vpop.f32.mrb[0].mxu0
    %v8625 = vadd.f32 %v8554, %v8624
    %v8626 = vpop.f32.mrb[0].mxu0
    %v8627 = vadd.f32 %v8556, %v8626
    %8628 = vdwg.mxu0
    %8629 = vmatprep.subr.mxu0 %v3719
    %8630 = vmatpush1.msra.mxu0 %v3718
    %8631 = vmatprep.subr.mxu0 %v3721
    %8632 = vmatpush1.msra.mxu0 %v3720
    %8633 = vmatprep.subr.mxu0 %v3723
    %8634 = vmatpush1.msra.mxu0 %v3722
    %8635 = vmatprep.subr.mxu0 %v3725
    %8636 = vmatpush1.msra.mxu0 %v3724
    %8637 = vmatprep.subr.mxu0 %v3727
    %8638 = vmatpush1.msra.mxu0 %v3726
    %8639 = vmatprep.subr.mxu0 %v3729
    %8640 = vmatpush1.msra.mxu0 %v3728
    %8641 = vmatprep.subr.mxu0 %v3731
    %8642 = vmatpush1.msra.mxu0 %v3730
    %8643 = vmatprep.subr.mxu0 %v3733
    %8644 = vmatpush1.msra.mxu0 %v3732
    %8645 = vmatprep.subr.mxu0 %v3735
    %8646 = vmatpush1.msra.mxu0 %v3734
    %8647 = vmatprep.subr.mxu0 %v3737
    %8648 = vmatpush1.msra.mxu0 %v3736
    %8649 = vmatprep.subr.mxu0 %v3739
    %8650 = vmatpush1.msra.mxu0 %v3738
    %8651 = vmatprep.subr.mxu0 %v3741
    %8652 = vmatpush1.msra.mxu0 %v3740
    %8653 = vmatprep.subr.mxu0 %v3743
    %8654 = vmatpush1.msra.mxu0 %v3742
    %8655 = vmatprep.subr.mxu0 %v3745
    %8656 = vmatpush1.msra.mxu0 %v3744
    %8657 = vmatprep.subr.mxu0 %v3747
    %8658 = vmatpush1.msra.mxu0 %v3746
    %8659 = vmatprep.subr.mxu0 %v3749
    %8660 = vmatpush1.msra.mxu0 %v3748
    %8661 = vmatprep.subr.mxu0 %v3751
    %8662 = vmatpush1.msra.mxu0 %v3750
    %8663 = vmatprep.subr.mxu0 %v3753
    %8664 = vmatpush1.msra.mxu0 %v3752
    %8665 = vmatprep.subr.mxu0 %v3755
    %8666 = vmatpush1.msra.mxu0 %v3754
    %8667 = vmatprep.subr.mxu0 %v3757
    %8668 = vmatpush1.msra.mxu0 %v3756
    %8669 = vmatprep.subr.mxu0 %v3759
    %8670 = vmatpush1.msra.mxu0 %v3758
    %8671 = vmatprep.subr.mxu0 %v3761
    %8672 = vmatpush1.msra.mxu0 %v3760
    %8673 = vmatprep.subr.mxu0 %v3763
    %8674 = vmatpush1.msra.mxu0 %v3762
    %8675 = vmatprep.subr.mxu0 %v3765
    %8676 = vmatpush1.msra.mxu0 %v3764
    %8677 = vmatprep.subr.mxu0 %v3767
    %8678 = vmatpush1.msra.mxu0 %v3766
    %8679 = vmatprep.subr.mxu0 %v3769
    %8680 = vmatpush1.msra.mxu0 %v3768
    %8681 = vmatprep.subr.mxu0 %v3771
    %8682 = vmatpush1.msra.mxu0 %v3770
    %8683 = vmatprep.subr.mxu0 %v3773
    %8684 = vmatpush1.msra.mxu0 %v3772
    %8685 = vmatprep.subr.mxu0 %v3775
    %8686 = vmatpush1.msra.mxu0 %v3774
    %8687 = vmatprep.subr.mxu0 %v3777
    %8688 = vmatpush1.msra.mxu0 %v3776
    %8689 = vmatprep.subr.mxu0 %v3779
    %8690 = vmatpush1.msra.mxu0 %v3778
    %8691 = vmatprep.subr.mxu0 %v3781
    %8692 = vmatpush1.msra.mxu0 %v3780
    %8693 = vmatprep.mubr.f32.mxu0 %v4444
    %8694 = vmatmul.mubr.f32.gmra.mrb[0].mxu0 %v4442
    %v8695 = vpop.f32.mrb[0].mxu0
    %v8696 = vadd.f32 %v8625, %v8695
    %v8697 = vpop.f32.mrb[0].mxu0
    %v8698 = vadd.f32 %v8627, %v8697
    %8699 = vdwg.mxu0
    %8700 = vmatprep.subr.mxu0 %v3783
    %8701 = vmatpush1.msra.mxu0 %v3782
    %8702 = vmatprep.subr.mxu0 %v3785
    %8703 = vmatpush1.msra.mxu0 %v3784
    %8704 = vmatprep.subr.mxu0 %v3787
    %8705 = vmatpush1.msra.mxu0 %v3786
    %8706 = vmatprep.subr.mxu0 %v3789
    %8707 = vmatpush1.msra.mxu0 %v3788
    %8708 = vmatprep.subr.mxu0 %v3791
    %8709 = vmatpush1.msra.mxu0 %v3790
    %8710 = vmatprep.subr.mxu0 %v3793
    %8711 = vmatpush1.msra.mxu0 %v3792
    %8712 = vmatprep.subr.mxu0 %v3795
    %8713 = vmatpush1.msra.mxu0 %v3794
    %8714 = vmatprep.subr.mxu0 %v3797
    %8715 = vmatpush1.msra.mxu0 %v3796
    %8716 = vmatprep.subr.mxu0 %v3799
    %8717 = vmatpush1.msra.mxu0 %v3798
    %8718 = vmatprep.subr.mxu0 %v3801
    %8719 = vmatpush1.msra.mxu0 %v3800
    %8720 = vmatprep.subr.mxu0 %v3803
    %8721 = vmatpush1.msra.mxu0 %v3802
    %8722 = vmatprep.subr.mxu0 %v3805
    %8723 = vmatpush1.msra.mxu0 %v3804
    %8724 = vmatprep.subr.mxu0 %v3807
    %8725 = vmatpush1.msra.mxu0 %v3806
    %8726 = vmatprep.subr.mxu0 %v3809
    %8727 = vmatpush1.msra.mxu0 %v3808
    %8728 = vmatprep.subr.mxu0 %v3811
    %8729 = vmatpush1.msra.mxu0 %v3810
    %8730 = vmatprep.subr.mxu0 %v3813
    %8731 = vmatpush1.msra.mxu0 %v3812
    %8732 = vmatprep.subr.mxu0 %v3815
    %8733 = vmatpush1.msra.mxu0 %v3814
    %8734 = vmatprep.subr.mxu0 %v3817
    %8735 = vmatpush1.msra.mxu0 %v3816
    %8736 = vmatprep.subr.mxu0 %v3819
    %8737 = vmatpush1.msra.mxu0 %v3818
    %8738 = vmatprep.subr.mxu0 %v3821
    %8739 = vmatpush1.msra.mxu0 %v3820
    %8740 = vmatprep.subr.mxu0 %v3823
    %8741 = vmatpush1.msra.mxu0 %v3822
    %8742 = vmatprep.subr.mxu0 %v3825
    %8743 = vmatpush1.msra.mxu0 %v3824
    %8744 = vmatprep.subr.mxu0 %v3827
    %8745 = vmatpush1.msra.mxu0 %v3826
    %8746 = vmatprep.subr.mxu0 %v3829
    %8747 = vmatpush1.msra.mxu0 %v3828
    %8748 = vmatprep.subr.mxu0 %v3831
    %8749 = vmatpush1.msra.mxu0 %v3830
    %8750 = vmatprep.subr.mxu0 %v3833
    %8751 = vmatpush1.msra.mxu0 %v3832
    %8752 = vmatprep.subr.mxu0 %v3835
    %8753 = vmatpush1.msra.mxu0 %v3834
    %8754 = vmatprep.subr.mxu0 %v3837
    %8755 = vmatpush1.msra.mxu0 %v3836
    %8756 = vmatprep.subr.mxu0 %v3839
    %8757 = vmatpush1.msra.mxu0 %v3838
    %8758 = vmatprep.subr.mxu0 %v3841
    %8759 = vmatpush1.msra.mxu0 %v3840
    %8760 = vmatprep.subr.mxu0 %v3843
    %8761 = vmatpush1.msra.mxu0 %v3842
    %8762 = vmatprep.subr.mxu0 %v3845
    %8763 = vmatpush1.msra.mxu0 %v3844
    %8764 = vmatprep.mubr.f32.mxu0 %v4460
    %8765 = vmatmul.mubr.f32.gmra.mrb[0].mxu0 %v4452
    %v8766 = vpop.f32.mrb[0].mxu0
    %v8767 = vadd.f32 %v8696, %v8766
    %v8768 = vpop.f32.mrb[0].mxu0
    %v8769 = vadd.f32 %v8698, %v8768
    %8770 = vdwg.mxu0
    %8771 = vmatprep.subr.mxu0 %v3847
    %8772 = vmatpush1.msra.mxu0 %v3846
    %8773 = vmatprep.subr.mxu0 %v3849
    %8774 = vmatpush1.msra.mxu0 %v3848
    %8775 = vmatprep.subr.mxu0 %v3851
    %8776 = vmatpush1.msra.mxu0 %v3850
    %8777 = vmatprep.subr.mxu0 %v3853
    %8778 = vmatpush1.msra.mxu0 %v3852
    %8779 = vmatprep.subr.mxu0 %v3855
    %8780 = vmatpush1.msra.mxu0 %v3854
    %8781 = vmatprep.subr.mxu0 %v3857
    %8782 = vmatpush1.msra.mxu0 %v3856
    %8783 = vmatprep.subr.mxu0 %v3859
    %8784 = vmatpush1.msra.mxu0 %v3858
    %8785 = vmatprep.subr.mxu0 %v3861
    %8786 = vmatpush1.msra.mxu0 %v3860
    %8787 = vmatprep.subr.mxu0 %v3863
    %8788 = vmatpush1.msra.mxu0 %v3862
    %8789 = vmatprep.subr.mxu0 %v3865
    %8790 = vmatpush1.msra.mxu0 %v3864
    %8791 = vmatprep.subr.mxu0 %v3867
    %8792 = vmatpush1.msra.mxu0 %v3866
    %8793 = vmatprep.subr.mxu0 %v3869
    %8794 = vmatpush1.msra.mxu0 %v3868
    %8795 = vmatprep.subr.mxu0 %v3871
    %8796 = vmatpush1.msra.mxu0 %v3870
    %8797 = vmatprep.subr.mxu0 %v3873
    %8798 = vmatpush1.msra.mxu0 %v3872
    %8799 = vmatprep.subr.mxu0 %v3875
    %8800 = vmatpush1.msra.mxu0 %v3874
    %8801 = vmatprep.subr.mxu0 %v3877
    %8802 = vmatpush1.msra.mxu0 %v3876
    %8803 = vmatprep.subr.mxu0 %v3879
    %8804 = vmatpush1.msra.mxu0 %v3878
    %8805 = vmatprep.subr.mxu0 %v3881
    %8806 = vmatpush1.msra.mxu0 %v3880
    %8807 = vmatprep.subr.mxu0 %v3883
    %8808 = vmatpush1.msra.mxu0 %v3882
    %8809 = vmatprep.subr.mxu0 %v3885
    %8810 = vmatpush1.msra.mxu0 %v3884
    %8811 = vmatprep.subr.mxu0 %v3887
    %8812 = vmatpush1.msra.mxu0 %v3886
    %8813 = vmatprep.subr.mxu0 %v3889
    %8814 = vmatpush1.msra.mxu0 %v3888
    %8815 = vmatprep.subr.mxu0 %v3891
    %8816 = vmatpush1.msra.mxu0 %v3890
    %8817 = vmatprep.subr.mxu0 %v3893
    %8818 = vmatpush1.msra.mxu0 %v3892
    %8819 = vmatprep.subr.mxu0 %v3895
    %8820 = vmatpush1.msra.mxu0 %v3894
    %8821 = vmatprep.subr.mxu0 %v3897
    %8822 = vmatpush1.msra.mxu0 %v3896
    %8823 = vmatprep.subr.mxu0 %v3899
    %8824 = vmatpush1.msra.mxu0 %v3898
    %8825 = vmatprep.subr.mxu0 %v3901
    %8826 = vmatpush1.msra.mxu0 %v3900
    %8827 = vmatprep.subr.mxu0 %v3903
    %8828 = vmatpush1.msra.mxu0 %v3902
    %8829 = vmatprep.subr.mxu0 %v3905
    %8830 = vmatpush1.msra.mxu0 %v3904
    %8831 = vmatprep.subr.mxu0 %v3907
    %8832 = vmatpush1.msra.mxu0 %v3906
    %8833 = vmatprep.subr.mxu0 %v3909
    %8834 = vmatpush1.msra.mxu0 %v3908
    %8835 = vmatprep.mubr.f32.mxu0 %v4461
    %8836 = vmatmul.mubr.f32.gmra.mrb[0].mxu0 %v4459
    %v8837 = vpop.f32.mrb[0].mxu0
    %v8838 = vadd.f32 %v8767, %v8837
    %v8839 = vpop.f32.mrb[0].mxu0
    %v8840 = vadd.f32 %v8769, %v8839
    %8841 = vdwg.mxu0
    %vm8842 = vcmask 1041408
    %v8843 = vsel %vm8842, %v8838, -inf
    %8844 = vmax.xlane.f32.xlu0 %v8843
    %v8845 = vpop.xlane.xlu0 %8844
    %v8846 = vsub.f32 %v8838, %v8845
    %v8847 = vmul.f32 %v8846, 1.442695
    %v8848 = vpow.pop %v8847
    %v8849 = vsel %vm8842, %v8848, 0.0
    %8850 = vadd.xlane.f32.xlu0 %v8849
    %v8851 = vpop.xlane.xlu0 %8850
    %v8852 = vlog2.pop %v8851
    %v8853 = vmul.f32 %v8852, 0.6931472
    %v8854 = vsub.f32 %v8846, %v8853
    %8855 = vst [vmem:[%s3] sm:$0x3] %v8854
    %v8856 = vsel %vm8842, %v8840, -inf
    %8857 = vmax.xlane.f32.xlu0 %v8856
    %v8858 = vpop.xlane.xlu0 %8857
    %v8859 = vsub.f32 %v8840, %v8858
    %v8860 = vmul.f32 %v8859, 1.442695
    %v8861 = vpow.pop %v8860
    %v8862 = vsel %vm8842, %v8861, 0.0
    %8863 = vadd.xlane.f32.xlu0 %v8862
    %v8864 = vpop.xlane.xlu0 %8863
    %v8865 = vlog2.pop %v8864
    %v8866 = vmul.f32 %v8865, 0.6931472
    %v8867 = vsub.f32 %v8859, %v8866
    %8868 = vst [vmem:[%s3 + $0x2] sm:$0x3] %v8867
    // Predicated region
    $region22: #{multitask_forward.1} parent=1 // pred_check
      _
    $region23: #{multitask_forward.1} parent=1 // pred_check_branch
      %8870 = sbr.rel (0) target = $region25
    $region24: #{multitask_forward.1} parent=1 // pred_region
      _
    $region25: #{multitask_forward.1} parent=1 // pred_fallthru
      _
    // Predicated region
    $region26: #{multitask_forward.1} parent=1 // pred_check
      _
    $region27: #{multitask_forward.1} parent=1 // pred_check_branch
      %8872 = sbr.rel (0) target = $region29
    $region28: #{multitask_forward.1} parent=1 // pred_region
      _
    $region29: #{multitask_forward.1} parent=1 // pred_fallthru
      _
    %8873 = vsyncpa [#allocation3], 1
    %8874 = vsyncpa [#allocation5], 1

</llo_original>
